<compile_context>
chip_gen: v7x
topology: tpu7x:2x2x1
jax: 0.10.0
libtpu: 0.0.40
codegen_flags: <defaults>
</compile_context>

<pallas_src>
import numpy as np
import jax
import jax.numpy as jnp
from jax.experimental import pallas as pl
from jax.experimental.pallas import tpu as pltpu

NUM_CLASSES = 10
BATCH = 2
HW = 28           # input spatial size (must be 28 to match the 7*7*32 fc)
C1, C2 = 16, 32   # conv channel counts
K = 5             # conv kernel size
EPS = 1e-5        # BatchNorm eps (PyTorch default)

# GEMM geometry:
#  conv1: (B*32, 5*32)   @ (5*32, 28*16)  -> rows = (b, out-row), lanes = (col, ch)
#  conv2: (B*16, 5*288)  @ (5*288, 14*32)
#  fc   : (B, 1568)      @ (1568, 10)
L1_LANES = 28 * C1            # 448
L2_LANES = 14 * C2            # 448
P2_LANES = 18 * C1            # 288 = padded width (2+14+2) * C1


def convnet_kernel(x_ref, t1_ref, b1_ref, t2_ref, b2_ref, fcw_ref, fcb_ref,
                   out_ref, xpad_ref, s1_ref, p2_ref, s2_ref):
    f32 = jnp.float32

    # ---------------- layer 1: Conv2d(1,16,5,pad=2) + BN + ReLU (one GEMM) ----------------
    xpad_ref[...] = jnp.zeros(xpad_ref.shape, f32)          # (B, 36, 32) zero-padded input
    xpad_ref[:, 2:2 + HW, 2:2 + HW] = x_ref[...]

    # lane-concat 5 kernel-row shifted slices; width taps live inside t1 (Toeplitz).
    taps1 = [
        jnp.concatenate([xpad_ref[b, kh:kh + 32, :] for b in range(BATCH)], axis=0)
        for kh in range(K)
    ]                                                        # 5 x (B*32, 32)
    xcat1 = jnp.concatenate(taps1, axis=-1)                  # (B*32, 160)
    a1 = jnp.dot(xcat1, t1_ref[...], preferred_element_type=f32) + b1_ref[...]
    a1 = jnp.maximum(a1, 0.0)                                # (B*32, 448); rows i<28 valid
    for b in range(BATCH):
        s1_ref[b] = a1[b * 32:(b + 1) * 32, :]

    # ---------------- maxpool1 (2x2, stride 2) -> zero-padded layer-2 input ----------------
    p2_ref[...] = jnp.zeros(p2_ref.shape, f32)               # (B, 20, 288)
    for i in range(14):
        r = jnp.maximum(s1_ref[:, 2 * i, :], s1_ref[:, 2 * i + 1, :])          # pool over H
        r = jnp.concatenate(
            [jnp.maximum(r[:, (2 * j) * C1:(2 * j + 1) * C1],
                         r[:, (2 * j + 1) * C1:(2 * j + 2) * C1])
             for j in range(14)], axis=-1)                                      # pool over W
        p2_ref[:, 2 + i, 2 * C1:(2 + 14) * C1] = r           # (B, 224) into padded buffer

    # ---------------- layer 2: Conv2d(16,32,5,pad=2) + BN + ReLU (one GEMM) ----------------
    taps2 = [
        jnp.concatenate([p2_ref[b, kh:kh + 16, :] for b in range(BATCH)], axis=0)
        for kh in range(K)
    ]                                                        # 5 x (B*16, 288)
    xcat2 = jnp.concatenate(taps2, axis=-1)                  # (B*16, 1440)
    a2 = jnp.dot(xcat2, t2_ref[...], preferred_element_type=f32) + b2_ref[...]
    a2 = jnp.maximum(a2, 0.0)                                # (B*16, 448); rows i<14 valid
    for b in range(BATCH):
        s2_ref[b] = a2[b * 16:(b + 1) * 16, :]

    # ---------------- maxpool2 (2x2, stride 2) + flatten + fc ----------------
    feats = []
    for h in range(7):
        r = jnp.maximum(s2_ref[:, 2 * h, :], s2_ref[:, 2 * h + 1, :])          # pool over H
        for w in range(7):
            feats.append(jnp.maximum(r[:, (2 * w) * C2:(2 * w + 1) * C2],
                                     r[:, (2 * w + 1) * C2:(2 * w + 2) * C2]))  # pool over W
    flat = jnp.concatenate(feats, axis=-1)                   # (B, 1568), order (h, w, c)
    out_ref[...] = jnp.dot(flat, fcw_ref[...], preferred_element_type=f32) + fcb_ref[...]


@jax.jit
def convnet_forward(x, params):
    """x: (B, 1, 28, 28) float32 — same layout as the PyTorch module."""
    t1, b1, t2, b2, fcw, fcb = params
    x3 = x.reshape(BATCH, HW, HW)        # drop the single input channel (layout prep)
    args = (x3, t1, b1, t2, b2, fcw, fcb)
    return pl.pallas_call(
        convnet_kernel,
        out_shape=jax.ShapeDtypeStruct((BATCH, NUM_CLASSES), jnp.float32),
        in_specs=[pl.BlockSpec(memory_space=pltpu.MemorySpace.VMEM)] * len(args),
        out_specs=pl.BlockSpec(memory_space=pltpu.MemorySpace.VMEM),
        scratch_shapes=[
            pltpu.VMEM((BATCH, 36, 32), jnp.float32),        # zero-padded input
            pltpu.VMEM((BATCH, 32, L1_LANES), jnp.float32),  # layer-1 conv output
            pltpu.VMEM((BATCH, 20, P2_LANES), jnp.float32),  # zero-padded pooled-1
            pltpu.VMEM((BATCH, 16, L2_LANES), jnp.float32),  # layer-2 conv output
        ],
    )(*args)


def init_raw_params(key):
    """Deterministic PyTorch-layout parameters (conv/bn/fc)."""
    ks = jax.random.split(key, 14)

    def n(k, shape, s=0.05):
        return (s * jax.random.normal(k, shape)).astype(jnp.float32)

    w1, bc1 = n(ks[0], (C1, 1, K, K)), n(ks[1], (C1,))
    g1, be1 = 1.0 + n(ks[2], (C1,), 0.1), n(ks[3], (C1,), 0.1)
    m1, v1 = n(ks[4], (C1,), 0.1), 1.0 + jnp.abs(n(ks[5], (C1,), 0.1))
    w2, bc2 = n(ks[6], (C2, C1, K, K)), n(ks[7], (C2,))
    g2, be2 = 1.0 + n(ks[8], (C2,), 0.1), n(ks[9], (C2,), 0.1)
    m2, v2 = n(ks[10], (C2,), 0.1), 1.0 + jnp.abs(n(ks[11], (C2,), 0.1))
    wfc, bfc = n(ks[12], (NUM_CLASSES, 7 * 7 * C2)), n(ks[13], (NUM_CLASSES,))
    return (w1, bc1, g1, be1, m1, v1, w2, bc2, g2, be2, m2, v2, wfc, bfc)


def pack_params(raw):
    """Fold BN into the convs and build the Toeplitz-expanded GEMM weights (host side)."""
    (w1, bc1, g1, be1, m1, v1,
     w2, bc2, g2, be2, m2, v2, wfc, bfc) = [np.asarray(a, np.float32) for a in raw]

    # BatchNorm (eval) fold: y = (conv(x) - mean) * gamma/sqrt(var+eps) + beta
    s1 = g1 / np.sqrt(v1 + EPS)
    s2 = g2 / np.sqrt(v2 + EPS)
    w1f = np.transpose(w1[:, 0], (1, 2, 0)) * s1          # (kh, kw, co)
    b1f = (bc1 - m1) * s1 + be1                           # (16,)
    w2f = np.transpose(w2, (2, 3, 1, 0)) * s2             # (kh, kw, ci, co)
    b2f = (bc2 - m2) * s2 + be2                           # (32,)

    # conv1 Toeplitz weight: rows = kh*32 + padded_col, cols = out_col*16 + co
    t1 = np.zeros((K * 32, L1_LANES), np.float32)
    for kh in range(K):
        for kw in range(K):
            for j in range(28):
                t1[kh * 32 + j + kw, j * C1:(j + 1) * C1] = w1f[kh, kw]
    b1row = np.tile(b1f, 28)[None, :]                     # (1, 448)

    # conv2 Toeplitz weight: rows = kh*288 + padded_col*16 + ci, cols = out_col*32 + co
    t2 = np.zeros((K * P2_LANES, L2_LANES), np.float32)
    for kh in range(K):
        for kw in range(K):
            for j in range(14):
                w_ = j + kw
                t2[kh * P2_LANES + w_ * C1: kh * P2_LANES + (w_ + 1) * C1,
                   j * C2:(j + 1) * C2] = w2f[kh, kw]
    b2row = np.tile(b2f, 14)[None, :]                     # (1, 448)

    # fc: PyTorch flatten order is (c, h, w); our features are (h, w, c) -> permute rows.
    fcw = np.transpose(wfc.reshape(NUM_CLASSES, C2, 7, 7),
                       (2, 3, 1, 0)).reshape(7 * 7 * C2, NUM_CLASSES)
    fcb = bfc[None, :]                                    # (1, 10)

    return tuple(jnp.asarray(a) for a in (t1, b1row, t2, b2row, fcw, fcb))


if __name__ == "__main__":
    key = jax.random.PRNGKey(0)
    kx, kp = jax.random.split(key)
    x = jax.random.normal(kx, (BATCH, 1, HW, HW), jnp.float32)
    params = pack_params(init_raw_params(kp))

    out = jax.block_until_ready(convnet_forward(x, params))
    assert out.shape == (BATCH, NUM_CLASSES) and out.dtype == jnp.float32
    assert bool(jnp.all(jnp.isfinite(out)))
    print("KERNEL_OK")
</pallas_src>

<mosaic_0001>
module attributes {stable_mosaic.version = 11 : i64} {
  func.func @convnet_kernel(%arg0: memref<2x28x28xf32, #tpu.memory_space<vmem>>, %arg1: memref<160x448xf32, #tpu.memory_space<vmem>>, %arg2: memref<1x448xf32, #tpu.memory_space<vmem>>, %arg3: memref<1440x448xf32, #tpu.memory_space<vmem>>, %arg4: memref<1x448xf32, #tpu.memory_space<vmem>>, %arg5: memref<1568x10xf32, #tpu.memory_space<vmem>>, %arg6: memref<1x10xf32, #tpu.memory_space<vmem>>, %arg7: memref<2x10xf32, #tpu.memory_space<vmem>>, %arg8: memref<2x36x32xf32, #tpu.memory_space<vmem>>, %arg9: memref<2x32x448xf32, #tpu.memory_space<vmem>>, %arg10: memref<2x20x288xf32, #tpu.memory_space<vmem>>, %arg11: memref<2x16x448xf32, #tpu.memory_space<vmem>>) attributes {dimension_semantics = [], scalar_prefetch = 0 : i64, scratch_operands = 4 : i64, tpu.core_type = #tpu.core_type<tc>} {
    %cst = arith.constant 0.000000e+00 : f32
    %0 = vector.broadcast %cst : f32 to vector<2x36x32xf32>
    %c0 = arith.constant 0 : index
    %c0_0 = arith.constant 0 : index
    %c0_1 = arith.constant 0 : index
    %1 = vector.load %arg8[%c0, %c0_0, %c0_1] : memref<2x36x32xf32, #tpu.memory_space<vmem>>, vector<2x36x32xf32>
    tpu.vector_store %arg8[%c0, %c0_0, %c0_1], %0 {strides = array<i32>} : memref<2x36x32xf32, #tpu.memory_space<vmem>>, vector<2x36x32xf32>,
    %c0_2 = arith.constant 0 : index
    %c0_3 = arith.constant 0 : index
    %c0_4 = arith.constant 0 : index
    %2 = vector.load %arg0[%c0_2, %c0_3, %c0_4] : memref<2x28x28xf32, #tpu.memory_space<vmem>>, vector<2x28x28xf32>
    %c0_5 = arith.constant 0 : index
    %c2 = arith.constant 2 : index
    %c2_6 = arith.constant 2 : index
    %3 = vector.load %arg8[%c0_5, %c2, %c2_6] : memref<2x36x32xf32, #tpu.memory_space<vmem>>, vector<2x28x28xf32>
    tpu.vector_store %arg8[%c0_5, %c2, %c2_6], %2 {strides = array<i32>} : memref<2x36x32xf32, #tpu.memory_space<vmem>>, vector<2x28x28xf32>,
    %c0_7 = arith.constant 0 : index
    %c0_8 = arith.constant 0 : index
    %c0_9 = arith.constant 0 : index
    %4 = vector.load %arg8[%c0_7, %c0_8, %c0_9] : memref<2x36x32xf32, #tpu.memory_space<vmem>>, vector<1x32x32xf32>
    %5 = vector.shape_cast %4 : vector<1x32x32xf32> to vector<32x32xf32>
    %c1 = arith.constant 1 : index
    %c0_10 = arith.constant 0 : index
    %c0_11 = arith.constant 0 : index
    %6 = vector.load %arg8[%c1, %c0_10, %c0_11] : memref<2x36x32xf32, #tpu.memory_space<vmem>>, vector<1x32x32xf32>
    %7 = vector.shape_cast %6 : vector<1x32x32xf32> to vector<32x32xf32>
    %8 = tpu.concatenate %5, %7 in 0 : vector<32x32xf32>, vector<32x32xf32> -> vector<64x32xf32>
    %c0_12 = arith.constant 0 : index
    %c1_13 = arith.constant 1 : index
    %c0_14 = arith.constant 0 : index
    %9 = vector.load %arg8[%c0_12, %c1_13, %c0_14] : memref<2x36x32xf32, #tpu.memory_space<vmem>>, vector<1x32x32xf32>
    %10 = vector.shape_cast %9 : vector<1x32x32xf32> to vector<32x32xf32>
    %c1_15 = arith.constant 1 : index
    %c1_16 = arith.constant 1 : index
    %c0_17 = arith.constant 0 : index
    %11 = vector.load %arg8[%c1_15, %c1_16, %c0_17] : memref<2x36x32xf32, #tpu.memory_space<vmem>>, vector<1x32x32xf32>
    %12 = vector.shape_cast %11 : vector<1x32x32xf32> to vector<32x32xf32>
    %13 = tpu.concatenate %10, %12 in 0 : vector<32x32xf32>, vector<32x32xf32> -> vector<64x32xf32>
    %c0_18 = arith.constant 0 : index
    %c2_19 = arith.constant 2 : index
    %c0_20 = arith.constant 0 : index
    %14 = vector.load %arg8[%c0_18, %c2_19, %c0_20] : memref<2x36x32xf32, #tpu.memory_space<vmem>>, vector<1x32x32xf32>
    %15 = vector.shape_cast %14 : vector<1x32x32xf32> to vector<32x32xf32>
    %c1_21 = arith.constant 1 : index
    %c2_22 = arith.constant 2 : index
    %c0_23 = arith.constant 0 : index
    %16 = vector.load %arg8[%c1_21, %c2_22, %c0_23] : memref<2x36x32xf32, #tpu.memory_space<vmem>>, vector<1x32x32xf32>
    %17 = vector.shape_cast %16 : vector<1x32x32xf32> to vector<32x32xf32>
    %18 = tpu.concatenate %15, %17 in 0 : vector<32x32xf32>, vector<32x32xf32> -> vector<64x32xf32>
    %c0_24 = arith.constant 0 : index
    %c3 = arith.constant 3 : index
    %c0_25 = arith.constant 0 : index
    %19 = vector.load %arg8[%c0_24, %c3, %c0_25] : memref<2x36x32xf32, #tpu.memory_space<vmem>>, vector<1x32x32xf32>
    %20 = vector.shape_cast %19 : vector<1x32x32xf32> to vector<32x32xf32>
    %c1_26 = arith.constant 1 : index
    %c3_27 = arith.constant 3 : index
    %c0_28 = arith.constant 0 : index
    %21 = vector.load %arg8[%c1_26, %c3_27, %c0_28] : memref<2x36x32xf32, #tpu.memory_space<vmem>>, vector<1x32x32xf32>
    %22 = vector.shape_cast %21 : vector<1x32x32xf32> to vector<32x32xf32>
    %23 = tpu.concatenate %20, %22 in 0 : vector<32x32xf32>, vector<32x32xf32> -> vector<64x32xf32>
    %c0_29 = arith.constant 0 : index
    %c4 = arith.constant 4 : index
    %c0_30 = arith.constant 0 : index
    %24 = vector.load %arg8[%c0_29, %c4, %c0_30] : memref<2x36x32xf32, #tpu.memory_space<vmem>>, vector<1x32x32xf32>
    %25 = vector.shape_cast %24 : vector<1x32x32xf32> to vector<32x32xf32>
    %c1_31 = arith.constant 1 : index
    %c4_32 = arith.constant 4 : index
    %c0_33 = arith.constant 0 : index
    %26 = vector.load %arg8[%c1_31, %c4_32, %c0_33] : memref<2x36x32xf32, #tpu.memory_space<vmem>>, vector<1x32x32xf32>
    %27 = vector.shape_cast %26 : vector<1x32x32xf32> to vector<32x32xf32>
    %28 = tpu.concatenate %25, %27 in 0 : vector<32x32xf32>, vector<32x32xf32> -> vector<64x32xf32>
    %29 = tpu.concatenate %8, %13, %18, %23, %28 in 1 : vector<64x32xf32>, vector<64x32xf32>, vector<64x32xf32>, vector<64x32xf32>, vector<64x32xf32> -> vector<64x160xf32>
    %c0_34 = arith.constant 0 : index
    %c0_35 = arith.constant 0 : index
    %30 = vector.load %arg1[%c0_34, %c0_35] : memref<160x448xf32, #tpu.memory_space<vmem>>, vector<160x448xf32>
    %cst_36 = arith.constant dense<0.000000e+00> : vector<64x448xf32>
    %31 = tpu.matmul %29, %30, %cst_36 {dimension_numbers = #tpu.dot_dimension_numbers<[1], [0], [0], [1], [0, 0, 1, 1], [], []>} : vector<64x160xf32>, vector<160x448xf32>, vector<64x448xf32> -> vector<64x448xf32>
    %c0_37 = arith.constant 0 : index
    %c0_38 = arith.constant 0 : index
    %32 = vector.load %arg2[%c0_37, %c0_38] : memref<1x448xf32, #tpu.memory_space<vmem>>, vector<1x448xf32>
    %33 = vector.broadcast %32 : vector<1x448xf32> to vector<64x448xf32>
    %34 = arith.addf %31, %33 : vector<64x448xf32>
    %cst_39 = arith.constant 0.000000e+00 : f32
    %35 = vector.broadcast %cst_39 : f32 to vector<64x448xf32>
    %36 = arith.maximumf %34, %35 : vector<64x448xf32>
    %37 = vector.extract_strided_slice %36 {offsets = [0, 0], sizes = [32, 448], strides = [1, 1]} : vector<64x448xf32> to vector<32x448xf32>
    %c0_40 = arith.constant 0 : index
    %c0_41 = arith.constant 0 : index
    %c0_42 = arith.constant 0 : index
    %38 = vector.load %arg9[%c0_40, %c0_41, %c0_42] : memref<2x32x448xf32, #tpu.memory_space<vmem>>, vector<1x32x448xf32>
    %39 = vector.shape_cast %38 : vector<1x32x448xf32> to vector<32x448xf32>
    %40 = vector.shape_cast %37 : vector<32x448xf32> to vector<1x32x448xf32>
    tpu.vector_store %arg9[%c0_40, %c0_41, %c0_42], %40 {strides = array<i32>} : memref<2x32x448xf32, #tpu.memory_space<vmem>>, vector<1x32x448xf32>,
    %41 = vector.extract_strided_slice %36 {offsets = [32, 0], sizes = [32, 448], strides = [1, 1]} : vector<64x448xf32> to vector<32x448xf32>
    %c1_43 = arith.constant 1 : index
    %c0_44 = arith.constant 0 : index
    %c0_45 = arith.constant 0 : index
    %42 = vector.load %arg9[%c1_43, %c0_44, %c0_45] : memref<2x32x448xf32, #tpu.memory_space<vmem>>, vector<1x32x448xf32>
    %43 = vector.shape_cast %42 : vector<1x32x448xf32> to vector<32x448xf32>
    %44 = vector.shape_cast %41 : vector<32x448xf32> to vector<1x32x448xf32>
    tpu.vector_store %arg9[%c1_43, %c0_44, %c0_45], %44 {strides = array<i32>} : memref<2x32x448xf32, #tpu.memory_space<vmem>>, vector<1x32x448xf32>,
    %cst_46 = arith.constant 0.000000e+00 : f32
    %45 = vector.broadcast %cst_46 : f32 to vector<2x20x288xf32>
    %c0_47 = arith.constant 0 : index
    %c0_48 = arith.constant 0 : index
    %c0_49 = arith.constant 0 : index
    %46 = vector.load %arg10[%c0_47, %c0_48, %c0_49] : memref<2x20x288xf32, #tpu.memory_space<vmem>>, vector<2x20x288xf32>
    tpu.vector_store %arg10[%c0_47, %c0_48, %c0_49], %45 {strides = array<i32>} : memref<2x20x288xf32, #tpu.memory_space<vmem>>, vector<2x20x288xf32>,
    %c0_50 = arith.constant 0 : index
    %c0_51 = arith.constant 0 : index
    %c0_52 = arith.constant 0 : index
    %47 = vector.load %arg9[%c0_50, %c0_51, %c0_52] : memref<2x32x448xf32, #tpu.memory_space<vmem>>, vector<2x1x448xf32>
    %48 = vector.shape_cast %47 : vector<2x1x448xf32> to vector<2x448xf32>
    %c0_53 = arith.constant 0 : index
    %c1_54 = arith.constant 1 : index
    %c0_55 = arith.constant 0 : index
    %49 = vector.load %arg9[%c0_53, %c1_54, %c0_55] : memref<2x32x448xf32, #tpu.memory_space<vmem>>, vector<2x1x448xf32>
    %50 = vector.shape_cast %49 : vector<2x1x448xf32> to vector<2x448xf32>
    %51 = arith.maximumf %48, %50 : vector<2x448xf32>
    %52 = vector.extract_strided_slice %51 {offsets = [0, 0], sizes = [2, 16], strides = [1, 1]} : vector<2x448xf32> to vector<2x16xf32>
    %53 = vector.extract_strided_slice %51 {offsets = [0, 16], sizes = [2, 16], strides = [1, 1]} : vector<2x448xf32> to vector<2x16xf32>
    %54 = arith.maximumf %52, %53 : vector<2x16xf32>
    %55 = vector.extract_strided_slice %51 {offsets = [0, 32], sizes = [2, 16], strides = [1, 1]} : vector<2x448xf32> to vector<2x16xf32>
    %56 = vector.extract_strided_slice %51 {offsets = [0, 48], sizes = [2, 16], strides = [1, 1]} : vector<2x448xf32> to vector<2x16xf32>
    %57 = arith.maximumf %55, %56 : vector<2x16xf32>
    %58 = vector.extract_strided_slice %51 {offsets = [0, 64], sizes = [2, 16], strides = [1, 1]} : vector<2x448xf32> to vector<2x16xf32>
    %59 = vector.extract_strided_slice %51 {offsets = [0, 80], sizes = [2, 16], strides = [1, 1]} : vector<2x448xf32> to vector<2x16xf32>
    %60 = arith.maximumf %58, %59 : vector<2x16xf32>
    %61 = vector.extract_strided_slice %51 {offsets = [0, 96], sizes = [2, 16], strides = [1, 1]} : vector<2x448xf32> to vector<2x16xf32>
    %62 = vector.extract_strided_slice %51 {offsets = [0, 112], sizes = [2, 16], strides = [1, 1]} : vector<2x448xf32> to vector<2x16xf32>
    %63 = arith.maximumf %61, %62 : vector<2x16xf32>
    %64 = vector.extract_strided_slice %51 {offsets = [0, 128], sizes = [2, 16], strides = [1, 1]} : vector<2x448xf32> to vector<2x16xf32>
    %65 = vector.extract_strided_slice %51 {offsets = [0, 144], sizes = [2, 16], strides = [1, 1]} : vector<2x448xf32> to vector<2x16xf32>
    %66 = arith.maximumf %64, %65 : vector<2x16xf32>
    %67 = vector.extract_strided_slice %51 {offsets = [0, 160], sizes = [2, 16], strides = [1, 1]} : vector<2x448xf32> to vector<2x16xf32>
    %68 = vector.extract_strided_slice %51 {offsets = [0, 176], sizes = [2, 16], strides = [1, 1]} : vector<2x448xf32> to vector<2x16xf32>
    %69 = arith.maximumf %67, %68 : vector<2x16xf32>
    %70 = vector.extract_strided_slice %51 {offsets = [0, 192], sizes = [2, 16], strides = [1, 1]} : vector<2x448xf32> to vector<2x16xf32>
    %71 = vector.extract_strided_slice %51 {offsets = [0, 208], sizes = [2, 16], strides = [1, 1]} : vector<2x448xf32> to vector<2x16xf32>
    %72 = arith.maximumf %70, %71 : vector<2x16xf32>
    %73 = vector.extract_strided_slice %51 {offsets = [0, 224], sizes = [2, 16], strides = [1, 1]} : vector<2x448xf32> to vector<2x16xf32>
    %74 = vector.extract_strided_slice %51 {offsets = [0, 240], sizes = [2, 16], strides = [1, 1]} : vector<2x448xf32> to vector<2x16xf32>
    %75 = arith.maximumf %73, %74 : vector<2x16xf32>
    %76 = vector.extract_strided_slice %51 {offsets = [0, 256], sizes = [2, 16], strides = [1, 1]} : vector<2x448xf32> to vector<2x16xf32>
    %77 = vector.extract_strided_slice %51 {offsets = [0, 272], sizes = [2, 16], strides = [1, 1]} : vector<2x448xf32> to vector<2x16xf32>
    %78 = arith.maximumf %76, %77 : vector<2x16xf32>
    %79 = vector.extract_strided_slice %51 {offsets = [0, 288], sizes = [2, 16], strides = [1, 1]} : vector<2x448xf32> to vector<2x16xf32>
    %80 = vector.extract_strided_slice %51 {offsets = [0, 304], sizes = [2, 16], strides = [1, 1]} : vector<2x448xf32> to vector<2x16xf32>
    %81 = arith.maximumf %79, %80 : vector<2x16xf32>
    %82 = vector.extract_strided_slice %51 {offsets = [0, 320], sizes = [2, 16], strides = [1, 1]} : vector<2x448xf32> to vector<2x16xf32>
    %83 = vector.extract_strided_slice %51 {offsets = [0, 336], sizes = [2, 16], strides = [1, 1]} : vector<2x448xf32> to vector<2x16xf32>
    %84 = arith.maximumf %82, %83 : vector<2x16xf32>
    %85 = vector.extract_strided_slice %51 {offsets = [0, 352], sizes = [2, 16], strides = [1, 1]} : vector<2x448xf32> to vector<2x16xf32>
    %86 = vector.extract_strided_slice %51 {offsets = [0, 368], sizes = [2, 16], strides = [1, 1]} : vector<2x448xf32> to vector<2x16xf32>
    %87 = arith.maximumf %85, %86 : vector<2x16xf32>
    %88 = vector.extract_strided_slice %51 {offsets = [0, 384], sizes = [2, 16], strides = [1, 1]} : vector<2x448xf32> to vector<2x16xf32>
    %89 = vector.extract_strided_slice %51 {offsets = [0, 400], sizes = [2, 16], strides = [1, 1]} : vector<2x448xf32> to vector<2x16xf32>
    %90 = arith.maximumf %88, %89 : vector<2x16xf32>
    %91 = vector.extract_strided_slice %51 {offsets = [0, 416], sizes = [2, 16], strides = [1, 1]} : vector<2x448xf32> to vector<2x16xf32>
    %92 = vector.extract_strided_slice %51 {offsets = [0, 432], sizes = [2, 16], strides = [1, 1]} : vector<2x448xf32> to vector<2x16xf32>
    %93 = arith.maximumf %91, %92 : vector<2x16xf32>
    %94 = tpu.concatenate %54, %57, %60, %63, %66, %69, %72, %75, %78, %81, %84, %87, %90, %93 in 1 : vector<2x16xf32>, vector<2x16xf32>, vector<2x16xf32>, vector<2x16xf32>, vector<2x16xf32>, vector<2x16xf32>, vector<2x16xf32>, vector<2x16xf32>, vector<2x16xf32>, vector<2x16xf32>, vector<2x16xf32>, vector<2x16xf32>, vector<2x16xf32>, vector<2x16xf32> -> vector<2x224xf32>
    %c0_56 = arith.constant 0 : index
    %c2_57 = arith.constant 2 : index
    %c32 = arith.constant 32 : index
    %95 = vector.load %arg10[%c0_56, %c2_57, %c32] : memref<2x20x288xf32, #tpu.memory_space<vmem>>, vector<2x1x224xf32>
    %96 = vector.shape_cast %95 : vector<2x1x224xf32> to vector<2x224xf32>
    %97 = vector.shape_cast %94 : vector<2x224xf32> to vector<2x1x224xf32>
    tpu.vector_store %arg10[%c0_56, %c2_57, %c32], %97 {strides = array<i32>} : memref<2x20x288xf32, #tpu.memory_space<vmem>>, vector<2x1x224xf32>,
    %c0_58 = arith.constant 0 : index
    %c2_59 = arith.constant 2 : index
    %c0_60 = arith.constant 0 : index
    %98 = vector.load %arg9[%c0_58, %c2_59, %c0_60] : memref<2x32x448xf32, #tpu.memory_space<vmem>>, vector<2x1x448xf32>
    %99 = vector.shape_cast %98 : vector<2x1x448xf32> to vector<2x448xf32>
    %c0_61 = arith.constant 0 : index
    %c3_62 = arith.constant 3 : index
    %c0_63 = arith.constant 0 : index
    %100 = vector.load %arg9[%c0_61, %c3_62, %c0_63] : memref<2x32x448xf32, #tpu.memory_space<vmem>>, vector<2x1x448xf32>
    %101 = vector.shape_cast %100 : vector<2x1x448xf32> to vector<2x448xf32>
    %102 = arith.maximumf %99, %101 : vector<2x448xf32>
    %103 = vector.extract_strided_slice %102 {offsets = [0, 0], sizes = [2, 16], strides = [1, 1]} : vector<2x448xf32> to vector<2x16xf32>
    %104 = vector.extract_strided_slice %102 {offsets = [0, 16], sizes = [2, 16], strides = [1, 1]} : vector<2x448xf32> to vector<2x16xf32>
    %105 = arith.maximumf %103, %104 : vector<2x16xf32>
    %106 = vector.extract_strided_slice %102 {offsets = [0, 32], sizes = [2, 16], strides = [1, 1]} : vector<2x448xf32> to vector<2x16xf32>
    %107 = vector.extract_strided_slice %102 {offsets = [0, 48], sizes = [2, 16], strides = [1, 1]} : vector<2x448xf32> to vector<2x16xf32>
    %108 = arith.maximumf %106, %107 : vector<2x16xf32>
    %109 = vector.extract_strided_slice %102 {offsets = [0, 64], sizes = [2, 16], strides = [1, 1]} : vector<2x448xf32> to vector<2x16xf32>
    %110 = vector.extract_strided_slice %102 {offsets = [0, 80], sizes = [2, 16], strides = [1, 1]} : vector<2x448xf32> to vector<2x16xf32>
    %111 = arith.maximumf %109, %110 : vector<2x16xf32>
    %112 = vector.extract_strided_slice %102 {offsets = [0, 96], sizes = [2, 16], strides = [1, 1]} : vector<2x448xf32> to vector<2x16xf32>
    %113 = vector.extract_strided_slice %102 {offsets = [0, 112], sizes = [2, 16], strides = [1, 1]} : vector<2x448xf32> to vector<2x16xf32>
    %114 = arith.maximumf %112, %113 : vector<2x16xf32>
    %115 = vector.extract_strided_slice %102 {offsets = [0, 128], sizes = [2, 16], strides = [1, 1]} : vector<2x448xf32> to vector<2x16xf32>
    %116 = vector.extract_strided_slice %102 {offsets = [0, 144], sizes = [2, 16], strides = [1, 1]} : vector<2x448xf32> to vector<2x16xf32>
    %117 = arith.maximumf %115, %116 : vector<2x16xf32>
    %118 = vector.extract_strided_slice %102 {offsets = [0, 160], sizes = [2, 16], strides = [1, 1]} : vector<2x448xf32> to vector<2x16xf32>
    %119 = vector.extract_strided_slice %102 {offsets = [0, 176], sizes = [2, 16], strides = [1, 1]} : vector<2x448xf32> to vector<2x16xf32>
    %120 = arith.maximumf %118, %119 : vector<2x16xf32>
    %121 = vector.extract_strided_slice %102 {offsets = [0, 192], sizes = [2, 16], strides = [1, 1]} : vector<2x448xf32> to vector<2x16xf32>
    %122 = vector.extract_strided_slice %102 {offsets = [0, 208], sizes = [2, 16], strides = [1, 1]} : vector<2x448xf32> to vector<2x16xf32>
    %123 = arith.maximumf %121, %122 : vector<2x16xf32>
    %124 = vector.extract_strided_slice %102 {offsets = [0, 224], sizes = [2, 16], strides = [1, 1]} : vector<2x448xf32> to vector<2x16xf32>
    %125 = vector.extract_strided_slice %102 {offsets = [0, 240], sizes = [2, 16], strides = [1, 1]} : vector<2x448xf32> to vector<2x16xf32>
    %126 = arith.maximumf %124, %125 : vector<2x16xf32>
    %127 = vector.extract_strided_slice %102 {offsets = [0, 256], sizes = [2, 16], strides = [1, 1]} : vector<2x448xf32> to vector<2x16xf32>
    %128 = vector.extract_strided_slice %102 {offsets = [0, 272], sizes = [2, 16], strides = [1, 1]} : vector<2x448xf32> to vector<2x16xf32>
    %129 = arith.maximumf %127, %128 : vector<2x16xf32>
    %130 = vector.extract_strided_slice %102 {offsets = [0, 288], sizes = [2, 16], strides = [1, 1]} : vector<2x448xf32> to vector<2x16xf32>
    %131 = vector.extract_strided_slice %102 {offsets = [0, 304], sizes = [2, 16], strides = [1, 1]} : vector<2x448xf32> to vector<2x16xf32>
    %132 = arith.maximumf %130, %131 : vector<2x16xf32>
    %133 = vector.extract_strided_slice %102 {offsets = [0, 320], sizes = [2, 16], strides = [1, 1]} : vector<2x448xf32> to vector<2x16xf32>
    %134 = vector.extract_strided_slice %102 {offsets = [0, 336], sizes = [2, 16], strides = [1, 1]} : vector<2x448xf32> to vector<2x16xf32>
    %135 = arith.maximumf %133, %134 : vector<2x16xf32>
    %136 = vector.extract_strided_slice %102 {offsets = [0, 352], sizes = [2, 16], strides = [1, 1]} : vector<2x448xf32> to vector<2x16xf32>
    %137 = vector.extract_strided_slice %102 {offsets = [0, 368], sizes = [2, 16], strides = [1, 1]} : vector<2x448xf32> to vector<2x16xf32>
    %138 = arith.maximumf %136, %137 : vector<2x16xf32>
    %139 = vector.extract_strided_slice %102 {offsets = [0, 384], sizes = [2, 16], strides = [1, 1]} : vector<2x448xf32> to vector<2x16xf32>
    %140 = vector.extract_strided_slice %102 {offsets = [0, 400], sizes = [2, 16], strides = [1, 1]} : vector<2x448xf32> to vector<2x16xf32>
    %141 = arith.maximumf %139, %140 : vector<2x16xf32>
    %142 = vector.extract_strided_slice %102 {offsets = [0, 416], sizes = [2, 16], strides = [1, 1]} : vector<2x448xf32> to vector<2x16xf32>
    %143 = vector.extract_strided_slice %102 {offsets = [0, 432], sizes = [2, 16], strides = [1, 1]} : vector<2x448xf32> to vector<2x16xf32>
    %144 = arith.maximumf %142, %143 : vector<2x16xf32>
    %145 = tpu.concatenate %105, %108, %111, %114, %117, %120, %123, %126, %129, %132, %135, %138, %141, %144 in 1 : vector<2x16xf32>, vector<2x16xf32>, vector<2x16xf32>, vector<2x16xf32>, vector<2x16xf32>, vector<2x16xf32>, vector<2x16xf32>, vector<2x16xf32>, vector<2x16xf32>, vector<2x16xf32>, vector<2x16xf32>, vector<2x16xf32>, vector<2x16xf32>, vector<2x16xf32> -> vector<2x224xf32>
    %c0_64 = arith.constant 0 : index
    %c3_65 = arith.constant 3 : index
    %c32_66 = arith.constant 32 : index
    %146 = vector.load %arg10[%c0_64, %c3_65, %c32_66] : memref<2x20x288xf32, #tpu.memory_space<vmem>>, vector<2x1x224xf32>
    %147 = vector.shape_cast %146 : vector<2x1x224xf32> to vector<2x224xf32>
    %148 = vector.shape_cast %145 : vector<2x224xf32> to vector<2x1x224xf32>
    tpu.vector_store %arg10[%c0_64, %c3_65, %c32_66], %148 {strides = array<i32>} : memref<2x20x288xf32, #tpu.memory_space<vmem>>, vector<2x1x224xf32>,
    %c0_67 = arith.constant 0 : index
    %c4_68 = arith.constant 4 : index
    %c0_69 = arith.constant 0 : index
    %149 = vector.load %arg9[%c0_67, %c4_68, %c0_69] : memref<2x32x448xf32, #tpu.memory_space<vmem>>, vector<2x1x448xf32>
    %150 = vector.shape_cast %149 : vector<2x1x448xf32> to vector<2x448xf32>
    %c0_70 = arith.constant 0 : index
    %c5 = arith.constant 5 : index
    %c0_71 = arith.constant 0 : index
    %151 = vector.load %arg9[%c0_70, %c5, %c0_71] : memref<2x32x448xf32, #tpu.memory_space<vmem>>, vector<2x1x448xf32>
    %152 = vector.shape_cast %151 : vector<2x1x448xf32> to vector<2x448xf32>
    %153 = arith.maximumf %150, %152 : vector<2x448xf32>
    %154 = vector.extract_strided_slice %153 {offsets = [0, 0], sizes = [2, 16], strides = [1, 1]} : vector<2x448xf32> to vector<2x16xf32>
    %155 = vector.extract_strided_slice %153 {offsets = [0, 16], sizes = [2, 16], strides = [1, 1]} : vector<2x448xf32> to vector<2x16xf32>
    %156 = arith.maximumf %154, %155 : vector<2x16xf32>
    %157 = vector.extract_strided_slice %153 {offsets = [0, 32], sizes = [2, 16], strides = [1, 1]} : vector<2x448xf32> to vector<2x16xf32>
    %158 = vector.extract_strided_slice %153 {offsets = [0, 48], sizes = [2, 16], strides = [1, 1]} : vector<2x448xf32> to vector<2x16xf32>
    %159 = arith.maximumf %157, %158 : vector<2x16xf32>
    %160 = vector.extract_strided_slice %153 {offsets = [0, 64], sizes = [2, 16], strides = [1, 1]} : vector<2x448xf32> to vector<2x16xf32>
    %161 = vector.extract_strided_slice %153 {offsets = [0, 80], sizes = [2, 16], strides = [1, 1]} : vector<2x448xf32> to vector<2x16xf32>
    %162 = arith.maximumf %160, %161 : vector<2x16xf32>
    %163 = vector.extract_strided_slice %153 {offsets = [0, 96], sizes = [2, 16], strides = [1, 1]} : vector<2x448xf32> to vector<2x16xf32>
    %164 = vector.extract_strided_slice %153 {offsets = [0, 112], sizes = [2, 16], strides = [1, 1]} : vector<2x448xf32> to vector<2x16xf32>
    %165 = arith.maximumf %163, %164 : vector<2x16xf32>
    %166 = vector.extract_strided_slice %153 {offsets = [0, 128], sizes = [2, 16], strides = [1, 1]} : vector<2x448xf32> to vector<2x16xf32>
    %167 = vector.extract_strided_slice %153 {offsets = [0, 144], sizes = [2, 16], strides = [1, 1]} : vector<2x448xf32> to vector<2x16xf32>
    %168 = arith.maximumf %166, %167 : vector<2x16xf32>
    %169 = vector.extract_strided_slice %153 {offsets = [0, 160], sizes = [2, 16], strides = [1, 1]} : vector<2x448xf32> to vector<2x16xf32>
    %170 = vector.extract_strided_slice %153 {offsets = [0, 176], sizes = [2, 16], strides = [1, 1]} : vector<2x448xf32> to vector<2x16xf32>
    %171 = arith.maximumf %169, %170 : vector<2x16xf32>
    %172 = vector.extract_strided_slice %153 {offsets = [0, 192], sizes = [2, 16], strides = [1, 1]} : vector<2x448xf32> to vector<2x16xf32>
    %173 = vector.extract_strided_slice %153 {offsets = [0, 208], sizes = [2, 16], strides = [1, 1]} : vector<2x448xf32> to vector<2x16xf32>
    %174 = arith.maximumf %172, %173 : vector<2x16xf32>
    %175 = vector.extract_strided_slice %153 {offsets = [0, 224], sizes = [2, 16], strides = [1, 1]} : vector<2x448xf32> to vector<2x16xf32>
    %176 = vector.extract_strided_slice %153 {offsets = [0, 240], sizes = [2, 16], strides = [1, 1]} : vector<2x448xf32> to vector<2x16xf32>
    %177 = arith.maximumf %175, %176 : vector<2x16xf32>
    %178 = vector.extract_strided_slice %153 {offsets = [0, 256], sizes = [2, 16], strides = [1, 1]} : vector<2x448xf32> to vector<2x16xf32>
    %179 = vector.extract_strided_slice %153 {offsets = [0, 272], sizes = [2, 16], strides = [1, 1]} : vector<2x448xf32> to vector<2x16xf32>
    %180 = arith.maximumf %178, %179 : vector<2x16xf32>
    %181 = vector.extract_strided_slice %153 {offsets = [0, 288], sizes = [2, 16], strides = [1, 1]} : vector<2x448xf32> to vector<2x16xf32>
    %182 = vector.extract_strided_slice %153 {offsets = [0, 304], sizes = [2, 16], strides = [1, 1]} : vector<2x448xf32> to vector<2x16xf32>
    %183 = arith.maximumf %181, %182 : vector<2x16xf32>
    %184 = vector.extract_strided_slice %153 {offsets = [0, 320], sizes = [2, 16], strides = [1, 1]} : vector<2x448xf32> to vector<2x16xf32>
    %185 = vector.extract_strided_slice %153 {offsets = [0, 336], sizes = [2, 16], strides = [1, 1]} : vector<2x448xf32> to vector<2x16xf32>
    %186 = arith.maximumf %184, %185 : vector<2x16xf32>
    %187 = vector.extract_strided_slice %153 {offsets = [0, 352], sizes = [2, 16], strides = [1, 1]} : vector<2x448xf32> to vector<2x16xf32>
    %188 = vector.extract_strided_slice %153 {offsets = [0, 368], sizes = [2, 16], strides = [1, 1]} : vector<2x448xf32> to vector<2x16xf32>
    %189 = arith.maximumf %187, %188 : vector<2x16xf32>
    %190 = vector.extract_strided_slice %153 {offsets = [0, 384], sizes = [2, 16], strides = [1, 1]} : vector<2x448xf32> to vector<2x16xf32>
    %191 = vector.extract_strided_slice %153 {offsets = [0, 400], sizes = [2, 16], strides = [1, 1]} : vector<2x448xf32> to vector<2x16xf32>
    %192 = arith.maximumf %190, %191 : vector<2x16xf32>
    %193 = vector.extract_strided_slice %153 {offsets = [0, 416], sizes = [2, 16], strides = [1, 1]} : vector<2x448xf32> to vector<2x16xf32>
    %194 = vector.extract_strided_slice %153 {offsets = [0, 432], sizes = [2, 16], strides = [1, 1]} : vector<2x448xf32> to vector<2x16xf32>
    %195 = arith.maximumf %193, %194 : vector<2x16xf32>
    %196 = tpu.concatenate %156, %159, %162, %165, %168, %171, %174, %177, %180, %183, %186, %189, %192, %195 in 1 : vector<2x16xf32>, vector<2x16xf32>, vector<2x16xf32>, vector<2x16xf32>, vector<2x16xf32>, vector<2x16xf32>, vector<2x16xf32>, vector<2x16xf32>, vector<2x16xf32>, vector<2x16xf32>, vector<2x16xf32>, vector<2x16xf32>, vector<2x16xf32>, vector<2x16xf32> -> vector<2x224xf32>
    %c0_72 = arith.constant 0 : index
    %c4_73 = arith.constant 4 : index
    %c32_74 = arith.constant 32 : index
    %197 = vector.load %arg10[%c0_72, %c4_73, %c32_74] : memref<2x20x288xf32, #tpu.memory_space<vmem>>, vector<2x1x224xf32>
    %198 = vector.shape_cast %197 : vector<2x1x224xf32> to vector<2x224xf32>
    %199 = vector.shape_cast %196 : vector<2x224xf32> to vector<2x1x224xf32>
    tpu.vector_store %arg10[%c0_72, %c4_73, %c32_74], %199 {strides = array<i32>} : memref<2x20x288xf32, #tpu.memory_space<vmem>>, vector<2x1x224xf32>,
    %c0_75 = arith.constant 0 : index
    %c6 = arith.constant 6 : index
    %c0_76 = arith.constant 0 : index
    %200 = vector.load %arg9[%c0_75, %c6, %c0_76] : memref<2x32x448xf32, #tpu.memory_space<vmem>>, vector<2x1x448xf32>
    %201 = vector.shape_cast %200 : vector<2x1x448xf32> to vector<2x448xf32>
    %c0_77 = arith.constant 0 : index
    %c7 = arith.constant 7 : index
    %c0_78 = arith.constant 0 : index
    %202 = vector.load %arg9[%c0_77, %c7, %c0_78] : memref<2x32x448xf32, #tpu.memory_space<vmem>>, vector<2x1x448xf32>
    %203 = vector.shape_cast %202 : vector<2x1x448xf32> to vector<2x448xf32>
    %204 = arith.maximumf %201, %203 : vector<2x448xf32>
    %205 = vector.extract_strided_slice %204 {offsets = [0, 0], sizes = [2, 16], strides = [1, 1]} : vector<2x448xf32> to vector<2x16xf32>
    %206 = vector.extract_strided_slice %204 {offsets = [0, 16], sizes = [2, 16], strides = [1, 1]} : vector<2x448xf32> to vector<2x16xf32>
    %207 = arith.maximumf %205, %206 : vector<2x16xf32>
    %208 = vector.extract_strided_slice %204 {offsets = [0, 32], sizes = [2, 16], strides = [1, 1]} : vector<2x448xf32> to vector<2x16xf32>
    %209 = vector.extract_strided_slice %204 {offsets = [0, 48], sizes = [2, 16], strides = [1, 1]} : vector<2x448xf32> to vector<2x16xf32>
    %210 = arith.maximumf %208, %209 : vector<2x16xf32>
    %211 = vector.extract_strided_slice %204 {offsets = [0, 64], sizes = [2, 16], strides = [1, 1]} : vector<2x448xf32> to vector<2x16xf32>
    %212 = vector.extract_strided_slice %204 {offsets = [0, 80], sizes = [2, 16], strides = [1, 1]} : vector<2x448xf32> to vector<2x16xf32>
    %213 = arith.maximumf %211, %212 : vector<2x16xf32>
    %214 = vector.extract_strided_slice %204 {offsets = [0, 96], sizes = [2, 16], strides = [1, 1]} : vector<2x448xf32> to vector<2x16xf32>
    %215 = vector.extract_strided_slice %204 {offsets = [0, 112], sizes = [2, 16], strides = [1, 1]} : vector<2x448xf32> to vector<2x16xf32>
    %216 = arith.maximumf %214, %215 : vector<2x16xf32>
    %217 = vector.extract_strided_slice %204 {offsets = [0, 128], sizes = [2, 16], strides = [1, 1]} : vector<2x448xf32> to vector<2x16xf32>
    %218 = vector.extract_strided_slice %204 {offsets = [0, 144], sizes = [2, 16], strides = [1, 1]} : vector<2x448xf32> to vector<2x16xf32>
    %219 = arith.maximumf %217, %218 : vector<2x16xf32>
    %220 = vector.extract_strided_slice %204 {offsets = [0, 160], sizes = [2, 16], strides = [1, 1]} : vector<2x448xf32> to vector<2x16xf32>
    %221 = vector.extract_strided_slice %204 {offsets = [0, 176], sizes = [2, 16], strides = [1, 1]} : vector<2x448xf32> to vector<2x16xf32>
    %222 = arith.maximumf %220, %221 : vector<2x16xf32>
    %223 = vector.extract_strided_slice %204 {offsets = [0, 192], sizes = [2, 16], strides = [1, 1]} : vector<2x448xf32> to vector<2x16xf32>
    %224 = vector.extract_strided_slice %204 {offsets = [0, 208], sizes = [2, 16], strides = [1, 1]} : vector<2x448xf32> to vector<2x16xf32>
    %225 = arith.maximumf %223, %224 : vector<2x16xf32>
    %226 = vector.extract_strided_slice %204 {offsets = [0, 224], sizes = [2, 16], strides = [1, 1]} : vector<2x448xf32> to vector<2x16xf32>
    %227 = vector.extract_strided_slice %204 {offsets = [0, 240], sizes = [2, 16], strides = [1, 1]} : vector<2x448xf32> to vector<2x16xf32>
    %228 = arith.maximumf %226, %227 : vector<2x16xf32>
    %229 = vector.extract_strided_slice %204 {offsets = [0, 256], sizes = [2, 16], strides = [1, 1]} : vector<2x448xf32> to vector<2x16xf32>
    %230 = vector.extract_strided_slice %204 {offsets = [0, 272], sizes = [2, 16], strides = [1, 1]} : vector<2x448xf32> to vector<2x16xf32>
    %231 = arith.maximumf %229, %230 : vector<2x16xf32>
    %232 = vector.extract_strided_slice %204 {offsets = [0, 288], sizes = [2, 16], strides = [1, 1]} : vector<2x448xf32> to vector<2x16xf32>
    %233 = vector.extract_strided_slice %204 {offsets = [0, 304], sizes = [2, 16], strides = [1, 1]} : vector<2x448xf32> to vector<2x16xf32>
    %234 = arith.maximumf %232, %233 : vector<2x16xf32>
    %235 = vector.extract_strided_slice %204 {offsets = [0, 320], sizes = [2, 16], strides = [1, 1]} : vector<2x448xf32> to vector<2x16xf32>
    %236 = vector.extract_strided_slice %204 {offsets = [0, 336], sizes = [2, 16], strides = [1, 1]} : vector<2x448xf32> to vector<2x16xf32>
    %237 = arith.maximumf %235, %236 : vector<2x16xf32>
    %238 = vector.extract_strided_slice %204 {offsets = [0, 352], sizes = [2, 16], strides = [1, 1]} : vector<2x448xf32> to vector<2x16xf32>
    %239 = vector.extract_strided_slice %204 {offsets = [0, 368], sizes = [2, 16], strides = [1, 1]} : vector<2x448xf32> to vector<2x16xf32>
    %240 = arith.maximumf %238, %239 : vector<2x16xf32>
    %241 = vector.extract_strided_slice %204 {offsets = [0, 384], sizes = [2, 16], strides = [1, 1]} : vector<2x448xf32> to vector<2x16xf32>
    %242 = vector.extract_strided_slice %204 {offsets = [0, 400], sizes = [2, 16], strides = [1, 1]} : vector<2x448xf32> to vector<2x16xf32>
    %243 = arith.maximumf %241, %242 : vector<2x16xf32>
    %244 = vector.extract_strided_slice %204 {offsets = [0, 416], sizes = [2, 16], strides = [1, 1]} : vector<2x448xf32> to vector<2x16xf32>
    %245 = vector.extract_strided_slice %204 {offsets = [0, 432], sizes = [2, 16], strides = [1, 1]} : vector<2x448xf32> to vector<2x16xf32>
    %246 = arith.maximumf %244, %245 : vector<2x16xf32>
    %247 = tpu.concatenate %207, %210, %213, %216, %219, %222, %225, %228, %231, %234, %237, %240, %243, %246 in 1 : vector<2x16xf32>, vector<2x16xf32>, vector<2x16xf32>, vector<2x16xf32>, vector<2x16xf32>, vector<2x16xf32>, vector<2x16xf32>, vector<2x16xf32>, vector<2x16xf32>, vector<2x16xf32>, vector<2x16xf32>, vector<2x16xf32>, vector<2x16xf32>, vector<2x16xf32> -> vector<2x224xf32>
    %c0_79 = arith.constant 0 : index
    %c5_80 = arith.constant 5 : index
    %c32_81 = arith.constant 32 : index
    %248 = vector.load %arg10[%c0_79, %c5_80, %c32_81] : memref<2x20x288xf32, #tpu.memory_space<vmem>>, vector<2x1x224xf32>
    %249 = vector.shape_cast %248 : vector<2x1x224xf32> to vector<2x224xf32>
    %250 = vector.shape_cast %247 : vector<2x224xf32> to vector<2x1x224xf32>
    tpu.vector_store %arg10[%c0_79, %c5_80, %c32_81], %250 {strides = array<i32>} : memref<2x20x288xf32, #tpu.memory_space<vmem>>, vector<2x1x224xf32>,
    %c0_82 = arith.constant 0 : index
    %c8 = arith.constant 8 : index
    %c0_83 = arith.constant 0 : index
    %251 = vector.load %arg9[%c0_82, %c8, %c0_83] : memref<2x32x448xf32, #tpu.memory_space<vmem>>, vector<2x1x448xf32>
    %252 = vector.shape_cast %251 : vector<2x1x448xf32> to vector<2x448xf32>
    %c0_84 = arith.constant 0 : index
    %c9 = arith.constant 9 : index
    %c0_85 = arith.constant 0 : index
    %253 = vector.load %arg9[%c0_84, %c9, %c0_85] : memref<2x32x448xf32, #tpu.memory_space<vmem>>, vector<2x1x448xf32>
    %254 = vector.shape_cast %253 : vector<2x1x448xf32> to vector<2x448xf32>
    %255 = arith.maximumf %252, %254 : vector<2x448xf32>
    %256 = vector.extract_strided_slice %255 {offsets = [0, 0], sizes = [2, 16], strides = [1, 1]} : vector<2x448xf32> to vector<2x16xf32>
    %257 = vector.extract_strided_slice %255 {offsets = [0, 16], sizes = [2, 16], strides = [1, 1]} : vector<2x448xf32> to vector<2x16xf32>
    %258 = arith.maximumf %256, %257 : vector<2x16xf32>
    %259 = vector.extract_strided_slice %255 {offsets = [0, 32], sizes = [2, 16], strides = [1, 1]} : vector<2x448xf32> to vector<2x16xf32>
    %260 = vector.extract_strided_slice %255 {offsets = [0, 48], sizes = [2, 16], strides = [1, 1]} : vector<2x448xf32> to vector<2x16xf32>
    %261 = arith.maximumf %259, %260 : vector<2x16xf32>
    %262 = vector.extract_strided_slice %255 {offsets = [0, 64], sizes = [2, 16], strides = [1, 1]} : vector<2x448xf32> to vector<2x16xf32>
    %263 = vector.extract_strided_slice %255 {offsets = [0, 80], sizes = [2, 16], strides = [1, 1]} : vector<2x448xf32> to vector<2x16xf32>
    %264 = arith.maximumf %262, %263 : vector<2x16xf32>
    %265 = vector.extract_strided_slice %255 {offsets = [0, 96], sizes = [2, 16], strides = [1, 1]} : vector<2x448xf32> to vector<2x16xf32>
    %266 = vector.extract_strided_slice %255 {offsets = [0, 112], sizes = [2, 16], strides = [1, 1]} : vector<2x448xf32> to vector<2x16xf32>
    %267 = arith.maximumf %265, %266 : vector<2x16xf32>
    %268 = vector.extract_strided_slice %255 {offsets = [0, 128], sizes = [2, 16], strides = [1, 1]} : vector<2x448xf32> to vector<2x16xf32>
    %269 = vector.extract_strided_slice %255 {offsets = [0, 144], sizes = [2, 16], strides = [1, 1]} : vector<2x448xf32> to vector<2x16xf32>
    %270 = arith.maximumf %268, %269 : vector<2x16xf32>
    %271 = vector.extract_strided_slice %255 {offsets = [0, 160], sizes = [2, 16], strides = [1, 1]} : vector<2x448xf32> to vector<2x16xf32>
    %272 = vector.extract_strided_slice %255 {offsets = [0, 176], sizes = [2, 16], strides = [1, 1]} : vector<2x448xf32> to vector<2x16xf32>
    %273 = arith.maximumf %271, %272 : vector<2x16xf32>
    %274 = vector.extract_strided_slice %255 {offsets = [0, 192], sizes = [2, 16], strides = [1, 1]} : vector<2x448xf32> to vector<2x16xf32>
    %275 = vector.extract_strided_slice %255 {offsets = [0, 208], sizes = [2, 16], strides = [1, 1]} : vector<2x448xf32> to vector<2x16xf32>
    %276 = arith.maximumf %274, %275 : vector<2x16xf32>
    %277 = vector.extract_strided_slice %255 {offsets = [0, 224], sizes = [2, 16], strides = [1, 1]} : vector<2x448xf32> to vector<2x16xf32>
    %278 = vector.extract_strided_slice %255 {offsets = [0, 240], sizes = [2, 16], strides = [1, 1]} : vector<2x448xf32> to vector<2x16xf32>
    %279 = arith.maximumf %277, %278 : vector<2x16xf32>
    %280 = vector.extract_strided_slice %255 {offsets = [0, 256], sizes = [2, 16], strides = [1, 1]} : vector<2x448xf32> to vector<2x16xf32>
    %281 = vector.extract_strided_slice %255 {offsets = [0, 272], sizes = [2, 16], strides = [1, 1]} : vector<2x448xf32> to vector<2x16xf32>
    %282 = arith.maximumf %280, %281 : vector<2x16xf32>
    %283 = vector.extract_strided_slice %255 {offsets = [0, 288], sizes = [2, 16], strides = [1, 1]} : vector<2x448xf32> to vector<2x16xf32>
    %284 = vector.extract_strided_slice %255 {offsets = [0, 304], sizes = [2, 16], strides = [1, 1]} : vector<2x448xf32> to vector<2x16xf32>
    %285 = arith.maximumf %283, %284 : vector<2x16xf32>
    %286 = vector.extract_strided_slice %255 {offsets = [0, 320], sizes = [2, 16], strides = [1, 1]} : vector<2x448xf32> to vector<2x16xf32>
    %287 = vector.extract_strided_slice %255 {offsets = [0, 336], sizes = [2, 16], strides = [1, 1]} : vector<2x448xf32> to vector<2x16xf32>
    %288 = arith.maximumf %286, %287 : vector<2x16xf32>
    %289 = vector.extract_strided_slice %255 {offsets = [0, 352], sizes = [2, 16], strides = [1, 1]} : vector<2x448xf32> to vector<2x16xf32>
    %290 = vector.extract_strided_slice %255 {offsets = [0, 368], sizes = [2, 16], strides = [1, 1]} : vector<2x448xf32> to vector<2x16xf32>
    %291 = arith.maximumf %289, %290 : vector<2x16xf32>
    %292 = vector.extract_strided_slice %255 {offsets = [0, 384], sizes = [2, 16], strides = [1, 1]} : vector<2x448xf32> to vector<2x16xf32>
    %293 = vector.extract_strided_slice %255 {offsets = [0, 400], sizes = [2, 16], strides = [1, 1]} : vector<2x448xf32> to vector<2x16xf32>
    %294 = arith.maximumf %292, %293 : vector<2x16xf32>
    %295 = vector.extract_strided_slice %255 {offsets = [0, 416], sizes = [2, 16], strides = [1, 1]} : vector<2x448xf32> to vector<2x16xf32>
    %296 = vector.extract_strided_slice %255 {offsets = [0, 432], sizes = [2, 16], strides = [1, 1]} : vector<2x448xf32> to vector<2x16xf32>
    %297 = arith.maximumf %295, %296 : vector<2x16xf32>
    %298 = tpu.concatenate %258, %261, %264, %267, %270, %273, %276, %279, %282, %285, %288, %291, %294, %297 in 1 : vector<2x16xf32>, vector<2x16xf32>, vector<2x16xf32>, vector<2x16xf32>, vector<2x16xf32>, vector<2x16xf32>, vector<2x16xf32>, vector<2x16xf32>, vector<2x16xf32>, vector<2x16xf32>, vector<2x16xf32>, vector<2x16xf32>, vector<2x16xf32>, vector<2x16xf32> -> vector<2x224xf32>
    %c0_86 = arith.constant 0 : index
    %c6_87 = arith.constant 6 : index
    %c32_88 = arith.constant 32 : index
    %299 = vector.load %arg10[%c0_86, %c6_87, %c32_88] : memref<2x20x288xf32, #tpu.memory_space<vmem>>, vector<2x1x224xf32>
    %300 = vector.shape_cast %299 : vector<2x1x224xf32> to vector<2x224xf32>
    %301 = vector.shape_cast %298 : vector<2x224xf32> to vector<2x1x224xf32>
    tpu.vector_store %arg10[%c0_86, %c6_87, %c32_88], %301 {strides = array<i32>} : memref<2x20x288xf32, #tpu.memory_space<vmem>>, vector<2x1x224xf32>,
    %c0_89 = arith.constant 0 : index
    %c10 = arith.constant 10 : index
    %c0_90 = arith.constant 0 : index
    %302 = vector.load %arg9[%c0_89, %c10, %c0_90] : memref<2x32x448xf32, #tpu.memory_space<vmem>>, vector<2x1x448xf32>
    %303 = vector.shape_cast %302 : vector<2x1x448xf32> to vector<2x448xf32>
    %c0_91 = arith.constant 0 : index
    %c11 = arith.constant 11 : index
    %c0_92 = arith.constant 0 : index
    %304 = vector.load %arg9[%c0_91, %c11, %c0_92] : memref<2x32x448xf32, #tpu.memory_space<vmem>>, vector<2x1x448xf32>
    %305 = vector.shape_cast %304 : vector<2x1x448xf32> to vector<2x448xf32>
    %306 = arith.maximumf %303, %305 : vector<2x448xf32>
    %307 = vector.extract_strided_slice %306 {offsets = [0, 0], sizes = [2, 16], strides = [1, 1]} : vector<2x448xf32> to vector<2x16xf32>
    %308 = vector.extract_strided_slice %306 {offsets = [0, 16], sizes = [2, 16], strides = [1, 1]} : vector<2x448xf32> to vector<2x16xf32>
    %309 = arith.maximumf %307, %308 : vector<2x16xf32>
    %310 = vector.extract_strided_slice %306 {offsets = [0, 32], sizes = [2, 16], strides = [1, 1]} : vector<2x448xf32> to vector<2x16xf32>
    %311 = vector.extract_strided_slice %306 {offsets = [0, 48], sizes = [2, 16], strides = [1, 1]} : vector<2x448xf32> to vector<2x16xf32>
    %312 = arith.maximumf %310, %311 : vector<2x16xf32>
    %313 = vector.extract_strided_slice %306 {offsets = [0, 64], sizes = [2, 16], strides = [1, 1]} : vector<2x448xf32> to vector<2x16xf32>
    %314 = vector.extract_strided_slice %306 {offsets = [0, 80], sizes = [2, 16], strides = [1, 1]} : vector<2x448xf32> to vector<2x16xf32>
    %315 = arith.maximumf %313, %314 : vector<2x16xf32>
    %316 = vector.extract_strided_slice %306 {offsets = [0, 96], sizes = [2, 16], strides = [1, 1]} : vector<2x448xf32> to vector<2x16xf32>
    %317 = vector.extract_strided_slice %306 {offsets = [0, 112], sizes = [2, 16], strides = [1, 1]} : vector<2x448xf32> to vector<2x16xf32>
    %318 = arith.maximumf %316, %317 : vector<2x16xf32>
    %319 = vector.extract_strided_slice %306 {offsets = [0, 128], sizes = [2, 16], strides = [1, 1]} : vector<2x448xf32> to vector<2x16xf32>
    %320 = vector.extract_strided_slice %306 {offsets = [0, 144], sizes = [2, 16], strides = [1, 1]} : vector<2x448xf32> to vector<2x16xf32>
    %321 = arith.maximumf %319, %320 : vector<2x16xf32>
    %322 = vector.extract_strided_slice %306 {offsets = [0, 160], sizes = [2, 16], strides = [1, 1]} : vector<2x448xf32> to vector<2x16xf32>
    %323 = vector.extract_strided_slice %306 {offsets = [0, 176], sizes = [2, 16], strides = [1, 1]} : vector<2x448xf32> to vector<2x16xf32>
    %324 = arith.maximumf %322, %323 : vector<2x16xf32>
    %325 = vector.extract_strided_slice %306 {offsets = [0, 192], sizes = [2, 16], strides = [1, 1]} : vector<2x448xf32> to vector<2x16xf32>
    %326 = vector.extract_strided_slice %306 {offsets = [0, 208], sizes = [2, 16], strides = [1, 1]} : vector<2x448xf32> to vector<2x16xf32>
    %327 = arith.maximumf %325, %326 : vector<2x16xf32>
    %328 = vector.extract_strided_slice %306 {offsets = [0, 224], sizes = [2, 16], strides = [1, 1]} : vector<2x448xf32> to vector<2x16xf32>
    %329 = vector.extract_strided_slice %306 {offsets = [0, 240], sizes = [2, 16], strides = [1, 1]} : vector<2x448xf32> to vector<2x16xf32>
    %330 = arith.maximumf %328, %329 : vector<2x16xf32>
    %331 = vector.extract_strided_slice %306 {offsets = [0, 256], sizes = [2, 16], strides = [1, 1]} : vector<2x448xf32> to vector<2x16xf32>
    %332 = vector.extract_strided_slice %306 {offsets = [0, 272], sizes = [2, 16], strides = [1, 1]} : vector<2x448xf32> to vector<2x16xf32>
    %333 = arith.maximumf %331, %332 : vector<2x16xf32>
    %334 = vector.extract_strided_slice %306 {offsets = [0, 288], sizes = [2, 16], strides = [1, 1]} : vector<2x448xf32> to vector<2x16xf32>
    %335 = vector.extract_strided_slice %306 {offsets = [0, 304], sizes = [2, 16], strides = [1, 1]} : vector<2x448xf32> to vector<2x16xf32>
    %336 = arith.maximumf %334, %335 : vector<2x16xf32>
    %337 = vector.extract_strided_slice %306 {offsets = [0, 320], sizes = [2, 16], strides = [1, 1]} : vector<2x448xf32> to vector<2x16xf32>
    %338 = vector.extract_strided_slice %306 {offsets = [0, 336], sizes = [2, 16], strides = [1, 1]} : vector<2x448xf32> to vector<2x16xf32>
    %339 = arith.maximumf %337, %338 : vector<2x16xf32>
    %340 = vector.extract_strided_slice %306 {offsets = [0, 352], sizes = [2, 16], strides = [1, 1]} : vector<2x448xf32> to vector<2x16xf32>
    %341 = vector.extract_strided_slice %306 {offsets = [0, 368], sizes = [2, 16], strides = [1, 1]} : vector<2x448xf32> to vector<2x16xf32>
    %342 = arith.maximumf %340, %341 : vector<2x16xf32>
    %343 = vector.extract_strided_slice %306 {offsets = [0, 384], sizes = [2, 16], strides = [1, 1]} : vector<2x448xf32> to vector<2x16xf32>
    %344 = vector.extract_strided_slice %306 {offsets = [0, 400], sizes = [2, 16], strides = [1, 1]} : vector<2x448xf32> to vector<2x16xf32>
    %345 = arith.maximumf %343, %344 : vector<2x16xf32>
    %346 = vector.extract_strided_slice %306 {offsets = [0, 416], sizes = [2, 16], strides = [1, 1]} : vector<2x448xf32> to vector<2x16xf32>
    %347 = vector.extract_strided_slice %306 {offsets = [0, 432], sizes = [2, 16], strides = [1, 1]} : vector<2x448xf32> to vector<2x16xf32>
    %348 = arith.maximumf %346, %347 : vector<2x16xf32>
    %349 = tpu.concatenate %309, %312, %315, %318, %321, %324, %327, %330, %333, %336, %339, %342, %345, %348 in 1 : vector<2x16xf32>, vector<2x16xf32>, vector<2x16xf32>, vector<2x16xf32>, vector<2x16xf32>, vector<2x16xf32>, vector<2x16xf32>, vector<2x16xf32>, vector<2x16xf32>, vector<2x16xf32>, vector<2x16xf32>, vector<2x16xf32>, vector<2x16xf32>, vector<2x16xf32> -> vector<2x224xf32>
    %c0_93 = arith.constant 0 : index
    %c7_94 = arith.constant 7 : index
    %c32_95 = arith.constant 32 : index
    %350 = vector.load %arg10[%c0_93, %c7_94, %c32_95] : memref<2x20x288xf32, #tpu.memory_space<vmem>>, vector<2x1x224xf32>
    %351 = vector.shape_cast %350 : vector<2x1x224xf32> to vector<2x224xf32>
    %352 = vector.shape_cast %349 : vector<2x224xf32> to vector<2x1x224xf32>
    tpu.vector_store %arg10[%c0_93, %c7_94, %c32_95], %352 {strides = array<i32>} : memref<2x20x288xf32, #tpu.memory_space<vmem>>, vector<2x1x224xf32>,
    %c0_96 = arith.constant 0 : index
    %c12 = arith.constant 12 : index
    %c0_97 = arith.constant 0 : index
    %353 = vector.load %arg9[%c0_96, %c12, %c0_97] : memref<2x32x448xf32, #tpu.memory_space<vmem>>, vector<2x1x448xf32>
    %354 = vector.shape_cast %353 : vector<2x1x448xf32> to vector<2x448xf32>
    %c0_98 = arith.constant 0 : index
    %c13 = arith.constant 13 : index
    %c0_99 = arith.constant 0 : index
    %355 = vector.load %arg9[%c0_98, %c13, %c0_99] : memref<2x32x448xf32, #tpu.memory_space<vmem>>, vector<2x1x448xf32>
    %356 = vector.shape_cast %355 : vector<2x1x448xf32> to vector<2x448xf32>
    %357 = arith.maximumf %354, %356 : vector<2x448xf32>
    %358 = vector.extract_strided_slice %357 {offsets = [0, 0], sizes = [2, 16], strides = [1, 1]} : vector<2x448xf32> to vector<2x16xf32>
    %359 = vector.extract_strided_slice %357 {offsets = [0, 16], sizes = [2, 16], strides = [1, 1]} : vector<2x448xf32> to vector<2x16xf32>
    %360 = arith.maximumf %358, %359 : vector<2x16xf32>
    %361 = vector.extract_strided_slice %357 {offsets = [0, 32], sizes = [2, 16], strides = [1, 1]} : vector<2x448xf32> to vector<2x16xf32>
    %362 = vector.extract_strided_slice %357 {offsets = [0, 48], sizes = [2, 16], strides = [1, 1]} : vector<2x448xf32> to vector<2x16xf32>
    %363 = arith.maximumf %361, %362 : vector<2x16xf32>
    %364 = vector.extract_strided_slice %357 {offsets = [0, 64], sizes = [2, 16], strides = [1, 1]} : vector<2x448xf32> to vector<2x16xf32>
    %365 = vector.extract_strided_slice %357 {offsets = [0, 80], sizes = [2, 16], strides = [1, 1]} : vector<2x448xf32> to vector<2x16xf32>
    %366 = arith.maximumf %364, %365 : vector<2x16xf32>
    %367 = vector.extract_strided_slice %357 {offsets = [0, 96], sizes = [2, 16], strides = [1, 1]} : vector<2x448xf32> to vector<2x16xf32>
    %368 = vector.extract_strided_slice %357 {offsets = [0, 112], sizes = [2, 16], strides = [1, 1]} : vector<2x448xf32> to vector<2x16xf32>
    %369 = arith.maximumf %367, %368 : vector<2x16xf32>
    %370 = vector.extract_strided_slice %357 {offsets = [0, 128], sizes = [2, 16], strides = [1, 1]} : vector<2x448xf32> to vector<2x16xf32>
    %371 = vector.extract_strided_slice %357 {offsets = [0, 144], sizes = [2, 16], strides = [1, 1]} : vector<2x448xf32> to vector<2x16xf32>
    %372 = arith.maximumf %370, %371 : vector<2x16xf32>
    %373 = vector.extract_strided_slice %357 {offsets = [0, 160], sizes = [2, 16], strides = [1, 1]} : vector<2x448xf32> to vector<2x16xf32>
    %374 = vector.extract_strided_slice %357 {offsets = [0, 176], sizes = [2, 16], strides = [1, 1]} : vector<2x448xf32> to vector<2x16xf32>
    %375 = arith.maximumf %373, %374 : vector<2x16xf32>
    %376 = vector.extract_strided_slice %357 {offsets = [0, 192], sizes = [2, 16], strides = [1, 1]} : vector<2x448xf32> to vector<2x16xf32>
    %377 = vector.extract_strided_slice %357 {offsets = [0, 208], sizes = [2, 16], strides = [1, 1]} : vector<2x448xf32> to vector<2x16xf32>
    %378 = arith.maximumf %376, %377 : vector<2x16xf32>
    %379 = vector.extract_strided_slice %357 {offsets = [0, 224], sizes = [2, 16], strides = [1, 1]} : vector<2x448xf32> to vector<2x16xf32>
    %380 = vector.extract_strided_slice %357 {offsets = [0, 240], sizes = [2, 16], strides = [1, 1]} : vector<2x448xf32> to vector<2x16xf32>
    %381 = arith.maximumf %379, %380 : vector<2x16xf32>
    %382 = vector.extract_strided_slice %357 {offsets = [0, 256], sizes = [2, 16], strides = [1, 1]} : vector<2x448xf32> to vector<2x16xf32>
    %383 = vector.extract_strided_slice %357 {offsets = [0, 272], sizes = [2, 16], strides = [1, 1]} : vector<2x448xf32> to vector<2x16xf32>
    %384 = arith.maximumf %382, %383 : vector<2x16xf32>
    %385 = vector.extract_strided_slice %357 {offsets = [0, 288], sizes = [2, 16], strides = [1, 1]} : vector<2x448xf32> to vector<2x16xf32>
    %386 = vector.extract_strided_slice %357 {offsets = [0, 304], sizes = [2, 16], strides = [1, 1]} : vector<2x448xf32> to vector<2x16xf32>
    %387 = arith.maximumf %385, %386 : vector<2x16xf32>
    %388 = vector.extract_strided_slice %357 {offsets = [0, 320], sizes = [2, 16], strides = [1, 1]} : vector<2x448xf32> to vector<2x16xf32>
    %389 = vector.extract_strided_slice %357 {offsets = [0, 336], sizes = [2, 16], strides = [1, 1]} : vector<2x448xf32> to vector<2x16xf32>
    %390 = arith.maximumf %388, %389 : vector<2x16xf32>
    %391 = vector.extract_strided_slice %357 {offsets = [0, 352], sizes = [2, 16], strides = [1, 1]} : vector<2x448xf32> to vector<2x16xf32>
    %392 = vector.extract_strided_slice %357 {offsets = [0, 368], sizes = [2, 16], strides = [1, 1]} : vector<2x448xf32> to vector<2x16xf32>
    %393 = arith.maximumf %391, %392 : vector<2x16xf32>
    %394 = vector.extract_strided_slice %357 {offsets = [0, 384], sizes = [2, 16], strides = [1, 1]} : vector<2x448xf32> to vector<2x16xf32>
    %395 = vector.extract_strided_slice %357 {offsets = [0, 400], sizes = [2, 16], strides = [1, 1]} : vector<2x448xf32> to vector<2x16xf32>
    %396 = arith.maximumf %394, %395 : vector<2x16xf32>
    %397 = vector.extract_strided_slice %357 {offsets = [0, 416], sizes = [2, 16], strides = [1, 1]} : vector<2x448xf32> to vector<2x16xf32>
    %398 = vector.extract_strided_slice %357 {offsets = [0, 432], sizes = [2, 16], strides = [1, 1]} : vector<2x448xf32> to vector<2x16xf32>
    %399 = arith.maximumf %397, %398 : vector<2x16xf32>
    %400 = tpu.concatenate %360, %363, %366, %369, %372, %375, %378, %381, %384, %387, %390, %393, %396, %399 in 1 : vector<2x16xf32>, vector<2x16xf32>, vector<2x16xf32>, vector<2x16xf32>, vector<2x16xf32>, vector<2x16xf32>, vector<2x16xf32>, vector<2x16xf32>, vector<2x16xf32>, vector<2x16xf32>, vector<2x16xf32>, vector<2x16xf32>, vector<2x16xf32>, vector<2x16xf32> -> vector<2x224xf32>
    %c0_100 = arith.constant 0 : index
    %c8_101 = arith.constant 8 : index
    %c32_102 = arith.constant 32 : index
    %401 = vector.load %arg10[%c0_100, %c8_101, %c32_102] : memref<2x20x288xf32, #tpu.memory_space<vmem>>, vector<2x1x224xf32>
    %402 = vector.shape_cast %401 : vector<2x1x224xf32> to vector<2x224xf32>
    %403 = vector.shape_cast %400 : vector<2x224xf32> to vector<2x1x224xf32>
    tpu.vector_store %arg10[%c0_100, %c8_101, %c32_102], %403 {strides = array<i32>} : memref<2x20x288xf32, #tpu.memory_space<vmem>>, vector<2x1x224xf32>,
    %c0_103 = arith.constant 0 : index
    %c14 = arith.constant 14 : index
    %c0_104 = arith.constant 0 : index
    %404 = vector.load %arg9[%c0_103, %c14, %c0_104] : memref<2x32x448xf32, #tpu.memory_space<vmem>>, vector<2x1x448xf32>
    %405 = vector.shape_cast %404 : vector<2x1x448xf32> to vector<2x448xf32>
    %c0_105 = arith.constant 0 : index
    %c15 = arith.constant 15 : index
    %c0_106 = arith.constant 0 : index
    %406 = vector.load %arg9[%c0_105, %c15, %c0_106] : memref<2x32x448xf32, #tpu.memory_space<vmem>>, vector<2x1x448xf32>
    %407 = vector.shape_cast %406 : vector<2x1x448xf32> to vector<2x448xf32>
    %408 = arith.maximumf %405, %407 : vector<2x448xf32>
    %409 = vector.extract_strided_slice %408 {offsets = [0, 0], sizes = [2, 16], strides = [1, 1]} : vector<2x448xf32> to vector<2x16xf32>
    %410 = vector.extract_strided_slice %408 {offsets = [0, 16], sizes = [2, 16], strides = [1, 1]} : vector<2x448xf32> to vector<2x16xf32>
    %411 = arith.maximumf %409, %410 : vector<2x16xf32>
    %412 = vector.extract_strided_slice %408 {offsets = [0, 32], sizes = [2, 16], strides = [1, 1]} : vector<2x448xf32> to vector<2x16xf32>
    %413 = vector.extract_strided_slice %408 {offsets = [0, 48], sizes = [2, 16], strides = [1, 1]} : vector<2x448xf32> to vector<2x16xf32>
    %414 = arith.maximumf %412, %413 : vector<2x16xf32>
    %415 = vector.extract_strided_slice %408 {offsets = [0, 64], sizes = [2, 16], strides = [1, 1]} : vector<2x448xf32> to vector<2x16xf32>
    %416 = vector.extract_strided_slice %408 {offsets = [0, 80], sizes = [2, 16], strides = [1, 1]} : vector<2x448xf32> to vector<2x16xf32>
    %417 = arith.maximumf %415, %416 : vector<2x16xf32>
    %418 = vector.extract_strided_slice %408 {offsets = [0, 96], sizes = [2, 16], strides = [1, 1]} : vector<2x448xf32> to vector<2x16xf32>
    %419 = vector.extract_strided_slice %408 {offsets = [0, 112], sizes = [2, 16], strides = [1, 1]} : vector<2x448xf32> to vector<2x16xf32>
    %420 = arith.maximumf %418, %419 : vector<2x16xf32>
    %421 = vector.extract_strided_slice %408 {offsets = [0, 128], sizes = [2, 16], strides = [1, 1]} : vector<2x448xf32> to vector<2x16xf32>
    %422 = vector.extract_strided_slice %408 {offsets = [0, 144], sizes = [2, 16], strides = [1, 1]} : vector<2x448xf32> to vector<2x16xf32>
    %423 = arith.maximumf %421, %422 : vector<2x16xf32>
    %424 = vector.extract_strided_slice %408 {offsets = [0, 160], sizes = [2, 16], strides = [1, 1]} : vector<2x448xf32> to vector<2x16xf32>
    %425 = vector.extract_strided_slice %408 {offsets = [0, 176], sizes = [2, 16], strides = [1, 1]} : vector<2x448xf32> to vector<2x16xf32>
    %426 = arith.maximumf %424, %425 : vector<2x16xf32>
    %427 = vector.extract_strided_slice %408 {offsets = [0, 192], sizes = [2, 16], strides = [1, 1]} : vector<2x448xf32> to vector<2x16xf32>
    %428 = vector.extract_strided_slice %408 {offsets = [0, 208], sizes = [2, 16], strides = [1, 1]} : vector<2x448xf32> to vector<2x16xf32>
    %429 = arith.maximumf %427, %428 : vector<2x16xf32>
    %430 = vector.extract_strided_slice %408 {offsets = [0, 224], sizes = [2, 16], strides = [1, 1]} : vector<2x448xf32> to vector<2x16xf32>
    %431 = vector.extract_strided_slice %408 {offsets = [0, 240], sizes = [2, 16], strides = [1, 1]} : vector<2x448xf32> to vector<2x16xf32>
    %432 = arith.maximumf %430, %431 : vector<2x16xf32>
    %433 = vector.extract_strided_slice %408 {offsets = [0, 256], sizes = [2, 16], strides = [1, 1]} : vector<2x448xf32> to vector<2x16xf32>
    %434 = vector.extract_strided_slice %408 {offsets = [0, 272], sizes = [2, 16], strides = [1, 1]} : vector<2x448xf32> to vector<2x16xf32>
    %435 = arith.maximumf %433, %434 : vector<2x16xf32>
    %436 = vector.extract_strided_slice %408 {offsets = [0, 288], sizes = [2, 16], strides = [1, 1]} : vector<2x448xf32> to vector<2x16xf32>
    %437 = vector.extract_strided_slice %408 {offsets = [0, 304], sizes = [2, 16], strides = [1, 1]} : vector<2x448xf32> to vector<2x16xf32>
    %438 = arith.maximumf %436, %437 : vector<2x16xf32>
    %439 = vector.extract_strided_slice %408 {offsets = [0, 320], sizes = [2, 16], strides = [1, 1]} : vector<2x448xf32> to vector<2x16xf32>
    %440 = vector.extract_strided_slice %408 {offsets = [0, 336], sizes = [2, 16], strides = [1, 1]} : vector<2x448xf32> to vector<2x16xf32>
    %441 = arith.maximumf %439, %440 : vector<2x16xf32>
    %442 = vector.extract_strided_slice %408 {offsets = [0, 352], sizes = [2, 16], strides = [1, 1]} : vector<2x448xf32> to vector<2x16xf32>
    %443 = vector.extract_strided_slice %408 {offsets = [0, 368], sizes = [2, 16], strides = [1, 1]} : vector<2x448xf32> to vector<2x16xf32>
    %444 = arith.maximumf %442, %443 : vector<2x16xf32>
    %445 = vector.extract_strided_slice %408 {offsets = [0, 384], sizes = [2, 16], strides = [1, 1]} : vector<2x448xf32> to vector<2x16xf32>
    %446 = vector.extract_strided_slice %408 {offsets = [0, 400], sizes = [2, 16], strides = [1, 1]} : vector<2x448xf32> to vector<2x16xf32>
    %447 = arith.maximumf %445, %446 : vector<2x16xf32>
    %448 = vector.extract_strided_slice %408 {offsets = [0, 416], sizes = [2, 16], strides = [1, 1]} : vector<2x448xf32> to vector<2x16xf32>
    %449 = vector.extract_strided_slice %408 {offsets = [0, 432], sizes = [2, 16], strides = [1, 1]} : vector<2x448xf32> to vector<2x16xf32>
    %450 = arith.maximumf %448, %449 : vector<2x16xf32>
    %451 = tpu.concatenate %411, %414, %417, %420, %423, %426, %429, %432, %435, %438, %441, %444, %447, %450 in 1 : vector<2x16xf32>, vector<2x16xf32>, vector<2x16xf32>, vector<2x16xf32>, vector<2x16xf32>, vector<2x16xf32>, vector<2x16xf32>, vector<2x16xf32>, vector<2x16xf32>, vector<2x16xf32>, vector<2x16xf32>, vector<2x16xf32>, vector<2x16xf32>, vector<2x16xf32> -> vector<2x224xf32>
    %c0_107 = arith.constant 0 : index
    %c9_108 = arith.constant 9 : index
    %c32_109 = arith.constant 32 : index
    %452 = vector.load %arg10[%c0_107, %c9_108, %c32_109] : memref<2x20x288xf32, #tpu.memory_space<vmem>>, vector<2x1x224xf32>
    %453 = vector.shape_cast %452 : vector<2x1x224xf32> to vector<2x224xf32>
    %454 = vector.shape_cast %451 : vector<2x224xf32> to vector<2x1x224xf32>
    tpu.vector_store %arg10[%c0_107, %c9_108, %c32_109], %454 {strides = array<i32>} : memref<2x20x288xf32, #tpu.memory_space<vmem>>, vector<2x1x224xf32>,
    %c0_110 = arith.constant 0 : index
    %c16 = arith.constant 16 : index
    %c0_111 = arith.constant 0 : index
    %455 = vector.load %arg9[%c0_110, %c16, %c0_111] : memref<2x32x448xf32, #tpu.memory_space<vmem>>, vector<2x1x448xf32>
    %456 = vector.shape_cast %455 : vector<2x1x448xf32> to vector<2x448xf32>
    %c0_112 = arith.constant 0 : index
    %c17 = arith.constant 17 : index
    %c0_113 = arith.constant 0 : index
    %457 = vector.load %arg9[%c0_112, %c17, %c0_113] : memref<2x32x448xf32, #tpu.memory_space<vmem>>, vector<2x1x448xf32>
    %458 = vector.shape_cast %457 : vector<2x1x448xf32> to vector<2x448xf32>
    %459 = arith.maximumf %456, %458 : vector<2x448xf32>
    %460 = vector.extract_strided_slice %459 {offsets = [0, 0], sizes = [2, 16], strides = [1, 1]} : vector<2x448xf32> to vector<2x16xf32>
    %461 = vector.extract_strided_slice %459 {offsets = [0, 16], sizes = [2, 16], strides = [1, 1]} : vector<2x448xf32> to vector<2x16xf32>
    %462 = arith.maximumf %460, %461 : vector<2x16xf32>
    %463 = vector.extract_strided_slice %459 {offsets = [0, 32], sizes = [2, 16], strides = [1, 1]} : vector<2x448xf32> to vector<2x16xf32>
    %464 = vector.extract_strided_slice %459 {offsets = [0, 48], sizes = [2, 16], strides = [1, 1]} : vector<2x448xf32> to vector<2x16xf32>
    %465 = arith.maximumf %463, %464 : vector<2x16xf32>
    %466 = vector.extract_strided_slice %459 {offsets = [0, 64], sizes = [2, 16], strides = [1, 1]} : vector<2x448xf32> to vector<2x16xf32>
    %467 = vector.extract_strided_slice %459 {offsets = [0, 80], sizes = [2, 16], strides = [1, 1]} : vector<2x448xf32> to vector<2x16xf32>
    %468 = arith.maximumf %466, %467 : vector<2x16xf32>
    %469 = vector.extract_strided_slice %459 {offsets = [0, 96], sizes = [2, 16], strides = [1, 1]} : vector<2x448xf32> to vector<2x16xf32>
    %470 = vector.extract_strided_slice %459 {offsets = [0, 112], sizes = [2, 16], strides = [1, 1]} : vector<2x448xf32> to vector<2x16xf32>
    %471 = arith.maximumf %469, %470 : vector<2x16xf32>
    %472 = vector.extract_strided_slice %459 {offsets = [0, 128], sizes = [2, 16], strides = [1, 1]} : vector<2x448xf32> to vector<2x16xf32>
    %473 = vector.extract_strided_slice %459 {offsets = [0, 144], sizes = [2, 16], strides = [1, 1]} : vector<2x448xf32> to vector<2x16xf32>
    %474 = arith.maximumf %472, %473 : vector<2x16xf32>
    %475 = vector.extract_strided_slice %459 {offsets = [0, 160], sizes = [2, 16], strides = [1, 1]} : vector<2x448xf32> to vector<2x16xf32>
    %476 = vector.extract_strided_slice %459 {offsets = [0, 176], sizes = [2, 16], strides = [1, 1]} : vector<2x448xf32> to vector<2x16xf32>
    %477 = arith.maximumf %475, %476 : vector<2x16xf32>
    %478 = vector.extract_strided_slice %459 {offsets = [0, 192], sizes = [2, 16], strides = [1, 1]} : vector<2x448xf32> to vector<2x16xf32>
    %479 = vector.extract_strided_slice %459 {offsets = [0, 208], sizes = [2, 16], strides = [1, 1]} : vector<2x448xf32> to vector<2x16xf32>
    %480 = arith.maximumf %478, %479 : vector<2x16xf32>
    %481 = vector.extract_strided_slice %459 {offsets = [0, 224], sizes = [2, 16], strides = [1, 1]} : vector<2x448xf32> to vector<2x16xf32>
    %482 = vector.extract_strided_slice %459 {offsets = [0, 240], sizes = [2, 16], strides = [1, 1]} : vector<2x448xf32> to vector<2x16xf32>
    %483 = arith.maximumf %481, %482 : vector<2x16xf32>
    %484 = vector.extract_strided_slice %459 {offsets = [0, 256], sizes = [2, 16], strides = [1, 1]} : vector<2x448xf32> to vector<2x16xf32>
    %485 = vector.extract_strided_slice %459 {offsets = [0, 272], sizes = [2, 16], strides = [1, 1]} : vector<2x448xf32> to vector<2x16xf32>
    %486 = arith.maximumf %484, %485 : vector<2x16xf32>
    %487 = vector.extract_strided_slice %459 {offsets = [0, 288], sizes = [2, 16], strides = [1, 1]} : vector<2x448xf32> to vector<2x16xf32>
    %488 = vector.extract_strided_slice %459 {offsets = [0, 304], sizes = [2, 16], strides = [1, 1]} : vector<2x448xf32> to vector<2x16xf32>
    %489 = arith.maximumf %487, %488 : vector<2x16xf32>
    %490 = vector.extract_strided_slice %459 {offsets = [0, 320], sizes = [2, 16], strides = [1, 1]} : vector<2x448xf32> to vector<2x16xf32>
    %491 = vector.extract_strided_slice %459 {offsets = [0, 336], sizes = [2, 16], strides = [1, 1]} : vector<2x448xf32> to vector<2x16xf32>
    %492 = arith.maximumf %490, %491 : vector<2x16xf32>
    %493 = vector.extract_strided_slice %459 {offsets = [0, 352], sizes = [2, 16], strides = [1, 1]} : vector<2x448xf32> to vector<2x16xf32>
    %494 = vector.extract_strided_slice %459 {offsets = [0, 368], sizes = [2, 16], strides = [1, 1]} : vector<2x448xf32> to vector<2x16xf32>
    %495 = arith.maximumf %493, %494 : vector<2x16xf32>
    %496 = vector.extract_strided_slice %459 {offsets = [0, 384], sizes = [2, 16], strides = [1, 1]} : vector<2x448xf32> to vector<2x16xf32>
    %497 = vector.extract_strided_slice %459 {offsets = [0, 400], sizes = [2, 16], strides = [1, 1]} : vector<2x448xf32> to vector<2x16xf32>
    %498 = arith.maximumf %496, %497 : vector<2x16xf32>
    %499 = vector.extract_strided_slice %459 {offsets = [0, 416], sizes = [2, 16], strides = [1, 1]} : vector<2x448xf32> to vector<2x16xf32>
    %500 = vector.extract_strided_slice %459 {offsets = [0, 432], sizes = [2, 16], strides = [1, 1]} : vector<2x448xf32> to vector<2x16xf32>
    %501 = arith.maximumf %499, %500 : vector<2x16xf32>
    %502 = tpu.concatenate %462, %465, %468, %471, %474, %477, %480, %483, %486, %489, %492, %495, %498, %501 in 1 : vector<2x16xf32>, vector<2x16xf32>, vector<2x16xf32>, vector<2x16xf32>, vector<2x16xf32>, vector<2x16xf32>, vector<2x16xf32>, vector<2x16xf32>, vector<2x16xf32>, vector<2x16xf32>, vector<2x16xf32>, vector<2x16xf32>, vector<2x16xf32>, vector<2x16xf32> -> vector<2x224xf32>
    %c0_114 = arith.constant 0 : index
    %c10_115 = arith.constant 10 : index
    %c32_116 = arith.constant 32 : index
    %503 = vector.load %arg10[%c0_114, %c10_115, %c32_116] : memref<2x20x288xf32, #tpu.memory_space<vmem>>, vector<2x1x224xf32>
    %504 = vector.shape_cast %503 : vector<2x1x224xf32> to vector<2x224xf32>
    %505 = vector.shape_cast %502 : vector<2x224xf32> to vector<2x1x224xf32>
    tpu.vector_store %arg10[%c0_114, %c10_115, %c32_116], %505 {strides = array<i32>} : memref<2x20x288xf32, #tpu.memory_space<vmem>>, vector<2x1x224xf32>,
    %c0_117 = arith.constant 0 : index
    %c18 = arith.constant 18 : index
    %c0_118 = arith.constant 0 : index
    %506 = vector.load %arg9[%c0_117, %c18, %c0_118] : memref<2x32x448xf32, #tpu.memory_space<vmem>>, vector<2x1x448xf32>
    %507 = vector.shape_cast %506 : vector<2x1x448xf32> to vector<2x448xf32>
    %c0_119 = arith.constant 0 : index
    %c19 = arith.constant 19 : index
    %c0_120 = arith.constant 0 : index
    %508 = vector.load %arg9[%c0_119, %c19, %c0_120] : memref<2x32x448xf32, #tpu.memory_space<vmem>>, vector<2x1x448xf32>
    %509 = vector.shape_cast %508 : vector<2x1x448xf32> to vector<2x448xf32>
    %510 = arith.maximumf %507, %509 : vector<2x448xf32>
    %511 = vector.extract_strided_slice %510 {offsets = [0, 0], sizes = [2, 16], strides = [1, 1]} : vector<2x448xf32> to vector<2x16xf32>
    %512 = vector.extract_strided_slice %510 {offsets = [0, 16], sizes = [2, 16], strides = [1, 1]} : vector<2x448xf32> to vector<2x16xf32>
    %513 = arith.maximumf %511, %512 : vector<2x16xf32>
    %514 = vector.extract_strided_slice %510 {offsets = [0, 32], sizes = [2, 16], strides = [1, 1]} : vector<2x448xf32> to vector<2x16xf32>
    %515 = vector.extract_strided_slice %510 {offsets = [0, 48], sizes = [2, 16], strides = [1, 1]} : vector<2x448xf32> to vector<2x16xf32>
    %516 = arith.maximumf %514, %515 : vector<2x16xf32>
    %517 = vector.extract_strided_slice %510 {offsets = [0, 64], sizes = [2, 16], strides = [1, 1]} : vector<2x448xf32> to vector<2x16xf32>
    %518 = vector.extract_strided_slice %510 {offsets = [0, 80], sizes = [2, 16], strides = [1, 1]} : vector<2x448xf32> to vector<2x16xf32>
    %519 = arith.maximumf %517, %518 : vector<2x16xf32>
    %520 = vector.extract_strided_slice %510 {offsets = [0, 96], sizes = [2, 16], strides = [1, 1]} : vector<2x448xf32> to vector<2x16xf32>
    %521 = vector.extract_strided_slice %510 {offsets = [0, 112], sizes = [2, 16], strides = [1, 1]} : vector<2x448xf32> to vector<2x16xf32>
    %522 = arith.maximumf %520, %521 : vector<2x16xf32>
    %523 = vector.extract_strided_slice %510 {offsets = [0, 128], sizes = [2, 16], strides = [1, 1]} : vector<2x448xf32> to vector<2x16xf32>
    %524 = vector.extract_strided_slice %510 {offsets = [0, 144], sizes = [2, 16], strides = [1, 1]} : vector<2x448xf32> to vector<2x16xf32>
    %525 = arith.maximumf %523, %524 : vector<2x16xf32>
    %526 = vector.extract_strided_slice %510 {offsets = [0, 160], sizes = [2, 16], strides = [1, 1]} : vector<2x448xf32> to vector<2x16xf32>
    %527 = vector.extract_strided_slice %510 {offsets = [0, 176], sizes = [2, 16], strides = [1, 1]} : vector<2x448xf32> to vector<2x16xf32>
    %528 = arith.maximumf %526, %527 : vector<2x16xf32>
    %529 = vector.extract_strided_slice %510 {offsets = [0, 192], sizes = [2, 16], strides = [1, 1]} : vector<2x448xf32> to vector<2x16xf32>
    %530 = vector.extract_strided_slice %510 {offsets = [0, 208], sizes = [2, 16], strides = [1, 1]} : vector<2x448xf32> to vector<2x16xf32>
    %531 = arith.maximumf %529, %530 : vector<2x16xf32>
    %532 = vector.extract_strided_slice %510 {offsets = [0, 224], sizes = [2, 16], strides = [1, 1]} : vector<2x448xf32> to vector<2x16xf32>
    %533 = vector.extract_strided_slice %510 {offsets = [0, 240], sizes = [2, 16], strides = [1, 1]} : vector<2x448xf32> to vector<2x16xf32>
    %534 = arith.maximumf %532, %533 : vector<2x16xf32>
    %535 = vector.extract_strided_slice %510 {offsets = [0, 256], sizes = [2, 16], strides = [1, 1]} : vector<2x448xf32> to vector<2x16xf32>
    %536 = vector.extract_strided_slice %510 {offsets = [0, 272], sizes = [2, 16], strides = [1, 1]} : vector<2x448xf32> to vector<2x16xf32>
    %537 = arith.maximumf %535, %536 : vector<2x16xf32>
    %538 = vector.extract_strided_slice %510 {offsets = [0, 288], sizes = [2, 16], strides = [1, 1]} : vector<2x448xf32> to vector<2x16xf32>
    %539 = vector.extract_strided_slice %510 {offsets = [0, 304], sizes = [2, 16], strides = [1, 1]} : vector<2x448xf32> to vector<2x16xf32>
    %540 = arith.maximumf %538, %539 : vector<2x16xf32>
    %541 = vector.extract_strided_slice %510 {offsets = [0, 320], sizes = [2, 16], strides = [1, 1]} : vector<2x448xf32> to vector<2x16xf32>
    %542 = vector.extract_strided_slice %510 {offsets = [0, 336], sizes = [2, 16], strides = [1, 1]} : vector<2x448xf32> to vector<2x16xf32>
    %543 = arith.maximumf %541, %542 : vector<2x16xf32>
    %544 = vector.extract_strided_slice %510 {offsets = [0, 352], sizes = [2, 16], strides = [1, 1]} : vector<2x448xf32> to vector<2x16xf32>
    %545 = vector.extract_strided_slice %510 {offsets = [0, 368], sizes = [2, 16], strides = [1, 1]} : vector<2x448xf32> to vector<2x16xf32>
    %546 = arith.maximumf %544, %545 : vector<2x16xf32>
    %547 = vector.extract_strided_slice %510 {offsets = [0, 384], sizes = [2, 16], strides = [1, 1]} : vector<2x448xf32> to vector<2x16xf32>
    %548 = vector.extract_strided_slice %510 {offsets = [0, 400], sizes = [2, 16], strides = [1, 1]} : vector<2x448xf32> to vector<2x16xf32>
    %549 = arith.maximumf %547, %548 : vector<2x16xf32>
    %550 = vector.extract_strided_slice %510 {offsets = [0, 416], sizes = [2, 16], strides = [1, 1]} : vector<2x448xf32> to vector<2x16xf32>
    %551 = vector.extract_strided_slice %510 {offsets = [0, 432], sizes = [2, 16], strides = [1, 1]} : vector<2x448xf32> to vector<2x16xf32>
    %552 = arith.maximumf %550, %551 : vector<2x16xf32>
    %553 = tpu.concatenate %513, %516, %519, %522, %525, %528, %531, %534, %537, %540, %543, %546, %549, %552 in 1 : vector<2x16xf32>, vector<2x16xf32>, vector<2x16xf32>, vector<2x16xf32>, vector<2x16xf32>, vector<2x16xf32>, vector<2x16xf32>, vector<2x16xf32>, vector<2x16xf32>, vector<2x16xf32>, vector<2x16xf32>, vector<2x16xf32>, vector<2x16xf32>, vector<2x16xf32> -> vector<2x224xf32>
    %c0_121 = arith.constant 0 : index
    %c11_122 = arith.constant 11 : index
    %c32_123 = arith.constant 32 : index
    %554 = vector.load %arg10[%c0_121, %c11_122, %c32_123] : memref<2x20x288xf32, #tpu.memory_space<vmem>>, vector<2x1x224xf32>
    %555 = vector.shape_cast %554 : vector<2x1x224xf32> to vector<2x224xf32>
    %556 = vector.shape_cast %553 : vector<2x224xf32> to vector<2x1x224xf32>
    tpu.vector_store %arg10[%c0_121, %c11_122, %c32_123], %556 {strides = array<i32>} : memref<2x20x288xf32, #tpu.memory_space<vmem>>, vector<2x1x224xf32>,
    %c0_124 = arith.constant 0 : index
    %c20 = arith.constant 20 : index
    %c0_125 = arith.constant 0 : index
    %557 = vector.load %arg9[%c0_124, %c20, %c0_125] : memref<2x32x448xf32, #tpu.memory_space<vmem>>, vector<2x1x448xf32>
    %558 = vector.shape_cast %557 : vector<2x1x448xf32> to vector<2x448xf32>
    %c0_126 = arith.constant 0 : index
    %c21 = arith.constant 21 : index
    %c0_127 = arith.constant 0 : index
    %559 = vector.load %arg9[%c0_126, %c21, %c0_127] : memref<2x32x448xf32, #tpu.memory_space<vmem>>, vector<2x1x448xf32>
    %560 = vector.shape_cast %559 : vector<2x1x448xf32> to vector<2x448xf32>
    %561 = arith.maximumf %558, %560 : vector<2x448xf32>
    %562 = vector.extract_strided_slice %561 {offsets = [0, 0], sizes = [2, 16], strides = [1, 1]} : vector<2x448xf32> to vector<2x16xf32>
    %563 = vector.extract_strided_slice %561 {offsets = [0, 16], sizes = [2, 16], strides = [1, 1]} : vector<2x448xf32> to vector<2x16xf32>
    %564 = arith.maximumf %562, %563 : vector<2x16xf32>
    %565 = vector.extract_strided_slice %561 {offsets = [0, 32], sizes = [2, 16], strides = [1, 1]} : vector<2x448xf32> to vector<2x16xf32>
    %566 = vector.extract_strided_slice %561 {offsets = [0, 48], sizes = [2, 16], strides = [1, 1]} : vector<2x448xf32> to vector<2x16xf32>
    %567 = arith.maximumf %565, %566 : vector<2x16xf32>
    %568 = vector.extract_strided_slice %561 {offsets = [0, 64], sizes = [2, 16], strides = [1, 1]} : vector<2x448xf32> to vector<2x16xf32>
    %569 = vector.extract_strided_slice %561 {offsets = [0, 80], sizes = [2, 16], strides = [1, 1]} : vector<2x448xf32> to vector<2x16xf32>
    %570 = arith.maximumf %568, %569 : vector<2x16xf32>
    %571 = vector.extract_strided_slice %561 {offsets = [0, 96], sizes = [2, 16], strides = [1, 1]} : vector<2x448xf32> to vector<2x16xf32>
    %572 = vector.extract_strided_slice %561 {offsets = [0, 112], sizes = [2, 16], strides = [1, 1]} : vector<2x448xf32> to vector<2x16xf32>
    %573 = arith.maximumf %571, %572 : vector<2x16xf32>
    %574 = vector.extract_strided_slice %561 {offsets = [0, 128], sizes = [2, 16], strides = [1, 1]} : vector<2x448xf32> to vector<2x16xf32>
    %575 = vector.extract_strided_slice %561 {offsets = [0, 144], sizes = [2, 16], strides = [1, 1]} : vector<2x448xf32> to vector<2x16xf32>
    %576 = arith.maximumf %574, %575 : vector<2x16xf32>
    %577 = vector.extract_strided_slice %561 {offsets = [0, 160], sizes = [2, 16], strides = [1, 1]} : vector<2x448xf32> to vector<2x16xf32>
    %578 = vector.extract_strided_slice %561 {offsets = [0, 176], sizes = [2, 16], strides = [1, 1]} : vector<2x448xf32> to vector<2x16xf32>
    %579 = arith.maximumf %577, %578 : vector<2x16xf32>
    %580 = vector.extract_strided_slice %561 {offsets = [0, 192], sizes = [2, 16], strides = [1, 1]} : vector<2x448xf32> to vector<2x16xf32>
    %581 = vector.extract_strided_slice %561 {offsets = [0, 208], sizes = [2, 16], strides = [1, 1]} : vector<2x448xf32> to vector<2x16xf32>
    %582 = arith.maximumf %580, %581 : vector<2x16xf32>
    %583 = vector.extract_strided_slice %561 {offsets = [0, 224], sizes = [2, 16], strides = [1, 1]} : vector<2x448xf32> to vector<2x16xf32>
    %584 = vector.extract_strided_slice %561 {offsets = [0, 240], sizes = [2, 16], strides = [1, 1]} : vector<2x448xf32> to vector<2x16xf32>
    %585 = arith.maximumf %583, %584 : vector<2x16xf32>
    %586 = vector.extract_strided_slice %561 {offsets = [0, 256], sizes = [2, 16], strides = [1, 1]} : vector<2x448xf32> to vector<2x16xf32>
    %587 = vector.extract_strided_slice %561 {offsets = [0, 272], sizes = [2, 16], strides = [1, 1]} : vector<2x448xf32> to vector<2x16xf32>
    %588 = arith.maximumf %586, %587 : vector<2x16xf32>
    %589 = vector.extract_strided_slice %561 {offsets = [0, 288], sizes = [2, 16], strides = [1, 1]} : vector<2x448xf32> to vector<2x16xf32>
    %590 = vector.extract_strided_slice %561 {offsets = [0, 304], sizes = [2, 16], strides = [1, 1]} : vector<2x448xf32> to vector<2x16xf32>
    %591 = arith.maximumf %589, %590 : vector<2x16xf32>
    %592 = vector.extract_strided_slice %561 {offsets = [0, 320], sizes = [2, 16], strides = [1, 1]} : vector<2x448xf32> to vector<2x16xf32>
    %593 = vector.extract_strided_slice %561 {offsets = [0, 336], sizes = [2, 16], strides = [1, 1]} : vector<2x448xf32> to vector<2x16xf32>
    %594 = arith.maximumf %592, %593 : vector<2x16xf32>
    %595 = vector.extract_strided_slice %561 {offsets = [0, 352], sizes = [2, 16], strides = [1, 1]} : vector<2x448xf32> to vector<2x16xf32>
    %596 = vector.extract_strided_slice %561 {offsets = [0, 368], sizes = [2, 16], strides = [1, 1]} : vector<2x448xf32> to vector<2x16xf32>
    %597 = arith.maximumf %595, %596 : vector<2x16xf32>
    %598 = vector.extract_strided_slice %561 {offsets = [0, 384], sizes = [2, 16], strides = [1, 1]} : vector<2x448xf32> to vector<2x16xf32>
    %599 = vector.extract_strided_slice %561 {offsets = [0, 400], sizes = [2, 16], strides = [1, 1]} : vector<2x448xf32> to vector<2x16xf32>
    %600 = arith.maximumf %598, %599 : vector<2x16xf32>
    %601 = vector.extract_strided_slice %561 {offsets = [0, 416], sizes = [2, 16], strides = [1, 1]} : vector<2x448xf32> to vector<2x16xf32>
    %602 = vector.extract_strided_slice %561 {offsets = [0, 432], sizes = [2, 16], strides = [1, 1]} : vector<2x448xf32> to vector<2x16xf32>
    %603 = arith.maximumf %601, %602 : vector<2x16xf32>
    %604 = tpu.concatenate %564, %567, %570, %573, %576, %579, %582, %585, %588, %591, %594, %597, %600, %603 in 1 : vector<2x16xf32>, vector<2x16xf32>, vector<2x16xf32>, vector<2x16xf32>, vector<2x16xf32>, vector<2x16xf32>, vector<2x16xf32>, vector<2x16xf32>, vector<2x16xf32>, vector<2x16xf32>, vector<2x16xf32>, vector<2x16xf32>, vector<2x16xf32>, vector<2x16xf32> -> vector<2x224xf32>
    %c0_128 = arith.constant 0 : index
    %c12_129 = arith.constant 12 : index
    %c32_130 = arith.constant 32 : index
    %605 = vector.load %arg10[%c0_128, %c12_129, %c32_130] : memref<2x20x288xf32, #tpu.memory_space<vmem>>, vector<2x1x224xf32>
    %606 = vector.shape_cast %605 : vector<2x1x224xf32> to vector<2x224xf32>
    %607 = vector.shape_cast %604 : vector<2x224xf32> to vector<2x1x224xf32>
    tpu.vector_store %arg10[%c0_128, %c12_129, %c32_130], %607 {strides = array<i32>} : memref<2x20x288xf32, #tpu.memory_space<vmem>>, vector<2x1x224xf32>,
    %c0_131 = arith.constant 0 : index
    %c22 = arith.constant 22 : index
    %c0_132 = arith.constant 0 : index
    %608 = vector.load %arg9[%c0_131, %c22, %c0_132] : memref<2x32x448xf32, #tpu.memory_space<vmem>>, vector<2x1x448xf32>
    %609 = vector.shape_cast %608 : vector<2x1x448xf32> to vector<2x448xf32>
    %c0_133 = arith.constant 0 : index
    %c23 = arith.constant 23 : index
    %c0_134 = arith.constant 0 : index
    %610 = vector.load %arg9[%c0_133, %c23, %c0_134] : memref<2x32x448xf32, #tpu.memory_space<vmem>>, vector<2x1x448xf32>
    %611 = vector.shape_cast %610 : vector<2x1x448xf32> to vector<2x448xf32>
    %612 = arith.maximumf %609, %611 : vector<2x448xf32>
    %613 = vector.extract_strided_slice %612 {offsets = [0, 0], sizes = [2, 16], strides = [1, 1]} : vector<2x448xf32> to vector<2x16xf32>
    %614 = vector.extract_strided_slice %612 {offsets = [0, 16], sizes = [2, 16], strides = [1, 1]} : vector<2x448xf32> to vector<2x16xf32>
    %615 = arith.maximumf %613, %614 : vector<2x16xf32>
    %616 = vector.extract_strided_slice %612 {offsets = [0, 32], sizes = [2, 16], strides = [1, 1]} : vector<2x448xf32> to vector<2x16xf32>
    %617 = vector.extract_strided_slice %612 {offsets = [0, 48], sizes = [2, 16], strides = [1, 1]} : vector<2x448xf32> to vector<2x16xf32>
    %618 = arith.maximumf %616, %617 : vector<2x16xf32>
    %619 = vector.extract_strided_slice %612 {offsets = [0, 64], sizes = [2, 16], strides = [1, 1]} : vector<2x448xf32> to vector<2x16xf32>
    %620 = vector.extract_strided_slice %612 {offsets = [0, 80], sizes = [2, 16], strides = [1, 1]} : vector<2x448xf32> to vector<2x16xf32>
    %621 = arith.maximumf %619, %620 : vector<2x16xf32>
    %622 = vector.extract_strided_slice %612 {offsets = [0, 96], sizes = [2, 16], strides = [1, 1]} : vector<2x448xf32> to vector<2x16xf32>
    %623 = vector.extract_strided_slice %612 {offsets = [0, 112], sizes = [2, 16], strides = [1, 1]} : vector<2x448xf32> to vector<2x16xf32>
    %624 = arith.maximumf %622, %623 : vector<2x16xf32>
    %625 = vector.extract_strided_slice %612 {offsets = [0, 128], sizes = [2, 16], strides = [1, 1]} : vector<2x448xf32> to vector<2x16xf32>
    %626 = vector.extract_strided_slice %612 {offsets = [0, 144], sizes = [2, 16], strides = [1, 1]} : vector<2x448xf32> to vector<2x16xf32>
    %627 = arith.maximumf %625, %626 : vector<2x16xf32>
    %628 = vector.extract_strided_slice %612 {offsets = [0, 160], sizes = [2, 16], strides = [1, 1]} : vector<2x448xf32> to vector<2x16xf32>
    %629 = vector.extract_strided_slice %612 {offsets = [0, 176], sizes = [2, 16], strides = [1, 1]} : vector<2x448xf32> to vector<2x16xf32>
    %630 = arith.maximumf %628, %629 : vector<2x16xf32>
    %631 = vector.extract_strided_slice %612 {offsets = [0, 192], sizes = [2, 16], strides = [1, 1]} : vector<2x448xf32> to vector<2x16xf32>
    %632 = vector.extract_strided_slice %612 {offsets = [0, 208], sizes = [2, 16], strides = [1, 1]} : vector<2x448xf32> to vector<2x16xf32>
    %633 = arith.maximumf %631, %632 : vector<2x16xf32>
    %634 = vector.extract_strided_slice %612 {offsets = [0, 224], sizes = [2, 16], strides = [1, 1]} : vector<2x448xf32> to vector<2x16xf32>
    %635 = vector.extract_strided_slice %612 {offsets = [0, 240], sizes = [2, 16], strides = [1, 1]} : vector<2x448xf32> to vector<2x16xf32>
    %636 = arith.maximumf %634, %635 : vector<2x16xf32>
    %637 = vector.extract_strided_slice %612 {offsets = [0, 256], sizes = [2, 16], strides = [1, 1]} : vector<2x448xf32> to vector<2x16xf32>
    %638 = vector.extract_strided_slice %612 {offsets = [0, 272], sizes = [2, 16], strides = [1, 1]} : vector<2x448xf32> to vector<2x16xf32>
    %639 = arith.maximumf %637, %638 : vector<2x16xf32>
    %640 = vector.extract_strided_slice %612 {offsets = [0, 288], sizes = [2, 16], strides = [1, 1]} : vector<2x448xf32> to vector<2x16xf32>
    %641 = vector.extract_strided_slice %612 {offsets = [0, 304], sizes = [2, 16], strides = [1, 1]} : vector<2x448xf32> to vector<2x16xf32>
    %642 = arith.maximumf %640, %641 : vector<2x16xf32>
    %643 = vector.extract_strided_slice %612 {offsets = [0, 320], sizes = [2, 16], strides = [1, 1]} : vector<2x448xf32> to vector<2x16xf32>
    %644 = vector.extract_strided_slice %612 {offsets = [0, 336], sizes = [2, 16], strides = [1, 1]} : vector<2x448xf32> to vector<2x16xf32>
    %645 = arith.maximumf %643, %644 : vector<2x16xf32>
    %646 = vector.extract_strided_slice %612 {offsets = [0, 352], sizes = [2, 16], strides = [1, 1]} : vector<2x448xf32> to vector<2x16xf32>
    %647 = vector.extract_strided_slice %612 {offsets = [0, 368], sizes = [2, 16], strides = [1, 1]} : vector<2x448xf32> to vector<2x16xf32>
    %648 = arith.maximumf %646, %647 : vector<2x16xf32>
    %649 = vector.extract_strided_slice %612 {offsets = [0, 384], sizes = [2, 16], strides = [1, 1]} : vector<2x448xf32> to vector<2x16xf32>
    %650 = vector.extract_strided_slice %612 {offsets = [0, 400], sizes = [2, 16], strides = [1, 1]} : vector<2x448xf32> to vector<2x16xf32>
    %651 = arith.maximumf %649, %650 : vector<2x16xf32>
    %652 = vector.extract_strided_slice %612 {offsets = [0, 416], sizes = [2, 16], strides = [1, 1]} : vector<2x448xf32> to vector<2x16xf32>
    %653 = vector.extract_strided_slice %612 {offsets = [0, 432], sizes = [2, 16], strides = [1, 1]} : vector<2x448xf32> to vector<2x16xf32>
    %654 = arith.maximumf %652, %653 : vector<2x16xf32>
    %655 = tpu.concatenate %615, %618, %621, %624, %627, %630, %633, %636, %639, %642, %645, %648, %651, %654 in 1 : vector<2x16xf32>, vector<2x16xf32>, vector<2x16xf32>, vector<2x16xf32>, vector<2x16xf32>, vector<2x16xf32>, vector<2x16xf32>, vector<2x16xf32>, vector<2x16xf32>, vector<2x16xf32>, vector<2x16xf32>, vector<2x16xf32>, vector<2x16xf32>, vector<2x16xf32> -> vector<2x224xf32>
    %c0_135 = arith.constant 0 : index
    %c13_136 = arith.constant 13 : index
    %c32_137 = arith.constant 32 : index
    %656 = vector.load %arg10[%c0_135, %c13_136, %c32_137] : memref<2x20x288xf32, #tpu.memory_space<vmem>>, vector<2x1x224xf32>
    %657 = vector.shape_cast %656 : vector<2x1x224xf32> to vector<2x224xf32>
    %658 = vector.shape_cast %655 : vector<2x224xf32> to vector<2x1x224xf32>
    tpu.vector_store %arg10[%c0_135, %c13_136, %c32_137], %658 {strides = array<i32>} : memref<2x20x288xf32, #tpu.memory_space<vmem>>, vector<2x1x224xf32>,
    %c0_138 = arith.constant 0 : index
    %c24 = arith.constant 24 : index
    %c0_139 = arith.constant 0 : index
    %659 = vector.load %arg9[%c0_138, %c24, %c0_139] : memref<2x32x448xf32, #tpu.memory_space<vmem>>, vector<2x1x448xf32>
    %660 = vector.shape_cast %659 : vector<2x1x448xf32> to vector<2x448xf32>
    %c0_140 = arith.constant 0 : index
    %c25 = arith.constant 25 : index
    %c0_141 = arith.constant 0 : index
    %661 = vector.load %arg9[%c0_140, %c25, %c0_141] : memref<2x32x448xf32, #tpu.memory_space<vmem>>, vector<2x1x448xf32>
    %662 = vector.shape_cast %661 : vector<2x1x448xf32> to vector<2x448xf32>
    %663 = arith.maximumf %660, %662 : vector<2x448xf32>
    %664 = vector.extract_strided_slice %663 {offsets = [0, 0], sizes = [2, 16], strides = [1, 1]} : vector<2x448xf32> to vector<2x16xf32>
    %665 = vector.extract_strided_slice %663 {offsets = [0, 16], sizes = [2, 16], strides = [1, 1]} : vector<2x448xf32> to vector<2x16xf32>
    %666 = arith.maximumf %664, %665 : vector<2x16xf32>
    %667 = vector.extract_strided_slice %663 {offsets = [0, 32], sizes = [2, 16], strides = [1, 1]} : vector<2x448xf32> to vector<2x16xf32>
    %668 = vector.extract_strided_slice %663 {offsets = [0, 48], sizes = [2, 16], strides = [1, 1]} : vector<2x448xf32> to vector<2x16xf32>
    %669 = arith.maximumf %667, %668 : vector<2x16xf32>
    %670 = vector.extract_strided_slice %663 {offsets = [0, 64], sizes = [2, 16], strides = [1, 1]} : vector<2x448xf32> to vector<2x16xf32>
    %671 = vector.extract_strided_slice %663 {offsets = [0, 80], sizes = [2, 16], strides = [1, 1]} : vector<2x448xf32> to vector<2x16xf32>
    %672 = arith.maximumf %670, %671 : vector<2x16xf32>
    %673 = vector.extract_strided_slice %663 {offsets = [0, 96], sizes = [2, 16], strides = [1, 1]} : vector<2x448xf32> to vector<2x16xf32>
    %674 = vector.extract_strided_slice %663 {offsets = [0, 112], sizes = [2, 16], strides = [1, 1]} : vector<2x448xf32> to vector<2x16xf32>
    %675 = arith.maximumf %673, %674 : vector<2x16xf32>
    %676 = vector.extract_strided_slice %663 {offsets = [0, 128], sizes = [2, 16], strides = [1, 1]} : vector<2x448xf32> to vector<2x16xf32>
    %677 = vector.extract_strided_slice %663 {offsets = [0, 144], sizes = [2, 16], strides = [1, 1]} : vector<2x448xf32> to vector<2x16xf32>
    %678 = arith.maximumf %676, %677 : vector<2x16xf32>
    %679 = vector.extract_strided_slice %663 {offsets = [0, 160], sizes = [2, 16], strides = [1, 1]} : vector<2x448xf32> to vector<2x16xf32>
    %680 = vector.extract_strided_slice %663 {offsets = [0, 176], sizes = [2, 16], strides = [1, 1]} : vector<2x448xf32> to vector<2x16xf32>
    %681 = arith.maximumf %679, %680 : vector<2x16xf32>
    %682 = vector.extract_strided_slice %663 {offsets = [0, 192], sizes = [2, 16], strides = [1, 1]} : vector<2x448xf32> to vector<2x16xf32>
    %683 = vector.extract_strided_slice %663 {offsets = [0, 208], sizes = [2, 16], strides = [1, 1]} : vector<2x448xf32> to vector<2x16xf32>
    %684 = arith.maximumf %682, %683 : vector<2x16xf32>
    %685 = vector.extract_strided_slice %663 {offsets = [0, 224], sizes = [2, 16], strides = [1, 1]} : vector<2x448xf32> to vector<2x16xf32>
    %686 = vector.extract_strided_slice %663 {offsets = [0, 240], sizes = [2, 16], strides = [1, 1]} : vector<2x448xf32> to vector<2x16xf32>
    %687 = arith.maximumf %685, %686 : vector<2x16xf32>
    %688 = vector.extract_strided_slice %663 {offsets = [0, 256], sizes = [2, 16], strides = [1, 1]} : vector<2x448xf32> to vector<2x16xf32>
    %689 = vector.extract_strided_slice %663 {offsets = [0, 272], sizes = [2, 16], strides = [1, 1]} : vector<2x448xf32> to vector<2x16xf32>
    %690 = arith.maximumf %688, %689 : vector<2x16xf32>
    %691 = vector.extract_strided_slice %663 {offsets = [0, 288], sizes = [2, 16], strides = [1, 1]} : vector<2x448xf32> to vector<2x16xf32>
    %692 = vector.extract_strided_slice %663 {offsets = [0, 304], sizes = [2, 16], strides = [1, 1]} : vector<2x448xf32> to vector<2x16xf32>
    %693 = arith.maximumf %691, %692 : vector<2x16xf32>
    %694 = vector.extract_strided_slice %663 {offsets = [0, 320], sizes = [2, 16], strides = [1, 1]} : vector<2x448xf32> to vector<2x16xf32>
    %695 = vector.extract_strided_slice %663 {offsets = [0, 336], sizes = [2, 16], strides = [1, 1]} : vector<2x448xf32> to vector<2x16xf32>
    %696 = arith.maximumf %694, %695 : vector<2x16xf32>
    %697 = vector.extract_strided_slice %663 {offsets = [0, 352], sizes = [2, 16], strides = [1, 1]} : vector<2x448xf32> to vector<2x16xf32>
    %698 = vector.extract_strided_slice %663 {offsets = [0, 368], sizes = [2, 16], strides = [1, 1]} : vector<2x448xf32> to vector<2x16xf32>
    %699 = arith.maximumf %697, %698 : vector<2x16xf32>
    %700 = vector.extract_strided_slice %663 {offsets = [0, 384], sizes = [2, 16], strides = [1, 1]} : vector<2x448xf32> to vector<2x16xf32>
    %701 = vector.extract_strided_slice %663 {offsets = [0, 400], sizes = [2, 16], strides = [1, 1]} : vector<2x448xf32> to vector<2x16xf32>
    %702 = arith.maximumf %700, %701 : vector<2x16xf32>
    %703 = vector.extract_strided_slice %663 {offsets = [0, 416], sizes = [2, 16], strides = [1, 1]} : vector<2x448xf32> to vector<2x16xf32>
    %704 = vector.extract_strided_slice %663 {offsets = [0, 432], sizes = [2, 16], strides = [1, 1]} : vector<2x448xf32> to vector<2x16xf32>
    %705 = arith.maximumf %703, %704 : vector<2x16xf32>
    %706 = tpu.concatenate %666, %669, %672, %675, %678, %681, %684, %687, %690, %693, %696, %699, %702, %705 in 1 : vector<2x16xf32>, vector<2x16xf32>, vector<2x16xf32>, vector<2x16xf32>, vector<2x16xf32>, vector<2x16xf32>, vector<2x16xf32>, vector<2x16xf32>, vector<2x16xf32>, vector<2x16xf32>, vector<2x16xf32>, vector<2x16xf32>, vector<2x16xf32>, vector<2x16xf32> -> vector<2x224xf32>
    %c0_142 = arith.constant 0 : index
    %c14_143 = arith.constant 14 : index
    %c32_144 = arith.constant 32 : index
    %707 = vector.load %arg10[%c0_142, %c14_143, %c32_144] : memref<2x20x288xf32, #tpu.memory_space<vmem>>, vector<2x1x224xf32>
    %708 = vector.shape_cast %707 : vector<2x1x224xf32> to vector<2x224xf32>
    %709 = vector.shape_cast %706 : vector<2x224xf32> to vector<2x1x224xf32>
    tpu.vector_store %arg10[%c0_142, %c14_143, %c32_144], %709 {strides = array<i32>} : memref<2x20x288xf32, #tpu.memory_space<vmem>>, vector<2x1x224xf32>,
    %c0_145 = arith.constant 0 : index
    %c26 = arith.constant 26 : index
    %c0_146 = arith.constant 0 : index
    %710 = vector.load %arg9[%c0_145, %c26, %c0_146] : memref<2x32x448xf32, #tpu.memory_space<vmem>>, vector<2x1x448xf32>
    %711 = vector.shape_cast %710 : vector<2x1x448xf32> to vector<2x448xf32>
    %c0_147 = arith.constant 0 : index
    %c27 = arith.constant 27 : index
    %c0_148 = arith.constant 0 : index
    %712 = vector.load %arg9[%c0_147, %c27, %c0_148] : memref<2x32x448xf32, #tpu.memory_space<vmem>>, vector<2x1x448xf32>
    %713 = vector.shape_cast %712 : vector<2x1x448xf32> to vector<2x448xf32>
    %714 = arith.maximumf %711, %713 : vector<2x448xf32>
    %715 = vector.extract_strided_slice %714 {offsets = [0, 0], sizes = [2, 16], strides = [1, 1]} : vector<2x448xf32> to vector<2x16xf32>
    %716 = vector.extract_strided_slice %714 {offsets = [0, 16], sizes = [2, 16], strides = [1, 1]} : vector<2x448xf32> to vector<2x16xf32>
    %717 = arith.maximumf %715, %716 : vector<2x16xf32>
    %718 = vector.extract_strided_slice %714 {offsets = [0, 32], sizes = [2, 16], strides = [1, 1]} : vector<2x448xf32> to vector<2x16xf32>
    %719 = vector.extract_strided_slice %714 {offsets = [0, 48], sizes = [2, 16], strides = [1, 1]} : vector<2x448xf32> to vector<2x16xf32>
    %720 = arith.maximumf %718, %719 : vector<2x16xf32>
    %721 = vector.extract_strided_slice %714 {offsets = [0, 64], sizes = [2, 16], strides = [1, 1]} : vector<2x448xf32> to vector<2x16xf32>
    %722 = vector.extract_strided_slice %714 {offsets = [0, 80], sizes = [2, 16], strides = [1, 1]} : vector<2x448xf32> to vector<2x16xf32>
    %723 = arith.maximumf %721, %722 : vector<2x16xf32>
    %724 = vector.extract_strided_slice %714 {offsets = [0, 96], sizes = [2, 16], strides = [1, 1]} : vector<2x448xf32> to vector<2x16xf32>
    %725 = vector.extract_strided_slice %714 {offsets = [0, 112], sizes = [2, 16], strides = [1, 1]} : vector<2x448xf32> to vector<2x16xf32>
    %726 = arith.maximumf %724, %725 : vector<2x16xf32>
    %727 = vector.extract_strided_slice %714 {offsets = [0, 128], sizes = [2, 16], strides = [1, 1]} : vector<2x448xf32> to vector<2x16xf32>
    %728 = vector.extract_strided_slice %714 {offsets = [0, 144], sizes = [2, 16], strides = [1, 1]} : vector<2x448xf32> to vector<2x16xf32>
    %729 = arith.maximumf %727, %728 : vector<2x16xf32>
    %730 = vector.extract_strided_slice %714 {offsets = [0, 160], sizes = [2, 16], strides = [1, 1]} : vector<2x448xf32> to vector<2x16xf32>
    %731 = vector.extract_strided_slice %714 {offsets = [0, 176], sizes = [2, 16], strides = [1, 1]} : vector<2x448xf32> to vector<2x16xf32>
    %732 = arith.maximumf %730, %731 : vector<2x16xf32>
    %733 = vector.extract_strided_slice %714 {offsets = [0, 192], sizes = [2, 16], strides = [1, 1]} : vector<2x448xf32> to vector<2x16xf32>
    %734 = vector.extract_strided_slice %714 {offsets = [0, 208], sizes = [2, 16], strides = [1, 1]} : vector<2x448xf32> to vector<2x16xf32>
    %735 = arith.maximumf %733, %734 : vector<2x16xf32>
    %736 = vector.extract_strided_slice %714 {offsets = [0, 224], sizes = [2, 16], strides = [1, 1]} : vector<2x448xf32> to vector<2x16xf32>
    %737 = vector.extract_strided_slice %714 {offsets = [0, 240], sizes = [2, 16], strides = [1, 1]} : vector<2x448xf32> to vector<2x16xf32>
    %738 = arith.maximumf %736, %737 : vector<2x16xf32>
    %739 = vector.extract_strided_slice %714 {offsets = [0, 256], sizes = [2, 16], strides = [1, 1]} : vector<2x448xf32> to vector<2x16xf32>
    %740 = vector.extract_strided_slice %714 {offsets = [0, 272], sizes = [2, 16], strides = [1, 1]} : vector<2x448xf32> to vector<2x16xf32>
    %741 = arith.maximumf %739, %740 : vector<2x16xf32>
    %742 = vector.extract_strided_slice %714 {offsets = [0, 288], sizes = [2, 16], strides = [1, 1]} : vector<2x448xf32> to vector<2x16xf32>
    %743 = vector.extract_strided_slice %714 {offsets = [0, 304], sizes = [2, 16], strides = [1, 1]} : vector<2x448xf32> to vector<2x16xf32>
    %744 = arith.maximumf %742, %743 : vector<2x16xf32>
    %745 = vector.extract_strided_slice %714 {offsets = [0, 320], sizes = [2, 16], strides = [1, 1]} : vector<2x448xf32> to vector<2x16xf32>
    %746 = vector.extract_strided_slice %714 {offsets = [0, 336], sizes = [2, 16], strides = [1, 1]} : vector<2x448xf32> to vector<2x16xf32>
    %747 = arith.maximumf %745, %746 : vector<2x16xf32>
    %748 = vector.extract_strided_slice %714 {offsets = [0, 352], sizes = [2, 16], strides = [1, 1]} : vector<2x448xf32> to vector<2x16xf32>
    %749 = vector.extract_strided_slice %714 {offsets = [0, 368], sizes = [2, 16], strides = [1, 1]} : vector<2x448xf32> to vector<2x16xf32>
    %750 = arith.maximumf %748, %749 : vector<2x16xf32>
    %751 = vector.extract_strided_slice %714 {offsets = [0, 384], sizes = [2, 16], strides = [1, 1]} : vector<2x448xf32> to vector<2x16xf32>
    %752 = vector.extract_strided_slice %714 {offsets = [0, 400], sizes = [2, 16], strides = [1, 1]} : vector<2x448xf32> to vector<2x16xf32>
    %753 = arith.maximumf %751, %752 : vector<2x16xf32>
    %754 = vector.extract_strided_slice %714 {offsets = [0, 416], sizes = [2, 16], strides = [1, 1]} : vector<2x448xf32> to vector<2x16xf32>
    %755 = vector.extract_strided_slice %714 {offsets = [0, 432], sizes = [2, 16], strides = [1, 1]} : vector<2x448xf32> to vector<2x16xf32>
    %756 = arith.maximumf %754, %755 : vector<2x16xf32>
    %757 = tpu.concatenate %717, %720, %723, %726, %729, %732, %735, %738, %741, %744, %747, %750, %753, %756 in 1 : vector<2x16xf32>, vector<2x16xf32>, vector<2x16xf32>, vector<2x16xf32>, vector<2x16xf32>, vector<2x16xf32>, vector<2x16xf32>, vector<2x16xf32>, vector<2x16xf32>, vector<2x16xf32>, vector<2x16xf32>, vector<2x16xf32>, vector<2x16xf32>, vector<2x16xf32> -> vector<2x224xf32>
    %c0_149 = arith.constant 0 : index
    %c15_150 = arith.constant 15 : index
    %c32_151 = arith.constant 32 : index
    %758 = vector.load %arg10[%c0_149, %c15_150, %c32_151] : memref<2x20x288xf32, #tpu.memory_space<vmem>>, vector<2x1x224xf32>
    %759 = vector.shape_cast %758 : vector<2x1x224xf32> to vector<2x224xf32>
    %760 = vector.shape_cast %757 : vector<2x224xf32> to vector<2x1x224xf32>
    tpu.vector_store %arg10[%c0_149, %c15_150, %c32_151], %760 {strides = array<i32>} : memref<2x20x288xf32, #tpu.memory_space<vmem>>, vector<2x1x224xf32>,
    %c0_152 = arith.constant 0 : index
    %c0_153 = arith.constant 0 : index
    %c0_154 = arith.constant 0 : index
    %761 = vector.load %arg10[%c0_152, %c0_153, %c0_154] : memref<2x20x288xf32, #tpu.memory_space<vmem>>, vector<1x16x288xf32>
    %762 = vector.shape_cast %761 : vector<1x16x288xf32> to vector<16x288xf32>
    %c1_155 = arith.constant 1 : index
    %c0_156 = arith.constant 0 : index
    %c0_157 = arith.constant 0 : index
    %763 = vector.load %arg10[%c1_155, %c0_156, %c0_157] : memref<2x20x288xf32, #tpu.memory_space<vmem>>, vector<1x16x288xf32>
    %764 = vector.shape_cast %763 : vector<1x16x288xf32> to vector<16x288xf32>
    %765 = tpu.concatenate %762, %764 in 0 : vector<16x288xf32>, vector<16x288xf32> -> vector<32x288xf32>
    %c0_158 = arith.constant 0 : index
    %c1_159 = arith.constant 1 : index
    %c0_160 = arith.constant 0 : index
    %766 = vector.load %arg10[%c0_158, %c1_159, %c0_160] : memref<2x20x288xf32, #tpu.memory_space<vmem>>, vector<1x16x288xf32>
    %767 = vector.shape_cast %766 : vector<1x16x288xf32> to vector<16x288xf32>
    %c1_161 = arith.constant 1 : index
    %c1_162 = arith.constant 1 : index
    %c0_163 = arith.constant 0 : index
    %768 = vector.load %arg10[%c1_161, %c1_162, %c0_163] : memref<2x20x288xf32, #tpu.memory_space<vmem>>, vector<1x16x288xf32>
    %769 = vector.shape_cast %768 : vector<1x16x288xf32> to vector<16x288xf32>
    %770 = tpu.concatenate %767, %769 in 0 : vector<16x288xf32>, vector<16x288xf32> -> vector<32x288xf32>
    %c0_164 = arith.constant 0 : index
    %c2_165 = arith.constant 2 : index
    %c0_166 = arith.constant 0 : index
    %771 = vector.load %arg10[%c0_164, %c2_165, %c0_166] : memref<2x20x288xf32, #tpu.memory_space<vmem>>, vector<1x16x288xf32>
    %772 = vector.shape_cast %771 : vector<1x16x288xf32> to vector<16x288xf32>
    %c1_167 = arith.constant 1 : index
    %c2_168 = arith.constant 2 : index
    %c0_169 = arith.constant 0 : index
    %773 = vector.load %arg10[%c1_167, %c2_168, %c0_169] : memref<2x20x288xf32, #tpu.memory_space<vmem>>, vector<1x16x288xf32>
    %774 = vector.shape_cast %773 : vector<1x16x288xf32> to vector<16x288xf32>
    %775 = tpu.concatenate %772, %774 in 0 : vector<16x288xf32>, vector<16x288xf32> -> vector<32x288xf32>
    %c0_170 = arith.constant 0 : index
    %c3_171 = arith.constant 3 : index
    %c0_172 = arith.constant 0 : index
    %776 = vector.load %arg10[%c0_170, %c3_171, %c0_172] : memref<2x20x288xf32, #tpu.memory_space<vmem>>, vector<1x16x288xf32>
    %777 = vector.shape_cast %776 : vector<1x16x288xf32> to vector<16x288xf32>
    %c1_173 = arith.constant 1 : index
    %c3_174 = arith.constant 3 : index
    %c0_175 = arith.constant 0 : index
    %778 = vector.load %arg10[%c1_173, %c3_174, %c0_175] : memref<2x20x288xf32, #tpu.memory_space<vmem>>, vector<1x16x288xf32>
    %779 = vector.shape_cast %778 : vector<1x16x288xf32> to vector<16x288xf32>
    %780 = tpu.concatenate %777, %779 in 0 : vector<16x288xf32>, vector<16x288xf32> -> vector<32x288xf32>
    %c0_176 = arith.constant 0 : index
    %c4_177 = arith.constant 4 : index
    %c0_178 = arith.constant 0 : index
    %781 = vector.load %arg10[%c0_176, %c4_177, %c0_178] : memref<2x20x288xf32, #tpu.memory_space<vmem>>, vector<1x16x288xf32>
    %782 = vector.shape_cast %781 : vector<1x16x288xf32> to vector<16x288xf32>
    %c1_179 = arith.constant 1 : index
    %c4_180 = arith.constant 4 : index
    %c0_181 = arith.constant 0 : index
    %783 = vector.load %arg10[%c1_179, %c4_180, %c0_181] : memref<2x20x288xf32, #tpu.memory_space<vmem>>, vector<1x16x288xf32>
    %784 = vector.shape_cast %783 : vector<1x16x288xf32> to vector<16x288xf32>
    %785 = tpu.concatenate %782, %784 in 0 : vector<16x288xf32>, vector<16x288xf32> -> vector<32x288xf32>
    %786 = tpu.concatenate %765, %770, %775, %780, %785 in 1 : vector<32x288xf32>, vector<32x288xf32>, vector<32x288xf32>, vector<32x288xf32>, vector<32x288xf32> -> vector<32x1440xf32>
    %c0_182 = arith.constant 0 : index
    %c0_183 = arith.constant 0 : index
    %787 = vector.load %arg3[%c0_182, %c0_183] : memref<1440x448xf32, #tpu.memory_space<vmem>>, vector<1440x448xf32>
    %cst_184 = arith.constant dense<0.000000e+00> : vector<32x448xf32>
    %788 = tpu.matmul %786, %787, %cst_184 {dimension_numbers = #tpu.dot_dimension_numbers<[1], [0], [0], [1], [0, 0, 1, 1], [], []>} : vector<32x1440xf32>, vector<1440x448xf32>, vector<32x448xf32> -> vector<32x448xf32>
    %c0_185 = arith.constant 0 : index
    %c0_186 = arith.constant 0 : index
    %789 = vector.load %arg4[%c0_185, %c0_186] : memref<1x448xf32, #tpu.memory_space<vmem>>, vector<1x448xf32>
    %790 = vector.broadcast %789 : vector<1x448xf32> to vector<32x448xf32>
    %791 = arith.addf %788, %790 : vector<32x448xf32>
    %cst_187 = arith.constant 0.000000e+00 : f32
    %792 = vector.broadcast %cst_187 : f32 to vector<32x448xf32>
    %793 = arith.maximumf %791, %792 : vector<32x448xf32>
    %794 = vector.extract_strided_slice %793 {offsets = [0, 0], sizes = [16, 448], strides = [1, 1]} : vector<32x448xf32> to vector<16x448xf32>
    %c0_188 = arith.constant 0 : index
    %c0_189 = arith.constant 0 : index
    %c0_190 = arith.constant 0 : index
    %795 = vector.load %arg11[%c0_188, %c0_189, %c0_190] : memref<2x16x448xf32, #tpu.memory_space<vmem>>, vector<1x16x448xf32>
    %796 = vector.shape_cast %795 : vector<1x16x448xf32> to vector<16x448xf32>
    %797 = vector.shape_cast %794 : vector<16x448xf32> to vector<1x16x448xf32>
    tpu.vector_store %arg11[%c0_188, %c0_189, %c0_190], %797 {strides = array<i32>} : memref<2x16x448xf32, #tpu.memory_space<vmem>>, vector<1x16x448xf32>,
    %798 = vector.extract_strided_slice %793 {offsets = [16, 0], sizes = [16, 448], strides = [1, 1]} : vector<32x448xf32> to vector<16x448xf32>
    %c1_191 = arith.constant 1 : index
    %c0_192 = arith.constant 0 : index
    %c0_193 = arith.constant 0 : index
    %799 = vector.load %arg11[%c1_191, %c0_192, %c0_193] : memref<2x16x448xf32, #tpu.memory_space<vmem>>, vector<1x16x448xf32>
    %800 = vector.shape_cast %799 : vector<1x16x448xf32> to vector<16x448xf32>
    %801 = vector.shape_cast %798 : vector<16x448xf32> to vector<1x16x448xf32>
    tpu.vector_store %arg11[%c1_191, %c0_192, %c0_193], %801 {strides = array<i32>} : memref<2x16x448xf32, #tpu.memory_space<vmem>>, vector<1x16x448xf32>,
    %c0_194 = arith.constant 0 : index
    %c0_195 = arith.constant 0 : index
    %c0_196 = arith.constant 0 : index
    %802 = vector.load %arg11[%c0_194, %c0_195, %c0_196] : memref<2x16x448xf32, #tpu.memory_space<vmem>>, vector<2x1x448xf32>
    %803 = vector.shape_cast %802 : vector<2x1x448xf32> to vector<2x448xf32>
    %c0_197 = arith.constant 0 : index
    %c1_198 = arith.constant 1 : index
    %c0_199 = arith.constant 0 : index
    %804 = vector.load %arg11[%c0_197, %c1_198, %c0_199] : memref<2x16x448xf32, #tpu.memory_space<vmem>>, vector<2x1x448xf32>
    %805 = vector.shape_cast %804 : vector<2x1x448xf32> to vector<2x448xf32>
    %806 = arith.maximumf %803, %805 : vector<2x448xf32>
    %807 = vector.extract_strided_slice %806 {offsets = [0, 0], sizes = [2, 32], strides = [1, 1]} : vector<2x448xf32> to vector<2x32xf32>
    %808 = vector.extract_strided_slice %806 {offsets = [0, 32], sizes = [2, 32], strides = [1, 1]} : vector<2x448xf32> to vector<2x32xf32>
    %809 = arith.maximumf %807, %808 : vector<2x32xf32>
    %810 = vector.extract_strided_slice %806 {offsets = [0, 64], sizes = [2, 32], strides = [1, 1]} : vector<2x448xf32> to vector<2x32xf32>
    %811 = vector.extract_strided_slice %806 {offsets = [0, 96], sizes = [2, 32], strides = [1, 1]} : vector<2x448xf32> to vector<2x32xf32>
    %812 = arith.maximumf %810, %811 : vector<2x32xf32>
    %813 = vector.extract_strided_slice %806 {offsets = [0, 128], sizes = [2, 32], strides = [1, 1]} : vector<2x448xf32> to vector<2x32xf32>
    %814 = vector.extract_strided_slice %806 {offsets = [0, 160], sizes = [2, 32], strides = [1, 1]} : vector<2x448xf32> to vector<2x32xf32>
    %815 = arith.maximumf %813, %814 : vector<2x32xf32>
    %816 = vector.extract_strided_slice %806 {offsets = [0, 192], sizes = [2, 32], strides = [1, 1]} : vector<2x448xf32> to vector<2x32xf32>
    %817 = vector.extract_strided_slice %806 {offsets = [0, 224], sizes = [2, 32], strides = [1, 1]} : vector<2x448xf32> to vector<2x32xf32>
    %818 = arith.maximumf %816, %817 : vector<2x32xf32>
    %819 = vector.extract_strided_slice %806 {offsets = [0, 256], sizes = [2, 32], strides = [1, 1]} : vector<2x448xf32> to vector<2x32xf32>
    %820 = vector.extract_strided_slice %806 {offsets = [0, 288], sizes = [2, 32], strides = [1, 1]} : vector<2x448xf32> to vector<2x32xf32>
    %821 = arith.maximumf %819, %820 : vector<2x32xf32>
    %822 = vector.extract_strided_slice %806 {offsets = [0, 320], sizes = [2, 32], strides = [1, 1]} : vector<2x448xf32> to vector<2x32xf32>
    %823 = vector.extract_strided_slice %806 {offsets = [0, 352], sizes = [2, 32], strides = [1, 1]} : vector<2x448xf32> to vector<2x32xf32>
    %824 = arith.maximumf %822, %823 : vector<2x32xf32>
    %825 = vector.extract_strided_slice %806 {offsets = [0, 384], sizes = [2, 32], strides = [1, 1]} : vector<2x448xf32> to vector<2x32xf32>
    %826 = vector.extract_strided_slice %806 {offsets = [0, 416], sizes = [2, 32], strides = [1, 1]} : vector<2x448xf32> to vector<2x32xf32>
    %827 = arith.maximumf %825, %826 : vector<2x32xf32>
    %c0_200 = arith.constant 0 : index
    %c2_201 = arith.constant 2 : index
    %c0_202 = arith.constant 0 : index
    %828 = vector.load %arg11[%c0_200, %c2_201, %c0_202] : memref<2x16x448xf32, #tpu.memory_space<vmem>>, vector<2x1x448xf32>
    %829 = vector.shape_cast %828 : vector<2x1x448xf32> to vector<2x448xf32>
    %c0_203 = arith.constant 0 : index
    %c3_204 = arith.constant 3 : index
    %c0_205 = arith.constant 0 : index
    %830 = vector.load %arg11[%c0_203, %c3_204, %c0_205] : memref<2x16x448xf32, #tpu.memory_space<vmem>>, vector<2x1x448xf32>
    %831 = vector.shape_cast %830 : vector<2x1x448xf32> to vector<2x448xf32>
    %832 = arith.maximumf %829, %831 : vector<2x448xf32>
    %833 = vector.extract_strided_slice %832 {offsets = [0, 0], sizes = [2, 32], strides = [1, 1]} : vector<2x448xf32> to vector<2x32xf32>
    %834 = vector.extract_strided_slice %832 {offsets = [0, 32], sizes = [2, 32], strides = [1, 1]} : vector<2x448xf32> to vector<2x32xf32>
    %835 = arith.maximumf %833, %834 : vector<2x32xf32>
    %836 = vector.extract_strided_slice %832 {offsets = [0, 64], sizes = [2, 32], strides = [1, 1]} : vector<2x448xf32> to vector<2x32xf32>
    %837 = vector.extract_strided_slice %832 {offsets = [0, 96], sizes = [2, 32], strides = [1, 1]} : vector<2x448xf32> to vector<2x32xf32>
    %838 = arith.maximumf %836, %837 : vector<2x32xf32>
    %839 = vector.extract_strided_slice %832 {offsets = [0, 128], sizes = [2, 32], strides = [1, 1]} : vector<2x448xf32> to vector<2x32xf32>
    %840 = vector.extract_strided_slice %832 {offsets = [0, 160], sizes = [2, 32], strides = [1, 1]} : vector<2x448xf32> to vector<2x32xf32>
    %841 = arith.maximumf %839, %840 : vector<2x32xf32>
    %842 = vector.extract_strided_slice %832 {offsets = [0, 192], sizes = [2, 32], strides = [1, 1]} : vector<2x448xf32> to vector<2x32xf32>
    %843 = vector.extract_strided_slice %832 {offsets = [0, 224], sizes = [2, 32], strides = [1, 1]} : vector<2x448xf32> to vector<2x32xf32>
    %844 = arith.maximumf %842, %843 : vector<2x32xf32>
    %845 = vector.extract_strided_slice %832 {offsets = [0, 256], sizes = [2, 32], strides = [1, 1]} : vector<2x448xf32> to vector<2x32xf32>
    %846 = vector.extract_strided_slice %832 {offsets = [0, 288], sizes = [2, 32], strides = [1, 1]} : vector<2x448xf32> to vector<2x32xf32>
    %847 = arith.maximumf %845, %846 : vector<2x32xf32>
    %848 = vector.extract_strided_slice %832 {offsets = [0, 320], sizes = [2, 32], strides = [1, 1]} : vector<2x448xf32> to vector<2x32xf32>
    %849 = vector.extract_strided_slice %832 {offsets = [0, 352], sizes = [2, 32], strides = [1, 1]} : vector<2x448xf32> to vector<2x32xf32>
    %850 = arith.maximumf %848, %849 : vector<2x32xf32>
    %851 = vector.extract_strided_slice %832 {offsets = [0, 384], sizes = [2, 32], strides = [1, 1]} : vector<2x448xf32> to vector<2x32xf32>
    %852 = vector.extract_strided_slice %832 {offsets = [0, 416], sizes = [2, 32], strides = [1, 1]} : vector<2x448xf32> to vector<2x32xf32>
    %853 = arith.maximumf %851, %852 : vector<2x32xf32>
    %c0_206 = arith.constant 0 : index
    %c4_207 = arith.constant 4 : index
    %c0_208 = arith.constant 0 : index
    %854 = vector.load %arg11[%c0_206, %c4_207, %c0_208] : memref<2x16x448xf32, #tpu.memory_space<vmem>>, vector<2x1x448xf32>
    %855 = vector.shape_cast %854 : vector<2x1x448xf32> to vector<2x448xf32>
    %c0_209 = arith.constant 0 : index
    %c5_210 = arith.constant 5 : index
    %c0_211 = arith.constant 0 : index
    %856 = vector.load %arg11[%c0_209, %c5_210, %c0_211] : memref<2x16x448xf32, #tpu.memory_space<vmem>>, vector<2x1x448xf32>
    %857 = vector.shape_cast %856 : vector<2x1x448xf32> to vector<2x448xf32>
    %858 = arith.maximumf %855, %857 : vector<2x448xf32>
    %859 = vector.extract_strided_slice %858 {offsets = [0, 0], sizes = [2, 32], strides = [1, 1]} : vector<2x448xf32> to vector<2x32xf32>
    %860 = vector.extract_strided_slice %858 {offsets = [0, 32], sizes = [2, 32], strides = [1, 1]} : vector<2x448xf32> to vector<2x32xf32>
    %861 = arith.maximumf %859, %860 : vector<2x32xf32>
    %862 = vector.extract_strided_slice %858 {offsets = [0, 64], sizes = [2, 32], strides = [1, 1]} : vector<2x448xf32> to vector<2x32xf32>
    %863 = vector.extract_strided_slice %858 {offsets = [0, 96], sizes = [2, 32], strides = [1, 1]} : vector<2x448xf32> to vector<2x32xf32>
    %864 = arith.maximumf %862, %863 : vector<2x32xf32>
    %865 = vector.extract_strided_slice %858 {offsets = [0, 128], sizes = [2, 32], strides = [1, 1]} : vector<2x448xf32> to vector<2x32xf32>
    %866 = vector.extract_strided_slice %858 {offsets = [0, 160], sizes = [2, 32], strides = [1, 1]} : vector<2x448xf32> to vector<2x32xf32>
    %867 = arith.maximumf %865, %866 : vector<2x32xf32>
    %868 = vector.extract_strided_slice %858 {offsets = [0, 192], sizes = [2, 32], strides = [1, 1]} : vector<2x448xf32> to vector<2x32xf32>
    %869 = vector.extract_strided_slice %858 {offsets = [0, 224], sizes = [2, 32], strides = [1, 1]} : vector<2x448xf32> to vector<2x32xf32>
    %870 = arith.maximumf %868, %869 : vector<2x32xf32>
    %871 = vector.extract_strided_slice %858 {offsets = [0, 256], sizes = [2, 32], strides = [1, 1]} : vector<2x448xf32> to vector<2x32xf32>
    %872 = vector.extract_strided_slice %858 {offsets = [0, 288], sizes = [2, 32], strides = [1, 1]} : vector<2x448xf32> to vector<2x32xf32>
    %873 = arith.maximumf %871, %872 : vector<2x32xf32>
    %874 = vector.extract_strided_slice %858 {offsets = [0, 320], sizes = [2, 32], strides = [1, 1]} : vector<2x448xf32> to vector<2x32xf32>
    %875 = vector.extract_strided_slice %858 {offsets = [0, 352], sizes = [2, 32], strides = [1, 1]} : vector<2x448xf32> to vector<2x32xf32>
    %876 = arith.maximumf %874, %875 : vector<2x32xf32>
    %877 = vector.extract_strided_slice %858 {offsets = [0, 384], sizes = [2, 32], strides = [1, 1]} : vector<2x448xf32> to vector<2x32xf32>
    %878 = vector.extract_strided_slice %858 {offsets = [0, 416], sizes = [2, 32], strides = [1, 1]} : vector<2x448xf32> to vector<2x32xf32>
    %879 = arith.maximumf %877, %878 : vector<2x32xf32>
    %c0_212 = arith.constant 0 : index
    %c6_213 = arith.constant 6 : index
    %c0_214 = arith.constant 0 : index
    %880 = vector.load %arg11[%c0_212, %c6_213, %c0_214] : memref<2x16x448xf32, #tpu.memory_space<vmem>>, vector<2x1x448xf32>
    %881 = vector.shape_cast %880 : vector<2x1x448xf32> to vector<2x448xf32>
    %c0_215 = arith.constant 0 : index
    %c7_216 = arith.constant 7 : index
    %c0_217 = arith.constant 0 : index
    %882 = vector.load %arg11[%c0_215, %c7_216, %c0_217] : memref<2x16x448xf32, #tpu.memory_space<vmem>>, vector<2x1x448xf32>
    %883 = vector.shape_cast %882 : vector<2x1x448xf32> to vector<2x448xf32>
    %884 = arith.maximumf %881, %883 : vector<2x448xf32>
    %885 = vector.extract_strided_slice %884 {offsets = [0, 0], sizes = [2, 32], strides = [1, 1]} : vector<2x448xf32> to vector<2x32xf32>
    %886 = vector.extract_strided_slice %884 {offsets = [0, 32], sizes = [2, 32], strides = [1, 1]} : vector<2x448xf32> to vector<2x32xf32>
    %887 = arith.maximumf %885, %886 : vector<2x32xf32>
    %888 = vector.extract_strided_slice %884 {offsets = [0, 64], sizes = [2, 32], strides = [1, 1]} : vector<2x448xf32> to vector<2x32xf32>
    %889 = vector.extract_strided_slice %884 {offsets = [0, 96], sizes = [2, 32], strides = [1, 1]} : vector<2x448xf32> to vector<2x32xf32>
    %890 = arith.maximumf %888, %889 : vector<2x32xf32>
    %891 = vector.extract_strided_slice %884 {offsets = [0, 128], sizes = [2, 32], strides = [1, 1]} : vector<2x448xf32> to vector<2x32xf32>
    %892 = vector.extract_strided_slice %884 {offsets = [0, 160], sizes = [2, 32], strides = [1, 1]} : vector<2x448xf32> to vector<2x32xf32>
    %893 = arith.maximumf %891, %892 : vector<2x32xf32>
    %894 = vector.extract_strided_slice %884 {offsets = [0, 192], sizes = [2, 32], strides = [1, 1]} : vector<2x448xf32> to vector<2x32xf32>
    %895 = vector.extract_strided_slice %884 {offsets = [0, 224], sizes = [2, 32], strides = [1, 1]} : vector<2x448xf32> to vector<2x32xf32>
    %896 = arith.maximumf %894, %895 : vector<2x32xf32>
    %897 = vector.extract_strided_slice %884 {offsets = [0, 256], sizes = [2, 32], strides = [1, 1]} : vector<2x448xf32> to vector<2x32xf32>
    %898 = vector.extract_strided_slice %884 {offsets = [0, 288], sizes = [2, 32], strides = [1, 1]} : vector<2x448xf32> to vector<2x32xf32>
    %899 = arith.maximumf %897, %898 : vector<2x32xf32>
    %900 = vector.extract_strided_slice %884 {offsets = [0, 320], sizes = [2, 32], strides = [1, 1]} : vector<2x448xf32> to vector<2x32xf32>
    %901 = vector.extract_strided_slice %884 {offsets = [0, 352], sizes = [2, 32], strides = [1, 1]} : vector<2x448xf32> to vector<2x32xf32>
    %902 = arith.maximumf %900, %901 : vector<2x32xf32>
    %903 = vector.extract_strided_slice %884 {offsets = [0, 384], sizes = [2, 32], strides = [1, 1]} : vector<2x448xf32> to vector<2x32xf32>
    %904 = vector.extract_strided_slice %884 {offsets = [0, 416], sizes = [2, 32], strides = [1, 1]} : vector<2x448xf32> to vector<2x32xf32>
    %905 = arith.maximumf %903, %904 : vector<2x32xf32>
    %c0_218 = arith.constant 0 : index
    %c8_219 = arith.constant 8 : index
    %c0_220 = arith.constant 0 : index
    %906 = vector.load %arg11[%c0_218, %c8_219, %c0_220] : memref<2x16x448xf32, #tpu.memory_space<vmem>>, vector<2x1x448xf32>
    %907 = vector.shape_cast %906 : vector<2x1x448xf32> to vector<2x448xf32>
    %c0_221 = arith.constant 0 : index
    %c9_222 = arith.constant 9 : index
    %c0_223 = arith.constant 0 : index
    %908 = vector.load %arg11[%c0_221, %c9_222, %c0_223] : memref<2x16x448xf32, #tpu.memory_space<vmem>>, vector<2x1x448xf32>
    %909 = vector.shape_cast %908 : vector<2x1x448xf32> to vector<2x448xf32>
    %910 = arith.maximumf %907, %909 : vector<2x448xf32>
    %911 = vector.extract_strided_slice %910 {offsets = [0, 0], sizes = [2, 32], strides = [1, 1]} : vector<2x448xf32> to vector<2x32xf32>
    %912 = vector.extract_strided_slice %910 {offsets = [0, 32], sizes = [2, 32], strides = [1, 1]} : vector<2x448xf32> to vector<2x32xf32>
    %913 = arith.maximumf %911, %912 : vector<2x32xf32>
    %914 = vector.extract_strided_slice %910 {offsets = [0, 64], sizes = [2, 32], strides = [1, 1]} : vector<2x448xf32> to vector<2x32xf32>
    %915 = vector.extract_strided_slice %910 {offsets = [0, 96], sizes = [2, 32], strides = [1, 1]} : vector<2x448xf32> to vector<2x32xf32>
    %916 = arith.maximumf %914, %915 : vector<2x32xf32>
    %917 = vector.extract_strided_slice %910 {offsets = [0, 128], sizes = [2, 32], strides = [1, 1]} : vector<2x448xf32> to vector<2x32xf32>
    %918 = vector.extract_strided_slice %910 {offsets = [0, 160], sizes = [2, 32], strides = [1, 1]} : vector<2x448xf32> to vector<2x32xf32>
    %919 = arith.maximumf %917, %918 : vector<2x32xf32>
    %920 = vector.extract_strided_slice %910 {offsets = [0, 192], sizes = [2, 32], strides = [1, 1]} : vector<2x448xf32> to vector<2x32xf32>
    %921 = vector.extract_strided_slice %910 {offsets = [0, 224], sizes = [2, 32], strides = [1, 1]} : vector<2x448xf32> to vector<2x32xf32>
    %922 = arith.maximumf %920, %921 : vector<2x32xf32>
    %923 = vector.extract_strided_slice %910 {offsets = [0, 256], sizes = [2, 32], strides = [1, 1]} : vector<2x448xf32> to vector<2x32xf32>
    %924 = vector.extract_strided_slice %910 {offsets = [0, 288], sizes = [2, 32], strides = [1, 1]} : vector<2x448xf32> to vector<2x32xf32>
    %925 = arith.maximumf %923, %924 : vector<2x32xf32>
    %926 = vector.extract_strided_slice %910 {offsets = [0, 320], sizes = [2, 32], strides = [1, 1]} : vector<2x448xf32> to vector<2x32xf32>
    %927 = vector.extract_strided_slice %910 {offsets = [0, 352], sizes = [2, 32], strides = [1, 1]} : vector<2x448xf32> to vector<2x32xf32>
    %928 = arith.maximumf %926, %927 : vector<2x32xf32>
    %929 = vector.extract_strided_slice %910 {offsets = [0, 384], sizes = [2, 32], strides = [1, 1]} : vector<2x448xf32> to vector<2x32xf32>
    %930 = vector.extract_strided_slice %910 {offsets = [0, 416], sizes = [2, 32], strides = [1, 1]} : vector<2x448xf32> to vector<2x32xf32>
    %931 = arith.maximumf %929, %930 : vector<2x32xf32>
    %c0_224 = arith.constant 0 : index
    %c10_225 = arith.constant 10 : index
    %c0_226 = arith.constant 0 : index
    %932 = vector.load %arg11[%c0_224, %c10_225, %c0_226] : memref<2x16x448xf32, #tpu.memory_space<vmem>>, vector<2x1x448xf32>
    %933 = vector.shape_cast %932 : vector<2x1x448xf32> to vector<2x448xf32>
    %c0_227 = arith.constant 0 : index
    %c11_228 = arith.constant 11 : index
    %c0_229 = arith.constant 0 : index
    %934 = vector.load %arg11[%c0_227, %c11_228, %c0_229] : memref<2x16x448xf32, #tpu.memory_space<vmem>>, vector<2x1x448xf32>
    %935 = vector.shape_cast %934 : vector<2x1x448xf32> to vector<2x448xf32>
    %936 = arith.maximumf %933, %935 : vector<2x448xf32>
    %937 = vector.extract_strided_slice %936 {offsets = [0, 0], sizes = [2, 32], strides = [1, 1]} : vector<2x448xf32> to vector<2x32xf32>
    %938 = vector.extract_strided_slice %936 {offsets = [0, 32], sizes = [2, 32], strides = [1, 1]} : vector<2x448xf32> to vector<2x32xf32>
    %939 = arith.maximumf %937, %938 : vector<2x32xf32>
    %940 = vector.extract_strided_slice %936 {offsets = [0, 64], sizes = [2, 32], strides = [1, 1]} : vector<2x448xf32> to vector<2x32xf32>
    %941 = vector.extract_strided_slice %936 {offsets = [0, 96], sizes = [2, 32], strides = [1, 1]} : vector<2x448xf32> to vector<2x32xf32>
    %942 = arith.maximumf %940, %941 : vector<2x32xf32>
    %943 = vector.extract_strided_slice %936 {offsets = [0, 128], sizes = [2, 32], strides = [1, 1]} : vector<2x448xf32> to vector<2x32xf32>
    %944 = vector.extract_strided_slice %936 {offsets = [0, 160], sizes = [2, 32], strides = [1, 1]} : vector<2x448xf32> to vector<2x32xf32>
    %945 = arith.maximumf %943, %944 : vector<2x32xf32>
    %946 = vector.extract_strided_slice %936 {offsets = [0, 192], sizes = [2, 32], strides = [1, 1]} : vector<2x448xf32> to vector<2x32xf32>
    %947 = vector.extract_strided_slice %936 {offsets = [0, 224], sizes = [2, 32], strides = [1, 1]} : vector<2x448xf32> to vector<2x32xf32>
    %948 = arith.maximumf %946, %947 : vector<2x32xf32>
    %949 = vector.extract_strided_slice %936 {offsets = [0, 256], sizes = [2, 32], strides = [1, 1]} : vector<2x448xf32> to vector<2x32xf32>
    %950 = vector.extract_strided_slice %936 {offsets = [0, 288], sizes = [2, 32], strides = [1, 1]} : vector<2x448xf32> to vector<2x32xf32>
    %951 = arith.maximumf %949, %950 : vector<2x32xf32>
    %952 = vector.extract_strided_slice %936 {offsets = [0, 320], sizes = [2, 32], strides = [1, 1]} : vector<2x448xf32> to vector<2x32xf32>
    %953 = vector.extract_strided_slice %936 {offsets = [0, 352], sizes = [2, 32], strides = [1, 1]} : vector<2x448xf32> to vector<2x32xf32>
    %954 = arith.maximumf %952, %953 : vector<2x32xf32>
    %955 = vector.extract_strided_slice %936 {offsets = [0, 384], sizes = [2, 32], strides = [1, 1]} : vector<2x448xf32> to vector<2x32xf32>
    %956 = vector.extract_strided_slice %936 {offsets = [0, 416], sizes = [2, 32], strides = [1, 1]} : vector<2x448xf32> to vector<2x32xf32>
    %957 = arith.maximumf %955, %956 : vector<2x32xf32>
    %c0_230 = arith.constant 0 : index
    %c12_231 = arith.constant 12 : index
    %c0_232 = arith.constant 0 : index
    %958 = vector.load %arg11[%c0_230, %c12_231, %c0_232] : memref<2x16x448xf32, #tpu.memory_space<vmem>>, vector<2x1x448xf32>
    %959 = vector.shape_cast %958 : vector<2x1x448xf32> to vector<2x448xf32>
    %c0_233 = arith.constant 0 : index
    %c13_234 = arith.constant 13 : index
    %c0_235 = arith.constant 0 : index
    %960 = vector.load %arg11[%c0_233, %c13_234, %c0_235] : memref<2x16x448xf32, #tpu.memory_space<vmem>>, vector<2x1x448xf32>
    %961 = vector.shape_cast %960 : vector<2x1x448xf32> to vector<2x448xf32>
    %962 = arith.maximumf %959, %961 : vector<2x448xf32>
    %963 = vector.extract_strided_slice %962 {offsets = [0, 0], sizes = [2, 32], strides = [1, 1]} : vector<2x448xf32> to vector<2x32xf32>
    %964 = vector.extract_strided_slice %962 {offsets = [0, 32], sizes = [2, 32], strides = [1, 1]} : vector<2x448xf32> to vector<2x32xf32>
    %965 = arith.maximumf %963, %964 : vector<2x32xf32>
    %966 = vector.extract_strided_slice %962 {offsets = [0, 64], sizes = [2, 32], strides = [1, 1]} : vector<2x448xf32> to vector<2x32xf32>
    %967 = vector.extract_strided_slice %962 {offsets = [0, 96], sizes = [2, 32], strides = [1, 1]} : vector<2x448xf32> to vector<2x32xf32>
    %968 = arith.maximumf %966, %967 : vector<2x32xf32>
    %969 = vector.extract_strided_slice %962 {offsets = [0, 128], sizes = [2, 32], strides = [1, 1]} : vector<2x448xf32> to vector<2x32xf32>
    %970 = vector.extract_strided_slice %962 {offsets = [0, 160], sizes = [2, 32], strides = [1, 1]} : vector<2x448xf32> to vector<2x32xf32>
    %971 = arith.maximumf %969, %970 : vector<2x32xf32>
    %972 = vector.extract_strided_slice %962 {offsets = [0, 192], sizes = [2, 32], strides = [1, 1]} : vector<2x448xf32> to vector<2x32xf32>
    %973 = vector.extract_strided_slice %962 {offsets = [0, 224], sizes = [2, 32], strides = [1, 1]} : vector<2x448xf32> to vector<2x32xf32>
    %974 = arith.maximumf %972, %973 : vector<2x32xf32>
    %975 = vector.extract_strided_slice %962 {offsets = [0, 256], sizes = [2, 32], strides = [1, 1]} : vector<2x448xf32> to vector<2x32xf32>
    %976 = vector.extract_strided_slice %962 {offsets = [0, 288], sizes = [2, 32], strides = [1, 1]} : vector<2x448xf32> to vector<2x32xf32>
    %977 = arith.maximumf %975, %976 : vector<2x32xf32>
    %978 = vector.extract_strided_slice %962 {offsets = [0, 320], sizes = [2, 32], strides = [1, 1]} : vector<2x448xf32> to vector<2x32xf32>
    %979 = vector.extract_strided_slice %962 {offsets = [0, 352], sizes = [2, 32], strides = [1, 1]} : vector<2x448xf32> to vector<2x32xf32>
    %980 = arith.maximumf %978, %979 : vector<2x32xf32>
    %981 = vector.extract_strided_slice %962 {offsets = [0, 384], sizes = [2, 32], strides = [1, 1]} : vector<2x448xf32> to vector<2x32xf32>
    %982 = vector.extract_strided_slice %962 {offsets = [0, 416], sizes = [2, 32], strides = [1, 1]} : vector<2x448xf32> to vector<2x32xf32>
    %983 = arith.maximumf %981, %982 : vector<2x32xf32>
    %984 = tpu.concatenate %809, %812, %815, %818, %821, %824, %827, %835, %838, %841, %844, %847, %850, %853, %861, %864 in 1 : vector<2x32xf32>, vector<2x32xf32>, vector<2x32xf32>, vector<2x32xf32>, vector<2x32xf32>, vector<2x32xf32>, vector<2x32xf32>, vector<2x32xf32>, vector<2x32xf32>, vector<2x32xf32>, vector<2x32xf32>, vector<2x32xf32>, vector<2x32xf32>, vector<2x32xf32>, vector<2x32xf32>, vector<2x32xf32> -> vector<2x512xf32>
    %985 = tpu.concatenate %867, %870, %873, %876, %879, %887, %890, %893, %896, %899, %902, %905, %913, %916, %919, %922 in 1 : vector<2x32xf32>, vector<2x32xf32>, vector<2x32xf32>, vector<2x32xf32>, vector<2x32xf32>, vector<2x32xf32>, vector<2x32xf32>, vector<2x32xf32>, vector<2x32xf32>, vector<2x32xf32>, vector<2x32xf32>, vector<2x32xf32>, vector<2x32xf32>, vector<2x32xf32>, vector<2x32xf32>, vector<2x32xf32> -> vector<2x512xf32>
    %986 = tpu.concatenate %925, %928, %931, %939, %942, %945, %948, %951, %954, %957, %965, %968, %971, %974, %977, %980 in 1 : vector<2x32xf32>, vector<2x32xf32>, vector<2x32xf32>, vector<2x32xf32>, vector<2x32xf32>, vector<2x32xf32>, vector<2x32xf32>, vector<2x32xf32>, vector<2x32xf32>, vector<2x32xf32>, vector<2x32xf32>, vector<2x32xf32>, vector<2x32xf32>, vector<2x32xf32>, vector<2x32xf32>, vector<2x32xf32> -> vector<2x512xf32>
    %987 = tpu.concatenate %984, %985, %986, %983 in 1 : vector<2x512xf32>, vector<2x512xf32>, vector<2x512xf32>, vector<2x32xf32> -> vector<2x1568xf32>
    %c0_236 = arith.constant 0 : index
    %c0_237 = arith.constant 0 : index
    %988 = vector.load %arg5[%c0_236, %c0_237] : memref<1568x10xf32, #tpu.memory_space<vmem>>, vector<1568x10xf32>
    %cst_238 = arith.constant dense<0.000000e+00> : vector<2x10xf32>
    %989 = tpu.matmul %987, %988, %cst_238 {dimension_numbers = #tpu.dot_dimension_numbers<[1], [0], [0], [1], [0, 0, 1, 1], [], []>} : vector<2x1568xf32>, vector<1568x10xf32>, vector<2x10xf32> -> vector<2x10xf32>
    %c0_239 = arith.constant 0 : index
    %c0_240 = arith.constant 0 : index
    %990 = vector.load %arg6[%c0_239, %c0_240] : memref<1x10xf32, #tpu.memory_space<vmem>>, vector<1x10xf32>
    %991 = vector.broadcast %990 : vector<1x10xf32> to vector<2x10xf32>
    %992 = arith.addf %989, %991 : vector<2x10xf32>
    %c0_241 = arith.constant 0 : index
    %c0_242 = arith.constant 0 : index
    %993 = vector.load %arg7[%c0_241, %c0_242] : memref<2x10xf32, #tpu.memory_space<vmem>>, vector<2x10xf32>
    tpu.vector_store %arg7[%c0_241, %c0_242], %992 {strides = array<i32>} : memref<2x10xf32, #tpu.memory_space<vmem>>, vector<2x10xf32>,
    return
  }
}

</mosaic_0001>

<llo_original>
// kernel: convnet_forward.1
$region0: #{convnet_forward.1}
  #allocation0 [shape = 'u32[]', space=smem, size = 0x4, offset = 0x4, fixed_abs, tag = 'smem constant byte address 0x4 - core index']
  #allocation1 [shape = 'u32[144,128]{1,0:T(1,128)}', space=vmem, size = 0x12000, scoped, tag = 'internal scratch']
  #allocation2 [shape = 'f32[2,36,32]{2,1,0:T(8,128)}', space=vmem, size = 0xa000, scoped, tag = 'scratch operand']
  #allocation3 [shape = 'f32[2,32,448]{2,1,0:T(8,128)}', space=vmem, size = 0x20000, scoped, tag = 'scratch operand']
  #allocation4 [shape = 'f32[2,20,288]{2,1,0:T(8,128)}', space=vmem, size = 0x12000, scoped, tag = 'scratch operand']
  #allocation5 [shape = 'f32[2,16,448]{2,1,0:T(8,128)}', space=vmem, size = 0x10000, scoped, tag = 'scratch operand']
  %s0 = inlined_call_operand.vmem [shape: f32[2,28,28], index: 0, kind: input, shape index: {}]
  %s1 = inlined_call_operand.vmem [shape: f32[160,448], index: 1, kind: input, shape index: {}]
  %s2 = inlined_call_operand.vmem [shape: f32[1,448], index: 2, kind: input, shape index: {}]
  %s3 = inlined_call_operand.vmem [shape: f32[1440,448], index: 3, kind: input, shape index: {}]
  %s4 = inlined_call_operand.vmem [shape: f32[1,448], index: 4, kind: input, shape index: {}]
  %s5 = inlined_call_operand.vmem [shape: f32[1568,10], index: 5, kind: input, shape index: {}]
  %s6 = inlined_call_operand.vmem [shape: f32[1,10], index: 6, kind: input, shape index: {}]
  %s7 = inlined_call_operand.hbm [shape: f32[2,10], index: 7, kind: output, shape index: {}]
  %s8 = sld [smem:[#allocation0]]
  $region38: #{convnet_forward.1} parent=0
    _
  %s10 = ssub.s32 1, %s8
  %s11 = scalar_select 0, %s10, %s8
  $region1: #{convnet_forward.1} parent=0
    #allocation6 [shape = 'u8[1024]{0}', space=vmem, size = 0x400, scoped, tag = 'output window, operand 0, single buffered']
    #allocation7 [shape = 's32[1]{0}', space=sflag, size = 0x4, scoped, tag = 'scoped memory for convnet_forward.1']
    %12 = vsyncpa [#allocation7], 0
    // Predicated region
    $region2: #{convnet_forward.1} parent=1 // pred_check
      _
    $region3: #{convnet_forward.1} parent=1 // pred_check_branch
      %14 = sbr.rel (0) target = $region5
    $region4: #{convnet_forward.1} parent=1 // pred_region
      _
    $region5: #{convnet_forward.1} parent=1 // pred_fallthru
      _
    // Predicated region
    $region6: #{convnet_forward.1} parent=1 // pred_check
      _
    $region7: #{convnet_forward.1} parent=1 // pred_check_branch
      %16 = sbr.rel (0) target = $region9
    $region8: #{convnet_forward.1} parent=1 // pred_region
      _
    $region9: #{convnet_forward.1} parent=1 // pred_fallthru
      _
    // Predicated region
    $region10: #{convnet_forward.1} parent=1 // pred_check
      _
    $region11: #{convnet_forward.1} parent=1 // pred_check_branch
      %18 = sbr.rel (0) target = $region13
    $region12: #{convnet_forward.1} parent=1 // pred_region
      _
    $region13: #{convnet_forward.1} parent=1 // pred_fallthru
      _
    // Predicated region
    $region14: #{convnet_forward.1} parent=1 // pred_check
      _
    $region15: #{convnet_forward.1} parent=1 // pred_check_branch
      %20 = sbr.rel (0) target = $region17
    $region16: #{convnet_forward.1} parent=1 // pred_region
      _
    $region17: #{convnet_forward.1} parent=1 // pred_fallthru
      _
    // Predicated region
    $region18: #{convnet_forward.1} parent=1 // pred_check
      _
    $region19: #{convnet_forward.1} parent=1 // pred_check_branch
      %22 = sbr.rel (0) target = $region21
    $region20: #{convnet_forward.1} parent=1 // pred_region
      _
    $region21: #{convnet_forward.1} parent=1 // pred_fallthru
      _
    // Predicated region
    $region22: #{convnet_forward.1} parent=1 // pred_check
      _
    $region23: #{convnet_forward.1} parent=1 // pred_check_branch
      %24 = sbr.rel (0) target = $region25
    $region24: #{convnet_forward.1} parent=1 // pred_region
      _
    $region25: #{convnet_forward.1} parent=1 // pred_fallthru
      _
    // Predicated region
    $region26: #{convnet_forward.1} parent=1 // pred_check
      _
    $region27: #{convnet_forward.1} parent=1 // pred_check_branch
      %26 = sbr.rel (0) target = $region29
    $region28: #{convnet_forward.1} parent=1 // pred_region
      _
    $region29: #{convnet_forward.1} parent=1 // pred_fallthru
      _
    %vm27 = vcmask 261120
    %28 = vst.msk [vmem:[#allocation2] sm:$0xff] %vm27, 0.0
    %29 = vst.msk [vmem:[#allocation2 + $0x8] sm:$0xff] %vm27, 0.0
    %30 = vst.msk [vmem:[#allocation2 + $0x10] sm:$0xff] %vm27, 0.0
    %31 = vst.msk [vmem:[#allocation2 + $0x18] sm:$0xff] %vm27, 0.0
    %vm32 = vcmask 257024
    %33 = vst.msk [vmem:[#allocation2 + $0x20] sm:$0xf] %vm32, 0.0
    %34 = vst.msk [vmem:[#allocation2 + $0x28] sm:$0xff] %vm27, 0.0
    %35 = vst.msk [vmem:[#allocation2 + $0x30] sm:$0xff] %vm27, 0.0
    %36 = vst.msk [vmem:[#allocation2 + $0x38] sm:$0xff] %vm27, 0.0
    %37 = vst.msk [vmem:[#allocation2 + $0x40] sm:$0xff] %vm27, 0.0
    %38 = vst.msk [vmem:[#allocation2 + $0x48] sm:$0xf] %vm32, 0.0
    %v39 = vld [vmem:[%s0] sm:$0xff]
    %v40 = vld [vmem:[%s0 + $0x8] sm:$0xff]
    %v41 = vld [vmem:[%s0 + $0x10] sm:$0xff]
    %v42 = vld [vmem:[%s0 + $0x18] sm:$0xf]
    %v43 = vld [vmem:[%s0 + $0x20] sm:$0xff]
    %v44 = vld [vmem:[%s0 + $0x28] sm:$0xff]
    %v45 = vld [vmem:[%s0 + $0x30] sm:$0xff]
    %v46 = vld [vmem:[%s0 + $0x38] sm:$0xf]
    %55 = vrot.lane.b32.xlu0 %v39, 2
    %v56 = vpop.permute.xlu0 %55
    %57 = vrot.lane.b32.xlu0 %v40, 2
    %v58 = vpop.permute.xlu0 %57
    %59 = vrot.lane.b32.xlu0 %v41, 2
    %v60 = vpop.permute.xlu0 %59
    %61 = vrot.lane.b32.xlu0 %v42, 2
    %v62 = vpop.permute.xlu0 %61
    %63 = vrot.lane.b32.xlu0 %v43, 2
    %v64 = vpop.permute.xlu0 %63
    %65 = vrot.lane.b32.xlu0 %v44, 2
    %v66 = vpop.permute.xlu0 %65
    %67 = vrot.lane.b32.xlu0 %v45, 2
    %v68 = vpop.permute.xlu0 %67
    %69 = vrot.lane.b32.xlu0 %v46, 2
    %v70 = vpop.permute.xlu0 %69
    %vm79 = vcmask 244752
    %80 = vst.msk [vmem:[#allocation2 + $0x2] sm:$0xff] %vm79, %v56
    %81 = vst.msk [vmem:[#allocation2 + $0xa] sm:$0xff] %vm79, %v58
    %82 = vst.msk [vmem:[#allocation2 + $0x12] sm:$0xff] %vm79, %v60
    %vm83 = vcmask 240656
    %84 = vst.msk [vmem:[#allocation2 + $0x1a] sm:$0xf] %vm83, %v62
    %85 = vst.msk [vmem:[#allocation2 + $0x2a] sm:$0xff] %vm79, %v64
    %86 = vst.msk [vmem:[#allocation2 + $0x32] sm:$0xff] %vm79, %v66
    %87 = vst.msk [vmem:[#allocation2 + $0x3a] sm:$0xff] %vm79, %v68
    %88 = vst.msk [vmem:[#allocation2 + $0x42] sm:$0xf] %vm83, %v70
    %v89 = vld [vmem:[#allocation2] sm:$0xff]
    %v90 = vld [vmem:[#allocation2 + $0x8] sm:$0xff]
    %v91 = vld [vmem:[#allocation2 + $0x10] sm:$0xff]
    %v92 = vld [vmem:[#allocation2 + $0x18] sm:$0xff]
    %s93 = scalar_lea.vmem [#allocation2], 40
    %v94 = vld [vmem:[%s93] sm:$0xff]
    %v95 = vld [vmem:[%s93 + $0x8] sm:$0xff]
    %v96 = vld [vmem:[%s93 + $0x10] sm:$0xff]
    %v97 = vld [vmem:[%s93 + $0x18] sm:$0xff]
    %v98 = vld [vmem:[#allocation2 + $0x1] sm:$0xff]
    %v99 = vld [vmem:[#allocation2 + $0x9] sm:$0xff]
    %v100 = vld [vmem:[#allocation2 + $0x11] sm:$0xff]
    %v101 = vld [vmem:[#allocation2 + $0x19] sm:$0xff]
    %v102 = vld [vmem:[%s93 + $0x1] sm:$0xff]
    %v103 = vld [vmem:[%s93 + $0x9] sm:$0xff]
    %v104 = vld [vmem:[%s93 + $0x11] sm:$0xff]
    %v105 = vld [vmem:[%s93 + $0x19] sm:$0xff]
    %v106 = vld [vmem:[#allocation2 + $0x2] sm:$0xff]
    %v107 = vld [vmem:[#allocation2 + $0xa] sm:$0xff]
    %v108 = vld [vmem:[#allocation2 + $0x12] sm:$0xff]
    %v109 = vld [vmem:[#allocation2 + $0x1a] sm:$0xff]
    %v110 = vld [vmem:[%s93 + $0x2] sm:$0xff]
    %v111 = vld [vmem:[%s93 + $0xa] sm:$0xff]
    %v112 = vld [vmem:[%s93 + $0x12] sm:$0xff]
    %v113 = vld [vmem:[%s93 + $0x1a] sm:$0xff]
    %v114 = vld [vmem:[#allocation2 + $0x3] sm:$0xff]
    %v115 = vld [vmem:[#allocation2 + $0xb] sm:$0xff]
    %v116 = vld [vmem:[#allocation2 + $0x13] sm:$0xff]
    %v117 = vld [vmem:[#allocation2 + $0x1b] sm:$0xff]
    %v118 = vld [vmem:[%s93 + $0x3] sm:$0xff]
    %v119 = vld [vmem:[%s93 + $0xb] sm:$0xff]
    %v120 = vld [vmem:[%s93 + $0x13] sm:$0xff]
    %v121 = vld [vmem:[%s93 + $0x1b] sm:$0xff]
    %v122 = vld [vmem:[#allocation2 + $0x4] sm:$0xff]
    %v123 = vld [vmem:[#allocation2 + $0xc] sm:$0xff]
    %v124 = vld [vmem:[#allocation2 + $0x14] sm:$0xff]
    %v125 = vld [vmem:[#allocation2 + $0x1c] sm:$0xff]
    %v126 = vld [vmem:[%s93 + $0x4] sm:$0xff]
    %v127 = vld [vmem:[%s93 + $0xc] sm:$0xff]
    %v128 = vld [vmem:[%s93 + $0x14] sm:$0xff]
    %v129 = vld [vmem:[%s93 + $0x1c] sm:$0xff]
    %138 = vrot.lane.b32.xlu0 %v98, 32
    %v139 = vpop.permute.xlu0 %138
    %140 = vrot.lane.b32.xlu0 %v99, 32
    %v141 = vpop.permute.xlu0 %140
    %142 = vrot.lane.b32.xlu0 %v100, 32
    %v143 = vpop.permute.xlu0 %142
    %144 = vrot.lane.b32.xlu0 %v101, 32
    %v145 = vpop.permute.xlu0 %144
    %146 = vrot.lane.b32.xlu0 %v102, 32
    %v147 = vpop.permute.xlu0 %146
    %148 = vrot.lane.b32.xlu0 %v103, 32
    %v149 = vpop.permute.xlu0 %148
    %150 = vrot.lane.b32.xlu0 %v104, 32
    %v151 = vpop.permute.xlu0 %150
    %152 = vrot.lane.b32.xlu0 %v105, 32
    %v153 = vpop.permute.xlu0 %152
    %170 = vrot.lane.b32.xlu0 %v106, 64
    %v171 = vpop.permute.xlu0 %170
    %172 = vrot.lane.b32.xlu0 %v107, 64
    %v173 = vpop.permute.xlu0 %172
    %174 = vrot.lane.b32.xlu0 %v108, 64
    %v175 = vpop.permute.xlu0 %174
    %176 = vrot.lane.b32.xlu0 %v109, 64
    %v177 = vpop.permute.xlu0 %176
    %178 = vrot.lane.b32.xlu0 %v110, 64
    %v179 = vpop.permute.xlu0 %178
    %180 = vrot.lane.b32.xlu0 %v111, 64
    %v181 = vpop.permute.xlu0 %180
    %182 = vrot.lane.b32.xlu0 %v112, 64
    %v183 = vpop.permute.xlu0 %182
    %184 = vrot.lane.b32.xlu0 %v113, 64
    %v185 = vpop.permute.xlu0 %184
    %202 = vrot.lane.b32.xlu0 %v114, 96
    %v203 = vpop.permute.xlu0 %202
    %204 = vrot.lane.b32.xlu0 %v115, 96
    %v205 = vpop.permute.xlu0 %204
    %206 = vrot.lane.b32.xlu0 %v116, 96
    %v207 = vpop.permute.xlu0 %206
    %208 = vrot.lane.b32.xlu0 %v117, 96
    %v209 = vpop.permute.xlu0 %208
    %210 = vrot.lane.b32.xlu0 %v118, 96
    %v211 = vpop.permute.xlu0 %210
    %212 = vrot.lane.b32.xlu0 %v119, 96
    %v213 = vpop.permute.xlu0 %212
    %214 = vrot.lane.b32.xlu0 %v120, 96
    %v215 = vpop.permute.xlu0 %214
    %216 = vrot.lane.b32.xlu0 %v121, 96
    %v217 = vpop.permute.xlu0 %216
    %v226 = vsel %vm27, %v89, %v139
    %v227 = vsel %vm27, %v90, %v141
    %v228 = vsel %vm27, %v91, %v143
    %v229 = vsel %vm27, %v92, %v145
    %v230 = vsel %vm27, %v94, %v147
    %v231 = vsel %vm27, %v95, %v149
    %v232 = vsel %vm27, %v96, %v151
    %v233 = vsel %vm27, %v97, %v153
    %vm234 = vcmask 523264
    %v235 = vsel %vm234, %v226, %v171
    %v236 = vsel %vm234, %v227, %v173
    %v237 = vsel %vm234, %v228, %v175
    %v238 = vsel %vm234, %v229, %v177
    %v239 = vsel %vm234, %v230, %v179
    %v240 = vsel %vm234, %v231, %v181
    %v241 = vsel %vm234, %v232, %v183
    %v242 = vsel %vm234, %v233, %v185
    %vm243 = vcmask 785408
    %v244 = vsel %vm243, %v235, %v203
    %v245 = vsel %vm243, %v236, %v205
    %v246 = vsel %vm243, %v237, %v207
    %v247 = vsel %vm243, %v238, %v209
    %v248 = vsel %vm243, %v239, %v211
    %v249 = vsel %vm243, %v240, %v213
    %v250 = vsel %vm243, %v241, %v215
    %v251 = vsel %vm243, %v242, %v217
    %v252 = vld [vmem:[%s1] sm:$0xff]
    %v253 = vld [vmem:[%s1 + $0x8] sm:$0xff]
    %v254 = vld [vmem:[%s1 + $0x10] sm:$0xff]
    %v255 = vld [vmem:[%s1 + $0x18] sm:$0xff]
    %v256 = vld [vmem:[%s1 + $0x20] sm:$0xff]
    %v257 = vld [vmem:[%s1 + $0x28] sm:$0xff]
    %v258 = vld [vmem:[%s1 + $0x30] sm:$0xff]
    %v259 = vld [vmem:[%s1 + $0x38] sm:$0xff]
    %v260 = vld [vmem:[%s1 + $0x40] sm:$0xff]
    %v261 = vld [vmem:[%s1 + $0x48] sm:$0xff]
    %v262 = vld [vmem:[%s1 + $0x50] sm:$0xff]
    %v263 = vld [vmem:[%s1 + $0x58] sm:$0xff]
    %v264 = vld [vmem:[%s1 + $0x60] sm:$0xff]
    %v265 = vld [vmem:[%s1 + $0x68] sm:$0xff]
    %v266 = vld [vmem:[%s1 + $0x70] sm:$0xff]
    %v267 = vld [vmem:[%s1 + $0x78] sm:$0xff]
    %v268 = vld [vmem:[%s1 + $0x80] sm:$0xff]
    %v269 = vld [vmem:[%s1 + $0x88] sm:$0xff]
    %v270 = vld [vmem:[%s1 + $0x90] sm:$0xff]
    %v271 = vld [vmem:[%s1 + $0x98] sm:$0xff]
    %v272 = vld [vmem:[%s1 + $0xa0] sm:$0xff]
    %v273 = vld [vmem:[%s1 + $0xa8] sm:$0xff]
    %v274 = vld [vmem:[%s1 + $0xb0] sm:$0xff]
    %v275 = vld [vmem:[%s1 + $0xb8] sm:$0xff]
    %v276 = vld [vmem:[%s1 + $0xc0] sm:$0xff]
    %v277 = vld [vmem:[%s1 + $0xc8] sm:$0xff]
    %v278 = vld [vmem:[%s1 + $0xd0] sm:$0xff]
    %v279 = vld [vmem:[%s1 + $0xd8] sm:$0xff]
    %v280 = vld [vmem:[%s1 + $0xe0] sm:$0xff]
    %v281 = vld [vmem:[%s1 + $0xe8] sm:$0xff]
    %v282 = vld [vmem:[%s1 + $0xf0] sm:$0xff]
    %v283 = vld [vmem:[%s1 + $0xf8] sm:$0xff]
    %v284 = vld [vmem:[%s1 + $0x100] sm:$0xff]
    %v285 = vld [vmem:[%s1 + $0x108] sm:$0xff]
    %v286 = vld [vmem:[%s1 + $0x110] sm:$0xff]
    %v287 = vld [vmem:[%s1 + $0x118] sm:$0xff]
    %v288 = vld [vmem:[%s1 + $0x120] sm:$0xff]
    %v289 = vld [vmem:[%s1 + $0x128] sm:$0xff]
    %v290 = vld [vmem:[%s1 + $0x130] sm:$0xff]
    %v291 = vld [vmem:[%s1 + $0x138] sm:$0xff]
    %v292 = vld [vmem:[%s1 + $0x140] sm:$0xff]
    %v293 = vld [vmem:[%s1 + $0x148] sm:$0xff]
    %v294 = vld [vmem:[%s1 + $0x150] sm:$0xff]
    %v295 = vld [vmem:[%s1 + $0x158] sm:$0xff]
    %v296 = vld [vmem:[%s1 + $0x160] sm:$0xff]
    %v297 = vld [vmem:[%s1 + $0x168] sm:$0xff]
    %v298 = vld [vmem:[%s1 + $0x170] sm:$0xff]
    %v299 = vld [vmem:[%s1 + $0x178] sm:$0xff]
    %v300 = vld [vmem:[%s1 + $0x180] sm:$0xff]
    %v301 = vld [vmem:[%s1 + $0x188] sm:$0xff]
    %v302 = vld [vmem:[%s1 + $0x190] sm:$0xff]
    %v303 = vld [vmem:[%s1 + $0x198] sm:$0xff]
    %v304 = vld [vmem:[%s1 + $0x1a0] sm:$0xff]
    %v305 = vld [vmem:[%s1 + $0x1a8] sm:$0xff]
    %v306 = vld [vmem:[%s1 + $0x1b0] sm:$0xff]
    %v307 = vld [vmem:[%s1 + $0x1b8] sm:$0xff]
    %v308 = vld [vmem:[%s1 + $0x1c0] sm:$0xff]
    %v309 = vld [vmem:[%s1 + $0x1c8] sm:$0xff]
    %v310 = vld [vmem:[%s1 + $0x1d0] sm:$0xff]
    %v311 = vld [vmem:[%s1 + $0x1d8] sm:$0xff]
    %v312 = vld [vmem:[%s1 + $0x1e0] sm:$0xff]
    %v313 = vld [vmem:[%s1 + $0x1e8] sm:$0xff]
    %v314 = vld [vmem:[%s1 + $0x1f0] sm:$0xff]
    %v315 = vld [vmem:[%s1 + $0x1f8] sm:$0xff]
    %v316 = vld [vmem:[%s1 + $0x200] sm:$0xff]
    %v317 = vld [vmem:[%s1 + $0x208] sm:$0xff]
    %v318 = vld [vmem:[%s1 + $0x210] sm:$0xff]
    %v319 = vld [vmem:[%s1 + $0x218] sm:$0xff]
    %v320 = vld [vmem:[%s1 + $0x220] sm:$0xff]
    %v321 = vld [vmem:[%s1 + $0x228] sm:$0xff]
    %v322 = vld [vmem:[%s1 + $0x230] sm:$0xff]
    %v323 = vld [vmem:[%s1 + $0x238] sm:$0xff]
    %v324 = vld [vmem:[%s1 + $0x240] sm:$0xff]
    %v325 = vld [vmem:[%s1 + $0x248] sm:$0xff]
    %v326 = vld [vmem:[%s1 + $0x250] sm:$0xff]
    %v327 = vld [vmem:[%s1 + $0x258] sm:$0xff]
    %v328 = vld [vmem:[%s1 + $0x260] sm:$0xff]
    %v329 = vld [vmem:[%s1 + $0x268] sm:$0xff]
    %v330 = vld [vmem:[%s1 + $0x270] sm:$0xff]
    %v331 = vld [vmem:[%s1 + $0x278] sm:$0xff]
    %v332 = vld [vmem:[%s2] sm:$0xf]
    %v334 = vlaneseq
    %v335 = vshrl.u32 %v334, 7
    %v336 = vsub.s32 0, %v335
    %v337 = vrot.slane %v332, %v336
    %v338 = vlaneseq
    %v339 = vshrl.u32 %v338, 7
    %v340 = vsub.s32 1, %v339
    %v341 = vrot.slane %v332, %v340
    %v342 = vlaneseq
    %v343 = vshrl.u32 %v342, 7
    %v344 = vsub.s32 2, %v343
    %v345 = vrot.slane %v332, %v344
    %v346 = vlaneseq
    %v347 = vshrl.u32 %v346, 7
    %v348 = vsub.s32 3, %v347
    %v349 = vrot.slane %v332, %v348
    %v355 = vsel %vm27, %v122, 0
    %v358 = vsel %vm27, %v123, 0
    %v361 = vsel %vm27, %v124, 0
    %v364 = vsel %vm27, %v125, 0
    %v367 = vsel %vm27, %v126, 0
    %v370 = vsel %vm27, %v127, 0
    %v373 = vsel %vm27, %v128, 0
    %v376 = vsel %vm27, %v129, 0
    %378 = vmatprep.subr.mxu0 %v253
    %379 = vmatpush1.msra.mxu0 %v252
    %380 = vmatprep.subr.mxu0 %v257
    %381 = vmatpush1.msra.mxu0 %v256
    %382 = vmatprep.subr.mxu0 %v261
    %383 = vmatpush1.msra.mxu0 %v260
    %384 = vmatprep.subr.mxu0 %v265
    %385 = vmatpush1.msra.mxu0 %v264
    %386 = vmatprep.subr.mxu0 %v269
    %387 = vmatpush1.msra.mxu0 %v268
    %388 = vmatprep.subr.mxu0 %v273
    %389 = vmatpush1.msra.mxu0 %v272
    %390 = vmatprep.subr.mxu0 %v277
    %391 = vmatpush1.msra.mxu0 %v276
    %392 = vmatprep.subr.mxu0 %v281
    %393 = vmatpush1.msra.mxu0 %v280
    %394 = vmatprep.subr.mxu0 %v285
    %395 = vmatpush1.msra.mxu0 %v284
    %396 = vmatprep.subr.mxu0 %v289
    %397 = vmatpush1.msra.mxu0 %v288
    %398 = vmatprep.subr.mxu0 %v293
    %399 = vmatpush1.msra.mxu0 %v292
    %400 = vmatprep.subr.mxu0 %v297
    %401 = vmatpush1.msra.mxu0 %v296
    %402 = vmatprep.subr.mxu0 %v301
    %403 = vmatpush1.msra.mxu0 %v300
    %404 = vmatprep.subr.mxu0 %v305
    %405 = vmatpush1.msra.mxu0 %v304
    %406 = vmatprep.subr.mxu0 %v309
    %407 = vmatpush1.msra.mxu0 %v308
    %408 = vmatprep.subr.mxu0 %v313
    %409 = vmatpush1.msra.mxu0 %v312
    %410 = vmatprep.subr.mxu0 %v317
    %411 = vmatpush1.msra.mxu0 %v316
    %412 = vmatprep.subr.mxu0 %v321
    %413 = vmatpush1.msra.mxu0 %v320
    %414 = vmatprep.subr.mxu0 %v325
    %415 = vmatpush1.msra.mxu0 %v324
    %416 = vmatprep.subr.mxu0 %v329
    %417 = vmatpush1.msra.mxu0 %v328
    %418 = vmatprep.subr.mxu0 0.0
    %419 = vmatpush1.msra.mxu0 0.0
    %420 = vmatprep.subr.mxu0 0.0
    %421 = vmatpush1.msra.mxu0 0.0
    %422 = vmatprep.subr.mxu0 0.0
    %423 = vmatpush1.msra.mxu0 0.0
    %424 = vmatprep.subr.mxu0 0.0
    %425 = vmatpush1.msra.mxu0 0.0
    %426 = vmatprep.subr.mxu0 0.0
    %427 = vmatpush1.msra.mxu0 0.0
    %428 = vmatprep.subr.mxu0 0.0
    %429 = vmatpush1.msra.mxu0 0.0
    %430 = vmatprep.subr.mxu0 0.0
    %431 = vmatpush1.msra.mxu0 0.0
    %432 = vmatprep.subr.mxu0 0.0
    %433 = vmatpush1.msra.mxu0 0.0
    %434 = vmatprep.subr.mxu0 0.0
    %435 = vmatpush1.msra.mxu0 0.0
    %436 = vmatprep.subr.mxu0 0.0
    %437 = vmatpush1.msra.mxu0 0.0
    %438 = vmatprep.subr.mxu0 0.0
    %439 = vmatpush1.msra.mxu0 0.0
    %440 = vmatprep.subr.mxu0 0.0
    %441 = vmatpush1.msra.mxu0 0.0
    %442 = vmatprep.mubr.f32.mxu0 %v355
    %443 = vmatmul.mubr.f32.gmra.mrb[0].mxu0 %v244
    %v444 = vpop.f32.mrb[0].mxu0
    %v445 = vadd.f32 %v337, %v444
    %v446 = vpop.f32.mrb[0].mxu0
    %v447 = vadd.f32 %v341, %v446
    %448 = vmatprep.mubr.f32.mxu0 %v358
    %449 = vmatmul.mubr.f32.gmra.mrb[0].mxu0 %v245
    %v450 = vpop.f32.mrb[0].mxu0
    %v451 = vadd.f32 %v337, %v450
    %v452 = vpop.f32.mrb[0].mxu0
    %v453 = vadd.f32 %v341, %v452
    %454 = vmatprep.mubr.f32.mxu0 %v361
    %455 = vmatmul.mubr.f32.gmra.mrb[0].mxu0 %v246
    %v456 = vpop.f32.mrb[0].mxu0
    %v457 = vadd.f32 %v337, %v456
    %v458 = vpop.f32.mrb[0].mxu0
    %v459 = vadd.f32 %v341, %v458
    %460 = vmatprep.mubr.f32.mxu0 %v364
    %461 = vmatmul.mubr.f32.gmra.mrb[0].mxu0 %v247
    %v462 = vpop.f32.mrb[0].mxu0
    %v463 = vadd.f32 %v337, %v462
    %v464 = vpop.f32.mrb[0].mxu0
    %v465 = vadd.f32 %v341, %v464
    %466 = vmatprep.mubr.f32.mxu0 %v367
    %467 = vmatmul.mubr.f32.gmra.mrb[0].mxu0 %v248
    %v468 = vpop.f32.mrb[0].mxu0
    %v469 = vadd.f32 %v337, %v468
    %v470 = vpop.f32.mrb[0].mxu0
    %v471 = vadd.f32 %v341, %v470
    %472 = vmatprep.mubr.f32.mxu0 %v370
    %473 = vmatmul.mubr.f32.gmra.mrb[0].mxu0 %v249
    %v474 = vpop.f32.mrb[0].mxu0
    %v475 = vadd.f32 %v337, %v474
    %v476 = vpop.f32.mrb[0].mxu0
    %v477 = vadd.f32 %v341, %v476
    %478 = vmatprep.mubr.f32.mxu0 %v373
    %479 = vmatmul.mubr.f32.gmra.mrb[0].mxu0 %v250
    %v480 = vpop.f32.mrb[0].mxu0
    %v481 = vadd.f32 %v337, %v480
    %v482 = vpop.f32.mrb[0].mxu0
    %v483 = vadd.f32 %v341, %v482
    %484 = vmatprep.mubr.f32.mxu0 %v376
    %485 = vmatmul.mubr.f32.gmra.mrb[0].mxu0 %v251
    %v486 = vpop.f32.mrb[0].mxu0
    %v487 = vadd.f32 %v337, %v486
    %v488 = vpop.f32.mrb[0].mxu0
    %v489 = vadd.f32 %v341, %v488
    %490 = vdwg.mxu0
    %491 = vmatprep.subr.mxu0 %v255
    %492 = vmatpush1.msra.mxu0 %v254
    %493 = vmatprep.subr.mxu0 %v259
    %494 = vmatpush1.msra.mxu0 %v258
    %495 = vmatprep.subr.mxu0 %v263
    %496 = vmatpush1.msra.mxu0 %v262
    %497 = vmatprep.subr.mxu0 %v267
    %498 = vmatpush1.msra.mxu0 %v266
    %499 = vmatprep.subr.mxu0 %v271
    %500 = vmatpush1.msra.mxu0 %v270
    %501 = vmatprep.subr.mxu0 %v275
    %502 = vmatpush1.msra.mxu0 %v274
    %503 = vmatprep.subr.mxu0 %v279
    %504 = vmatpush1.msra.mxu0 %v278
    %505 = vmatprep.subr.mxu0 %v283
    %506 = vmatpush1.msra.mxu0 %v282
    %507 = vmatprep.subr.mxu0 %v287
    %508 = vmatpush1.msra.mxu0 %v286
    %509 = vmatprep.subr.mxu0 %v291
    %510 = vmatpush1.msra.mxu0 %v290
    %511 = vmatprep.subr.mxu0 %v295
    %512 = vmatpush1.msra.mxu0 %v294
    %513 = vmatprep.subr.mxu0 %v299
    %514 = vmatpush1.msra.mxu0 %v298
    %515 = vmatprep.subr.mxu0 %v303
    %516 = vmatpush1.msra.mxu0 %v302
    %517 = vmatprep.subr.mxu0 %v307
    %518 = vmatpush1.msra.mxu0 %v306
    %519 = vmatprep.subr.mxu0 %v311
    %520 = vmatpush1.msra.mxu0 %v310
    %521 = vmatprep.subr.mxu0 %v315
    %522 = vmatpush1.msra.mxu0 %v314
    %523 = vmatprep.subr.mxu0 %v319
    %524 = vmatpush1.msra.mxu0 %v318
    %525 = vmatprep.subr.mxu0 %v323
    %526 = vmatpush1.msra.mxu0 %v322
    %527 = vmatprep.subr.mxu0 %v327
    %528 = vmatpush1.msra.mxu0 %v326
    %529 = vmatprep.subr.mxu0 %v331
    %530 = vmatpush1.msra.mxu0 %v330
    %531 = vmatprep.subr.mxu0 0.0
    %532 = vmatpush1.msra.mxu0 0.0
    %533 = vmatprep.subr.mxu0 0.0
    %534 = vmatpush1.msra.mxu0 0.0
    %535 = vmatprep.subr.mxu0 0.0
    %536 = vmatpush1.msra.mxu0 0.0
    %537 = vmatprep.subr.mxu0 0.0
    %538 = vmatpush1.msra.mxu0 0.0
    %539 = vmatprep.subr.mxu0 0.0
    %540 = vmatpush1.msra.mxu0 0.0
    %541 = vmatprep.subr.mxu0 0.0
    %542 = vmatpush1.msra.mxu0 0.0
    %543 = vmatprep.subr.mxu0 0.0
    %544 = vmatpush1.msra.mxu0 0.0
    %545 = vmatprep.subr.mxu0 0.0
    %546 = vmatpush1.msra.mxu0 0.0
    %547 = vmatprep.subr.mxu0 0.0
    %548 = vmatpush1.msra.mxu0 0.0
    %549 = vmatprep.subr.mxu0 0.0
    %550 = vmatpush1.msra.mxu0 0.0
    %551 = vmatprep.subr.mxu0 0.0
    %552 = vmatpush1.msra.mxu0 0.0
    %553 = vmatprep.subr.mxu0 0.0
    %554 = vmatpush1.msra.mxu0 0.0
    %555 = vmatprep.mubr.f32.mxu0 %v355
    %556 = vmatmul.mubr.f32.gmra.mrb[0].mxu0 %v244
    %v557 = vpop.f32.mrb[0].mxu0
    %v558 = vadd.f32 %v345, %v557
    %v559 = vpop.f32.mrb[0].mxu0
    %v560 = vadd.f32 %v349, %v559
    %561 = vmatprep.mubr.f32.mxu0 %v358
    %562 = vmatmul.mubr.f32.gmra.mrb[0].mxu0 %v245
    %v563 = vpop.f32.mrb[0].mxu0
    %v564 = vadd.f32 %v345, %v563
    %v565 = vpop.f32.mrb[0].mxu0
    %v566 = vadd.f32 %v349, %v565
    %567 = vmatprep.mubr.f32.mxu0 %v361
    %568 = vmatmul.mubr.f32.gmra.mrb[0].mxu0 %v246
    %v569 = vpop.f32.mrb[0].mxu0
    %v570 = vadd.f32 %v345, %v569
    %v571 = vpop.f32.mrb[0].mxu0
    %v572 = vadd.f32 %v349, %v571
    %573 = vmatprep.mubr.f32.mxu0 %v364
    %574 = vmatmul.mubr.f32.gmra.mrb[0].mxu0 %v247
    %v575 = vpop.f32.mrb[0].mxu0
    %v576 = vadd.f32 %v345, %v575
    %v577 = vpop.f32.mrb[0].mxu0
    %v578 = vadd.f32 %v349, %v577
    %579 = vmatprep.mubr.f32.mxu0 %v367
    %580 = vmatmul.mubr.f32.gmra.mrb[0].mxu0 %v248
    %v581 = vpop.f32.mrb[0].mxu0
    %v582 = vadd.f32 %v345, %v581
    %v583 = vpop.f32.mrb[0].mxu0
    %v584 = vadd.f32 %v349, %v583
    %585 = vmatprep.mubr.f32.mxu0 %v370
    %586 = vmatmul.mubr.f32.gmra.mrb[0].mxu0 %v249
    %v587 = vpop.f32.mrb[0].mxu0
    %v588 = vadd.f32 %v345, %v587
    %v589 = vpop.f32.mrb[0].mxu0
    %v590 = vadd.f32 %v349, %v589
    %591 = vmatprep.mubr.f32.mxu0 %v373
    %592 = vmatmul.mubr.f32.gmra.mrb[0].mxu0 %v250
    %v593 = vpop.f32.mrb[0].mxu0
    %v594 = vadd.f32 %v345, %v593
    %v595 = vpop.f32.mrb[0].mxu0
    %v596 = vadd.f32 %v349, %v595
    %597 = vmatprep.mubr.f32.mxu0 %v376
    %598 = vmatmul.mubr.f32.gmra.mrb[0].mxu0 %v251
    %v599 = vpop.f32.mrb[0].mxu0
    %v600 = vadd.f32 %v345, %v599
    %v601 = vpop.f32.mrb[0].mxu0
    %v602 = vadd.f32 %v349, %v601
    %603 = vdwg.mxu0
    %v604 = vmax.f32 %v445, 0.0
    %v605 = vmax.f32 %v447, 0.0
    %v606 = vmax.f32 %v558, 0.0
    %v607 = vmax.f32 %v560, 0.0
    %v608 = vmax.f32 %v451, 0.0
    %v609 = vmax.f32 %v453, 0.0
    %v610 = vmax.f32 %v564, 0.0
    %v611 = vmax.f32 %v566, 0.0
    %v612 = vmax.f32 %v457, 0.0
    %v613 = vmax.f32 %v459, 0.0
    %v614 = vmax.f32 %v570, 0.0
    %v615 = vmax.f32 %v572, 0.0
    %v616 = vmax.f32 %v463, 0.0
    %v617 = vmax.f32 %v465, 0.0
    %v618 = vmax.f32 %v576, 0.0
    %v619 = vmax.f32 %v578, 0.0
    %v620 = vmax.f32 %v469, 0.0
    %v621 = vmax.f32 %v471, 0.0
    %v622 = vmax.f32 %v582, 0.0
    %v623 = vmax.f32 %v584, 0.0
    %v624 = vmax.f32 %v475, 0.0
    %v625 = vmax.f32 %v477, 0.0
    %v626 = vmax.f32 %v588, 0.0
    %v627 = vmax.f32 %v590, 0.0
    %v628 = vmax.f32 %v481, 0.0
    %v629 = vmax.f32 %v483, 0.0
    %v630 = vmax.f32 %v594, 0.0
    %v631 = vmax.f32 %v596, 0.0
    %v632 = vmax.f32 %v487, 0.0
    %v633 = vmax.f32 %v489, 0.0
    %v634 = vmax.f32 %v600, 0.0
    %v635 = vmax.f32 %v602, 0.0
    %636 = vst [vmem:[#allocation3] sm:$0xff] %v604
    %637 = vst [vmem:[#allocation3 + $0x8] sm:$0xff] %v605
    %638 = vst [vmem:[#allocation3 + $0x10] sm:$0xff] %v606
    %639 = vst.msk [vmem:[#allocation3 + $0x18] sm:$0xff] %vm234, %v607
    %640 = vst [vmem:[#allocation3 + $0x20] sm:$0xff] %v608
    %641 = vst [vmem:[#allocation3 + $0x28] sm:$0xff] %v609
    %642 = vst [vmem:[#allocation3 + $0x30] sm:$0xff] %v610
    %643 = vst.msk [vmem:[#allocation3 + $0x38] sm:$0xff] %vm234, %v611
    %644 = vst [vmem:[#allocation3 + $0x40] sm:$0xff] %v612
    %645 = vst [vmem:[#allocation3 + $0x48] sm:$0xff] %v613
    %646 = vst [vmem:[#allocation3 + $0x50] sm:$0xff] %v614
    %647 = vst.msk [vmem:[#allocation3 + $0x58] sm:$0xff] %vm234, %v615
    %648 = vst [vmem:[#allocation3 + $0x60] sm:$0xff] %v616
    %649 = vst [vmem:[#allocation3 + $0x68] sm:$0xff] %v617
    %650 = vst [vmem:[#allocation3 + $0x70] sm:$0xff] %v618
    %651 = vst.msk [vmem:[#allocation3 + $0x78] sm:$0xff] %vm234, %v619
    %s652 = scalar_lea.vmem [#allocation3], 128
    %653 = vst [vmem:[%s652] sm:$0xff] %v620
    %654 = vst [vmem:[%s652 + $0x8] sm:$0xff] %v621
    %655 = vst [vmem:[%s652 + $0x10] sm:$0xff] %v622
    %656 = vst.msk [vmem:[%s652 + $0x18] sm:$0xff] %vm234, %v623
    %657 = vst [vmem:[%s652 + $0x20] sm:$0xff] %v624
    %658 = vst [vmem:[%s652 + $0x28] sm:$0xff] %v625
    %659 = vst [vmem:[%s652 + $0x30] sm:$0xff] %v626
    %660 = vst.msk [vmem:[%s652 + $0x38] sm:$0xff] %vm234, %v627
    %661 = vst [vmem:[%s652 + $0x40] sm:$0xff] %v628
    %662 = vst [vmem:[%s652 + $0x48] sm:$0xff] %v629
    %663 = vst [vmem:[%s652 + $0x50] sm:$0xff] %v630
    %664 = vst.msk [vmem:[%s652 + $0x58] sm:$0xff] %vm234, %v631
    %665 = vst [vmem:[%s652 + $0x60] sm:$0xff] %v632
    %666 = vst [vmem:[%s652 + $0x68] sm:$0xff] %v633
    %667 = vst [vmem:[%s652 + $0x70] sm:$0xff] %v634
    %668 = vst.msk [vmem:[%s652 + $0x78] sm:$0xff] %vm234, %v635
    %669 = vst [vmem:[#allocation4] sm:$0xff] 0.0
    %670 = vst [vmem:[#allocation4 + $0x8] sm:$0xff] 0.0
    %671 = vst.msk [vmem:[#allocation4 + $0x10] sm:$0xff] %vm27, 0.0
    %672 = vst [vmem:[#allocation4 + $0x18] sm:$0xff] 0.0
    %673 = vst [vmem:[#allocation4 + $0x20] sm:$0xff] 0.0
    %674 = vst.msk [vmem:[#allocation4 + $0x28] sm:$0xff] %vm27, 0.0
    %675 = vst [vmem:[#allocation4 + $0x30] sm:$0xf] 0.0
    %676 = vst [vmem:[#allocation4 + $0x38] sm:$0xf] 0.0
    %677 = vst.msk [vmem:[#allocation4 + $0x40] sm:$0xf] %vm32, 0.0
    %678 = vst [vmem:[#allocation4 + $0x48] sm:$0xff] 0.0
    %679 = vst [vmem:[#allocation4 + $0x50] sm:$0xff] 0.0
    %680 = vst.msk [vmem:[#allocation4 + $0x58] sm:$0xff] %vm27, 0.0
    %681 = vst [vmem:[#allocation4 + $0x60] sm:$0xff] 0.0
    %682 = vst [vmem:[#allocation4 + $0x68] sm:$0xff] 0.0
    %683 = vst.msk [vmem:[#allocation4 + $0x70] sm:$0xff] %vm27, 0.0
    %684 = vst [vmem:[#allocation4 + $0x78] sm:$0xf] 0.0
    %685 = vst [vmem:[#allocation4 + $0x80] sm:$0xf] 0.0
    %686 = vst.msk [vmem:[#allocation4 + $0x88] sm:$0xf] %vm32, 0.0
    %v687 = vld [vmem:[#allocation3] ss:$8 sm:$0xf]
    %s688 = scalar_lea.vmem [#allocation3], 128
    %v689 = vld [vmem:[%s688] ss:$8 sm:$0xf]
    %s690 = scalar_lea.vmem [#allocation3], 1
    %v691 = vld [vmem:[%s690] ss:$8 sm:$0xf]
    %s692 = scalar_lea.vmem [#allocation3], 129
    %v693 = vld [vmem:[%s692] ss:$8 sm:$0xf]
    %v694 = vmax.f32 %v687, %v691
    %v695 = vmax.f32 %v689, %v693
    %698 = vrot.lane.b32.xlu0 %v694, 112
    %v699 = vpop.permute.xlu0 %698
    %700 = vrot.lane.b32.xlu0 %v695, 112
    %v701 = vpop.permute.xlu0 %700
    %v704 = vmax.f32 %v694, %v699
    %v705 = vmax.f32 %v695, %v701
    %v706 = vrot.slane %v694, 1
    %v707 = vrot.slane %v695, 1
    %v710 = vrot.slane %v699, 1
    %v711 = vrot.slane %v701, 1
    %v714 = vmax.f32 %v706, %v710
    %v715 = vmax.f32 %v707, %v711
    %716 = vrot.lane.b32.xlu0 %v694, 96
    %v717 = vpop.permute.xlu0 %716
    %718 = vrot.lane.b32.xlu0 %v695, 96
    %v719 = vpop.permute.xlu0 %718
    %v720 = vrot.slane %v717, 1
    %v721 = vrot.slane %v719, 1
    %724 = vrot.lane.b32.xlu0 %v694, 80
    %v725 = vpop.permute.xlu0 %724
    %726 = vrot.lane.b32.xlu0 %v695, 80
    %v727 = vpop.permute.xlu0 %726
    %v728 = vrot.slane %v725, 1
    %v729 = vrot.slane %v727, 1
    %v732 = vmax.f32 %v720, %v728
    %v733 = vmax.f32 %v721, %v729
    %734 = vrot.lane.b32.xlu0 %v694, 64
    %v735 = vpop.permute.xlu0 %734
    %736 = vrot.lane.b32.xlu0 %v695, 64
    %v737 = vpop.permute.xlu0 %736
    %v738 = vrot.slane %v735, 1
    %v739 = vrot.slane %v737, 1
    %742 = vrot.lane.b32.xlu0 %v694, 48
    %v743 = vpop.permute.xlu0 %742
    %744 = vrot.lane.b32.xlu0 %v695, 48
    %v745 = vpop.permute.xlu0 %744
    %v746 = vrot.slane %v743, 1
    %v747 = vrot.slane %v745, 1
    %v750 = vmax.f32 %v738, %v746
    %v751 = vmax.f32 %v739, %v747
    %752 = vrot.lane.b32.xlu0 %v694, 32
    %v753 = vpop.permute.xlu0 %752
    %754 = vrot.lane.b32.xlu0 %v695, 32
    %v755 = vpop.permute.xlu0 %754
    %v756 = vrot.slane %v753, 1
    %v757 = vrot.slane %v755, 1
    %760 = vrot.lane.b32.xlu0 %v694, 16
    %v761 = vpop.permute.xlu0 %760
    %762 = vrot.lane.b32.xlu0 %v695, 16
    %v763 = vpop.permute.xlu0 %762
    %v764 = vrot.slane %v761, 1
    %v765 = vrot.slane %v763, 1
    %v768 = vmax.f32 %v756, %v764
    %v769 = vmax.f32 %v757, %v765
    %v770 = vrot.slane %v694, 2
    %v771 = vrot.slane %v695, 2
    %v774 = vrot.slane %v699, 2
    %v775 = vrot.slane %v701, 2
    %v778 = vmax.f32 %v770, %v774
    %v779 = vmax.f32 %v771, %v775
    %v780 = vrot.slane %v717, 2
    %v781 = vrot.slane %v719, 2
    %v784 = vrot.slane %v725, 2
    %v785 = vrot.slane %v727, 2
    %v788 = vmax.f32 %v780, %v784
    %v789 = vmax.f32 %v781, %v785
    %v790 = vrot.slane %v735, 2
    %v791 = vrot.slane %v737, 2
    %v794 = vrot.slane %v743, 2
    %v795 = vrot.slane %v745, 2
    %v798 = vmax.f32 %v790, %v794
    %v799 = vmax.f32 %v791, %v795
    %v800 = vrot.slane %v753, 2
    %v801 = vrot.slane %v755, 2
    %v804 = vrot.slane %v761, 2
    %v805 = vrot.slane %v763, 2
    %v808 = vmax.f32 %v800, %v804
    %v809 = vmax.f32 %v801, %v805
    %v810 = vrot.slane %v694, 3
    %v811 = vrot.slane %v695, 3
    %v814 = vrot.slane %v699, 3
    %v815 = vrot.slane %v701, 3
    %v818 = vmax.f32 %v810, %v814
    %v819 = vmax.f32 %v811, %v815
    %v820 = vrot.slane %v717, 3
    %v821 = vrot.slane %v719, 3
    %v824 = vrot.slane %v725, 3
    %v825 = vrot.slane %v727, 3
    %v828 = vmax.f32 %v820, %v824
    %v829 = vmax.f32 %v821, %v825
    %v832 = vcombine.low %v704, %v705
    %v834 = vunpack.c.l.s4 1966171168
    %v835 = vunpack.c.0.s8 %v834
    %v836 = vlaneseq
    %v837 = vshrl.u32 %v836, 7
    %v838 = vsub.s32 %v835, %v837
    %v839 = vrot.slane %v832, %v838
    %v841 = vunpack.c.l.s4 1966171168
    %v842 = vunpack.c.0.s8 %v841
    %v843 = vlaneseq
    %v844 = vshrl.u32 %v843, 7
    %v845 = vsub.s32 %v842, %v844
    %v846 = vrot.slane %v839, %v845
    %848 = vrot.lane.b32.xlu0 %v846, 112
    %v849 = vpop.permute.xlu0 %848
    %851 = vrot.lane.b32.xlu0 %v846, 96
    %v852 = vpop.permute.xlu0 %851
    %854 = vrot.lane.b32.xlu0 %v846, 80
    %v855 = vpop.permute.xlu0 %854
    %v859 = vcombine.low %v714, %v715
    %v861 = vunpack.c.l.s4 1966171168
    %v862 = vunpack.c.0.s8 %v861
    %v863 = vlaneseq
    %v864 = vshrl.u32 %v863, 7
    %v865 = vsub.s32 %v862, %v864
    %v866 = vrot.slane %v859, %v865
    %v868 = vunpack.c.l.s4 1966171168
    %v869 = vunpack.c.0.s8 %v868
    %v870 = vlaneseq
    %v871 = vshrl.u32 %v870, 7
    %v872 = vsub.s32 %v869, %v871
    %v873 = vrot.slane %v866, %v872
    %874 = vrot.lane.b32.xlu0 %v873, 64
    %v875 = vpop.permute.xlu0 %874
    %v879 = vcombine.low %v732, %v733
    %v881 = vunpack.c.l.s4 1966171168
    %v882 = vunpack.c.0.s8 %v881
    %v883 = vlaneseq
    %v884 = vshrl.u32 %v883, 7
    %v885 = vsub.s32 %v882, %v884
    %v886 = vrot.slane %v879, %v885
    %v888 = vunpack.c.l.s4 1966171168
    %v889 = vunpack.c.0.s8 %v888
    %v890 = vlaneseq
    %v891 = vshrl.u32 %v890, 7
    %v892 = vsub.s32 %v889, %v891
    %v893 = vrot.slane %v886, %v892
    %894 = vrot.lane.b32.xlu0 %v893, 80
    %v895 = vpop.permute.xlu0 %894
    %v899 = vcombine.low %v750, %v751
    %v901 = vunpack.c.l.s4 1966171168
    %v902 = vunpack.c.0.s8 %v901
    %v903 = vlaneseq
    %v904 = vshrl.u32 %v903, 7
    %v905 = vsub.s32 %v902, %v904
    %v906 = vrot.slane %v899, %v905
    %v908 = vunpack.c.l.s4 1966171168
    %v909 = vunpack.c.0.s8 %v908
    %v910 = vlaneseq
    %v911 = vshrl.u32 %v910, 7
    %v912 = vsub.s32 %v909, %v911
    %v913 = vrot.slane %v906, %v912
    %914 = vrot.lane.b32.xlu0 %v913, 96
    %v915 = vpop.permute.xlu0 %914
    %v919 = vcombine.low %v768, %v769
    %v921 = vunpack.c.l.s4 1966171168
    %v922 = vunpack.c.0.s8 %v921
    %v923 = vlaneseq
    %v924 = vshrl.u32 %v923, 7
    %v925 = vsub.s32 %v922, %v924
    %v926 = vrot.slane %v919, %v925
    %v928 = vunpack.c.l.s4 1966171168
    %v929 = vunpack.c.0.s8 %v928
    %v930 = vlaneseq
    %v931 = vshrl.u32 %v930, 7
    %v932 = vsub.s32 %v929, %v931
    %v933 = vrot.slane %v926, %v932
    %934 = vrot.lane.b32.xlu0 %v933, 112
    %v935 = vpop.permute.xlu0 %934
    %v939 = vcombine.low %v778, %v779
    %v941 = vunpack.c.l.s4 1966171168
    %v942 = vunpack.c.0.s8 %v941
    %v943 = vlaneseq
    %v944 = vshrl.u32 %v943, 7
    %v945 = vsub.s32 %v942, %v944
    %v946 = vrot.slane %v939, %v945
    %v948 = vunpack.c.l.s4 1966171168
    %v949 = vunpack.c.0.s8 %v948
    %v950 = vlaneseq
    %v951 = vshrl.u32 %v950, 7
    %v952 = vsub.s32 %v949, %v951
    %v953 = vrot.slane %v946, %v952
    %v957 = vcombine.low %v788, %v789
    %v959 = vunpack.c.l.s4 1966171168
    %v960 = vunpack.c.0.s8 %v959
    %v961 = vlaneseq
    %v962 = vshrl.u32 %v961, 7
    %v963 = vsub.s32 %v960, %v962
    %v964 = vrot.slane %v957, %v963
    %v966 = vunpack.c.l.s4 1966171168
    %v967 = vunpack.c.0.s8 %v966
    %v968 = vlaneseq
    %v969 = vshrl.u32 %v968, 7
    %v970 = vsub.s32 %v967, %v969
    %v971 = vrot.slane %v964, %v970
    %972 = vrot.lane.b32.xlu0 %v971, 16
    %v973 = vpop.permute.xlu0 %972
    %v977 = vcombine.low %v798, %v799
    %v979 = vunpack.c.l.s4 1966171168
    %v980 = vunpack.c.0.s8 %v979
    %v981 = vlaneseq
    %v982 = vshrl.u32 %v981, 7
    %v983 = vsub.s32 %v980, %v982
    %v984 = vrot.slane %v977, %v983
    %v986 = vunpack.c.l.s4 1966171168
    %v987 = vunpack.c.0.s8 %v986
    %v988 = vlaneseq
    %v989 = vshrl.u32 %v988, 7
    %v990 = vsub.s32 %v987, %v989
    %v991 = vrot.slane %v984, %v990
    %992 = vrot.lane.b32.xlu0 %v991, 32
    %v993 = vpop.permute.xlu0 %992
    %v997 = vcombine.low %v808, %v809
    %v999 = vunpack.c.l.s4 1966171168
    %v1000 = vunpack.c.0.s8 %v999
    %v1001 = vlaneseq
    %v1002 = vshrl.u32 %v1001, 7
    %v1003 = vsub.s32 %v1000, %v1002
    %v1004 = vrot.slane %v997, %v1003
    %v1006 = vunpack.c.l.s4 1966171168
    %v1007 = vunpack.c.0.s8 %v1006
    %v1008 = vlaneseq
    %v1009 = vshrl.u32 %v1008, 7
    %v1010 = vsub.s32 %v1007, %v1009
    %v1011 = vrot.slane %v1004, %v1010
    %1012 = vrot.lane.b32.xlu0 %v1011, 48
    %v1013 = vpop.permute.xlu0 %1012
    %v1017 = vcombine.low %v818, %v819
    %v1019 = vunpack.c.l.s4 1966171168
    %v1020 = vunpack.c.0.s8 %v1019
    %v1021 = vlaneseq
    %v1022 = vshrl.u32 %v1021, 7
    %v1023 = vsub.s32 %v1020, %v1022
    %v1024 = vrot.slane %v1017, %v1023
    %v1026 = vunpack.c.l.s4 1966171168
    %v1027 = vunpack.c.0.s8 %v1026
    %v1028 = vlaneseq
    %v1029 = vshrl.u32 %v1028, 7
    %v1030 = vsub.s32 %v1027, %v1029
    %v1031 = vrot.slane %v1024, %v1030
    %1032 = vrot.lane.b32.xlu0 %v1031, 64
    %v1033 = vpop.permute.xlu0 %1032
    %v1037 = vcombine.low %v828, %v829
    %v1039 = vunpack.c.l.s4 1966171168
    %v1040 = vunpack.c.0.s8 %v1039
    %v1041 = vlaneseq
    %v1042 = vshrl.u32 %v1041, 7
    %v1043 = vsub.s32 %v1040, %v1042
    %v1044 = vrot.slane %v1037, %v1043
    %v1046 = vunpack.c.l.s4 1966171168
    %v1047 = vunpack.c.0.s8 %v1046
    %v1048 = vlaneseq
    %v1049 = vshrl.u32 %v1048, 7
    %v1050 = vsub.s32 %v1047, %v1049
    %v1051 = vrot.slane %v1044, %v1050
    %1052 = vrot.lane.b32.xlu0 %v1051, 80
    %v1053 = vpop.permute.xlu0 %1052
    %vm1055 = vcmask 130048
    %v1056 = vsel %vm1055, %v846, %v849
    %v1057 = vsel %vm27, %v1056, %v852
    %vm1058 = vcmask 392192
    %v1059 = vsel %vm1058, %v1057, %v855
    %v1060 = vsel %vm234, %v1059, %v875
    %vm1061 = vcmask 654336
    %v1062 = vsel %vm1061, %v1060, %v895
    %v1063 = vsel %vm243, %v1062, %v915
    %vm1064 = vcmask 916480
    %v1065 = vsel %vm1064, %v1063, %v935
    %v1066 = vsel %vm1055, %v953, %v973
    %v1067 = vsel %vm27, %v1066, %v993
    %v1068 = vsel %vm1058, %v1067, %v1013
    %v1069 = vsel %vm234, %v1068, %v1033
    %v1070 = vsel %vm1061, %v1069, %v1053
    %v1073 = vcombine.low %v1065, %v1070
    %v1075 = vunpack.c.l.s4 1966171168
    %v1076 = vunpack.c.0.s8 %v1075
    %v1077 = vlaneseq
    %v1078 = vshrl.u32 %v1077, 7
    %v1079 = vsub.s32 %v1076, %v1078
    %v1080 = vrot.slane %v1073, %v1079
    %v1081 = vcombine.high %v1080, %v1080
    %v1083 = vunpack.c.l.s4 1966171168
    %v1084 = vunpack.c.0.s8 %v1083
    %v1085 = vlaneseq
    %v1086 = vshrl.u32 %v1085, 7
    %v1087 = vsub.s32 %v1084, %v1086
    %v1088 = vrot.slane %v1080, %v1087
    %v1090 = vunpack.c.l.s4 1966171168
    %v1091 = vunpack.c.0.s8 %v1090
    %v1092 = vlaneseq
    %v1093 = vshrl.u32 %v1092, 7
    %v1094 = vsub.s32 %v1091, %v1093
    %v1095 = vrot.slane %v1081, %v1094
    %1096 = vrot.lane.b32.xlu0 %v1088, 32
    %v1097 = vpop.permute.xlu0 %1096
    %1098 = vrot.lane.b32.xlu0 %v1095, 32
    %v1099 = vpop.permute.xlu0 %1098
    %v1100 = vrot.slane %v1097, 7
    %v1101 = vrot.slane %v1099, 7
    %v1102 = vsel %vm27, %v1100, %v1097
    %v1103 = vsel %vm27, %v1101, %v1099
    %v1106 = vlaneseq
    %vm1107 = vcmp.ge.s32.totalorder %v1106, 32
    %vm1108 = vcmp.lt.s32.totalorder %v1106, 256
    %vm1109 = vmand %vm1107, %vm1108
    %s1110 = scalar_lea.vmem [#allocation4], 2
    %1111 = vst.msk [vmem:[%s1110] ss:$8 sm:$0x3] %vm1109, %v1102
    %1112 = vst.msk [vmem:[%s1110] ss:$8 sm:$0x0] %vm1109, %v1102
    %s1113 = scalar_lea.vmem [#allocation4], 74
    %1114 = vst.msk [vmem:[%s1113] ss:$8 sm:$0x3] %vm1109, %v1103
    %1115 = vst.msk [vmem:[%s1113] ss:$8 sm:$0x0] %vm1109, %v1103
    %s1116 = scalar_lea.vmem [#allocation3], 2
    %v1117 = vld [vmem:[%s1116] ss:$8 sm:$0xf]
    %s1118 = scalar_lea.vmem [#allocation3], 130
    %v1119 = vld [vmem:[%s1118] ss:$8 sm:$0xf]
    %s1120 = scalar_lea.vmem [#allocation3], 3
    %v1121 = vld [vmem:[%s1120] ss:$8 sm:$0xf]
    %s1122 = scalar_lea.vmem [#allocation3], 131
    %v1123 = vld [vmem:[%s1122] ss:$8 sm:$0xf]
    %v1124 = vmax.f32 %v1117, %v1121
    %v1125 = vmax.f32 %v1119, %v1123
    %1128 = vrot.lane.b32.xlu0 %v1124, 112
    %v1129 = vpop.permute.xlu0 %1128
    %1130 = vrot.lane.b32.xlu0 %v1125, 112
    %v1131 = vpop.permute.xlu0 %1130
    %v1134 = vmax.f32 %v1124, %v1129
    %v1135 = vmax.f32 %v1125, %v1131
    %v1136 = vrot.slane %v1124, 1
    %v1137 = vrot.slane %v1125, 1
    %v1140 = vrot.slane %v1129, 1
    %v1141 = vrot.slane %v1131, 1
    %v1144 = vmax.f32 %v1136, %v1140
    %v1145 = vmax.f32 %v1137, %v1141
    %1146 = vrot.lane.b32.xlu0 %v1124, 96
    %v1147 = vpop.permute.xlu0 %1146
    %1148 = vrot.lane.b32.xlu0 %v1125, 96
    %v1149 = vpop.permute.xlu0 %1148
    %v1150 = vrot.slane %v1147, 1
    %v1151 = vrot.slane %v1149, 1
    %1154 = vrot.lane.b32.xlu0 %v1124, 80
    %v1155 = vpop.permute.xlu0 %1154
    %1156 = vrot.lane.b32.xlu0 %v1125, 80
    %v1157 = vpop.permute.xlu0 %1156
    %v1158 = vrot.slane %v1155, 1
    %v1159 = vrot.slane %v1157, 1
    %v1162 = vmax.f32 %v1150, %v1158
    %v1163 = vmax.f32 %v1151, %v1159
    %1164 = vrot.lane.b32.xlu0 %v1124, 64
    %v1165 = vpop.permute.xlu0 %1164
    %1166 = vrot.lane.b32.xlu0 %v1125, 64
    %v1167 = vpop.permute.xlu0 %1166
    %v1168 = vrot.slane %v1165, 1
    %v1169 = vrot.slane %v1167, 1
    %1172 = vrot.lane.b32.xlu0 %v1124, 48
    %v1173 = vpop.permute.xlu0 %1172
    %1174 = vrot.lane.b32.xlu0 %v1125, 48
    %v1175 = vpop.permute.xlu0 %1174
    %v1176 = vrot.slane %v1173, 1
    %v1177 = vrot.slane %v1175, 1
    %v1180 = vmax.f32 %v1168, %v1176
    %v1181 = vmax.f32 %v1169, %v1177
    %1182 = vrot.lane.b32.xlu0 %v1124, 32
    %v1183 = vpop.permute.xlu0 %1182
    %1184 = vrot.lane.b32.xlu0 %v1125, 32
    %v1185 = vpop.permute.xlu0 %1184
    %v1186 = vrot.slane %v1183, 1
    %v1187 = vrot.slane %v1185, 1
    %1190 = vrot.lane.b32.xlu0 %v1124, 16
    %v1191 = vpop.permute.xlu0 %1190
    %1192 = vrot.lane.b32.xlu0 %v1125, 16
    %v1193 = vpop.permute.xlu0 %1192
    %v1194 = vrot.slane %v1191, 1
    %v1195 = vrot.slane %v1193, 1
    %v1198 = vmax.f32 %v1186, %v1194
    %v1199 = vmax.f32 %v1187, %v1195
    %v1200 = vrot.slane %v1124, 2
    %v1201 = vrot.slane %v1125, 2
    %v1204 = vrot.slane %v1129, 2
    %v1205 = vrot.slane %v1131, 2
    %v1208 = vmax.f32 %v1200, %v1204
    %v1209 = vmax.f32 %v1201, %v1205
    %v1210 = vrot.slane %v1147, 2
    %v1211 = vrot.slane %v1149, 2
    %v1214 = vrot.slane %v1155, 2
    %v1215 = vrot.slane %v1157, 2
    %v1218 = vmax.f32 %v1210, %v1214
    %v1219 = vmax.f32 %v1211, %v1215
    %v1220 = vrot.slane %v1165, 2
    %v1221 = vrot.slane %v1167, 2
    %v1224 = vrot.slane %v1173, 2
    %v1225 = vrot.slane %v1175, 2
    %v1228 = vmax.f32 %v1220, %v1224
    %v1229 = vmax.f32 %v1221, %v1225
    %v1230 = vrot.slane %v1183, 2
    %v1231 = vrot.slane %v1185, 2
    %v1234 = vrot.slane %v1191, 2
    %v1235 = vrot.slane %v1193, 2
    %v1238 = vmax.f32 %v1230, %v1234
    %v1239 = vmax.f32 %v1231, %v1235
    %v1240 = vrot.slane %v1124, 3
    %v1241 = vrot.slane %v1125, 3
    %v1244 = vrot.slane %v1129, 3
    %v1245 = vrot.slane %v1131, 3
    %v1248 = vmax.f32 %v1240, %v1244
    %v1249 = vmax.f32 %v1241, %v1245
    %v1250 = vrot.slane %v1147, 3
    %v1251 = vrot.slane %v1149, 3
    %v1254 = vrot.slane %v1155, 3
    %v1255 = vrot.slane %v1157, 3
    %v1258 = vmax.f32 %v1250, %v1254
    %v1259 = vmax.f32 %v1251, %v1255
    %v1262 = vcombine.low %v1134, %v1135
    %v1264 = vunpack.c.l.s4 1966171168
    %v1265 = vunpack.c.0.s8 %v1264
    %v1266 = vlaneseq
    %v1267 = vshrl.u32 %v1266, 7
    %v1268 = vsub.s32 %v1265, %v1267
    %v1269 = vrot.slane %v1262, %v1268
    %v1271 = vunpack.c.l.s4 1966171168
    %v1272 = vunpack.c.0.s8 %v1271
    %v1273 = vlaneseq
    %v1274 = vshrl.u32 %v1273, 7
    %v1275 = vsub.s32 %v1272, %v1274
    %v1276 = vrot.slane %v1269, %v1275
    %1278 = vrot.lane.b32.xlu0 %v1276, 112
    %v1279 = vpop.permute.xlu0 %1278
    %1281 = vrot.lane.b32.xlu0 %v1276, 96
    %v1282 = vpop.permute.xlu0 %1281
    %1284 = vrot.lane.b32.xlu0 %v1276, 80
    %v1285 = vpop.permute.xlu0 %1284
    %v1289 = vcombine.low %v1144, %v1145
    %v1291 = vunpack.c.l.s4 1966171168
    %v1292 = vunpack.c.0.s8 %v1291
    %v1293 = vlaneseq
    %v1294 = vshrl.u32 %v1293, 7
    %v1295 = vsub.s32 %v1292, %v1294
    %v1296 = vrot.slane %v1289, %v1295
    %v1298 = vunpack.c.l.s4 1966171168
    %v1299 = vunpack.c.0.s8 %v1298
    %v1300 = vlaneseq
    %v1301 = vshrl.u32 %v1300, 7
    %v1302 = vsub.s32 %v1299, %v1301
    %v1303 = vrot.slane %v1296, %v1302
    %1304 = vrot.lane.b32.xlu0 %v1303, 64
    %v1305 = vpop.permute.xlu0 %1304
    %v1309 = vcombine.low %v1162, %v1163
    %v1311 = vunpack.c.l.s4 1966171168
    %v1312 = vunpack.c.0.s8 %v1311
    %v1313 = vlaneseq
    %v1314 = vshrl.u32 %v1313, 7
    %v1315 = vsub.s32 %v1312, %v1314
    %v1316 = vrot.slane %v1309, %v1315
    %v1318 = vunpack.c.l.s4 1966171168
    %v1319 = vunpack.c.0.s8 %v1318
    %v1320 = vlaneseq
    %v1321 = vshrl.u32 %v1320, 7
    %v1322 = vsub.s32 %v1319, %v1321
    %v1323 = vrot.slane %v1316, %v1322
    %1324 = vrot.lane.b32.xlu0 %v1323, 80
    %v1325 = vpop.permute.xlu0 %1324
    %v1329 = vcombine.low %v1180, %v1181
    %v1331 = vunpack.c.l.s4 1966171168
    %v1332 = vunpack.c.0.s8 %v1331
    %v1333 = vlaneseq
    %v1334 = vshrl.u32 %v1333, 7
    %v1335 = vsub.s32 %v1332, %v1334
    %v1336 = vrot.slane %v1329, %v1335
    %v1338 = vunpack.c.l.s4 1966171168
    %v1339 = vunpack.c.0.s8 %v1338
    %v1340 = vlaneseq
    %v1341 = vshrl.u32 %v1340, 7
    %v1342 = vsub.s32 %v1339, %v1341
    %v1343 = vrot.slane %v1336, %v1342
    %1344 = vrot.lane.b32.xlu0 %v1343, 96
    %v1345 = vpop.permute.xlu0 %1344
    %v1349 = vcombine.low %v1198, %v1199
    %v1351 = vunpack.c.l.s4 1966171168
    %v1352 = vunpack.c.0.s8 %v1351
    %v1353 = vlaneseq
    %v1354 = vshrl.u32 %v1353, 7
    %v1355 = vsub.s32 %v1352, %v1354
    %v1356 = vrot.slane %v1349, %v1355
    %v1358 = vunpack.c.l.s4 1966171168
    %v1359 = vunpack.c.0.s8 %v1358
    %v1360 = vlaneseq
    %v1361 = vshrl.u32 %v1360, 7
    %v1362 = vsub.s32 %v1359, %v1361
    %v1363 = vrot.slane %v1356, %v1362
    %1364 = vrot.lane.b32.xlu0 %v1363, 112
    %v1365 = vpop.permute.xlu0 %1364
    %v1369 = vcombine.low %v1208, %v1209
    %v1371 = vunpack.c.l.s4 1966171168
    %v1372 = vunpack.c.0.s8 %v1371
    %v1373 = vlaneseq
    %v1374 = vshrl.u32 %v1373, 7
    %v1375 = vsub.s32 %v1372, %v1374
    %v1376 = vrot.slane %v1369, %v1375
    %v1378 = vunpack.c.l.s4 1966171168
    %v1379 = vunpack.c.0.s8 %v1378
    %v1380 = vlaneseq
    %v1381 = vshrl.u32 %v1380, 7
    %v1382 = vsub.s32 %v1379, %v1381
    %v1383 = vrot.slane %v1376, %v1382
    %v1387 = vcombine.low %v1218, %v1219
    %v1389 = vunpack.c.l.s4 1966171168
    %v1390 = vunpack.c.0.s8 %v1389
    %v1391 = vlaneseq
    %v1392 = vshrl.u32 %v1391, 7
    %v1393 = vsub.s32 %v1390, %v1392
    %v1394 = vrot.slane %v1387, %v1393
    %v1396 = vunpack.c.l.s4 1966171168
    %v1397 = vunpack.c.0.s8 %v1396
    %v1398 = vlaneseq
    %v1399 = vshrl.u32 %v1398, 7
    %v1400 = vsub.s32 %v1397, %v1399
    %v1401 = vrot.slane %v1394, %v1400
    %1402 = vrot.lane.b32.xlu0 %v1401, 16
    %v1403 = vpop.permute.xlu0 %1402
    %v1407 = vcombine.low %v1228, %v1229
    %v1409 = vunpack.c.l.s4 1966171168
    %v1410 = vunpack.c.0.s8 %v1409
    %v1411 = vlaneseq
    %v1412 = vshrl.u32 %v1411, 7
    %v1413 = vsub.s32 %v1410, %v1412
    %v1414 = vrot.slane %v1407, %v1413
    %v1416 = vunpack.c.l.s4 1966171168
    %v1417 = vunpack.c.0.s8 %v1416
    %v1418 = vlaneseq
    %v1419 = vshrl.u32 %v1418, 7
    %v1420 = vsub.s32 %v1417, %v1419
    %v1421 = vrot.slane %v1414, %v1420
    %1422 = vrot.lane.b32.xlu0 %v1421, 32
    %v1423 = vpop.permute.xlu0 %1422
    %v1427 = vcombine.low %v1238, %v1239
    %v1429 = vunpack.c.l.s4 1966171168
    %v1430 = vunpack.c.0.s8 %v1429
    %v1431 = vlaneseq
    %v1432 = vshrl.u32 %v1431, 7
    %v1433 = vsub.s32 %v1430, %v1432
    %v1434 = vrot.slane %v1427, %v1433
    %v1436 = vunpack.c.l.s4 1966171168
    %v1437 = vunpack.c.0.s8 %v1436
    %v1438 = vlaneseq
    %v1439 = vshrl.u32 %v1438, 7
    %v1440 = vsub.s32 %v1437, %v1439
    %v1441 = vrot.slane %v1434, %v1440
    %1442 = vrot.lane.b32.xlu0 %v1441, 48
    %v1443 = vpop.permute.xlu0 %1442
    %v1447 = vcombine.low %v1248, %v1249
    %v1449 = vunpack.c.l.s4 1966171168
    %v1450 = vunpack.c.0.s8 %v1449
    %v1451 = vlaneseq
    %v1452 = vshrl.u32 %v1451, 7
    %v1453 = vsub.s32 %v1450, %v1452
    %v1454 = vrot.slane %v1447, %v1453
    %v1456 = vunpack.c.l.s4 1966171168
    %v1457 = vunpack.c.0.s8 %v1456
    %v1458 = vlaneseq
    %v1459 = vshrl.u32 %v1458, 7
    %v1460 = vsub.s32 %v1457, %v1459
    %v1461 = vrot.slane %v1454, %v1460
    %1462 = vrot.lane.b32.xlu0 %v1461, 64
    %v1463 = vpop.permute.xlu0 %1462
    %v1467 = vcombine.low %v1258, %v1259
    %v1469 = vunpack.c.l.s4 1966171168
    %v1470 = vunpack.c.0.s8 %v1469
    %v1471 = vlaneseq
    %v1472 = vshrl.u32 %v1471, 7
    %v1473 = vsub.s32 %v1470, %v1472
    %v1474 = vrot.slane %v1467, %v1473
    %v1476 = vunpack.c.l.s4 1966171168
    %v1477 = vunpack.c.0.s8 %v1476
    %v1478 = vlaneseq
    %v1479 = vshrl.u32 %v1478, 7
    %v1480 = vsub.s32 %v1477, %v1479
    %v1481 = vrot.slane %v1474, %v1480
    %1482 = vrot.lane.b32.xlu0 %v1481, 80
    %v1483 = vpop.permute.xlu0 %1482
    %v1485 = vsel %vm1055, %v1276, %v1279
    %v1486 = vsel %vm27, %v1485, %v1282
    %v1487 = vsel %vm1058, %v1486, %v1285
    %v1488 = vsel %vm234, %v1487, %v1305
    %v1489 = vsel %vm1061, %v1488, %v1325
    %v1490 = vsel %vm243, %v1489, %v1345
    %v1491 = vsel %vm1064, %v1490, %v1365
    %v1492 = vsel %vm1055, %v1383, %v1403
    %v1493 = vsel %vm27, %v1492, %v1423
    %v1494 = vsel %vm1058, %v1493, %v1443
    %v1495 = vsel %vm234, %v1494, %v1463
    %v1496 = vsel %vm1061, %v1495, %v1483
    %v1499 = vcombine.low %v1491, %v1496
    %v1501 = vunpack.c.l.s4 1966171168
    %v1502 = vunpack.c.0.s8 %v1501
    %v1503 = vlaneseq
    %v1504 = vshrl.u32 %v1503, 7
    %v1505 = vsub.s32 %v1502, %v1504
    %v1506 = vrot.slane %v1499, %v1505
    %v1507 = vcombine.high %v1506, %v1506
    %v1509 = vunpack.c.l.s4 1966171168
    %v1510 = vunpack.c.0.s8 %v1509
    %v1511 = vlaneseq
    %v1512 = vshrl.u32 %v1511, 7
    %v1513 = vsub.s32 %v1510, %v1512
    %v1514 = vrot.slane %v1506, %v1513
    %v1516 = vunpack.c.l.s4 1966171168
    %v1517 = vunpack.c.0.s8 %v1516
    %v1518 = vlaneseq
    %v1519 = vshrl.u32 %v1518, 7
    %v1520 = vsub.s32 %v1517, %v1519
    %v1521 = vrot.slane %v1507, %v1520
    %1522 = vrot.lane.b32.xlu0 %v1514, 32
    %v1523 = vpop.permute.xlu0 %1522
    %1524 = vrot.lane.b32.xlu0 %v1521, 32
    %v1525 = vpop.permute.xlu0 %1524
    %v1526 = vrot.slane %v1523, 7
    %v1527 = vrot.slane %v1525, 7
    %v1528 = vsel %vm27, %v1526, %v1523
    %v1529 = vsel %vm27, %v1527, %v1525
    %s1532 = scalar_lea.vmem [#allocation4], 3
    %1533 = vst.msk [vmem:[%s1532] ss:$8 sm:$0x3] %vm1109, %v1528
    %1534 = vst.msk [vmem:[%s1532] ss:$8 sm:$0x0] %vm1109, %v1528
    %s1535 = scalar_lea.vmem [#allocation4], 75
    %1536 = vst.msk [vmem:[%s1535] ss:$8 sm:$0x3] %vm1109, %v1529
    %1537 = vst.msk [vmem:[%s1535] ss:$8 sm:$0x0] %vm1109, %v1529
    %s1538 = scalar_lea.vmem [#allocation3], 4
    %v1539 = vld [vmem:[%s1538] ss:$8 sm:$0xf]
    %s1540 = scalar_lea.vmem [#allocation3], 132
    %v1541 = vld [vmem:[%s1540] ss:$8 sm:$0xf]
    %s1542 = scalar_lea.vmem [#allocation3], 5
    %v1543 = vld [vmem:[%s1542] ss:$8 sm:$0xf]
    %s1544 = scalar_lea.vmem [#allocation3], 133
    %v1545 = vld [vmem:[%s1544] ss:$8 sm:$0xf]
    %v1546 = vmax.f32 %v1539, %v1543
    %v1547 = vmax.f32 %v1541, %v1545
    %1550 = vrot.lane.b32.xlu0 %v1546, 112
    %v1551 = vpop.permute.xlu0 %1550
    %1552 = vrot.lane.b32.xlu0 %v1547, 112
    %v1553 = vpop.permute.xlu0 %1552
    %v1556 = vmax.f32 %v1546, %v1551
    %v1557 = vmax.f32 %v1547, %v1553
    %v1558 = vrot.slane %v1546, 1
    %v1559 = vrot.slane %v1547, 1
    %v1562 = vrot.slane %v1551, 1
    %v1563 = vrot.slane %v1553, 1
    %v1566 = vmax.f32 %v1558, %v1562
    %v1567 = vmax.f32 %v1559, %v1563
    %1568 = vrot.lane.b32.xlu0 %v1546, 96
    %v1569 = vpop.permute.xlu0 %1568
    %1570 = vrot.lane.b32.xlu0 %v1547, 96
    %v1571 = vpop.permute.xlu0 %1570
    %v1572 = vrot.slane %v1569, 1
    %v1573 = vrot.slane %v1571, 1
    %1576 = vrot.lane.b32.xlu0 %v1546, 80
    %v1577 = vpop.permute.xlu0 %1576
    %1578 = vrot.lane.b32.xlu0 %v1547, 80
    %v1579 = vpop.permute.xlu0 %1578
    %v1580 = vrot.slane %v1577, 1
    %v1581 = vrot.slane %v1579, 1
    %v1584 = vmax.f32 %v1572, %v1580
    %v1585 = vmax.f32 %v1573, %v1581
    %1586 = vrot.lane.b32.xlu0 %v1546, 64
    %v1587 = vpop.permute.xlu0 %1586
    %1588 = vrot.lane.b32.xlu0 %v1547, 64
    %v1589 = vpop.permute.xlu0 %1588
    %v1590 = vrot.slane %v1587, 1
    %v1591 = vrot.slane %v1589, 1
    %1594 = vrot.lane.b32.xlu0 %v1546, 48
    %v1595 = vpop.permute.xlu0 %1594
    %1596 = vrot.lane.b32.xlu0 %v1547, 48
    %v1597 = vpop.permute.xlu0 %1596
    %v1598 = vrot.slane %v1595, 1
    %v1599 = vrot.slane %v1597, 1
    %v1602 = vmax.f32 %v1590, %v1598
    %v1603 = vmax.f32 %v1591, %v1599
    %1604 = vrot.lane.b32.xlu0 %v1546, 32
    %v1605 = vpop.permute.xlu0 %1604
    %1606 = vrot.lane.b32.xlu0 %v1547, 32
    %v1607 = vpop.permute.xlu0 %1606
    %v1608 = vrot.slane %v1605, 1
    %v1609 = vrot.slane %v1607, 1
    %1612 = vrot.lane.b32.xlu0 %v1546, 16
    %v1613 = vpop.permute.xlu0 %1612
    %1614 = vrot.lane.b32.xlu0 %v1547, 16
    %v1615 = vpop.permute.xlu0 %1614
    %v1616 = vrot.slane %v1613, 1
    %v1617 = vrot.slane %v1615, 1
    %v1620 = vmax.f32 %v1608, %v1616
    %v1621 = vmax.f32 %v1609, %v1617
    %v1622 = vrot.slane %v1546, 2
    %v1623 = vrot.slane %v1547, 2
    %v1626 = vrot.slane %v1551, 2
    %v1627 = vrot.slane %v1553, 2
    %v1630 = vmax.f32 %v1622, %v1626
    %v1631 = vmax.f32 %v1623, %v1627
    %v1632 = vrot.slane %v1569, 2
    %v1633 = vrot.slane %v1571, 2
    %v1636 = vrot.slane %v1577, 2
    %v1637 = vrot.slane %v1579, 2
    %v1640 = vmax.f32 %v1632, %v1636
    %v1641 = vmax.f32 %v1633, %v1637
    %v1642 = vrot.slane %v1587, 2
    %v1643 = vrot.slane %v1589, 2
    %v1646 = vrot.slane %v1595, 2
    %v1647 = vrot.slane %v1597, 2
    %v1650 = vmax.f32 %v1642, %v1646
    %v1651 = vmax.f32 %v1643, %v1647
    %v1652 = vrot.slane %v1605, 2
    %v1653 = vrot.slane %v1607, 2
    %v1656 = vrot.slane %v1613, 2
    %v1657 = vrot.slane %v1615, 2
    %v1660 = vmax.f32 %v1652, %v1656
    %v1661 = vmax.f32 %v1653, %v1657
    %v1662 = vrot.slane %v1546, 3
    %v1663 = vrot.slane %v1547, 3
    %v1666 = vrot.slane %v1551, 3
    %v1667 = vrot.slane %v1553, 3
    %v1670 = vmax.f32 %v1662, %v1666
    %v1671 = vmax.f32 %v1663, %v1667
    %v1672 = vrot.slane %v1569, 3
    %v1673 = vrot.slane %v1571, 3
    %v1676 = vrot.slane %v1577, 3
    %v1677 = vrot.slane %v1579, 3
    %v1680 = vmax.f32 %v1672, %v1676
    %v1681 = vmax.f32 %v1673, %v1677
    %v1684 = vcombine.low %v1556, %v1557
    %v1686 = vunpack.c.l.s4 1966171168
    %v1687 = vunpack.c.0.s8 %v1686
    %v1688 = vlaneseq
    %v1689 = vshrl.u32 %v1688, 7
    %v1690 = vsub.s32 %v1687, %v1689
    %v1691 = vrot.slane %v1684, %v1690
    %v1693 = vunpack.c.l.s4 1966171168
    %v1694 = vunpack.c.0.s8 %v1693
    %v1695 = vlaneseq
    %v1696 = vshrl.u32 %v1695, 7
    %v1697 = vsub.s32 %v1694, %v1696
    %v1698 = vrot.slane %v1691, %v1697
    %1700 = vrot.lane.b32.xlu0 %v1698, 112
    %v1701 = vpop.permute.xlu0 %1700
    %1703 = vrot.lane.b32.xlu0 %v1698, 96
    %v1704 = vpop.permute.xlu0 %1703
    %1706 = vrot.lane.b32.xlu0 %v1698, 80
    %v1707 = vpop.permute.xlu0 %1706
    %v1711 = vcombine.low %v1566, %v1567
    %v1713 = vunpack.c.l.s4 1966171168
    %v1714 = vunpack.c.0.s8 %v1713
    %v1715 = vlaneseq
    %v1716 = vshrl.u32 %v1715, 7
    %v1717 = vsub.s32 %v1714, %v1716
    %v1718 = vrot.slane %v1711, %v1717
    %v1720 = vunpack.c.l.s4 1966171168
    %v1721 = vunpack.c.0.s8 %v1720
    %v1722 = vlaneseq
    %v1723 = vshrl.u32 %v1722, 7
    %v1724 = vsub.s32 %v1721, %v1723
    %v1725 = vrot.slane %v1718, %v1724
    %1726 = vrot.lane.b32.xlu0 %v1725, 64
    %v1727 = vpop.permute.xlu0 %1726
    %v1731 = vcombine.low %v1584, %v1585
    %v1733 = vunpack.c.l.s4 1966171168
    %v1734 = vunpack.c.0.s8 %v1733
    %v1735 = vlaneseq
    %v1736 = vshrl.u32 %v1735, 7
    %v1737 = vsub.s32 %v1734, %v1736
    %v1738 = vrot.slane %v1731, %v1737
    %v1740 = vunpack.c.l.s4 1966171168
    %v1741 = vunpack.c.0.s8 %v1740
    %v1742 = vlaneseq
    %v1743 = vshrl.u32 %v1742, 7
    %v1744 = vsub.s32 %v1741, %v1743
    %v1745 = vrot.slane %v1738, %v1744
    %1746 = vrot.lane.b32.xlu0 %v1745, 80
    %v1747 = vpop.permute.xlu0 %1746
    %v1751 = vcombine.low %v1602, %v1603
    %v1753 = vunpack.c.l.s4 1966171168
    %v1754 = vunpack.c.0.s8 %v1753
    %v1755 = vlaneseq
    %v1756 = vshrl.u32 %v1755, 7
    %v1757 = vsub.s32 %v1754, %v1756
    %v1758 = vrot.slane %v1751, %v1757
    %v1760 = vunpack.c.l.s4 1966171168
    %v1761 = vunpack.c.0.s8 %v1760
    %v1762 = vlaneseq
    %v1763 = vshrl.u32 %v1762, 7
    %v1764 = vsub.s32 %v1761, %v1763
    %v1765 = vrot.slane %v1758, %v1764
    %1766 = vrot.lane.b32.xlu0 %v1765, 96
    %v1767 = vpop.permute.xlu0 %1766
    %v1771 = vcombine.low %v1620, %v1621
    %v1773 = vunpack.c.l.s4 1966171168
    %v1774 = vunpack.c.0.s8 %v1773
    %v1775 = vlaneseq
    %v1776 = vshrl.u32 %v1775, 7
    %v1777 = vsub.s32 %v1774, %v1776
    %v1778 = vrot.slane %v1771, %v1777
    %v1780 = vunpack.c.l.s4 1966171168
    %v1781 = vunpack.c.0.s8 %v1780
    %v1782 = vlaneseq
    %v1783 = vshrl.u32 %v1782, 7
    %v1784 = vsub.s32 %v1781, %v1783
    %v1785 = vrot.slane %v1778, %v1784
    %1786 = vrot.lane.b32.xlu0 %v1785, 112
    %v1787 = vpop.permute.xlu0 %1786
    %v1791 = vcombine.low %v1630, %v1631
    %v1793 = vunpack.c.l.s4 1966171168
    %v1794 = vunpack.c.0.s8 %v1793
    %v1795 = vlaneseq
    %v1796 = vshrl.u32 %v1795, 7
    %v1797 = vsub.s32 %v1794, %v1796
    %v1798 = vrot.slane %v1791, %v1797
    %v1800 = vunpack.c.l.s4 1966171168
    %v1801 = vunpack.c.0.s8 %v1800
    %v1802 = vlaneseq
    %v1803 = vshrl.u32 %v1802, 7
    %v1804 = vsub.s32 %v1801, %v1803
    %v1805 = vrot.slane %v1798, %v1804
    %v1809 = vcombine.low %v1640, %v1641
    %v1811 = vunpack.c.l.s4 1966171168
    %v1812 = vunpack.c.0.s8 %v1811
    %v1813 = vlaneseq
    %v1814 = vshrl.u32 %v1813, 7
    %v1815 = vsub.s32 %v1812, %v1814
    %v1816 = vrot.slane %v1809, %v1815
    %v1818 = vunpack.c.l.s4 1966171168
    %v1819 = vunpack.c.0.s8 %v1818
    %v1820 = vlaneseq
    %v1821 = vshrl.u32 %v1820, 7
    %v1822 = vsub.s32 %v1819, %v1821
    %v1823 = vrot.slane %v1816, %v1822
    %1824 = vrot.lane.b32.xlu0 %v1823, 16
    %v1825 = vpop.permute.xlu0 %1824
    %v1829 = vcombine.low %v1650, %v1651
    %v1831 = vunpack.c.l.s4 1966171168
    %v1832 = vunpack.c.0.s8 %v1831
    %v1833 = vlaneseq
    %v1834 = vshrl.u32 %v1833, 7
    %v1835 = vsub.s32 %v1832, %v1834
    %v1836 = vrot.slane %v1829, %v1835
    %v1838 = vunpack.c.l.s4 1966171168
    %v1839 = vunpack.c.0.s8 %v1838
    %v1840 = vlaneseq
    %v1841 = vshrl.u32 %v1840, 7
    %v1842 = vsub.s32 %v1839, %v1841
    %v1843 = vrot.slane %v1836, %v1842
    %1844 = vrot.lane.b32.xlu0 %v1843, 32
    %v1845 = vpop.permute.xlu0 %1844
    %v1849 = vcombine.low %v1660, %v1661
    %v1851 = vunpack.c.l.s4 1966171168
    %v1852 = vunpack.c.0.s8 %v1851
    %v1853 = vlaneseq
    %v1854 = vshrl.u32 %v1853, 7
    %v1855 = vsub.s32 %v1852, %v1854
    %v1856 = vrot.slane %v1849, %v1855
    %v1858 = vunpack.c.l.s4 1966171168
    %v1859 = vunpack.c.0.s8 %v1858
    %v1860 = vlaneseq
    %v1861 = vshrl.u32 %v1860, 7
    %v1862 = vsub.s32 %v1859, %v1861
    %v1863 = vrot.slane %v1856, %v1862
    %1864 = vrot.lane.b32.xlu0 %v1863, 48
    %v1865 = vpop.permute.xlu0 %1864
    %v1869 = vcombine.low %v1670, %v1671
    %v1871 = vunpack.c.l.s4 1966171168
    %v1872 = vunpack.c.0.s8 %v1871
    %v1873 = vlaneseq
    %v1874 = vshrl.u32 %v1873, 7
    %v1875 = vsub.s32 %v1872, %v1874
    %v1876 = vrot.slane %v1869, %v1875
    %v1878 = vunpack.c.l.s4 1966171168
    %v1879 = vunpack.c.0.s8 %v1878
    %v1880 = vlaneseq
    %v1881 = vshrl.u32 %v1880, 7
    %v1882 = vsub.s32 %v1879, %v1881
    %v1883 = vrot.slane %v1876, %v1882
    %1884 = vrot.lane.b32.xlu0 %v1883, 64
    %v1885 = vpop.permute.xlu0 %1884
    %v1889 = vcombine.low %v1680, %v1681
    %v1891 = vunpack.c.l.s4 1966171168
    %v1892 = vunpack.c.0.s8 %v1891
    %v1893 = vlaneseq
    %v1894 = vshrl.u32 %v1893, 7
    %v1895 = vsub.s32 %v1892, %v1894
    %v1896 = vrot.slane %v1889, %v1895
    %v1898 = vunpack.c.l.s4 1966171168
    %v1899 = vunpack.c.0.s8 %v1898
    %v1900 = vlaneseq
    %v1901 = vshrl.u32 %v1900, 7
    %v1902 = vsub.s32 %v1899, %v1901
    %v1903 = vrot.slane %v1896, %v1902
    %1904 = vrot.lane.b32.xlu0 %v1903, 80
    %v1905 = vpop.permute.xlu0 %1904
    %v1907 = vsel %vm1055, %v1698, %v1701
    %v1908 = vsel %vm27, %v1907, %v1704
    %v1909 = vsel %vm1058, %v1908, %v1707
    %v1910 = vsel %vm234, %v1909, %v1727
    %v1911 = vsel %vm1061, %v1910, %v1747
    %v1912 = vsel %vm243, %v1911, %v1767
    %v1913 = vsel %vm1064, %v1912, %v1787
    %v1914 = vsel %vm1055, %v1805, %v1825
    %v1915 = vsel %vm27, %v1914, %v1845
    %v1916 = vsel %vm1058, %v1915, %v1865
    %v1917 = vsel %vm234, %v1916, %v1885
    %v1918 = vsel %vm1061, %v1917, %v1905
    %v1921 = vcombine.low %v1913, %v1918
    %v1923 = vunpack.c.l.s4 1966171168
    %v1924 = vunpack.c.0.s8 %v1923
    %v1925 = vlaneseq
    %v1926 = vshrl.u32 %v1925, 7
    %v1927 = vsub.s32 %v1924, %v1926
    %v1928 = vrot.slane %v1921, %v1927
    %v1929 = vcombine.high %v1928, %v1928
    %v1931 = vunpack.c.l.s4 1966171168
    %v1932 = vunpack.c.0.s8 %v1931
    %v1933 = vlaneseq
    %v1934 = vshrl.u32 %v1933, 7
    %v1935 = vsub.s32 %v1932, %v1934
    %v1936 = vrot.slane %v1928, %v1935
    %v1938 = vunpack.c.l.s4 1966171168
    %v1939 = vunpack.c.0.s8 %v1938
    %v1940 = vlaneseq
    %v1941 = vshrl.u32 %v1940, 7
    %v1942 = vsub.s32 %v1939, %v1941
    %v1943 = vrot.slane %v1929, %v1942
    %1944 = vrot.lane.b32.xlu0 %v1936, 32
    %v1945 = vpop.permute.xlu0 %1944
    %1946 = vrot.lane.b32.xlu0 %v1943, 32
    %v1947 = vpop.permute.xlu0 %1946
    %v1948 = vrot.slane %v1945, 7
    %v1949 = vrot.slane %v1947, 7
    %v1950 = vsel %vm27, %v1948, %v1945
    %v1951 = vsel %vm27, %v1949, %v1947
    %s1954 = scalar_lea.vmem [#allocation4], 4
    %1955 = vst.msk [vmem:[%s1954] ss:$8 sm:$0x3] %vm1109, %v1950
    %1956 = vst.msk [vmem:[%s1954] ss:$8 sm:$0x0] %vm1109, %v1950
    %s1957 = scalar_lea.vmem [#allocation4], 76
    %1958 = vst.msk [vmem:[%s1957] ss:$8 sm:$0x3] %vm1109, %v1951
    %1959 = vst.msk [vmem:[%s1957] ss:$8 sm:$0x0] %vm1109, %v1951
    %s1960 = scalar_lea.vmem [#allocation3], 6
    %v1961 = vld [vmem:[%s1960] ss:$8 sm:$0xf]
    %s1962 = scalar_lea.vmem [#allocation3], 134
    %v1963 = vld [vmem:[%s1962] ss:$8 sm:$0xf]
    %s1964 = scalar_lea.vmem [#allocation3], 7
    %v1965 = vld [vmem:[%s1964] ss:$8 sm:$0xf]
    %s1966 = scalar_lea.vmem [#allocation3], 135
    %v1967 = vld [vmem:[%s1966] ss:$8 sm:$0xf]
    %v1968 = vmax.f32 %v1961, %v1965
    %v1969 = vmax.f32 %v1963, %v1967
    %1972 = vrot.lane.b32.xlu0 %v1968, 112
    %v1973 = vpop.permute.xlu0 %1972
    %1974 = vrot.lane.b32.xlu0 %v1969, 112
    %v1975 = vpop.permute.xlu0 %1974
    %v1978 = vmax.f32 %v1968, %v1973
    %v1979 = vmax.f32 %v1969, %v1975
    %v1980 = vrot.slane %v1968, 1
    %v1981 = vrot.slane %v1969, 1
    %v1984 = vrot.slane %v1973, 1
    %v1985 = vrot.slane %v1975, 1
    %v1988 = vmax.f32 %v1980, %v1984
    %v1989 = vmax.f32 %v1981, %v1985
    %1990 = vrot.lane.b32.xlu0 %v1968, 96
    %v1991 = vpop.permute.xlu0 %1990
    %1992 = vrot.lane.b32.xlu0 %v1969, 96
    %v1993 = vpop.permute.xlu0 %1992
    %v1994 = vrot.slane %v1991, 1
    %v1995 = vrot.slane %v1993, 1
    %1998 = vrot.lane.b32.xlu0 %v1968, 80
    %v1999 = vpop.permute.xlu0 %1998
    %2000 = vrot.lane.b32.xlu0 %v1969, 80
    %v2001 = vpop.permute.xlu0 %2000
    %v2002 = vrot.slane %v1999, 1
    %v2003 = vrot.slane %v2001, 1
    %v2006 = vmax.f32 %v1994, %v2002
    %v2007 = vmax.f32 %v1995, %v2003
    %2008 = vrot.lane.b32.xlu0 %v1968, 64
    %v2009 = vpop.permute.xlu0 %2008
    %2010 = vrot.lane.b32.xlu0 %v1969, 64
    %v2011 = vpop.permute.xlu0 %2010
    %v2012 = vrot.slane %v2009, 1
    %v2013 = vrot.slane %v2011, 1
    %2016 = vrot.lane.b32.xlu0 %v1968, 48
    %v2017 = vpop.permute.xlu0 %2016
    %2018 = vrot.lane.b32.xlu0 %v1969, 48
    %v2019 = vpop.permute.xlu0 %2018
    %v2020 = vrot.slane %v2017, 1
    %v2021 = vrot.slane %v2019, 1
    %v2024 = vmax.f32 %v2012, %v2020
    %v2025 = vmax.f32 %v2013, %v2021
    %2026 = vrot.lane.b32.xlu0 %v1968, 32
    %v2027 = vpop.permute.xlu0 %2026
    %2028 = vrot.lane.b32.xlu0 %v1969, 32
    %v2029 = vpop.permute.xlu0 %2028
    %v2030 = vrot.slane %v2027, 1
    %v2031 = vrot.slane %v2029, 1
    %2034 = vrot.lane.b32.xlu0 %v1968, 16
    %v2035 = vpop.permute.xlu0 %2034
    %2036 = vrot.lane.b32.xlu0 %v1969, 16
    %v2037 = vpop.permute.xlu0 %2036
    %v2038 = vrot.slane %v2035, 1
    %v2039 = vrot.slane %v2037, 1
    %v2042 = vmax.f32 %v2030, %v2038
    %v2043 = vmax.f32 %v2031, %v2039
    %v2044 = vrot.slane %v1968, 2
    %v2045 = vrot.slane %v1969, 2
    %v2048 = vrot.slane %v1973, 2
    %v2049 = vrot.slane %v1975, 2
    %v2052 = vmax.f32 %v2044, %v2048
    %v2053 = vmax.f32 %v2045, %v2049
    %v2054 = vrot.slane %v1991, 2
    %v2055 = vrot.slane %v1993, 2
    %v2058 = vrot.slane %v1999, 2
    %v2059 = vrot.slane %v2001, 2
    %v2062 = vmax.f32 %v2054, %v2058
    %v2063 = vmax.f32 %v2055, %v2059
    %v2064 = vrot.slane %v2009, 2
    %v2065 = vrot.slane %v2011, 2
    %v2068 = vrot.slane %v2017, 2
    %v2069 = vrot.slane %v2019, 2
    %v2072 = vmax.f32 %v2064, %v2068
    %v2073 = vmax.f32 %v2065, %v2069
    %v2074 = vrot.slane %v2027, 2
    %v2075 = vrot.slane %v2029, 2
    %v2078 = vrot.slane %v2035, 2
    %v2079 = vrot.slane %v2037, 2
    %v2082 = vmax.f32 %v2074, %v2078
    %v2083 = vmax.f32 %v2075, %v2079
    %v2084 = vrot.slane %v1968, 3
    %v2085 = vrot.slane %v1969, 3
    %v2088 = vrot.slane %v1973, 3
    %v2089 = vrot.slane %v1975, 3
    %v2092 = vmax.f32 %v2084, %v2088
    %v2093 = vmax.f32 %v2085, %v2089
    %v2094 = vrot.slane %v1991, 3
    %v2095 = vrot.slane %v1993, 3
    %v2098 = vrot.slane %v1999, 3
    %v2099 = vrot.slane %v2001, 3
    %v2102 = vmax.f32 %v2094, %v2098
    %v2103 = vmax.f32 %v2095, %v2099
    %v2106 = vcombine.low %v1978, %v1979
    %v2108 = vunpack.c.l.s4 1966171168
    %v2109 = vunpack.c.0.s8 %v2108
    %v2110 = vlaneseq
    %v2111 = vshrl.u32 %v2110, 7
    %v2112 = vsub.s32 %v2109, %v2111
    %v2113 = vrot.slane %v2106, %v2112
    %v2115 = vunpack.c.l.s4 1966171168
    %v2116 = vunpack.c.0.s8 %v2115
    %v2117 = vlaneseq
    %v2118 = vshrl.u32 %v2117, 7
    %v2119 = vsub.s32 %v2116, %v2118
    %v2120 = vrot.slane %v2113, %v2119
    %2122 = vrot.lane.b32.xlu0 %v2120, 112
    %v2123 = vpop.permute.xlu0 %2122
    %2125 = vrot.lane.b32.xlu0 %v2120, 96
    %v2126 = vpop.permute.xlu0 %2125
    %2128 = vrot.lane.b32.xlu0 %v2120, 80
    %v2129 = vpop.permute.xlu0 %2128
    %v2133 = vcombine.low %v1988, %v1989
    %v2135 = vunpack.c.l.s4 1966171168
    %v2136 = vunpack.c.0.s8 %v2135
    %v2137 = vlaneseq
    %v2138 = vshrl.u32 %v2137, 7
    %v2139 = vsub.s32 %v2136, %v2138
    %v2140 = vrot.slane %v2133, %v2139
    %v2142 = vunpack.c.l.s4 1966171168
    %v2143 = vunpack.c.0.s8 %v2142
    %v2144 = vlaneseq
    %v2145 = vshrl.u32 %v2144, 7
    %v2146 = vsub.s32 %v2143, %v2145
    %v2147 = vrot.slane %v2140, %v2146
    %2148 = vrot.lane.b32.xlu0 %v2147, 64
    %v2149 = vpop.permute.xlu0 %2148
    %v2153 = vcombine.low %v2006, %v2007
    %v2155 = vunpack.c.l.s4 1966171168
    %v2156 = vunpack.c.0.s8 %v2155
    %v2157 = vlaneseq
    %v2158 = vshrl.u32 %v2157, 7
    %v2159 = vsub.s32 %v2156, %v2158
    %v2160 = vrot.slane %v2153, %v2159
    %v2162 = vunpack.c.l.s4 1966171168
    %v2163 = vunpack.c.0.s8 %v2162
    %v2164 = vlaneseq
    %v2165 = vshrl.u32 %v2164, 7
    %v2166 = vsub.s32 %v2163, %v2165
    %v2167 = vrot.slane %v2160, %v2166
    %2168 = vrot.lane.b32.xlu0 %v2167, 80
    %v2169 = vpop.permute.xlu0 %2168
    %v2173 = vcombine.low %v2024, %v2025
    %v2175 = vunpack.c.l.s4 1966171168
    %v2176 = vunpack.c.0.s8 %v2175
    %v2177 = vlaneseq
    %v2178 = vshrl.u32 %v2177, 7
    %v2179 = vsub.s32 %v2176, %v2178
    %v2180 = vrot.slane %v2173, %v2179
    %v2182 = vunpack.c.l.s4 1966171168
    %v2183 = vunpack.c.0.s8 %v2182
    %v2184 = vlaneseq
    %v2185 = vshrl.u32 %v2184, 7
    %v2186 = vsub.s32 %v2183, %v2185
    %v2187 = vrot.slane %v2180, %v2186
    %2188 = vrot.lane.b32.xlu0 %v2187, 96
    %v2189 = vpop.permute.xlu0 %2188
    %v2193 = vcombine.low %v2042, %v2043
    %v2195 = vunpack.c.l.s4 1966171168
    %v2196 = vunpack.c.0.s8 %v2195
    %v2197 = vlaneseq
    %v2198 = vshrl.u32 %v2197, 7
    %v2199 = vsub.s32 %v2196, %v2198
    %v2200 = vrot.slane %v2193, %v2199
    %v2202 = vunpack.c.l.s4 1966171168
    %v2203 = vunpack.c.0.s8 %v2202
    %v2204 = vlaneseq
    %v2205 = vshrl.u32 %v2204, 7
    %v2206 = vsub.s32 %v2203, %v2205
    %v2207 = vrot.slane %v2200, %v2206
    %2208 = vrot.lane.b32.xlu0 %v2207, 112
    %v2209 = vpop.permute.xlu0 %2208
    %v2213 = vcombine.low %v2052, %v2053
    %v2215 = vunpack.c.l.s4 1966171168
    %v2216 = vunpack.c.0.s8 %v2215
    %v2217 = vlaneseq
    %v2218 = vshrl.u32 %v2217, 7
    %v2219 = vsub.s32 %v2216, %v2218
    %v2220 = vrot.slane %v2213, %v2219
    %v2222 = vunpack.c.l.s4 1966171168
    %v2223 = vunpack.c.0.s8 %v2222
    %v2224 = vlaneseq
    %v2225 = vshrl.u32 %v2224, 7
    %v2226 = vsub.s32 %v2223, %v2225
    %v2227 = vrot.slane %v2220, %v2226
    %v2231 = vcombine.low %v2062, %v2063
    %v2233 = vunpack.c.l.s4 1966171168
    %v2234 = vunpack.c.0.s8 %v2233
    %v2235 = vlaneseq
    %v2236 = vshrl.u32 %v2235, 7
    %v2237 = vsub.s32 %v2234, %v2236
    %v2238 = vrot.slane %v2231, %v2237
    %v2240 = vunpack.c.l.s4 1966171168
    %v2241 = vunpack.c.0.s8 %v2240
    %v2242 = vlaneseq
    %v2243 = vshrl.u32 %v2242, 7
    %v2244 = vsub.s32 %v2241, %v2243
    %v2245 = vrot.slane %v2238, %v2244
    %2246 = vrot.lane.b32.xlu0 %v2245, 16
    %v2247 = vpop.permute.xlu0 %2246
    %v2251 = vcombine.low %v2072, %v2073
    %v2253 = vunpack.c.l.s4 1966171168
    %v2254 = vunpack.c.0.s8 %v2253
    %v2255 = vlaneseq
    %v2256 = vshrl.u32 %v2255, 7
    %v2257 = vsub.s32 %v2254, %v2256
    %v2258 = vrot.slane %v2251, %v2257
    %v2260 = vunpack.c.l.s4 1966171168
    %v2261 = vunpack.c.0.s8 %v2260
    %v2262 = vlaneseq
    %v2263 = vshrl.u32 %v2262, 7
    %v2264 = vsub.s32 %v2261, %v2263
    %v2265 = vrot.slane %v2258, %v2264
    %2266 = vrot.lane.b32.xlu0 %v2265, 32
    %v2267 = vpop.permute.xlu0 %2266
    %v2271 = vcombine.low %v2082, %v2083
    %v2273 = vunpack.c.l.s4 1966171168
    %v2274 = vunpack.c.0.s8 %v2273
    %v2275 = vlaneseq
    %v2276 = vshrl.u32 %v2275, 7
    %v2277 = vsub.s32 %v2274, %v2276
    %v2278 = vrot.slane %v2271, %v2277
    %v2280 = vunpack.c.l.s4 1966171168
    %v2281 = vunpack.c.0.s8 %v2280
    %v2282 = vlaneseq
    %v2283 = vshrl.u32 %v2282, 7
    %v2284 = vsub.s32 %v2281, %v2283
    %v2285 = vrot.slane %v2278, %v2284
    %2286 = vrot.lane.b32.xlu0 %v2285, 48
    %v2287 = vpop.permute.xlu0 %2286
    %v2291 = vcombine.low %v2092, %v2093
    %v2293 = vunpack.c.l.s4 1966171168
    %v2294 = vunpack.c.0.s8 %v2293
    %v2295 = vlaneseq
    %v2296 = vshrl.u32 %v2295, 7
    %v2297 = vsub.s32 %v2294, %v2296
    %v2298 = vrot.slane %v2291, %v2297
    %v2300 = vunpack.c.l.s4 1966171168
    %v2301 = vunpack.c.0.s8 %v2300
    %v2302 = vlaneseq
    %v2303 = vshrl.u32 %v2302, 7
    %v2304 = vsub.s32 %v2301, %v2303
    %v2305 = vrot.slane %v2298, %v2304
    %2306 = vrot.lane.b32.xlu0 %v2305, 64
    %v2307 = vpop.permute.xlu0 %2306
    %v2311 = vcombine.low %v2102, %v2103
    %v2313 = vunpack.c.l.s4 1966171168
    %v2314 = vunpack.c.0.s8 %v2313
    %v2315 = vlaneseq
    %v2316 = vshrl.u32 %v2315, 7
    %v2317 = vsub.s32 %v2314, %v2316
    %v2318 = vrot.slane %v2311, %v2317
    %v2320 = vunpack.c.l.s4 1966171168
    %v2321 = vunpack.c.0.s8 %v2320
    %v2322 = vlaneseq
    %v2323 = vshrl.u32 %v2322, 7
    %v2324 = vsub.s32 %v2321, %v2323
    %v2325 = vrot.slane %v2318, %v2324
    %2326 = vrot.lane.b32.xlu0 %v2325, 80
    %v2327 = vpop.permute.xlu0 %2326
    %v2329 = vsel %vm1055, %v2120, %v2123
    %v2330 = vsel %vm27, %v2329, %v2126
    %v2331 = vsel %vm1058, %v2330, %v2129
    %v2332 = vsel %vm234, %v2331, %v2149
    %v2333 = vsel %vm1061, %v2332, %v2169
    %v2334 = vsel %vm243, %v2333, %v2189
    %v2335 = vsel %vm1064, %v2334, %v2209
    %v2336 = vsel %vm1055, %v2227, %v2247
    %v2337 = vsel %vm27, %v2336, %v2267
    %v2338 = vsel %vm1058, %v2337, %v2287
    %v2339 = vsel %vm234, %v2338, %v2307
    %v2340 = vsel %vm1061, %v2339, %v2327
    %v2343 = vcombine.low %v2335, %v2340
    %v2345 = vunpack.c.l.s4 1966171168
    %v2346 = vunpack.c.0.s8 %v2345
    %v2347 = vlaneseq
    %v2348 = vshrl.u32 %v2347, 7
    %v2349 = vsub.s32 %v2346, %v2348
    %v2350 = vrot.slane %v2343, %v2349
    %v2351 = vcombine.high %v2350, %v2350
    %v2353 = vunpack.c.l.s4 1966171168
    %v2354 = vunpack.c.0.s8 %v2353
    %v2355 = vlaneseq
    %v2356 = vshrl.u32 %v2355, 7
    %v2357 = vsub.s32 %v2354, %v2356
    %v2358 = vrot.slane %v2350, %v2357
    %v2360 = vunpack.c.l.s4 1966171168
    %v2361 = vunpack.c.0.s8 %v2360
    %v2362 = vlaneseq
    %v2363 = vshrl.u32 %v2362, 7
    %v2364 = vsub.s32 %v2361, %v2363
    %v2365 = vrot.slane %v2351, %v2364
    %2366 = vrot.lane.b32.xlu0 %v2358, 32
    %v2367 = vpop.permute.xlu0 %2366
    %2368 = vrot.lane.b32.xlu0 %v2365, 32
    %v2369 = vpop.permute.xlu0 %2368
    %v2370 = vrot.slane %v2367, 7
    %v2371 = vrot.slane %v2369, 7
    %v2372 = vsel %vm27, %v2370, %v2367
    %v2373 = vsel %vm27, %v2371, %v2369
    %s2376 = scalar_lea.vmem [#allocation4], 5
    %2377 = vst.msk [vmem:[%s2376] ss:$8 sm:$0x3] %vm1109, %v2372
    %2378 = vst.msk [vmem:[%s2376] ss:$8 sm:$0x0] %vm1109, %v2372
    %s2379 = scalar_lea.vmem [#allocation4], 77
    %2380 = vst.msk [vmem:[%s2379] ss:$8 sm:$0x3] %vm1109, %v2373
    %2381 = vst.msk [vmem:[%s2379] ss:$8 sm:$0x0] %vm1109, %v2373
    %s2382 = scalar_lea.vmem [#allocation3], 32
    %v2383 = vld [vmem:[%s2382] ss:$8 sm:$0xf]
    %s2384 = scalar_lea.vmem [#allocation3], 160
    %v2385 = vld [vmem:[%s2384] ss:$8 sm:$0xf]
    %s2386 = scalar_lea.vmem [#allocation3], 33
    %v2387 = vld [vmem:[%s2386] ss:$8 sm:$0xf]
    %s2388 = scalar_lea.vmem [#allocation3], 161
    %v2389 = vld [vmem:[%s2388] ss:$8 sm:$0xf]
    %v2390 = vmax.f32 %v2383, %v2387
    %v2391 = vmax.f32 %v2385, %v2389
    %2394 = vrot.lane.b32.xlu0 %v2390, 112
    %v2395 = vpop.permute.xlu0 %2394
    %2396 = vrot.lane.b32.xlu0 %v2391, 112
    %v2397 = vpop.permute.xlu0 %2396
    %v2400 = vmax.f32 %v2390, %v2395
    %v2401 = vmax.f32 %v2391, %v2397
    %v2402 = vrot.slane %v2390, 1
    %v2403 = vrot.slane %v2391, 1
    %v2406 = vrot.slane %v2395, 1
    %v2407 = vrot.slane %v2397, 1
    %v2410 = vmax.f32 %v2402, %v2406
    %v2411 = vmax.f32 %v2403, %v2407
    %2412 = vrot.lane.b32.xlu0 %v2390, 96
    %v2413 = vpop.permute.xlu0 %2412
    %2414 = vrot.lane.b32.xlu0 %v2391, 96
    %v2415 = vpop.permute.xlu0 %2414
    %v2416 = vrot.slane %v2413, 1
    %v2417 = vrot.slane %v2415, 1
    %2420 = vrot.lane.b32.xlu0 %v2390, 80
    %v2421 = vpop.permute.xlu0 %2420
    %2422 = vrot.lane.b32.xlu0 %v2391, 80
    %v2423 = vpop.permute.xlu0 %2422
    %v2424 = vrot.slane %v2421, 1
    %v2425 = vrot.slane %v2423, 1
    %v2428 = vmax.f32 %v2416, %v2424
    %v2429 = vmax.f32 %v2417, %v2425
    %2430 = vrot.lane.b32.xlu0 %v2390, 64
    %v2431 = vpop.permute.xlu0 %2430
    %2432 = vrot.lane.b32.xlu0 %v2391, 64
    %v2433 = vpop.permute.xlu0 %2432
    %v2434 = vrot.slane %v2431, 1
    %v2435 = vrot.slane %v2433, 1
    %2438 = vrot.lane.b32.xlu0 %v2390, 48
    %v2439 = vpop.permute.xlu0 %2438
    %2440 = vrot.lane.b32.xlu0 %v2391, 48
    %v2441 = vpop.permute.xlu0 %2440
    %v2442 = vrot.slane %v2439, 1
    %v2443 = vrot.slane %v2441, 1
    %v2446 = vmax.f32 %v2434, %v2442
    %v2447 = vmax.f32 %v2435, %v2443
    %2448 = vrot.lane.b32.xlu0 %v2390, 32
    %v2449 = vpop.permute.xlu0 %2448
    %2450 = vrot.lane.b32.xlu0 %v2391, 32
    %v2451 = vpop.permute.xlu0 %2450
    %v2452 = vrot.slane %v2449, 1
    %v2453 = vrot.slane %v2451, 1
    %2456 = vrot.lane.b32.xlu0 %v2390, 16
    %v2457 = vpop.permute.xlu0 %2456
    %2458 = vrot.lane.b32.xlu0 %v2391, 16
    %v2459 = vpop.permute.xlu0 %2458
    %v2460 = vrot.slane %v2457, 1
    %v2461 = vrot.slane %v2459, 1
    %v2464 = vmax.f32 %v2452, %v2460
    %v2465 = vmax.f32 %v2453, %v2461
    %v2466 = vrot.slane %v2390, 2
    %v2467 = vrot.slane %v2391, 2
    %v2470 = vrot.slane %v2395, 2
    %v2471 = vrot.slane %v2397, 2
    %v2474 = vmax.f32 %v2466, %v2470
    %v2475 = vmax.f32 %v2467, %v2471
    %v2476 = vrot.slane %v2413, 2
    %v2477 = vrot.slane %v2415, 2
    %v2480 = vrot.slane %v2421, 2
    %v2481 = vrot.slane %v2423, 2
    %v2484 = vmax.f32 %v2476, %v2480
    %v2485 = vmax.f32 %v2477, %v2481
    %v2486 = vrot.slane %v2431, 2
    %v2487 = vrot.slane %v2433, 2
    %v2490 = vrot.slane %v2439, 2
    %v2491 = vrot.slane %v2441, 2
    %v2494 = vmax.f32 %v2486, %v2490
    %v2495 = vmax.f32 %v2487, %v2491
    %v2496 = vrot.slane %v2449, 2
    %v2497 = vrot.slane %v2451, 2
    %v2500 = vrot.slane %v2457, 2
    %v2501 = vrot.slane %v2459, 2
    %v2504 = vmax.f32 %v2496, %v2500
    %v2505 = vmax.f32 %v2497, %v2501
    %v2506 = vrot.slane %v2390, 3
    %v2507 = vrot.slane %v2391, 3
    %v2510 = vrot.slane %v2395, 3
    %v2511 = vrot.slane %v2397, 3
    %v2514 = vmax.f32 %v2506, %v2510
    %v2515 = vmax.f32 %v2507, %v2511
    %v2516 = vrot.slane %v2413, 3
    %v2517 = vrot.slane %v2415, 3
    %v2520 = vrot.slane %v2421, 3
    %v2521 = vrot.slane %v2423, 3
    %v2524 = vmax.f32 %v2516, %v2520
    %v2525 = vmax.f32 %v2517, %v2521
    %v2528 = vcombine.low %v2400, %v2401
    %v2530 = vunpack.c.l.s4 1966171168
    %v2531 = vunpack.c.0.s8 %v2530
    %v2532 = vlaneseq
    %v2533 = vshrl.u32 %v2532, 7
    %v2534 = vsub.s32 %v2531, %v2533
    %v2535 = vrot.slane %v2528, %v2534
    %v2537 = vunpack.c.l.s4 1966171168
    %v2538 = vunpack.c.0.s8 %v2537
    %v2539 = vlaneseq
    %v2540 = vshrl.u32 %v2539, 7
    %v2541 = vsub.s32 %v2538, %v2540
    %v2542 = vrot.slane %v2535, %v2541
    %2544 = vrot.lane.b32.xlu0 %v2542, 112
    %v2545 = vpop.permute.xlu0 %2544
    %2547 = vrot.lane.b32.xlu0 %v2542, 96
    %v2548 = vpop.permute.xlu0 %2547
    %2550 = vrot.lane.b32.xlu0 %v2542, 80
    %v2551 = vpop.permute.xlu0 %2550
    %v2555 = vcombine.low %v2410, %v2411
    %v2557 = vunpack.c.l.s4 1966171168
    %v2558 = vunpack.c.0.s8 %v2557
    %v2559 = vlaneseq
    %v2560 = vshrl.u32 %v2559, 7
    %v2561 = vsub.s32 %v2558, %v2560
    %v2562 = vrot.slane %v2555, %v2561
    %v2564 = vunpack.c.l.s4 1966171168
    %v2565 = vunpack.c.0.s8 %v2564
    %v2566 = vlaneseq
    %v2567 = vshrl.u32 %v2566, 7
    %v2568 = vsub.s32 %v2565, %v2567
    %v2569 = vrot.slane %v2562, %v2568
    %2570 = vrot.lane.b32.xlu0 %v2569, 64
    %v2571 = vpop.permute.xlu0 %2570
    %v2575 = vcombine.low %v2428, %v2429
    %v2577 = vunpack.c.l.s4 1966171168
    %v2578 = vunpack.c.0.s8 %v2577
    %v2579 = vlaneseq
    %v2580 = vshrl.u32 %v2579, 7
    %v2581 = vsub.s32 %v2578, %v2580
    %v2582 = vrot.slane %v2575, %v2581
    %v2584 = vunpack.c.l.s4 1966171168
    %v2585 = vunpack.c.0.s8 %v2584
    %v2586 = vlaneseq
    %v2587 = vshrl.u32 %v2586, 7
    %v2588 = vsub.s32 %v2585, %v2587
    %v2589 = vrot.slane %v2582, %v2588
    %2590 = vrot.lane.b32.xlu0 %v2589, 80
    %v2591 = vpop.permute.xlu0 %2590
    %v2595 = vcombine.low %v2446, %v2447
    %v2597 = vunpack.c.l.s4 1966171168
    %v2598 = vunpack.c.0.s8 %v2597
    %v2599 = vlaneseq
    %v2600 = vshrl.u32 %v2599, 7
    %v2601 = vsub.s32 %v2598, %v2600
    %v2602 = vrot.slane %v2595, %v2601
    %v2604 = vunpack.c.l.s4 1966171168
    %v2605 = vunpack.c.0.s8 %v2604
    %v2606 = vlaneseq
    %v2607 = vshrl.u32 %v2606, 7
    %v2608 = vsub.s32 %v2605, %v2607
    %v2609 = vrot.slane %v2602, %v2608
    %2610 = vrot.lane.b32.xlu0 %v2609, 96
    %v2611 = vpop.permute.xlu0 %2610
    %v2615 = vcombine.low %v2464, %v2465
    %v2617 = vunpack.c.l.s4 1966171168
    %v2618 = vunpack.c.0.s8 %v2617
    %v2619 = vlaneseq
    %v2620 = vshrl.u32 %v2619, 7
    %v2621 = vsub.s32 %v2618, %v2620
    %v2622 = vrot.slane %v2615, %v2621
    %v2624 = vunpack.c.l.s4 1966171168
    %v2625 = vunpack.c.0.s8 %v2624
    %v2626 = vlaneseq
    %v2627 = vshrl.u32 %v2626, 7
    %v2628 = vsub.s32 %v2625, %v2627
    %v2629 = vrot.slane %v2622, %v2628
    %2630 = vrot.lane.b32.xlu0 %v2629, 112
    %v2631 = vpop.permute.xlu0 %2630
    %v2635 = vcombine.low %v2474, %v2475
    %v2637 = vunpack.c.l.s4 1966171168
    %v2638 = vunpack.c.0.s8 %v2637
    %v2639 = vlaneseq
    %v2640 = vshrl.u32 %v2639, 7
    %v2641 = vsub.s32 %v2638, %v2640
    %v2642 = vrot.slane %v2635, %v2641
    %v2644 = vunpack.c.l.s4 1966171168
    %v2645 = vunpack.c.0.s8 %v2644
    %v2646 = vlaneseq
    %v2647 = vshrl.u32 %v2646, 7
    %v2648 = vsub.s32 %v2645, %v2647
    %v2649 = vrot.slane %v2642, %v2648
    %v2653 = vcombine.low %v2484, %v2485
    %v2655 = vunpack.c.l.s4 1966171168
    %v2656 = vunpack.c.0.s8 %v2655
    %v2657 = vlaneseq
    %v2658 = vshrl.u32 %v2657, 7
    %v2659 = vsub.s32 %v2656, %v2658
    %v2660 = vrot.slane %v2653, %v2659
    %v2662 = vunpack.c.l.s4 1966171168
    %v2663 = vunpack.c.0.s8 %v2662
    %v2664 = vlaneseq
    %v2665 = vshrl.u32 %v2664, 7
    %v2666 = vsub.s32 %v2663, %v2665
    %v2667 = vrot.slane %v2660, %v2666
    %2668 = vrot.lane.b32.xlu0 %v2667, 16
    %v2669 = vpop.permute.xlu0 %2668
    %v2673 = vcombine.low %v2494, %v2495
    %v2675 = vunpack.c.l.s4 1966171168
    %v2676 = vunpack.c.0.s8 %v2675
    %v2677 = vlaneseq
    %v2678 = vshrl.u32 %v2677, 7
    %v2679 = vsub.s32 %v2676, %v2678
    %v2680 = vrot.slane %v2673, %v2679
    %v2682 = vunpack.c.l.s4 1966171168
    %v2683 = vunpack.c.0.s8 %v2682
    %v2684 = vlaneseq
    %v2685 = vshrl.u32 %v2684, 7
    %v2686 = vsub.s32 %v2683, %v2685
    %v2687 = vrot.slane %v2680, %v2686
    %2688 = vrot.lane.b32.xlu0 %v2687, 32
    %v2689 = vpop.permute.xlu0 %2688
    %v2693 = vcombine.low %v2504, %v2505
    %v2695 = vunpack.c.l.s4 1966171168
    %v2696 = vunpack.c.0.s8 %v2695
    %v2697 = vlaneseq
    %v2698 = vshrl.u32 %v2697, 7
    %v2699 = vsub.s32 %v2696, %v2698
    %v2700 = vrot.slane %v2693, %v2699
    %v2702 = vunpack.c.l.s4 1966171168
    %v2703 = vunpack.c.0.s8 %v2702
    %v2704 = vlaneseq
    %v2705 = vshrl.u32 %v2704, 7
    %v2706 = vsub.s32 %v2703, %v2705
    %v2707 = vrot.slane %v2700, %v2706
    %2708 = vrot.lane.b32.xlu0 %v2707, 48
    %v2709 = vpop.permute.xlu0 %2708
    %v2713 = vcombine.low %v2514, %v2515
    %v2715 = vunpack.c.l.s4 1966171168
    %v2716 = vunpack.c.0.s8 %v2715
    %v2717 = vlaneseq
    %v2718 = vshrl.u32 %v2717, 7
    %v2719 = vsub.s32 %v2716, %v2718
    %v2720 = vrot.slane %v2713, %v2719
    %v2722 = vunpack.c.l.s4 1966171168
    %v2723 = vunpack.c.0.s8 %v2722
    %v2724 = vlaneseq
    %v2725 = vshrl.u32 %v2724, 7
    %v2726 = vsub.s32 %v2723, %v2725
    %v2727 = vrot.slane %v2720, %v2726
    %2728 = vrot.lane.b32.xlu0 %v2727, 64
    %v2729 = vpop.permute.xlu0 %2728
    %v2733 = vcombine.low %v2524, %v2525
    %v2735 = vunpack.c.l.s4 1966171168
    %v2736 = vunpack.c.0.s8 %v2735
    %v2737 = vlaneseq
    %v2738 = vshrl.u32 %v2737, 7
    %v2739 = vsub.s32 %v2736, %v2738
    %v2740 = vrot.slane %v2733, %v2739
    %v2742 = vunpack.c.l.s4 1966171168
    %v2743 = vunpack.c.0.s8 %v2742
    %v2744 = vlaneseq
    %v2745 = vshrl.u32 %v2744, 7
    %v2746 = vsub.s32 %v2743, %v2745
    %v2747 = vrot.slane %v2740, %v2746
    %2748 = vrot.lane.b32.xlu0 %v2747, 80
    %v2749 = vpop.permute.xlu0 %2748
    %v2751 = vsel %vm1055, %v2542, %v2545
    %v2752 = vsel %vm27, %v2751, %v2548
    %v2753 = vsel %vm1058, %v2752, %v2551
    %v2754 = vsel %vm234, %v2753, %v2571
    %v2755 = vsel %vm1061, %v2754, %v2591
    %v2756 = vsel %vm243, %v2755, %v2611
    %v2757 = vsel %vm1064, %v2756, %v2631
    %v2758 = vsel %vm1055, %v2649, %v2669
    %v2759 = vsel %vm27, %v2758, %v2689
    %v2760 = vsel %vm1058, %v2759, %v2709
    %v2761 = vsel %vm234, %v2760, %v2729
    %v2762 = vsel %vm1061, %v2761, %v2749
    %v2765 = vcombine.low %v2757, %v2762
    %v2767 = vunpack.c.l.s4 1966171168
    %v2768 = vunpack.c.0.s8 %v2767
    %v2769 = vlaneseq
    %v2770 = vshrl.u32 %v2769, 7
    %v2771 = vsub.s32 %v2768, %v2770
    %v2772 = vrot.slane %v2765, %v2771
    %v2773 = vcombine.high %v2772, %v2772
    %v2775 = vunpack.c.l.s4 1966171168
    %v2776 = vunpack.c.0.s8 %v2775
    %v2777 = vlaneseq
    %v2778 = vshrl.u32 %v2777, 7
    %v2779 = vsub.s32 %v2776, %v2778
    %v2780 = vrot.slane %v2772, %v2779
    %v2782 = vunpack.c.l.s4 1966171168
    %v2783 = vunpack.c.0.s8 %v2782
    %v2784 = vlaneseq
    %v2785 = vshrl.u32 %v2784, 7
    %v2786 = vsub.s32 %v2783, %v2785
    %v2787 = vrot.slane %v2773, %v2786
    %2788 = vrot.lane.b32.xlu0 %v2780, 32
    %v2789 = vpop.permute.xlu0 %2788
    %2790 = vrot.lane.b32.xlu0 %v2787, 32
    %v2791 = vpop.permute.xlu0 %2790
    %v2792 = vrot.slane %v2789, 7
    %v2793 = vrot.slane %v2791, 7
    %v2794 = vsel %vm27, %v2792, %v2789
    %v2795 = vsel %vm27, %v2793, %v2791
    %s2798 = scalar_lea.vmem [#allocation4], 6
    %2799 = vst.msk [vmem:[%s2798] ss:$8 sm:$0x3] %vm1109, %v2794
    %2800 = vst.msk [vmem:[%s2798] ss:$8 sm:$0x0] %vm1109, %v2794
    %s2801 = scalar_lea.vmem [#allocation4], 78
    %2802 = vst.msk [vmem:[%s2801] ss:$8 sm:$0x3] %vm1109, %v2795
    %2803 = vst.msk [vmem:[%s2801] ss:$8 sm:$0x0] %vm1109, %v2795
    %s2804 = scalar_lea.vmem [#allocation3], 34
    %v2805 = vld [vmem:[%s2804] ss:$8 sm:$0xf]
    %s2806 = scalar_lea.vmem [#allocation3], 162
    %v2807 = vld [vmem:[%s2806] ss:$8 sm:$0xf]
    %s2808 = scalar_lea.vmem [#allocation3], 35
    %v2809 = vld [vmem:[%s2808] ss:$8 sm:$0xf]
    %s2810 = scalar_lea.vmem [#allocation3], 163
    %v2811 = vld [vmem:[%s2810] ss:$8 sm:$0xf]
    %v2812 = vmax.f32 %v2805, %v2809
    %v2813 = vmax.f32 %v2807, %v2811
    %2816 = vrot.lane.b32.xlu0 %v2812, 112
    %v2817 = vpop.permute.xlu0 %2816
    %2818 = vrot.lane.b32.xlu0 %v2813, 112
    %v2819 = vpop.permute.xlu0 %2818
    %v2822 = vmax.f32 %v2812, %v2817
    %v2823 = vmax.f32 %v2813, %v2819
    %v2824 = vrot.slane %v2812, 1
    %v2825 = vrot.slane %v2813, 1
    %v2828 = vrot.slane %v2817, 1
    %v2829 = vrot.slane %v2819, 1
    %v2832 = vmax.f32 %v2824, %v2828
    %v2833 = vmax.f32 %v2825, %v2829
    %2834 = vrot.lane.b32.xlu0 %v2812, 96
    %v2835 = vpop.permute.xlu0 %2834
    %2836 = vrot.lane.b32.xlu0 %v2813, 96
    %v2837 = vpop.permute.xlu0 %2836
    %v2838 = vrot.slane %v2835, 1
    %v2839 = vrot.slane %v2837, 1
    %2842 = vrot.lane.b32.xlu0 %v2812, 80
    %v2843 = vpop.permute.xlu0 %2842
    %2844 = vrot.lane.b32.xlu0 %v2813, 80
    %v2845 = vpop.permute.xlu0 %2844
    %v2846 = vrot.slane %v2843, 1
    %v2847 = vrot.slane %v2845, 1
    %v2850 = vmax.f32 %v2838, %v2846
    %v2851 = vmax.f32 %v2839, %v2847
    %2852 = vrot.lane.b32.xlu0 %v2812, 64
    %v2853 = vpop.permute.xlu0 %2852
    %2854 = vrot.lane.b32.xlu0 %v2813, 64
    %v2855 = vpop.permute.xlu0 %2854
    %v2856 = vrot.slane %v2853, 1
    %v2857 = vrot.slane %v2855, 1
    %2860 = vrot.lane.b32.xlu0 %v2812, 48
    %v2861 = vpop.permute.xlu0 %2860
    %2862 = vrot.lane.b32.xlu0 %v2813, 48
    %v2863 = vpop.permute.xlu0 %2862
    %v2864 = vrot.slane %v2861, 1
    %v2865 = vrot.slane %v2863, 1
    %v2868 = vmax.f32 %v2856, %v2864
    %v2869 = vmax.f32 %v2857, %v2865
    %2870 = vrot.lane.b32.xlu0 %v2812, 32
    %v2871 = vpop.permute.xlu0 %2870
    %2872 = vrot.lane.b32.xlu0 %v2813, 32
    %v2873 = vpop.permute.xlu0 %2872
    %v2874 = vrot.slane %v2871, 1
    %v2875 = vrot.slane %v2873, 1
    %2878 = vrot.lane.b32.xlu0 %v2812, 16
    %v2879 = vpop.permute.xlu0 %2878
    %2880 = vrot.lane.b32.xlu0 %v2813, 16
    %v2881 = vpop.permute.xlu0 %2880
    %v2882 = vrot.slane %v2879, 1
    %v2883 = vrot.slane %v2881, 1
    %v2886 = vmax.f32 %v2874, %v2882
    %v2887 = vmax.f32 %v2875, %v2883
    %v2888 = vrot.slane %v2812, 2
    %v2889 = vrot.slane %v2813, 2
    %v2892 = vrot.slane %v2817, 2
    %v2893 = vrot.slane %v2819, 2
    %v2896 = vmax.f32 %v2888, %v2892
    %v2897 = vmax.f32 %v2889, %v2893
    %v2898 = vrot.slane %v2835, 2
    %v2899 = vrot.slane %v2837, 2
    %v2902 = vrot.slane %v2843, 2
    %v2903 = vrot.slane %v2845, 2
    %v2906 = vmax.f32 %v2898, %v2902
    %v2907 = vmax.f32 %v2899, %v2903
    %v2908 = vrot.slane %v2853, 2
    %v2909 = vrot.slane %v2855, 2
    %v2912 = vrot.slane %v2861, 2
    %v2913 = vrot.slane %v2863, 2
    %v2916 = vmax.f32 %v2908, %v2912
    %v2917 = vmax.f32 %v2909, %v2913
    %v2918 = vrot.slane %v2871, 2
    %v2919 = vrot.slane %v2873, 2
    %v2922 = vrot.slane %v2879, 2
    %v2923 = vrot.slane %v2881, 2
    %v2926 = vmax.f32 %v2918, %v2922
    %v2927 = vmax.f32 %v2919, %v2923
    %v2928 = vrot.slane %v2812, 3
    %v2929 = vrot.slane %v2813, 3
    %v2932 = vrot.slane %v2817, 3
    %v2933 = vrot.slane %v2819, 3
    %v2936 = vmax.f32 %v2928, %v2932
    %v2937 = vmax.f32 %v2929, %v2933
    %v2938 = vrot.slane %v2835, 3
    %v2939 = vrot.slane %v2837, 3
    %v2942 = vrot.slane %v2843, 3
    %v2943 = vrot.slane %v2845, 3
    %v2946 = vmax.f32 %v2938, %v2942
    %v2947 = vmax.f32 %v2939, %v2943
    %v2950 = vcombine.low %v2822, %v2823
    %v2952 = vunpack.c.l.s4 1966171168
    %v2953 = vunpack.c.0.s8 %v2952
    %v2954 = vlaneseq
    %v2955 = vshrl.u32 %v2954, 7
    %v2956 = vsub.s32 %v2953, %v2955
    %v2957 = vrot.slane %v2950, %v2956
    %v2959 = vunpack.c.l.s4 1966171168
    %v2960 = vunpack.c.0.s8 %v2959
    %v2961 = vlaneseq
    %v2962 = vshrl.u32 %v2961, 7
    %v2963 = vsub.s32 %v2960, %v2962
    %v2964 = vrot.slane %v2957, %v2963
    %2966 = vrot.lane.b32.xlu0 %v2964, 112
    %v2967 = vpop.permute.xlu0 %2966
    %2969 = vrot.lane.b32.xlu0 %v2964, 96
    %v2970 = vpop.permute.xlu0 %2969
    %2972 = vrot.lane.b32.xlu0 %v2964, 80
    %v2973 = vpop.permute.xlu0 %2972
    %v2977 = vcombine.low %v2832, %v2833
    %v2979 = vunpack.c.l.s4 1966171168
    %v2980 = vunpack.c.0.s8 %v2979
    %v2981 = vlaneseq
    %v2982 = vshrl.u32 %v2981, 7
    %v2983 = vsub.s32 %v2980, %v2982
    %v2984 = vrot.slane %v2977, %v2983
    %v2986 = vunpack.c.l.s4 1966171168
    %v2987 = vunpack.c.0.s8 %v2986
    %v2988 = vlaneseq
    %v2989 = vshrl.u32 %v2988, 7
    %v2990 = vsub.s32 %v2987, %v2989
    %v2991 = vrot.slane %v2984, %v2990
    %2992 = vrot.lane.b32.xlu0 %v2991, 64
    %v2993 = vpop.permute.xlu0 %2992
    %v2997 = vcombine.low %v2850, %v2851
    %v2999 = vunpack.c.l.s4 1966171168
    %v3000 = vunpack.c.0.s8 %v2999
    %v3001 = vlaneseq
    %v3002 = vshrl.u32 %v3001, 7
    %v3003 = vsub.s32 %v3000, %v3002
    %v3004 = vrot.slane %v2997, %v3003
    %v3006 = vunpack.c.l.s4 1966171168
    %v3007 = vunpack.c.0.s8 %v3006
    %v3008 = vlaneseq
    %v3009 = vshrl.u32 %v3008, 7
    %v3010 = vsub.s32 %v3007, %v3009
    %v3011 = vrot.slane %v3004, %v3010
    %3012 = vrot.lane.b32.xlu0 %v3011, 80
    %v3013 = vpop.permute.xlu0 %3012
    %v3017 = vcombine.low %v2868, %v2869
    %v3019 = vunpack.c.l.s4 1966171168
    %v3020 = vunpack.c.0.s8 %v3019
    %v3021 = vlaneseq
    %v3022 = vshrl.u32 %v3021, 7
    %v3023 = vsub.s32 %v3020, %v3022
    %v3024 = vrot.slane %v3017, %v3023
    %v3026 = vunpack.c.l.s4 1966171168
    %v3027 = vunpack.c.0.s8 %v3026
    %v3028 = vlaneseq
    %v3029 = vshrl.u32 %v3028, 7
    %v3030 = vsub.s32 %v3027, %v3029
    %v3031 = vrot.slane %v3024, %v3030
    %3032 = vrot.lane.b32.xlu0 %v3031, 96
    %v3033 = vpop.permute.xlu0 %3032
    %v3037 = vcombine.low %v2886, %v2887
    %v3039 = vunpack.c.l.s4 1966171168
    %v3040 = vunpack.c.0.s8 %v3039
    %v3041 = vlaneseq
    %v3042 = vshrl.u32 %v3041, 7
    %v3043 = vsub.s32 %v3040, %v3042
    %v3044 = vrot.slane %v3037, %v3043
    %v3046 = vunpack.c.l.s4 1966171168
    %v3047 = vunpack.c.0.s8 %v3046
    %v3048 = vlaneseq
    %v3049 = vshrl.u32 %v3048, 7
    %v3050 = vsub.s32 %v3047, %v3049
    %v3051 = vrot.slane %v3044, %v3050
    %3052 = vrot.lane.b32.xlu0 %v3051, 112
    %v3053 = vpop.permute.xlu0 %3052
    %v3057 = vcombine.low %v2896, %v2897
    %v3059 = vunpack.c.l.s4 1966171168
    %v3060 = vunpack.c.0.s8 %v3059
    %v3061 = vlaneseq
    %v3062 = vshrl.u32 %v3061, 7
    %v3063 = vsub.s32 %v3060, %v3062
    %v3064 = vrot.slane %v3057, %v3063
    %v3066 = vunpack.c.l.s4 1966171168
    %v3067 = vunpack.c.0.s8 %v3066
    %v3068 = vlaneseq
    %v3069 = vshrl.u32 %v3068, 7
    %v3070 = vsub.s32 %v3067, %v3069
    %v3071 = vrot.slane %v3064, %v3070
    %v3075 = vcombine.low %v2906, %v2907
    %v3077 = vunpack.c.l.s4 1966171168
    %v3078 = vunpack.c.0.s8 %v3077
    %v3079 = vlaneseq
    %v3080 = vshrl.u32 %v3079, 7
    %v3081 = vsub.s32 %v3078, %v3080
    %v3082 = vrot.slane %v3075, %v3081
    %v3084 = vunpack.c.l.s4 1966171168
    %v3085 = vunpack.c.0.s8 %v3084
    %v3086 = vlaneseq
    %v3087 = vshrl.u32 %v3086, 7
    %v3088 = vsub.s32 %v3085, %v3087
    %v3089 = vrot.slane %v3082, %v3088
    %3090 = vrot.lane.b32.xlu0 %v3089, 16
    %v3091 = vpop.permute.xlu0 %3090
    %v3095 = vcombine.low %v2916, %v2917
    %v3097 = vunpack.c.l.s4 1966171168
    %v3098 = vunpack.c.0.s8 %v3097
    %v3099 = vlaneseq
    %v3100 = vshrl.u32 %v3099, 7
    %v3101 = vsub.s32 %v3098, %v3100
    %v3102 = vrot.slane %v3095, %v3101
    %v3104 = vunpack.c.l.s4 1966171168
    %v3105 = vunpack.c.0.s8 %v3104
    %v3106 = vlaneseq
    %v3107 = vshrl.u32 %v3106, 7
    %v3108 = vsub.s32 %v3105, %v3107
    %v3109 = vrot.slane %v3102, %v3108
    %3110 = vrot.lane.b32.xlu0 %v3109, 32
    %v3111 = vpop.permute.xlu0 %3110
    %v3115 = vcombine.low %v2926, %v2927
    %v3117 = vunpack.c.l.s4 1966171168
    %v3118 = vunpack.c.0.s8 %v3117
    %v3119 = vlaneseq
    %v3120 = vshrl.u32 %v3119, 7
    %v3121 = vsub.s32 %v3118, %v3120
    %v3122 = vrot.slane %v3115, %v3121
    %v3124 = vunpack.c.l.s4 1966171168
    %v3125 = vunpack.c.0.s8 %v3124
    %v3126 = vlaneseq
    %v3127 = vshrl.u32 %v3126, 7
    %v3128 = vsub.s32 %v3125, %v3127
    %v3129 = vrot.slane %v3122, %v3128
    %3130 = vrot.lane.b32.xlu0 %v3129, 48
    %v3131 = vpop.permute.xlu0 %3130
    %v3135 = vcombine.low %v2936, %v2937
    %v3137 = vunpack.c.l.s4 1966171168
    %v3138 = vunpack.c.0.s8 %v3137
    %v3139 = vlaneseq
    %v3140 = vshrl.u32 %v3139, 7
    %v3141 = vsub.s32 %v3138, %v3140
    %v3142 = vrot.slane %v3135, %v3141
    %v3144 = vunpack.c.l.s4 1966171168
    %v3145 = vunpack.c.0.s8 %v3144
    %v3146 = vlaneseq
    %v3147 = vshrl.u32 %v3146, 7
    %v3148 = vsub.s32 %v3145, %v3147
    %v3149 = vrot.slane %v3142, %v3148
    %3150 = vrot.lane.b32.xlu0 %v3149, 64
    %v3151 = vpop.permute.xlu0 %3150
    %v3155 = vcombine.low %v2946, %v2947
    %v3157 = vunpack.c.l.s4 1966171168
    %v3158 = vunpack.c.0.s8 %v3157
    %v3159 = vlaneseq
    %v3160 = vshrl.u32 %v3159, 7
    %v3161 = vsub.s32 %v3158, %v3160
    %v3162 = vrot.slane %v3155, %v3161
    %v3164 = vunpack.c.l.s4 1966171168
    %v3165 = vunpack.c.0.s8 %v3164
    %v3166 = vlaneseq
    %v3167 = vshrl.u32 %v3166, 7
    %v3168 = vsub.s32 %v3165, %v3167
    %v3169 = vrot.slane %v3162, %v3168
    %3170 = vrot.lane.b32.xlu0 %v3169, 80
    %v3171 = vpop.permute.xlu0 %3170
    %v3173 = vsel %vm1055, %v2964, %v2967
    %v3174 = vsel %vm27, %v3173, %v2970
    %v3175 = vsel %vm1058, %v3174, %v2973
    %v3176 = vsel %vm234, %v3175, %v2993
    %v3177 = vsel %vm1061, %v3176, %v3013
    %v3178 = vsel %vm243, %v3177, %v3033
    %v3179 = vsel %vm1064, %v3178, %v3053
    %v3180 = vsel %vm1055, %v3071, %v3091
    %v3181 = vsel %vm27, %v3180, %v3111
    %v3182 = vsel %vm1058, %v3181, %v3131
    %v3183 = vsel %vm234, %v3182, %v3151
    %v3184 = vsel %vm1061, %v3183, %v3171
    %v3187 = vcombine.low %v3179, %v3184
    %v3189 = vunpack.c.l.s4 1966171168
    %v3190 = vunpack.c.0.s8 %v3189
    %v3191 = vlaneseq
    %v3192 = vshrl.u32 %v3191, 7
    %v3193 = vsub.s32 %v3190, %v3192
    %v3194 = vrot.slane %v3187, %v3193
    %v3195 = vcombine.high %v3194, %v3194
    %v3197 = vunpack.c.l.s4 1966171168
    %v3198 = vunpack.c.0.s8 %v3197
    %v3199 = vlaneseq
    %v3200 = vshrl.u32 %v3199, 7
    %v3201 = vsub.s32 %v3198, %v3200
    %v3202 = vrot.slane %v3194, %v3201
    %v3204 = vunpack.c.l.s4 1966171168
    %v3205 = vunpack.c.0.s8 %v3204
    %v3206 = vlaneseq
    %v3207 = vshrl.u32 %v3206, 7
    %v3208 = vsub.s32 %v3205, %v3207
    %v3209 = vrot.slane %v3195, %v3208
    %3210 = vrot.lane.b32.xlu0 %v3202, 32
    %v3211 = vpop.permute.xlu0 %3210
    %3212 = vrot.lane.b32.xlu0 %v3209, 32
    %v3213 = vpop.permute.xlu0 %3212
    %v3214 = vrot.slane %v3211, 7
    %v3215 = vrot.slane %v3213, 7
    %v3216 = vsel %vm27, %v3214, %v3211
    %v3217 = vsel %vm27, %v3215, %v3213
    %s3220 = scalar_lea.vmem [#allocation4], 7
    %3221 = vst.msk [vmem:[%s3220] ss:$8 sm:$0x3] %vm1109, %v3216
    %3222 = vst.msk [vmem:[%s3220] ss:$8 sm:$0x0] %vm1109, %v3216
    %s3223 = scalar_lea.vmem [#allocation4], 79
    %3224 = vst.msk [vmem:[%s3223] ss:$8 sm:$0x3] %vm1109, %v3217
    %3225 = vst.msk [vmem:[%s3223] ss:$8 sm:$0x0] %vm1109, %v3217
    %s3226 = scalar_lea.vmem [#allocation3], 36
    %v3227 = vld [vmem:[%s3226] ss:$8 sm:$0xf]
    %s3228 = scalar_lea.vmem [#allocation3], 164
    %v3229 = vld [vmem:[%s3228] ss:$8 sm:$0xf]
    %s3230 = scalar_lea.vmem [#allocation3], 37
    %v3231 = vld [vmem:[%s3230] ss:$8 sm:$0xf]
    %s3232 = scalar_lea.vmem [#allocation3], 165
    %v3233 = vld [vmem:[%s3232] ss:$8 sm:$0xf]
    %v3234 = vmax.f32 %v3227, %v3231
    %v3235 = vmax.f32 %v3229, %v3233
    %3238 = vrot.lane.b32.xlu0 %v3234, 112
    %v3239 = vpop.permute.xlu0 %3238
    %3240 = vrot.lane.b32.xlu0 %v3235, 112
    %v3241 = vpop.permute.xlu0 %3240
    %v3244 = vmax.f32 %v3234, %v3239
    %v3245 = vmax.f32 %v3235, %v3241
    %v3246 = vrot.slane %v3234, 1
    %v3247 = vrot.slane %v3235, 1
    %v3250 = vrot.slane %v3239, 1
    %v3251 = vrot.slane %v3241, 1
    %v3254 = vmax.f32 %v3246, %v3250
    %v3255 = vmax.f32 %v3247, %v3251
    %3256 = vrot.lane.b32.xlu0 %v3234, 96
    %v3257 = vpop.permute.xlu0 %3256
    %3258 = vrot.lane.b32.xlu0 %v3235, 96
    %v3259 = vpop.permute.xlu0 %3258
    %v3260 = vrot.slane %v3257, 1
    %v3261 = vrot.slane %v3259, 1
    %3264 = vrot.lane.b32.xlu0 %v3234, 80
    %v3265 = vpop.permute.xlu0 %3264
    %3266 = vrot.lane.b32.xlu0 %v3235, 80
    %v3267 = vpop.permute.xlu0 %3266
    %v3268 = vrot.slane %v3265, 1
    %v3269 = vrot.slane %v3267, 1
    %v3272 = vmax.f32 %v3260, %v3268
    %v3273 = vmax.f32 %v3261, %v3269
    %3274 = vrot.lane.b32.xlu0 %v3234, 64
    %v3275 = vpop.permute.xlu0 %3274
    %3276 = vrot.lane.b32.xlu0 %v3235, 64
    %v3277 = vpop.permute.xlu0 %3276
    %v3278 = vrot.slane %v3275, 1
    %v3279 = vrot.slane %v3277, 1
    %3282 = vrot.lane.b32.xlu0 %v3234, 48
    %v3283 = vpop.permute.xlu0 %3282
    %3284 = vrot.lane.b32.xlu0 %v3235, 48
    %v3285 = vpop.permute.xlu0 %3284
    %v3286 = vrot.slane %v3283, 1
    %v3287 = vrot.slane %v3285, 1
    %v3290 = vmax.f32 %v3278, %v3286
    %v3291 = vmax.f32 %v3279, %v3287
    %3292 = vrot.lane.b32.xlu0 %v3234, 32
    %v3293 = vpop.permute.xlu0 %3292
    %3294 = vrot.lane.b32.xlu0 %v3235, 32
    %v3295 = vpop.permute.xlu0 %3294
    %v3296 = vrot.slane %v3293, 1
    %v3297 = vrot.slane %v3295, 1
    %3300 = vrot.lane.b32.xlu0 %v3234, 16
    %v3301 = vpop.permute.xlu0 %3300
    %3302 = vrot.lane.b32.xlu0 %v3235, 16
    %v3303 = vpop.permute.xlu0 %3302
    %v3304 = vrot.slane %v3301, 1
    %v3305 = vrot.slane %v3303, 1
    %v3308 = vmax.f32 %v3296, %v3304
    %v3309 = vmax.f32 %v3297, %v3305
    %v3310 = vrot.slane %v3234, 2
    %v3311 = vrot.slane %v3235, 2
    %v3314 = vrot.slane %v3239, 2
    %v3315 = vrot.slane %v3241, 2
    %v3318 = vmax.f32 %v3310, %v3314
    %v3319 = vmax.f32 %v3311, %v3315
    %v3320 = vrot.slane %v3257, 2
    %v3321 = vrot.slane %v3259, 2
    %v3324 = vrot.slane %v3265, 2
    %v3325 = vrot.slane %v3267, 2
    %v3328 = vmax.f32 %v3320, %v3324
    %v3329 = vmax.f32 %v3321, %v3325
    %v3330 = vrot.slane %v3275, 2
    %v3331 = vrot.slane %v3277, 2
    %v3334 = vrot.slane %v3283, 2
    %v3335 = vrot.slane %v3285, 2
    %v3338 = vmax.f32 %v3330, %v3334
    %v3339 = vmax.f32 %v3331, %v3335
    %v3340 = vrot.slane %v3293, 2
    %v3341 = vrot.slane %v3295, 2
    %v3344 = vrot.slane %v3301, 2
    %v3345 = vrot.slane %v3303, 2
    %v3348 = vmax.f32 %v3340, %v3344
    %v3349 = vmax.f32 %v3341, %v3345
    %v3350 = vrot.slane %v3234, 3
    %v3351 = vrot.slane %v3235, 3
    %v3354 = vrot.slane %v3239, 3
    %v3355 = vrot.slane %v3241, 3
    %v3358 = vmax.f32 %v3350, %v3354
    %v3359 = vmax.f32 %v3351, %v3355
    %v3360 = vrot.slane %v3257, 3
    %v3361 = vrot.slane %v3259, 3
    %v3364 = vrot.slane %v3265, 3
    %v3365 = vrot.slane %v3267, 3
    %v3368 = vmax.f32 %v3360, %v3364
    %v3369 = vmax.f32 %v3361, %v3365
    %v3372 = vcombine.low %v3244, %v3245
    %v3374 = vunpack.c.l.s4 1966171168
    %v3375 = vunpack.c.0.s8 %v3374
    %v3376 = vlaneseq
    %v3377 = vshrl.u32 %v3376, 7
    %v3378 = vsub.s32 %v3375, %v3377
    %v3379 = vrot.slane %v3372, %v3378
    %v3381 = vunpack.c.l.s4 1966171168
    %v3382 = vunpack.c.0.s8 %v3381
    %v3383 = vlaneseq
    %v3384 = vshrl.u32 %v3383, 7
    %v3385 = vsub.s32 %v3382, %v3384
    %v3386 = vrot.slane %v3379, %v3385
    %3388 = vrot.lane.b32.xlu0 %v3386, 112
    %v3389 = vpop.permute.xlu0 %3388
    %3391 = vrot.lane.b32.xlu0 %v3386, 96
    %v3392 = vpop.permute.xlu0 %3391
    %3394 = vrot.lane.b32.xlu0 %v3386, 80
    %v3395 = vpop.permute.xlu0 %3394
    %v3399 = vcombine.low %v3254, %v3255
    %v3401 = vunpack.c.l.s4 1966171168
    %v3402 = vunpack.c.0.s8 %v3401
    %v3403 = vlaneseq
    %v3404 = vshrl.u32 %v3403, 7
    %v3405 = vsub.s32 %v3402, %v3404
    %v3406 = vrot.slane %v3399, %v3405
    %v3408 = vunpack.c.l.s4 1966171168
    %v3409 = vunpack.c.0.s8 %v3408
    %v3410 = vlaneseq
    %v3411 = vshrl.u32 %v3410, 7
    %v3412 = vsub.s32 %v3409, %v3411
    %v3413 = vrot.slane %v3406, %v3412
    %3414 = vrot.lane.b32.xlu0 %v3413, 64
    %v3415 = vpop.permute.xlu0 %3414
    %v3419 = vcombine.low %v3272, %v3273
    %v3421 = vunpack.c.l.s4 1966171168
    %v3422 = vunpack.c.0.s8 %v3421
    %v3423 = vlaneseq
    %v3424 = vshrl.u32 %v3423, 7
    %v3425 = vsub.s32 %v3422, %v3424
    %v3426 = vrot.slane %v3419, %v3425
    %v3428 = vunpack.c.l.s4 1966171168
    %v3429 = vunpack.c.0.s8 %v3428
    %v3430 = vlaneseq
    %v3431 = vshrl.u32 %v3430, 7
    %v3432 = vsub.s32 %v3429, %v3431
    %v3433 = vrot.slane %v3426, %v3432
    %3434 = vrot.lane.b32.xlu0 %v3433, 80
    %v3435 = vpop.permute.xlu0 %3434
    %v3439 = vcombine.low %v3290, %v3291
    %v3441 = vunpack.c.l.s4 1966171168
    %v3442 = vunpack.c.0.s8 %v3441
    %v3443 = vlaneseq
    %v3444 = vshrl.u32 %v3443, 7
    %v3445 = vsub.s32 %v3442, %v3444
    %v3446 = vrot.slane %v3439, %v3445
    %v3448 = vunpack.c.l.s4 1966171168
    %v3449 = vunpack.c.0.s8 %v3448
    %v3450 = vlaneseq
    %v3451 = vshrl.u32 %v3450, 7
    %v3452 = vsub.s32 %v3449, %v3451
    %v3453 = vrot.slane %v3446, %v3452
    %3454 = vrot.lane.b32.xlu0 %v3453, 96
    %v3455 = vpop.permute.xlu0 %3454
    %v3459 = vcombine.low %v3308, %v3309
    %v3461 = vunpack.c.l.s4 1966171168
    %v3462 = vunpack.c.0.s8 %v3461
    %v3463 = vlaneseq
    %v3464 = vshrl.u32 %v3463, 7
    %v3465 = vsub.s32 %v3462, %v3464
    %v3466 = vrot.slane %v3459, %v3465
    %v3468 = vunpack.c.l.s4 1966171168
    %v3469 = vunpack.c.0.s8 %v3468
    %v3470 = vlaneseq
    %v3471 = vshrl.u32 %v3470, 7
    %v3472 = vsub.s32 %v3469, %v3471
    %v3473 = vrot.slane %v3466, %v3472
    %3474 = vrot.lane.b32.xlu0 %v3473, 112
    %v3475 = vpop.permute.xlu0 %3474
    %v3479 = vcombine.low %v3318, %v3319
    %v3481 = vunpack.c.l.s4 1966171168
    %v3482 = vunpack.c.0.s8 %v3481
    %v3483 = vlaneseq
    %v3484 = vshrl.u32 %v3483, 7
    %v3485 = vsub.s32 %v3482, %v3484
    %v3486 = vrot.slane %v3479, %v3485
    %v3488 = vunpack.c.l.s4 1966171168
    %v3489 = vunpack.c.0.s8 %v3488
    %v3490 = vlaneseq
    %v3491 = vshrl.u32 %v3490, 7
    %v3492 = vsub.s32 %v3489, %v3491
    %v3493 = vrot.slane %v3486, %v3492
    %v3497 = vcombine.low %v3328, %v3329
    %v3499 = vunpack.c.l.s4 1966171168
    %v3500 = vunpack.c.0.s8 %v3499
    %v3501 = vlaneseq
    %v3502 = vshrl.u32 %v3501, 7
    %v3503 = vsub.s32 %v3500, %v3502
    %v3504 = vrot.slane %v3497, %v3503
    %v3506 = vunpack.c.l.s4 1966171168
    %v3507 = vunpack.c.0.s8 %v3506
    %v3508 = vlaneseq
    %v3509 = vshrl.u32 %v3508, 7
    %v3510 = vsub.s32 %v3507, %v3509
    %v3511 = vrot.slane %v3504, %v3510
    %3512 = vrot.lane.b32.xlu0 %v3511, 16
    %v3513 = vpop.permute.xlu0 %3512
    %v3517 = vcombine.low %v3338, %v3339
    %v3519 = vunpack.c.l.s4 1966171168
    %v3520 = vunpack.c.0.s8 %v3519
    %v3521 = vlaneseq
    %v3522 = vshrl.u32 %v3521, 7
    %v3523 = vsub.s32 %v3520, %v3522
    %v3524 = vrot.slane %v3517, %v3523
    %v3526 = vunpack.c.l.s4 1966171168
    %v3527 = vunpack.c.0.s8 %v3526
    %v3528 = vlaneseq
    %v3529 = vshrl.u32 %v3528, 7
    %v3530 = vsub.s32 %v3527, %v3529
    %v3531 = vrot.slane %v3524, %v3530
    %3532 = vrot.lane.b32.xlu0 %v3531, 32
    %v3533 = vpop.permute.xlu0 %3532
    %v3537 = vcombine.low %v3348, %v3349
    %v3539 = vunpack.c.l.s4 1966171168
    %v3540 = vunpack.c.0.s8 %v3539
    %v3541 = vlaneseq
    %v3542 = vshrl.u32 %v3541, 7
    %v3543 = vsub.s32 %v3540, %v3542
    %v3544 = vrot.slane %v3537, %v3543
    %v3546 = vunpack.c.l.s4 1966171168
    %v3547 = vunpack.c.0.s8 %v3546
    %v3548 = vlaneseq
    %v3549 = vshrl.u32 %v3548, 7
    %v3550 = vsub.s32 %v3547, %v3549
    %v3551 = vrot.slane %v3544, %v3550
    %3552 = vrot.lane.b32.xlu0 %v3551, 48
    %v3553 = vpop.permute.xlu0 %3552
    %v3557 = vcombine.low %v3358, %v3359
    %v3559 = vunpack.c.l.s4 1966171168
    %v3560 = vunpack.c.0.s8 %v3559
    %v3561 = vlaneseq
    %v3562 = vshrl.u32 %v3561, 7
    %v3563 = vsub.s32 %v3560, %v3562
    %v3564 = vrot.slane %v3557, %v3563
    %v3566 = vunpack.c.l.s4 1966171168
    %v3567 = vunpack.c.0.s8 %v3566
    %v3568 = vlaneseq
    %v3569 = vshrl.u32 %v3568, 7
    %v3570 = vsub.s32 %v3567, %v3569
    %v3571 = vrot.slane %v3564, %v3570
    %3572 = vrot.lane.b32.xlu0 %v3571, 64
    %v3573 = vpop.permute.xlu0 %3572
    %v3577 = vcombine.low %v3368, %v3369
    %v3579 = vunpack.c.l.s4 1966171168
    %v3580 = vunpack.c.0.s8 %v3579
    %v3581 = vlaneseq
    %v3582 = vshrl.u32 %v3581, 7
    %v3583 = vsub.s32 %v3580, %v3582
    %v3584 = vrot.slane %v3577, %v3583
    %v3586 = vunpack.c.l.s4 1966171168
    %v3587 = vunpack.c.0.s8 %v3586
    %v3588 = vlaneseq
    %v3589 = vshrl.u32 %v3588, 7
    %v3590 = vsub.s32 %v3587, %v3589
    %v3591 = vrot.slane %v3584, %v3590
    %3592 = vrot.lane.b32.xlu0 %v3591, 80
    %v3593 = vpop.permute.xlu0 %3592
    %v3595 = vsel %vm1055, %v3386, %v3389
    %v3596 = vsel %vm27, %v3595, %v3392
    %v3597 = vsel %vm1058, %v3596, %v3395
    %v3598 = vsel %vm234, %v3597, %v3415
    %v3599 = vsel %vm1061, %v3598, %v3435
    %v3600 = vsel %vm243, %v3599, %v3455
    %v3601 = vsel %vm1064, %v3600, %v3475
    %v3602 = vsel %vm1055, %v3493, %v3513
    %v3603 = vsel %vm27, %v3602, %v3533
    %v3604 = vsel %vm1058, %v3603, %v3553
    %v3605 = vsel %vm234, %v3604, %v3573
    %v3606 = vsel %vm1061, %v3605, %v3593
    %v3609 = vcombine.low %v3601, %v3606
    %v3611 = vunpack.c.l.s4 1966171168
    %v3612 = vunpack.c.0.s8 %v3611
    %v3613 = vlaneseq
    %v3614 = vshrl.u32 %v3613, 7
    %v3615 = vsub.s32 %v3612, %v3614
    %v3616 = vrot.slane %v3609, %v3615
    %v3617 = vcombine.high %v3616, %v3616
    %v3619 = vunpack.c.l.s4 1966171168
    %v3620 = vunpack.c.0.s8 %v3619
    %v3621 = vlaneseq
    %v3622 = vshrl.u32 %v3621, 7
    %v3623 = vsub.s32 %v3620, %v3622
    %v3624 = vrot.slane %v3616, %v3623
    %v3626 = vunpack.c.l.s4 1966171168
    %v3627 = vunpack.c.0.s8 %v3626
    %v3628 = vlaneseq
    %v3629 = vshrl.u32 %v3628, 7
    %v3630 = vsub.s32 %v3627, %v3629
    %v3631 = vrot.slane %v3617, %v3630
    %3632 = vrot.lane.b32.xlu0 %v3624, 32
    %v3633 = vpop.permute.xlu0 %3632
    %3634 = vrot.lane.b32.xlu0 %v3631, 32
    %v3635 = vpop.permute.xlu0 %3634
    %v3636 = vrot.slane %v3633, 7
    %v3637 = vrot.slane %v3635, 7
    %v3638 = vsel %vm27, %v3636, %v3633
    %v3639 = vsel %vm27, %v3637, %v3635
    %s3642 = scalar_lea.vmem [#allocation4], 24
    %3643 = vst.msk [vmem:[%s3642] ss:$8 sm:$0x3] %vm1109, %v3638
    %3644 = vst.msk [vmem:[%s3642] ss:$8 sm:$0x0] %vm1109, %v3638
    %s3645 = scalar_lea.vmem [#allocation4], 96
    %3646 = vst.msk [vmem:[%s3645] ss:$8 sm:$0x3] %vm1109, %v3639
    %3647 = vst.msk [vmem:[%s3645] ss:$8 sm:$0x0] %vm1109, %v3639
    %s3648 = scalar_lea.vmem [#allocation3], 38
    %v3649 = vld [vmem:[%s3648] ss:$8 sm:$0xf]
    %s3650 = scalar_lea.vmem [#allocation3], 166
    %v3651 = vld [vmem:[%s3650] ss:$8 sm:$0xf]
    %s3652 = scalar_lea.vmem [#allocation3], 39
    %v3653 = vld [vmem:[%s3652] ss:$8 sm:$0xf]
    %s3654 = scalar_lea.vmem [#allocation3], 167
    %v3655 = vld [vmem:[%s3654] ss:$8 sm:$0xf]
    %v3656 = vmax.f32 %v3649, %v3653
    %v3657 = vmax.f32 %v3651, %v3655
    %3660 = vrot.lane.b32.xlu0 %v3656, 112
    %v3661 = vpop.permute.xlu0 %3660
    %3662 = vrot.lane.b32.xlu0 %v3657, 112
    %v3663 = vpop.permute.xlu0 %3662
    %v3666 = vmax.f32 %v3656, %v3661
    %v3667 = vmax.f32 %v3657, %v3663
    %v3668 = vrot.slane %v3656, 1
    %v3669 = vrot.slane %v3657, 1
    %v3672 = vrot.slane %v3661, 1
    %v3673 = vrot.slane %v3663, 1
    %v3676 = vmax.f32 %v3668, %v3672
    %v3677 = vmax.f32 %v3669, %v3673
    %3678 = vrot.lane.b32.xlu0 %v3656, 96
    %v3679 = vpop.permute.xlu0 %3678
    %3680 = vrot.lane.b32.xlu0 %v3657, 96
    %v3681 = vpop.permute.xlu0 %3680
    %v3682 = vrot.slane %v3679, 1
    %v3683 = vrot.slane %v3681, 1
    %3686 = vrot.lane.b32.xlu0 %v3656, 80
    %v3687 = vpop.permute.xlu0 %3686
    %3688 = vrot.lane.b32.xlu0 %v3657, 80
    %v3689 = vpop.permute.xlu0 %3688
    %v3690 = vrot.slane %v3687, 1
    %v3691 = vrot.slane %v3689, 1
    %v3694 = vmax.f32 %v3682, %v3690
    %v3695 = vmax.f32 %v3683, %v3691
    %3696 = vrot.lane.b32.xlu0 %v3656, 64
    %v3697 = vpop.permute.xlu0 %3696
    %3698 = vrot.lane.b32.xlu0 %v3657, 64
    %v3699 = vpop.permute.xlu0 %3698
    %v3700 = vrot.slane %v3697, 1
    %v3701 = vrot.slane %v3699, 1
    %3704 = vrot.lane.b32.xlu0 %v3656, 48
    %v3705 = vpop.permute.xlu0 %3704
    %3706 = vrot.lane.b32.xlu0 %v3657, 48
    %v3707 = vpop.permute.xlu0 %3706
    %v3708 = vrot.slane %v3705, 1
    %v3709 = vrot.slane %v3707, 1
    %v3712 = vmax.f32 %v3700, %v3708
    %v3713 = vmax.f32 %v3701, %v3709
    %3714 = vrot.lane.b32.xlu0 %v3656, 32
    %v3715 = vpop.permute.xlu0 %3714
    %3716 = vrot.lane.b32.xlu0 %v3657, 32
    %v3717 = vpop.permute.xlu0 %3716
    %v3718 = vrot.slane %v3715, 1
    %v3719 = vrot.slane %v3717, 1
    %3722 = vrot.lane.b32.xlu0 %v3656, 16
    %v3723 = vpop.permute.xlu0 %3722
    %3724 = vrot.lane.b32.xlu0 %v3657, 16
    %v3725 = vpop.permute.xlu0 %3724
    %v3726 = vrot.slane %v3723, 1
    %v3727 = vrot.slane %v3725, 1
    %v3730 = vmax.f32 %v3718, %v3726
    %v3731 = vmax.f32 %v3719, %v3727
    %v3732 = vrot.slane %v3656, 2
    %v3733 = vrot.slane %v3657, 2
    %v3736 = vrot.slane %v3661, 2
    %v3737 = vrot.slane %v3663, 2
    %v3740 = vmax.f32 %v3732, %v3736
    %v3741 = vmax.f32 %v3733, %v3737
    %v3742 = vrot.slane %v3679, 2
    %v3743 = vrot.slane %v3681, 2
    %v3746 = vrot.slane %v3687, 2
    %v3747 = vrot.slane %v3689, 2
    %v3750 = vmax.f32 %v3742, %v3746
    %v3751 = vmax.f32 %v3743, %v3747
    %v3752 = vrot.slane %v3697, 2
    %v3753 = vrot.slane %v3699, 2
    %v3756 = vrot.slane %v3705, 2
    %v3757 = vrot.slane %v3707, 2
    %v3760 = vmax.f32 %v3752, %v3756
    %v3761 = vmax.f32 %v3753, %v3757
    %v3762 = vrot.slane %v3715, 2
    %v3763 = vrot.slane %v3717, 2
    %v3766 = vrot.slane %v3723, 2
    %v3767 = vrot.slane %v3725, 2
    %v3770 = vmax.f32 %v3762, %v3766
    %v3771 = vmax.f32 %v3763, %v3767
    %v3772 = vrot.slane %v3656, 3
    %v3773 = vrot.slane %v3657, 3
    %v3776 = vrot.slane %v3661, 3
    %v3777 = vrot.slane %v3663, 3
    %v3780 = vmax.f32 %v3772, %v3776
    %v3781 = vmax.f32 %v3773, %v3777
    %v3782 = vrot.slane %v3679, 3
    %v3783 = vrot.slane %v3681, 3
    %v3786 = vrot.slane %v3687, 3
    %v3787 = vrot.slane %v3689, 3
    %v3790 = vmax.f32 %v3782, %v3786
    %v3791 = vmax.f32 %v3783, %v3787
    %v3794 = vcombine.low %v3666, %v3667
    %v3796 = vunpack.c.l.s4 1966171168
    %v3797 = vunpack.c.0.s8 %v3796
    %v3798 = vlaneseq
    %v3799 = vshrl.u32 %v3798, 7
    %v3800 = vsub.s32 %v3797, %v3799
    %v3801 = vrot.slane %v3794, %v3800
    %v3803 = vunpack.c.l.s4 1966171168
    %v3804 = vunpack.c.0.s8 %v3803
    %v3805 = vlaneseq
    %v3806 = vshrl.u32 %v3805, 7
    %v3807 = vsub.s32 %v3804, %v3806
    %v3808 = vrot.slane %v3801, %v3807
    %3810 = vrot.lane.b32.xlu0 %v3808, 112
    %v3811 = vpop.permute.xlu0 %3810
    %3813 = vrot.lane.b32.xlu0 %v3808, 96
    %v3814 = vpop.permute.xlu0 %3813
    %3816 = vrot.lane.b32.xlu0 %v3808, 80
    %v3817 = vpop.permute.xlu0 %3816
    %v3821 = vcombine.low %v3676, %v3677
    %v3823 = vunpack.c.l.s4 1966171168
    %v3824 = vunpack.c.0.s8 %v3823
    %v3825 = vlaneseq
    %v3826 = vshrl.u32 %v3825, 7
    %v3827 = vsub.s32 %v3824, %v3826
    %v3828 = vrot.slane %v3821, %v3827
    %v3830 = vunpack.c.l.s4 1966171168
    %v3831 = vunpack.c.0.s8 %v3830
    %v3832 = vlaneseq
    %v3833 = vshrl.u32 %v3832, 7
    %v3834 = vsub.s32 %v3831, %v3833
    %v3835 = vrot.slane %v3828, %v3834
    %3836 = vrot.lane.b32.xlu0 %v3835, 64
    %v3837 = vpop.permute.xlu0 %3836
    %v3841 = vcombine.low %v3694, %v3695
    %v3843 = vunpack.c.l.s4 1966171168
    %v3844 = vunpack.c.0.s8 %v3843
    %v3845 = vlaneseq
    %v3846 = vshrl.u32 %v3845, 7
    %v3847 = vsub.s32 %v3844, %v3846
    %v3848 = vrot.slane %v3841, %v3847
    %v3850 = vunpack.c.l.s4 1966171168
    %v3851 = vunpack.c.0.s8 %v3850
    %v3852 = vlaneseq
    %v3853 = vshrl.u32 %v3852, 7
    %v3854 = vsub.s32 %v3851, %v3853
    %v3855 = vrot.slane %v3848, %v3854
    %3856 = vrot.lane.b32.xlu0 %v3855, 80
    %v3857 = vpop.permute.xlu0 %3856
    %v3861 = vcombine.low %v3712, %v3713
    %v3863 = vunpack.c.l.s4 1966171168
    %v3864 = vunpack.c.0.s8 %v3863
    %v3865 = vlaneseq
    %v3866 = vshrl.u32 %v3865, 7
    %v3867 = vsub.s32 %v3864, %v3866
    %v3868 = vrot.slane %v3861, %v3867
    %v3870 = vunpack.c.l.s4 1966171168
    %v3871 = vunpack.c.0.s8 %v3870
    %v3872 = vlaneseq
    %v3873 = vshrl.u32 %v3872, 7
    %v3874 = vsub.s32 %v3871, %v3873
    %v3875 = vrot.slane %v3868, %v3874
    %3876 = vrot.lane.b32.xlu0 %v3875, 96
    %v3877 = vpop.permute.xlu0 %3876
    %v3881 = vcombine.low %v3730, %v3731
    %v3883 = vunpack.c.l.s4 1966171168
    %v3884 = vunpack.c.0.s8 %v3883
    %v3885 = vlaneseq
    %v3886 = vshrl.u32 %v3885, 7
    %v3887 = vsub.s32 %v3884, %v3886
    %v3888 = vrot.slane %v3881, %v3887
    %v3890 = vunpack.c.l.s4 1966171168
    %v3891 = vunpack.c.0.s8 %v3890
    %v3892 = vlaneseq
    %v3893 = vshrl.u32 %v3892, 7
    %v3894 = vsub.s32 %v3891, %v3893
    %v3895 = vrot.slane %v3888, %v3894
    %3896 = vrot.lane.b32.xlu0 %v3895, 112
    %v3897 = vpop.permute.xlu0 %3896
    %v3901 = vcombine.low %v3740, %v3741
    %v3903 = vunpack.c.l.s4 1966171168
    %v3904 = vunpack.c.0.s8 %v3903
    %v3905 = vlaneseq
    %v3906 = vshrl.u32 %v3905, 7
    %v3907 = vsub.s32 %v3904, %v3906
    %v3908 = vrot.slane %v3901, %v3907
    %v3910 = vunpack.c.l.s4 1966171168
    %v3911 = vunpack.c.0.s8 %v3910
    %v3912 = vlaneseq
    %v3913 = vshrl.u32 %v3912, 7
    %v3914 = vsub.s32 %v3911, %v3913
    %v3915 = vrot.slane %v3908, %v3914
    %v3919 = vcombine.low %v3750, %v3751
    %v3921 = vunpack.c.l.s4 1966171168
    %v3922 = vunpack.c.0.s8 %v3921
    %v3923 = vlaneseq
    %v3924 = vshrl.u32 %v3923, 7
    %v3925 = vsub.s32 %v3922, %v3924
    %v3926 = vrot.slane %v3919, %v3925
    %v3928 = vunpack.c.l.s4 1966171168
    %v3929 = vunpack.c.0.s8 %v3928
    %v3930 = vlaneseq
    %v3931 = vshrl.u32 %v3930, 7
    %v3932 = vsub.s32 %v3929, %v3931
    %v3933 = vrot.slane %v3926, %v3932
    %3934 = vrot.lane.b32.xlu0 %v3933, 16
    %v3935 = vpop.permute.xlu0 %3934
    %v3939 = vcombine.low %v3760, %v3761
    %v3941 = vunpack.c.l.s4 1966171168
    %v3942 = vunpack.c.0.s8 %v3941
    %v3943 = vlaneseq
    %v3944 = vshrl.u32 %v3943, 7
    %v3945 = vsub.s32 %v3942, %v3944
    %v3946 = vrot.slane %v3939, %v3945
    %v3948 = vunpack.c.l.s4 1966171168
    %v3949 = vunpack.c.0.s8 %v3948
    %v3950 = vlaneseq
    %v3951 = vshrl.u32 %v3950, 7
    %v3952 = vsub.s32 %v3949, %v3951
    %v3953 = vrot.slane %v3946, %v3952
    %3954 = vrot.lane.b32.xlu0 %v3953, 32
    %v3955 = vpop.permute.xlu0 %3954
    %v3959 = vcombine.low %v3770, %v3771
    %v3961 = vunpack.c.l.s4 1966171168
    %v3962 = vunpack.c.0.s8 %v3961
    %v3963 = vlaneseq
    %v3964 = vshrl.u32 %v3963, 7
    %v3965 = vsub.s32 %v3962, %v3964
    %v3966 = vrot.slane %v3959, %v3965
    %v3968 = vunpack.c.l.s4 1966171168
    %v3969 = vunpack.c.0.s8 %v3968
    %v3970 = vlaneseq
    %v3971 = vshrl.u32 %v3970, 7
    %v3972 = vsub.s32 %v3969, %v3971
    %v3973 = vrot.slane %v3966, %v3972
    %3974 = vrot.lane.b32.xlu0 %v3973, 48
    %v3975 = vpop.permute.xlu0 %3974
    %v3979 = vcombine.low %v3780, %v3781
    %v3981 = vunpack.c.l.s4 1966171168
    %v3982 = vunpack.c.0.s8 %v3981
    %v3983 = vlaneseq
    %v3984 = vshrl.u32 %v3983, 7
    %v3985 = vsub.s32 %v3982, %v3984
    %v3986 = vrot.slane %v3979, %v3985
    %v3988 = vunpack.c.l.s4 1966171168
    %v3989 = vunpack.c.0.s8 %v3988
    %v3990 = vlaneseq
    %v3991 = vshrl.u32 %v3990, 7
    %v3992 = vsub.s32 %v3989, %v3991
    %v3993 = vrot.slane %v3986, %v3992
    %3994 = vrot.lane.b32.xlu0 %v3993, 64
    %v3995 = vpop.permute.xlu0 %3994
    %v3999 = vcombine.low %v3790, %v3791
    %v4001 = vunpack.c.l.s4 1966171168
    %v4002 = vunpack.c.0.s8 %v4001
    %v4003 = vlaneseq
    %v4004 = vshrl.u32 %v4003, 7
    %v4005 = vsub.s32 %v4002, %v4004
    %v4006 = vrot.slane %v3999, %v4005
    %v4008 = vunpack.c.l.s4 1966171168
    %v4009 = vunpack.c.0.s8 %v4008
    %v4010 = vlaneseq
    %v4011 = vshrl.u32 %v4010, 7
    %v4012 = vsub.s32 %v4009, %v4011
    %v4013 = vrot.slane %v4006, %v4012
    %4014 = vrot.lane.b32.xlu0 %v4013, 80
    %v4015 = vpop.permute.xlu0 %4014
    %v4017 = vsel %vm1055, %v3808, %v3811
    %v4018 = vsel %vm27, %v4017, %v3814
    %v4019 = vsel %vm1058, %v4018, %v3817
    %v4020 = vsel %vm234, %v4019, %v3837
    %v4021 = vsel %vm1061, %v4020, %v3857
    %v4022 = vsel %vm243, %v4021, %v3877
    %v4023 = vsel %vm1064, %v4022, %v3897
    %v4024 = vsel %vm1055, %v3915, %v3935
    %v4025 = vsel %vm27, %v4024, %v3955
    %v4026 = vsel %vm1058, %v4025, %v3975
    %v4027 = vsel %vm234, %v4026, %v3995
    %v4028 = vsel %vm1061, %v4027, %v4015
    %v4031 = vcombine.low %v4023, %v4028
    %v4033 = vunpack.c.l.s4 1966171168
    %v4034 = vunpack.c.0.s8 %v4033
    %v4035 = vlaneseq
    %v4036 = vshrl.u32 %v4035, 7
    %v4037 = vsub.s32 %v4034, %v4036
    %v4038 = vrot.slane %v4031, %v4037
    %v4039 = vcombine.high %v4038, %v4038
    %v4041 = vunpack.c.l.s4 1966171168
    %v4042 = vunpack.c.0.s8 %v4041
    %v4043 = vlaneseq
    %v4044 = vshrl.u32 %v4043, 7
    %v4045 = vsub.s32 %v4042, %v4044
    %v4046 = vrot.slane %v4038, %v4045
    %v4048 = vunpack.c.l.s4 1966171168
    %v4049 = vunpack.c.0.s8 %v4048
    %v4050 = vlaneseq
    %v4051 = vshrl.u32 %v4050, 7
    %v4052 = vsub.s32 %v4049, %v4051
    %v4053 = vrot.slane %v4039, %v4052
    %4054 = vrot.lane.b32.xlu0 %v4046, 32
    %v4055 = vpop.permute.xlu0 %4054
    %4056 = vrot.lane.b32.xlu0 %v4053, 32
    %v4057 = vpop.permute.xlu0 %4056
    %v4058 = vrot.slane %v4055, 7
    %v4059 = vrot.slane %v4057, 7
    %v4060 = vsel %vm27, %v4058, %v4055
    %v4061 = vsel %vm27, %v4059, %v4057
    %s4064 = scalar_lea.vmem [#allocation4], 25
    %4065 = vst.msk [vmem:[%s4064] ss:$8 sm:$0x3] %vm1109, %v4060
    %4066 = vst.msk [vmem:[%s4064] ss:$8 sm:$0x0] %vm1109, %v4060
    %s4067 = scalar_lea.vmem [#allocation4], 97
    %4068 = vst.msk [vmem:[%s4067] ss:$8 sm:$0x3] %vm1109, %v4061
    %4069 = vst.msk [vmem:[%s4067] ss:$8 sm:$0x0] %vm1109, %v4061
    %s4070 = scalar_lea.vmem [#allocation3], 64
    %v4071 = vld [vmem:[%s4070] ss:$8 sm:$0xf]
    %s4072 = scalar_lea.vmem [#allocation3], 192
    %v4073 = vld [vmem:[%s4072] ss:$8 sm:$0xf]
    %s4074 = scalar_lea.vmem [#allocation3], 65
    %v4075 = vld [vmem:[%s4074] ss:$8 sm:$0xf]
    %s4076 = scalar_lea.vmem [#allocation3], 193
    %v4077 = vld [vmem:[%s4076] ss:$8 sm:$0xf]
    %v4078 = vmax.f32 %v4071, %v4075
    %v4079 = vmax.f32 %v4073, %v4077
    %4082 = vrot.lane.b32.xlu0 %v4078, 112
    %v4083 = vpop.permute.xlu0 %4082
    %4084 = vrot.lane.b32.xlu0 %v4079, 112
    %v4085 = vpop.permute.xlu0 %4084
    %v4088 = vmax.f32 %v4078, %v4083
    %v4089 = vmax.f32 %v4079, %v4085
    %v4090 = vrot.slane %v4078, 1
    %v4091 = vrot.slane %v4079, 1
    %v4094 = vrot.slane %v4083, 1
    %v4095 = vrot.slane %v4085, 1
    %v4098 = vmax.f32 %v4090, %v4094
    %v4099 = vmax.f32 %v4091, %v4095
    %4100 = vrot.lane.b32.xlu0 %v4078, 96
    %v4101 = vpop.permute.xlu0 %4100
    %4102 = vrot.lane.b32.xlu0 %v4079, 96
    %v4103 = vpop.permute.xlu0 %4102
    %v4104 = vrot.slane %v4101, 1
    %v4105 = vrot.slane %v4103, 1
    %4108 = vrot.lane.b32.xlu0 %v4078, 80
    %v4109 = vpop.permute.xlu0 %4108
    %4110 = vrot.lane.b32.xlu0 %v4079, 80
    %v4111 = vpop.permute.xlu0 %4110
    %v4112 = vrot.slane %v4109, 1
    %v4113 = vrot.slane %v4111, 1
    %v4116 = vmax.f32 %v4104, %v4112
    %v4117 = vmax.f32 %v4105, %v4113
    %4118 = vrot.lane.b32.xlu0 %v4078, 64
    %v4119 = vpop.permute.xlu0 %4118
    %4120 = vrot.lane.b32.xlu0 %v4079, 64
    %v4121 = vpop.permute.xlu0 %4120
    %v4122 = vrot.slane %v4119, 1
    %v4123 = vrot.slane %v4121, 1
    %4126 = vrot.lane.b32.xlu0 %v4078, 48
    %v4127 = vpop.permute.xlu0 %4126
    %4128 = vrot.lane.b32.xlu0 %v4079, 48
    %v4129 = vpop.permute.xlu0 %4128
    %v4130 = vrot.slane %v4127, 1
    %v4131 = vrot.slane %v4129, 1
    %v4134 = vmax.f32 %v4122, %v4130
    %v4135 = vmax.f32 %v4123, %v4131
    %4136 = vrot.lane.b32.xlu0 %v4078, 32
    %v4137 = vpop.permute.xlu0 %4136
    %4138 = vrot.lane.b32.xlu0 %v4079, 32
    %v4139 = vpop.permute.xlu0 %4138
    %v4140 = vrot.slane %v4137, 1
    %v4141 = vrot.slane %v4139, 1
    %4144 = vrot.lane.b32.xlu0 %v4078, 16
    %v4145 = vpop.permute.xlu0 %4144
    %4146 = vrot.lane.b32.xlu0 %v4079, 16
    %v4147 = vpop.permute.xlu0 %4146
    %v4148 = vrot.slane %v4145, 1
    %v4149 = vrot.slane %v4147, 1
    %v4152 = vmax.f32 %v4140, %v4148
    %v4153 = vmax.f32 %v4141, %v4149
    %v4154 = vrot.slane %v4078, 2
    %v4155 = vrot.slane %v4079, 2
    %v4158 = vrot.slane %v4083, 2
    %v4159 = vrot.slane %v4085, 2
    %v4162 = vmax.f32 %v4154, %v4158
    %v4163 = vmax.f32 %v4155, %v4159
    %v4164 = vrot.slane %v4101, 2
    %v4165 = vrot.slane %v4103, 2
    %v4168 = vrot.slane %v4109, 2
    %v4169 = vrot.slane %v4111, 2
    %v4172 = vmax.f32 %v4164, %v4168
    %v4173 = vmax.f32 %v4165, %v4169
    %v4174 = vrot.slane %v4119, 2
    %v4175 = vrot.slane %v4121, 2
    %v4178 = vrot.slane %v4127, 2
    %v4179 = vrot.slane %v4129, 2
    %v4182 = vmax.f32 %v4174, %v4178
    %v4183 = vmax.f32 %v4175, %v4179
    %v4184 = vrot.slane %v4137, 2
    %v4185 = vrot.slane %v4139, 2
    %v4188 = vrot.slane %v4145, 2
    %v4189 = vrot.slane %v4147, 2
    %v4192 = vmax.f32 %v4184, %v4188
    %v4193 = vmax.f32 %v4185, %v4189
    %v4194 = vrot.slane %v4078, 3
    %v4195 = vrot.slane %v4079, 3
    %v4198 = vrot.slane %v4083, 3
    %v4199 = vrot.slane %v4085, 3
    %v4202 = vmax.f32 %v4194, %v4198
    %v4203 = vmax.f32 %v4195, %v4199
    %v4204 = vrot.slane %v4101, 3
    %v4205 = vrot.slane %v4103, 3
    %v4208 = vrot.slane %v4109, 3
    %v4209 = vrot.slane %v4111, 3
    %v4212 = vmax.f32 %v4204, %v4208
    %v4213 = vmax.f32 %v4205, %v4209
    %v4216 = vcombine.low %v4088, %v4089
    %v4218 = vunpack.c.l.s4 1966171168
    %v4219 = vunpack.c.0.s8 %v4218
    %v4220 = vlaneseq
    %v4221 = vshrl.u32 %v4220, 7
    %v4222 = vsub.s32 %v4219, %v4221
    %v4223 = vrot.slane %v4216, %v4222
    %v4225 = vunpack.c.l.s4 1966171168
    %v4226 = vunpack.c.0.s8 %v4225
    %v4227 = vlaneseq
    %v4228 = vshrl.u32 %v4227, 7
    %v4229 = vsub.s32 %v4226, %v4228
    %v4230 = vrot.slane %v4223, %v4229
    %4232 = vrot.lane.b32.xlu0 %v4230, 112
    %v4233 = vpop.permute.xlu0 %4232
    %4235 = vrot.lane.b32.xlu0 %v4230, 96
    %v4236 = vpop.permute.xlu0 %4235
    %4238 = vrot.lane.b32.xlu0 %v4230, 80
    %v4239 = vpop.permute.xlu0 %4238
    %v4243 = vcombine.low %v4098, %v4099
    %v4245 = vunpack.c.l.s4 1966171168
    %v4246 = vunpack.c.0.s8 %v4245
    %v4247 = vlaneseq
    %v4248 = vshrl.u32 %v4247, 7
    %v4249 = vsub.s32 %v4246, %v4248
    %v4250 = vrot.slane %v4243, %v4249
    %v4252 = vunpack.c.l.s4 1966171168
    %v4253 = vunpack.c.0.s8 %v4252
    %v4254 = vlaneseq
    %v4255 = vshrl.u32 %v4254, 7
    %v4256 = vsub.s32 %v4253, %v4255
    %v4257 = vrot.slane %v4250, %v4256
    %4258 = vrot.lane.b32.xlu0 %v4257, 64
    %v4259 = vpop.permute.xlu0 %4258
    %v4263 = vcombine.low %v4116, %v4117
    %v4265 = vunpack.c.l.s4 1966171168
    %v4266 = vunpack.c.0.s8 %v4265
    %v4267 = vlaneseq
    %v4268 = vshrl.u32 %v4267, 7
    %v4269 = vsub.s32 %v4266, %v4268
    %v4270 = vrot.slane %v4263, %v4269
    %v4272 = vunpack.c.l.s4 1966171168
    %v4273 = vunpack.c.0.s8 %v4272
    %v4274 = vlaneseq
    %v4275 = vshrl.u32 %v4274, 7
    %v4276 = vsub.s32 %v4273, %v4275
    %v4277 = vrot.slane %v4270, %v4276
    %4278 = vrot.lane.b32.xlu0 %v4277, 80
    %v4279 = vpop.permute.xlu0 %4278
    %v4283 = vcombine.low %v4134, %v4135
    %v4285 = vunpack.c.l.s4 1966171168
    %v4286 = vunpack.c.0.s8 %v4285
    %v4287 = vlaneseq
    %v4288 = vshrl.u32 %v4287, 7
    %v4289 = vsub.s32 %v4286, %v4288
    %v4290 = vrot.slane %v4283, %v4289
    %v4292 = vunpack.c.l.s4 1966171168
    %v4293 = vunpack.c.0.s8 %v4292
    %v4294 = vlaneseq
    %v4295 = vshrl.u32 %v4294, 7
    %v4296 = vsub.s32 %v4293, %v4295
    %v4297 = vrot.slane %v4290, %v4296
    %4298 = vrot.lane.b32.xlu0 %v4297, 96
    %v4299 = vpop.permute.xlu0 %4298
    %v4303 = vcombine.low %v4152, %v4153
    %v4305 = vunpack.c.l.s4 1966171168
    %v4306 = vunpack.c.0.s8 %v4305
    %v4307 = vlaneseq
    %v4308 = vshrl.u32 %v4307, 7
    %v4309 = vsub.s32 %v4306, %v4308
    %v4310 = vrot.slane %v4303, %v4309
    %v4312 = vunpack.c.l.s4 1966171168
    %v4313 = vunpack.c.0.s8 %v4312
    %v4314 = vlaneseq
    %v4315 = vshrl.u32 %v4314, 7
    %v4316 = vsub.s32 %v4313, %v4315
    %v4317 = vrot.slane %v4310, %v4316
    %4318 = vrot.lane.b32.xlu0 %v4317, 112
    %v4319 = vpop.permute.xlu0 %4318
    %v4323 = vcombine.low %v4162, %v4163
    %v4325 = vunpack.c.l.s4 1966171168
    %v4326 = vunpack.c.0.s8 %v4325
    %v4327 = vlaneseq
    %v4328 = vshrl.u32 %v4327, 7
    %v4329 = vsub.s32 %v4326, %v4328
    %v4330 = vrot.slane %v4323, %v4329
    %v4332 = vunpack.c.l.s4 1966171168
    %v4333 = vunpack.c.0.s8 %v4332
    %v4334 = vlaneseq
    %v4335 = vshrl.u32 %v4334, 7
    %v4336 = vsub.s32 %v4333, %v4335
    %v4337 = vrot.slane %v4330, %v4336
    %v4341 = vcombine.low %v4172, %v4173
    %v4343 = vunpack.c.l.s4 1966171168
    %v4344 = vunpack.c.0.s8 %v4343
    %v4345 = vlaneseq
    %v4346 = vshrl.u32 %v4345, 7
    %v4347 = vsub.s32 %v4344, %v4346
    %v4348 = vrot.slane %v4341, %v4347
    %v4350 = vunpack.c.l.s4 1966171168
    %v4351 = vunpack.c.0.s8 %v4350
    %v4352 = vlaneseq
    %v4353 = vshrl.u32 %v4352, 7
    %v4354 = vsub.s32 %v4351, %v4353
    %v4355 = vrot.slane %v4348, %v4354
    %4356 = vrot.lane.b32.xlu0 %v4355, 16
    %v4357 = vpop.permute.xlu0 %4356
    %v4361 = vcombine.low %v4182, %v4183
    %v4363 = vunpack.c.l.s4 1966171168
    %v4364 = vunpack.c.0.s8 %v4363
    %v4365 = vlaneseq
    %v4366 = vshrl.u32 %v4365, 7
    %v4367 = vsub.s32 %v4364, %v4366
    %v4368 = vrot.slane %v4361, %v4367
    %v4370 = vunpack.c.l.s4 1966171168
    %v4371 = vunpack.c.0.s8 %v4370
    %v4372 = vlaneseq
    %v4373 = vshrl.u32 %v4372, 7
    %v4374 = vsub.s32 %v4371, %v4373
    %v4375 = vrot.slane %v4368, %v4374
    %4376 = vrot.lane.b32.xlu0 %v4375, 32
    %v4377 = vpop.permute.xlu0 %4376
    %v4381 = vcombine.low %v4192, %v4193
    %v4383 = vunpack.c.l.s4 1966171168
    %v4384 = vunpack.c.0.s8 %v4383
    %v4385 = vlaneseq
    %v4386 = vshrl.u32 %v4385, 7
    %v4387 = vsub.s32 %v4384, %v4386
    %v4388 = vrot.slane %v4381, %v4387
    %v4390 = vunpack.c.l.s4 1966171168
    %v4391 = vunpack.c.0.s8 %v4390
    %v4392 = vlaneseq
    %v4393 = vshrl.u32 %v4392, 7
    %v4394 = vsub.s32 %v4391, %v4393
    %v4395 = vrot.slane %v4388, %v4394
    %4396 = vrot.lane.b32.xlu0 %v4395, 48
    %v4397 = vpop.permute.xlu0 %4396
    %v4401 = vcombine.low %v4202, %v4203
    %v4403 = vunpack.c.l.s4 1966171168
    %v4404 = vunpack.c.0.s8 %v4403
    %v4405 = vlaneseq
    %v4406 = vshrl.u32 %v4405, 7
    %v4407 = vsub.s32 %v4404, %v4406
    %v4408 = vrot.slane %v4401, %v4407
    %v4410 = vunpack.c.l.s4 1966171168
    %v4411 = vunpack.c.0.s8 %v4410
    %v4412 = vlaneseq
    %v4413 = vshrl.u32 %v4412, 7
    %v4414 = vsub.s32 %v4411, %v4413
    %v4415 = vrot.slane %v4408, %v4414
    %4416 = vrot.lane.b32.xlu0 %v4415, 64
    %v4417 = vpop.permute.xlu0 %4416
    %v4421 = vcombine.low %v4212, %v4213
    %v4423 = vunpack.c.l.s4 1966171168
    %v4424 = vunpack.c.0.s8 %v4423
    %v4425 = vlaneseq
    %v4426 = vshrl.u32 %v4425, 7
    %v4427 = vsub.s32 %v4424, %v4426
    %v4428 = vrot.slane %v4421, %v4427
    %v4430 = vunpack.c.l.s4 1966171168
    %v4431 = vunpack.c.0.s8 %v4430
    %v4432 = vlaneseq
    %v4433 = vshrl.u32 %v4432, 7
    %v4434 = vsub.s32 %v4431, %v4433
    %v4435 = vrot.slane %v4428, %v4434
    %4436 = vrot.lane.b32.xlu0 %v4435, 80
    %v4437 = vpop.permute.xlu0 %4436
    %v4439 = vsel %vm1055, %v4230, %v4233
    %v4440 = vsel %vm27, %v4439, %v4236
    %v4441 = vsel %vm1058, %v4440, %v4239
    %v4442 = vsel %vm234, %v4441, %v4259
    %v4443 = vsel %vm1061, %v4442, %v4279
    %v4444 = vsel %vm243, %v4443, %v4299
    %v4445 = vsel %vm1064, %v4444, %v4319
    %v4446 = vsel %vm1055, %v4337, %v4357
    %v4447 = vsel %vm27, %v4446, %v4377
    %v4448 = vsel %vm1058, %v4447, %v4397
    %v4449 = vsel %vm234, %v4448, %v4417
    %v4450 = vsel %vm1061, %v4449, %v4437
    %v4453 = vcombine.low %v4445, %v4450
    %v4455 = vunpack.c.l.s4 1966171168
    %v4456 = vunpack.c.0.s8 %v4455
    %v4457 = vlaneseq
    %v4458 = vshrl.u32 %v4457, 7
    %v4459 = vsub.s32 %v4456, %v4458
    %v4460 = vrot.slane %v4453, %v4459
    %v4461 = vcombine.high %v4460, %v4460
    %v4463 = vunpack.c.l.s4 1966171168
    %v4464 = vunpack.c.0.s8 %v4463
    %v4465 = vlaneseq
    %v4466 = vshrl.u32 %v4465, 7
    %v4467 = vsub.s32 %v4464, %v4466
    %v4468 = vrot.slane %v4460, %v4467
    %v4470 = vunpack.c.l.s4 1966171168
    %v4471 = vunpack.c.0.s8 %v4470
    %v4472 = vlaneseq
    %v4473 = vshrl.u32 %v4472, 7
    %v4474 = vsub.s32 %v4471, %v4473
    %v4475 = vrot.slane %v4461, %v4474
    %4476 = vrot.lane.b32.xlu0 %v4468, 32
    %v4477 = vpop.permute.xlu0 %4476
    %4478 = vrot.lane.b32.xlu0 %v4475, 32
    %v4479 = vpop.permute.xlu0 %4478
    %v4480 = vrot.slane %v4477, 7
    %v4481 = vrot.slane %v4479, 7
    %v4482 = vsel %vm27, %v4480, %v4477
    %v4483 = vsel %vm27, %v4481, %v4479
    %s4486 = scalar_lea.vmem [#allocation4], 26
    %4487 = vst.msk [vmem:[%s4486] ss:$8 sm:$0x3] %vm1109, %v4482
    %4488 = vst.msk [vmem:[%s4486] ss:$8 sm:$0x0] %vm1109, %v4482
    %s4489 = scalar_lea.vmem [#allocation4], 98
    %4490 = vst.msk [vmem:[%s4489] ss:$8 sm:$0x3] %vm1109, %v4483
    %4491 = vst.msk [vmem:[%s4489] ss:$8 sm:$0x0] %vm1109, %v4483
    %s4492 = scalar_lea.vmem [#allocation3], 66
    %v4493 = vld [vmem:[%s4492] ss:$8 sm:$0xf]
    %s4494 = scalar_lea.vmem [#allocation3], 194
    %v4495 = vld [vmem:[%s4494] ss:$8 sm:$0xf]
    %s4496 = scalar_lea.vmem [#allocation3], 67
    %v4497 = vld [vmem:[%s4496] ss:$8 sm:$0xf]
    %s4498 = scalar_lea.vmem [#allocation3], 195
    %v4499 = vld [vmem:[%s4498] ss:$8 sm:$0xf]
    %v4500 = vmax.f32 %v4493, %v4497
    %v4501 = vmax.f32 %v4495, %v4499
    %4504 = vrot.lane.b32.xlu0 %v4500, 112
    %v4505 = vpop.permute.xlu0 %4504
    %4506 = vrot.lane.b32.xlu0 %v4501, 112
    %v4507 = vpop.permute.xlu0 %4506
    %v4510 = vmax.f32 %v4500, %v4505
    %v4511 = vmax.f32 %v4501, %v4507
    %v4512 = vrot.slane %v4500, 1
    %v4513 = vrot.slane %v4501, 1
    %v4516 = vrot.slane %v4505, 1
    %v4517 = vrot.slane %v4507, 1
    %v4520 = vmax.f32 %v4512, %v4516
    %v4521 = vmax.f32 %v4513, %v4517
    %4522 = vrot.lane.b32.xlu0 %v4500, 96
    %v4523 = vpop.permute.xlu0 %4522
    %4524 = vrot.lane.b32.xlu0 %v4501, 96
    %v4525 = vpop.permute.xlu0 %4524
    %v4526 = vrot.slane %v4523, 1
    %v4527 = vrot.slane %v4525, 1
    %4530 = vrot.lane.b32.xlu0 %v4500, 80
    %v4531 = vpop.permute.xlu0 %4530
    %4532 = vrot.lane.b32.xlu0 %v4501, 80
    %v4533 = vpop.permute.xlu0 %4532
    %v4534 = vrot.slane %v4531, 1
    %v4535 = vrot.slane %v4533, 1
    %v4538 = vmax.f32 %v4526, %v4534
    %v4539 = vmax.f32 %v4527, %v4535
    %4540 = vrot.lane.b32.xlu0 %v4500, 64
    %v4541 = vpop.permute.xlu0 %4540
    %4542 = vrot.lane.b32.xlu0 %v4501, 64
    %v4543 = vpop.permute.xlu0 %4542
    %v4544 = vrot.slane %v4541, 1
    %v4545 = vrot.slane %v4543, 1
    %4548 = vrot.lane.b32.xlu0 %v4500, 48
    %v4549 = vpop.permute.xlu0 %4548
    %4550 = vrot.lane.b32.xlu0 %v4501, 48
    %v4551 = vpop.permute.xlu0 %4550
    %v4552 = vrot.slane %v4549, 1
    %v4553 = vrot.slane %v4551, 1
    %v4556 = vmax.f32 %v4544, %v4552
    %v4557 = vmax.f32 %v4545, %v4553
    %4558 = vrot.lane.b32.xlu0 %v4500, 32
    %v4559 = vpop.permute.xlu0 %4558
    %4560 = vrot.lane.b32.xlu0 %v4501, 32
    %v4561 = vpop.permute.xlu0 %4560
    %v4562 = vrot.slane %v4559, 1
    %v4563 = vrot.slane %v4561, 1
    %4566 = vrot.lane.b32.xlu0 %v4500, 16
    %v4567 = vpop.permute.xlu0 %4566
    %4568 = vrot.lane.b32.xlu0 %v4501, 16
    %v4569 = vpop.permute.xlu0 %4568
    %v4570 = vrot.slane %v4567, 1
    %v4571 = vrot.slane %v4569, 1
    %v4574 = vmax.f32 %v4562, %v4570
    %v4575 = vmax.f32 %v4563, %v4571
    %v4576 = vrot.slane %v4500, 2
    %v4577 = vrot.slane %v4501, 2
    %v4580 = vrot.slane %v4505, 2
    %v4581 = vrot.slane %v4507, 2
    %v4584 = vmax.f32 %v4576, %v4580
    %v4585 = vmax.f32 %v4577, %v4581
    %v4586 = vrot.slane %v4523, 2
    %v4587 = vrot.slane %v4525, 2
    %v4590 = vrot.slane %v4531, 2
    %v4591 = vrot.slane %v4533, 2
    %v4594 = vmax.f32 %v4586, %v4590
    %v4595 = vmax.f32 %v4587, %v4591
    %v4596 = vrot.slane %v4541, 2
    %v4597 = vrot.slane %v4543, 2
    %v4600 = vrot.slane %v4549, 2
    %v4601 = vrot.slane %v4551, 2
    %v4604 = vmax.f32 %v4596, %v4600
    %v4605 = vmax.f32 %v4597, %v4601
    %v4606 = vrot.slane %v4559, 2
    %v4607 = vrot.slane %v4561, 2
    %v4610 = vrot.slane %v4567, 2
    %v4611 = vrot.slane %v4569, 2
    %v4614 = vmax.f32 %v4606, %v4610
    %v4615 = vmax.f32 %v4607, %v4611
    %v4616 = vrot.slane %v4500, 3
    %v4617 = vrot.slane %v4501, 3
    %v4620 = vrot.slane %v4505, 3
    %v4621 = vrot.slane %v4507, 3
    %v4624 = vmax.f32 %v4616, %v4620
    %v4625 = vmax.f32 %v4617, %v4621
    %v4626 = vrot.slane %v4523, 3
    %v4627 = vrot.slane %v4525, 3
    %v4630 = vrot.slane %v4531, 3
    %v4631 = vrot.slane %v4533, 3
    %v4634 = vmax.f32 %v4626, %v4630
    %v4635 = vmax.f32 %v4627, %v4631
    %v4638 = vcombine.low %v4510, %v4511
    %v4640 = vunpack.c.l.s4 1966171168
    %v4641 = vunpack.c.0.s8 %v4640
    %v4642 = vlaneseq
    %v4643 = vshrl.u32 %v4642, 7
    %v4644 = vsub.s32 %v4641, %v4643
    %v4645 = vrot.slane %v4638, %v4644
    %v4647 = vunpack.c.l.s4 1966171168
    %v4648 = vunpack.c.0.s8 %v4647
    %v4649 = vlaneseq
    %v4650 = vshrl.u32 %v4649, 7
    %v4651 = vsub.s32 %v4648, %v4650
    %v4652 = vrot.slane %v4645, %v4651
    %4654 = vrot.lane.b32.xlu0 %v4652, 112
    %v4655 = vpop.permute.xlu0 %4654
    %4657 = vrot.lane.b32.xlu0 %v4652, 96
    %v4658 = vpop.permute.xlu0 %4657
    %4660 = vrot.lane.b32.xlu0 %v4652, 80
    %v4661 = vpop.permute.xlu0 %4660
    %v4665 = vcombine.low %v4520, %v4521
    %v4667 = vunpack.c.l.s4 1966171168
    %v4668 = vunpack.c.0.s8 %v4667
    %v4669 = vlaneseq
    %v4670 = vshrl.u32 %v4669, 7
    %v4671 = vsub.s32 %v4668, %v4670
    %v4672 = vrot.slane %v4665, %v4671
    %v4674 = vunpack.c.l.s4 1966171168
    %v4675 = vunpack.c.0.s8 %v4674
    %v4676 = vlaneseq
    %v4677 = vshrl.u32 %v4676, 7
    %v4678 = vsub.s32 %v4675, %v4677
    %v4679 = vrot.slane %v4672, %v4678
    %4680 = vrot.lane.b32.xlu0 %v4679, 64
    %v4681 = vpop.permute.xlu0 %4680
    %v4685 = vcombine.low %v4538, %v4539
    %v4687 = vunpack.c.l.s4 1966171168
    %v4688 = vunpack.c.0.s8 %v4687
    %v4689 = vlaneseq
    %v4690 = vshrl.u32 %v4689, 7
    %v4691 = vsub.s32 %v4688, %v4690
    %v4692 = vrot.slane %v4685, %v4691
    %v4694 = vunpack.c.l.s4 1966171168
    %v4695 = vunpack.c.0.s8 %v4694
    %v4696 = vlaneseq
    %v4697 = vshrl.u32 %v4696, 7
    %v4698 = vsub.s32 %v4695, %v4697
    %v4699 = vrot.slane %v4692, %v4698
    %4700 = vrot.lane.b32.xlu0 %v4699, 80
    %v4701 = vpop.permute.xlu0 %4700
    %v4705 = vcombine.low %v4556, %v4557
    %v4707 = vunpack.c.l.s4 1966171168
    %v4708 = vunpack.c.0.s8 %v4707
    %v4709 = vlaneseq
    %v4710 = vshrl.u32 %v4709, 7
    %v4711 = vsub.s32 %v4708, %v4710
    %v4712 = vrot.slane %v4705, %v4711
    %v4714 = vunpack.c.l.s4 1966171168
    %v4715 = vunpack.c.0.s8 %v4714
    %v4716 = vlaneseq
    %v4717 = vshrl.u32 %v4716, 7
    %v4718 = vsub.s32 %v4715, %v4717
    %v4719 = vrot.slane %v4712, %v4718
    %4720 = vrot.lane.b32.xlu0 %v4719, 96
    %v4721 = vpop.permute.xlu0 %4720
    %v4725 = vcombine.low %v4574, %v4575
    %v4727 = vunpack.c.l.s4 1966171168
    %v4728 = vunpack.c.0.s8 %v4727
    %v4729 = vlaneseq
    %v4730 = vshrl.u32 %v4729, 7
    %v4731 = vsub.s32 %v4728, %v4730
    %v4732 = vrot.slane %v4725, %v4731
    %v4734 = vunpack.c.l.s4 1966171168
    %v4735 = vunpack.c.0.s8 %v4734
    %v4736 = vlaneseq
    %v4737 = vshrl.u32 %v4736, 7
    %v4738 = vsub.s32 %v4735, %v4737
    %v4739 = vrot.slane %v4732, %v4738
    %4740 = vrot.lane.b32.xlu0 %v4739, 112
    %v4741 = vpop.permute.xlu0 %4740
    %v4745 = vcombine.low %v4584, %v4585
    %v4747 = vunpack.c.l.s4 1966171168
    %v4748 = vunpack.c.0.s8 %v4747
    %v4749 = vlaneseq
    %v4750 = vshrl.u32 %v4749, 7
    %v4751 = vsub.s32 %v4748, %v4750
    %v4752 = vrot.slane %v4745, %v4751
    %v4754 = vunpack.c.l.s4 1966171168
    %v4755 = vunpack.c.0.s8 %v4754
    %v4756 = vlaneseq
    %v4757 = vshrl.u32 %v4756, 7
    %v4758 = vsub.s32 %v4755, %v4757
    %v4759 = vrot.slane %v4752, %v4758
    %v4763 = vcombine.low %v4594, %v4595
    %v4765 = vunpack.c.l.s4 1966171168
    %v4766 = vunpack.c.0.s8 %v4765
    %v4767 = vlaneseq
    %v4768 = vshrl.u32 %v4767, 7
    %v4769 = vsub.s32 %v4766, %v4768
    %v4770 = vrot.slane %v4763, %v4769
    %v4772 = vunpack.c.l.s4 1966171168
    %v4773 = vunpack.c.0.s8 %v4772
    %v4774 = vlaneseq
    %v4775 = vshrl.u32 %v4774, 7
    %v4776 = vsub.s32 %v4773, %v4775
    %v4777 = vrot.slane %v4770, %v4776
    %4778 = vrot.lane.b32.xlu0 %v4777, 16
    %v4779 = vpop.permute.xlu0 %4778
    %v4783 = vcombine.low %v4604, %v4605
    %v4785 = vunpack.c.l.s4 1966171168
    %v4786 = vunpack.c.0.s8 %v4785
    %v4787 = vlaneseq
    %v4788 = vshrl.u32 %v4787, 7
    %v4789 = vsub.s32 %v4786, %v4788
    %v4790 = vrot.slane %v4783, %v4789
    %v4792 = vunpack.c.l.s4 1966171168
    %v4793 = vunpack.c.0.s8 %v4792
    %v4794 = vlaneseq
    %v4795 = vshrl.u32 %v4794, 7
    %v4796 = vsub.s32 %v4793, %v4795
    %v4797 = vrot.slane %v4790, %v4796
    %4798 = vrot.lane.b32.xlu0 %v4797, 32
    %v4799 = vpop.permute.xlu0 %4798
    %v4803 = vcombine.low %v4614, %v4615
    %v4805 = vunpack.c.l.s4 1966171168
    %v4806 = vunpack.c.0.s8 %v4805
    %v4807 = vlaneseq
    %v4808 = vshrl.u32 %v4807, 7
    %v4809 = vsub.s32 %v4806, %v4808
    %v4810 = vrot.slane %v4803, %v4809
    %v4812 = vunpack.c.l.s4 1966171168
    %v4813 = vunpack.c.0.s8 %v4812
    %v4814 = vlaneseq
    %v4815 = vshrl.u32 %v4814, 7
    %v4816 = vsub.s32 %v4813, %v4815
    %v4817 = vrot.slane %v4810, %v4816
    %4818 = vrot.lane.b32.xlu0 %v4817, 48
    %v4819 = vpop.permute.xlu0 %4818
    %v4823 = vcombine.low %v4624, %v4625
    %v4825 = vunpack.c.l.s4 1966171168
    %v4826 = vunpack.c.0.s8 %v4825
    %v4827 = vlaneseq
    %v4828 = vshrl.u32 %v4827, 7
    %v4829 = vsub.s32 %v4826, %v4828
    %v4830 = vrot.slane %v4823, %v4829
    %v4832 = vunpack.c.l.s4 1966171168
    %v4833 = vunpack.c.0.s8 %v4832
    %v4834 = vlaneseq
    %v4835 = vshrl.u32 %v4834, 7
    %v4836 = vsub.s32 %v4833, %v4835
    %v4837 = vrot.slane %v4830, %v4836
    %4838 = vrot.lane.b32.xlu0 %v4837, 64
    %v4839 = vpop.permute.xlu0 %4838
    %v4843 = vcombine.low %v4634, %v4635
    %v4845 = vunpack.c.l.s4 1966171168
    %v4846 = vunpack.c.0.s8 %v4845
    %v4847 = vlaneseq
    %v4848 = vshrl.u32 %v4847, 7
    %v4849 = vsub.s32 %v4846, %v4848
    %v4850 = vrot.slane %v4843, %v4849
    %v4852 = vunpack.c.l.s4 1966171168
    %v4853 = vunpack.c.0.s8 %v4852
    %v4854 = vlaneseq
    %v4855 = vshrl.u32 %v4854, 7
    %v4856 = vsub.s32 %v4853, %v4855
    %v4857 = vrot.slane %v4850, %v4856
    %4858 = vrot.lane.b32.xlu0 %v4857, 80
    %v4859 = vpop.permute.xlu0 %4858
    %v4861 = vsel %vm1055, %v4652, %v4655
    %v4862 = vsel %vm27, %v4861, %v4658
    %v4863 = vsel %vm1058, %v4862, %v4661
    %v4864 = vsel %vm234, %v4863, %v4681
    %v4865 = vsel %vm1061, %v4864, %v4701
    %v4866 = vsel %vm243, %v4865, %v4721
    %v4867 = vsel %vm1064, %v4866, %v4741
    %v4868 = vsel %vm1055, %v4759, %v4779
    %v4869 = vsel %vm27, %v4868, %v4799
    %v4870 = vsel %vm1058, %v4869, %v4819
    %v4871 = vsel %vm234, %v4870, %v4839
    %v4872 = vsel %vm1061, %v4871, %v4859
    %v4875 = vcombine.low %v4867, %v4872
    %v4877 = vunpack.c.l.s4 1966171168
    %v4878 = vunpack.c.0.s8 %v4877
    %v4879 = vlaneseq
    %v4880 = vshrl.u32 %v4879, 7
    %v4881 = vsub.s32 %v4878, %v4880
    %v4882 = vrot.slane %v4875, %v4881
    %v4883 = vcombine.high %v4882, %v4882
    %v4885 = vunpack.c.l.s4 1966171168
    %v4886 = vunpack.c.0.s8 %v4885
    %v4887 = vlaneseq
    %v4888 = vshrl.u32 %v4887, 7
    %v4889 = vsub.s32 %v4886, %v4888
    %v4890 = vrot.slane %v4882, %v4889
    %v4892 = vunpack.c.l.s4 1966171168
    %v4893 = vunpack.c.0.s8 %v4892
    %v4894 = vlaneseq
    %v4895 = vshrl.u32 %v4894, 7
    %v4896 = vsub.s32 %v4893, %v4895
    %v4897 = vrot.slane %v4883, %v4896
    %4898 = vrot.lane.b32.xlu0 %v4890, 32
    %v4899 = vpop.permute.xlu0 %4898
    %4900 = vrot.lane.b32.xlu0 %v4897, 32
    %v4901 = vpop.permute.xlu0 %4900
    %v4902 = vrot.slane %v4899, 7
    %v4903 = vrot.slane %v4901, 7
    %v4904 = vsel %vm27, %v4902, %v4899
    %v4905 = vsel %vm27, %v4903, %v4901
    %s4908 = scalar_lea.vmem [#allocation4], 27
    %4909 = vst.msk [vmem:[%s4908] ss:$8 sm:$0x3] %vm1109, %v4904
    %4910 = vst.msk [vmem:[%s4908] ss:$8 sm:$0x0] %vm1109, %v4904
    %s4911 = scalar_lea.vmem [#allocation4], 99
    %4912 = vst.msk [vmem:[%s4911] ss:$8 sm:$0x3] %vm1109, %v4905
    %4913 = vst.msk [vmem:[%s4911] ss:$8 sm:$0x0] %vm1109, %v4905
    %s4914 = scalar_lea.vmem [#allocation3], 68
    %v4915 = vld [vmem:[%s4914] ss:$8 sm:$0xf]
    %s4916 = scalar_lea.vmem [#allocation3], 196
    %v4917 = vld [vmem:[%s4916] ss:$8 sm:$0xf]
    %s4918 = scalar_lea.vmem [#allocation3], 69
    %v4919 = vld [vmem:[%s4918] ss:$8 sm:$0xf]
    %s4920 = scalar_lea.vmem [#allocation3], 197
    %v4921 = vld [vmem:[%s4920] ss:$8 sm:$0xf]
    %v4922 = vmax.f32 %v4915, %v4919
    %v4923 = vmax.f32 %v4917, %v4921
    %4926 = vrot.lane.b32.xlu0 %v4922, 112
    %v4927 = vpop.permute.xlu0 %4926
    %4928 = vrot.lane.b32.xlu0 %v4923, 112
    %v4929 = vpop.permute.xlu0 %4928
    %v4932 = vmax.f32 %v4922, %v4927
    %v4933 = vmax.f32 %v4923, %v4929
    %v4934 = vrot.slane %v4922, 1
    %v4935 = vrot.slane %v4923, 1
    %v4938 = vrot.slane %v4927, 1
    %v4939 = vrot.slane %v4929, 1
    %v4942 = vmax.f32 %v4934, %v4938
    %v4943 = vmax.f32 %v4935, %v4939
    %4944 = vrot.lane.b32.xlu0 %v4922, 96
    %v4945 = vpop.permute.xlu0 %4944
    %4946 = vrot.lane.b32.xlu0 %v4923, 96
    %v4947 = vpop.permute.xlu0 %4946
    %v4948 = vrot.slane %v4945, 1
    %v4949 = vrot.slane %v4947, 1
    %4952 = vrot.lane.b32.xlu0 %v4922, 80
    %v4953 = vpop.permute.xlu0 %4952
    %4954 = vrot.lane.b32.xlu0 %v4923, 80
    %v4955 = vpop.permute.xlu0 %4954
    %v4956 = vrot.slane %v4953, 1
    %v4957 = vrot.slane %v4955, 1
    %v4960 = vmax.f32 %v4948, %v4956
    %v4961 = vmax.f32 %v4949, %v4957
    %4962 = vrot.lane.b32.xlu0 %v4922, 64
    %v4963 = vpop.permute.xlu0 %4962
    %4964 = vrot.lane.b32.xlu0 %v4923, 64
    %v4965 = vpop.permute.xlu0 %4964
    %v4966 = vrot.slane %v4963, 1
    %v4967 = vrot.slane %v4965, 1
    %4970 = vrot.lane.b32.xlu0 %v4922, 48
    %v4971 = vpop.permute.xlu0 %4970
    %4972 = vrot.lane.b32.xlu0 %v4923, 48
    %v4973 = vpop.permute.xlu0 %4972
    %v4974 = vrot.slane %v4971, 1
    %v4975 = vrot.slane %v4973, 1
    %v4978 = vmax.f32 %v4966, %v4974
    %v4979 = vmax.f32 %v4967, %v4975
    %4980 = vrot.lane.b32.xlu0 %v4922, 32
    %v4981 = vpop.permute.xlu0 %4980
    %4982 = vrot.lane.b32.xlu0 %v4923, 32
    %v4983 = vpop.permute.xlu0 %4982
    %v4984 = vrot.slane %v4981, 1
    %v4985 = vrot.slane %v4983, 1
    %4988 = vrot.lane.b32.xlu0 %v4922, 16
    %v4989 = vpop.permute.xlu0 %4988
    %4990 = vrot.lane.b32.xlu0 %v4923, 16
    %v4991 = vpop.permute.xlu0 %4990
    %v4992 = vrot.slane %v4989, 1
    %v4993 = vrot.slane %v4991, 1
    %v4996 = vmax.f32 %v4984, %v4992
    %v4997 = vmax.f32 %v4985, %v4993
    %v4998 = vrot.slane %v4922, 2
    %v4999 = vrot.slane %v4923, 2
    %v5002 = vrot.slane %v4927, 2
    %v5003 = vrot.slane %v4929, 2
    %v5006 = vmax.f32 %v4998, %v5002
    %v5007 = vmax.f32 %v4999, %v5003
    %v5008 = vrot.slane %v4945, 2
    %v5009 = vrot.slane %v4947, 2
    %v5012 = vrot.slane %v4953, 2
    %v5013 = vrot.slane %v4955, 2
    %v5016 = vmax.f32 %v5008, %v5012
    %v5017 = vmax.f32 %v5009, %v5013
    %v5018 = vrot.slane %v4963, 2
    %v5019 = vrot.slane %v4965, 2
    %v5022 = vrot.slane %v4971, 2
    %v5023 = vrot.slane %v4973, 2
    %v5026 = vmax.f32 %v5018, %v5022
    %v5027 = vmax.f32 %v5019, %v5023
    %v5028 = vrot.slane %v4981, 2
    %v5029 = vrot.slane %v4983, 2
    %v5032 = vrot.slane %v4989, 2
    %v5033 = vrot.slane %v4991, 2
    %v5036 = vmax.f32 %v5028, %v5032
    %v5037 = vmax.f32 %v5029, %v5033
    %v5038 = vrot.slane %v4922, 3
    %v5039 = vrot.slane %v4923, 3
    %v5042 = vrot.slane %v4927, 3
    %v5043 = vrot.slane %v4929, 3
    %v5046 = vmax.f32 %v5038, %v5042
    %v5047 = vmax.f32 %v5039, %v5043
    %v5048 = vrot.slane %v4945, 3
    %v5049 = vrot.slane %v4947, 3
    %v5052 = vrot.slane %v4953, 3
    %v5053 = vrot.slane %v4955, 3
    %v5056 = vmax.f32 %v5048, %v5052
    %v5057 = vmax.f32 %v5049, %v5053
    %v5060 = vcombine.low %v4932, %v4933
    %v5062 = vunpack.c.l.s4 1966171168
    %v5063 = vunpack.c.0.s8 %v5062
    %v5064 = vlaneseq
    %v5065 = vshrl.u32 %v5064, 7
    %v5066 = vsub.s32 %v5063, %v5065
    %v5067 = vrot.slane %v5060, %v5066
    %v5069 = vunpack.c.l.s4 1966171168
    %v5070 = vunpack.c.0.s8 %v5069
    %v5071 = vlaneseq
    %v5072 = vshrl.u32 %v5071, 7
    %v5073 = vsub.s32 %v5070, %v5072
    %v5074 = vrot.slane %v5067, %v5073
    %5076 = vrot.lane.b32.xlu0 %v5074, 112
    %v5077 = vpop.permute.xlu0 %5076
    %5079 = vrot.lane.b32.xlu0 %v5074, 96
    %v5080 = vpop.permute.xlu0 %5079
    %5082 = vrot.lane.b32.xlu0 %v5074, 80
    %v5083 = vpop.permute.xlu0 %5082
    %v5087 = vcombine.low %v4942, %v4943
    %v5089 = vunpack.c.l.s4 1966171168
    %v5090 = vunpack.c.0.s8 %v5089
    %v5091 = vlaneseq
    %v5092 = vshrl.u32 %v5091, 7
    %v5093 = vsub.s32 %v5090, %v5092
    %v5094 = vrot.slane %v5087, %v5093
    %v5096 = vunpack.c.l.s4 1966171168
    %v5097 = vunpack.c.0.s8 %v5096
    %v5098 = vlaneseq
    %v5099 = vshrl.u32 %v5098, 7
    %v5100 = vsub.s32 %v5097, %v5099
    %v5101 = vrot.slane %v5094, %v5100
    %5102 = vrot.lane.b32.xlu0 %v5101, 64
    %v5103 = vpop.permute.xlu0 %5102
    %v5107 = vcombine.low %v4960, %v4961
    %v5109 = vunpack.c.l.s4 1966171168
    %v5110 = vunpack.c.0.s8 %v5109
    %v5111 = vlaneseq
    %v5112 = vshrl.u32 %v5111, 7
    %v5113 = vsub.s32 %v5110, %v5112
    %v5114 = vrot.slane %v5107, %v5113
    %v5116 = vunpack.c.l.s4 1966171168
    %v5117 = vunpack.c.0.s8 %v5116
    %v5118 = vlaneseq
    %v5119 = vshrl.u32 %v5118, 7
    %v5120 = vsub.s32 %v5117, %v5119
    %v5121 = vrot.slane %v5114, %v5120
    %5122 = vrot.lane.b32.xlu0 %v5121, 80
    %v5123 = vpop.permute.xlu0 %5122
    %v5127 = vcombine.low %v4978, %v4979
    %v5129 = vunpack.c.l.s4 1966171168
    %v5130 = vunpack.c.0.s8 %v5129
    %v5131 = vlaneseq
    %v5132 = vshrl.u32 %v5131, 7
    %v5133 = vsub.s32 %v5130, %v5132
    %v5134 = vrot.slane %v5127, %v5133
    %v5136 = vunpack.c.l.s4 1966171168
    %v5137 = vunpack.c.0.s8 %v5136
    %v5138 = vlaneseq
    %v5139 = vshrl.u32 %v5138, 7
    %v5140 = vsub.s32 %v5137, %v5139
    %v5141 = vrot.slane %v5134, %v5140
    %5142 = vrot.lane.b32.xlu0 %v5141, 96
    %v5143 = vpop.permute.xlu0 %5142
    %v5147 = vcombine.low %v4996, %v4997
    %v5149 = vunpack.c.l.s4 1966171168
    %v5150 = vunpack.c.0.s8 %v5149
    %v5151 = vlaneseq
    %v5152 = vshrl.u32 %v5151, 7
    %v5153 = vsub.s32 %v5150, %v5152
    %v5154 = vrot.slane %v5147, %v5153
    %v5156 = vunpack.c.l.s4 1966171168
    %v5157 = vunpack.c.0.s8 %v5156
    %v5158 = vlaneseq
    %v5159 = vshrl.u32 %v5158, 7
    %v5160 = vsub.s32 %v5157, %v5159
    %v5161 = vrot.slane %v5154, %v5160
    %5162 = vrot.lane.b32.xlu0 %v5161, 112
    %v5163 = vpop.permute.xlu0 %5162
    %v5167 = vcombine.low %v5006, %v5007
    %v5169 = vunpack.c.l.s4 1966171168
    %v5170 = vunpack.c.0.s8 %v5169
    %v5171 = vlaneseq
    %v5172 = vshrl.u32 %v5171, 7
    %v5173 = vsub.s32 %v5170, %v5172
    %v5174 = vrot.slane %v5167, %v5173
    %v5176 = vunpack.c.l.s4 1966171168
    %v5177 = vunpack.c.0.s8 %v5176
    %v5178 = vlaneseq
    %v5179 = vshrl.u32 %v5178, 7
    %v5180 = vsub.s32 %v5177, %v5179
    %v5181 = vrot.slane %v5174, %v5180
    %v5185 = vcombine.low %v5016, %v5017
    %v5187 = vunpack.c.l.s4 1966171168
    %v5188 = vunpack.c.0.s8 %v5187
    %v5189 = vlaneseq
    %v5190 = vshrl.u32 %v5189, 7
    %v5191 = vsub.s32 %v5188, %v5190
    %v5192 = vrot.slane %v5185, %v5191
    %v5194 = vunpack.c.l.s4 1966171168
    %v5195 = vunpack.c.0.s8 %v5194
    %v5196 = vlaneseq
    %v5197 = vshrl.u32 %v5196, 7
    %v5198 = vsub.s32 %v5195, %v5197
    %v5199 = vrot.slane %v5192, %v5198
    %5200 = vrot.lane.b32.xlu0 %v5199, 16
    %v5201 = vpop.permute.xlu0 %5200
    %v5205 = vcombine.low %v5026, %v5027
    %v5207 = vunpack.c.l.s4 1966171168
    %v5208 = vunpack.c.0.s8 %v5207
    %v5209 = vlaneseq
    %v5210 = vshrl.u32 %v5209, 7
    %v5211 = vsub.s32 %v5208, %v5210
    %v5212 = vrot.slane %v5205, %v5211
    %v5214 = vunpack.c.l.s4 1966171168
    %v5215 = vunpack.c.0.s8 %v5214
    %v5216 = vlaneseq
    %v5217 = vshrl.u32 %v5216, 7
    %v5218 = vsub.s32 %v5215, %v5217
    %v5219 = vrot.slane %v5212, %v5218
    %5220 = vrot.lane.b32.xlu0 %v5219, 32
    %v5221 = vpop.permute.xlu0 %5220
    %v5225 = vcombine.low %v5036, %v5037
    %v5227 = vunpack.c.l.s4 1966171168
    %v5228 = vunpack.c.0.s8 %v5227
    %v5229 = vlaneseq
    %v5230 = vshrl.u32 %v5229, 7
    %v5231 = vsub.s32 %v5228, %v5230
    %v5232 = vrot.slane %v5225, %v5231
    %v5234 = vunpack.c.l.s4 1966171168
    %v5235 = vunpack.c.0.s8 %v5234
    %v5236 = vlaneseq
    %v5237 = vshrl.u32 %v5236, 7
    %v5238 = vsub.s32 %v5235, %v5237
    %v5239 = vrot.slane %v5232, %v5238
    %5240 = vrot.lane.b32.xlu0 %v5239, 48
    %v5241 = vpop.permute.xlu0 %5240
    %v5245 = vcombine.low %v5046, %v5047
    %v5247 = vunpack.c.l.s4 1966171168
    %v5248 = vunpack.c.0.s8 %v5247
    %v5249 = vlaneseq
    %v5250 = vshrl.u32 %v5249, 7
    %v5251 = vsub.s32 %v5248, %v5250
    %v5252 = vrot.slane %v5245, %v5251
    %v5254 = vunpack.c.l.s4 1966171168
    %v5255 = vunpack.c.0.s8 %v5254
    %v5256 = vlaneseq
    %v5257 = vshrl.u32 %v5256, 7
    %v5258 = vsub.s32 %v5255, %v5257
    %v5259 = vrot.slane %v5252, %v5258
    %5260 = vrot.lane.b32.xlu0 %v5259, 64
    %v5261 = vpop.permute.xlu0 %5260
    %v5265 = vcombine.low %v5056, %v5057
    %v5267 = vunpack.c.l.s4 1966171168
    %v5268 = vunpack.c.0.s8 %v5267
    %v5269 = vlaneseq
    %v5270 = vshrl.u32 %v5269, 7
    %v5271 = vsub.s32 %v5268, %v5270
    %v5272 = vrot.slane %v5265, %v5271
    %v5274 = vunpack.c.l.s4 1966171168
    %v5275 = vunpack.c.0.s8 %v5274
    %v5276 = vlaneseq
    %v5277 = vshrl.u32 %v5276, 7
    %v5278 = vsub.s32 %v5275, %v5277
    %v5279 = vrot.slane %v5272, %v5278
    %5280 = vrot.lane.b32.xlu0 %v5279, 80
    %v5281 = vpop.permute.xlu0 %5280
    %v5283 = vsel %vm1055, %v5074, %v5077
    %v5284 = vsel %vm27, %v5283, %v5080
    %v5285 = vsel %vm1058, %v5284, %v5083
    %v5286 = vsel %vm234, %v5285, %v5103
    %v5287 = vsel %vm1061, %v5286, %v5123
    %v5288 = vsel %vm243, %v5287, %v5143
    %v5289 = vsel %vm1064, %v5288, %v5163
    %v5290 = vsel %vm1055, %v5181, %v5201
    %v5291 = vsel %vm27, %v5290, %v5221
    %v5292 = vsel %vm1058, %v5291, %v5241
    %v5293 = vsel %vm234, %v5292, %v5261
    %v5294 = vsel %vm1061, %v5293, %v5281
    %v5297 = vcombine.low %v5289, %v5294
    %v5299 = vunpack.c.l.s4 1966171168
    %v5300 = vunpack.c.0.s8 %v5299
    %v5301 = vlaneseq
    %v5302 = vshrl.u32 %v5301, 7
    %v5303 = vsub.s32 %v5300, %v5302
    %v5304 = vrot.slane %v5297, %v5303
    %v5305 = vcombine.high %v5304, %v5304
    %v5307 = vunpack.c.l.s4 1966171168
    %v5308 = vunpack.c.0.s8 %v5307
    %v5309 = vlaneseq
    %v5310 = vshrl.u32 %v5309, 7
    %v5311 = vsub.s32 %v5308, %v5310
    %v5312 = vrot.slane %v5304, %v5311
    %v5314 = vunpack.c.l.s4 1966171168
    %v5315 = vunpack.c.0.s8 %v5314
    %v5316 = vlaneseq
    %v5317 = vshrl.u32 %v5316, 7
    %v5318 = vsub.s32 %v5315, %v5317
    %v5319 = vrot.slane %v5305, %v5318
    %5320 = vrot.lane.b32.xlu0 %v5312, 32
    %v5321 = vpop.permute.xlu0 %5320
    %5322 = vrot.lane.b32.xlu0 %v5319, 32
    %v5323 = vpop.permute.xlu0 %5322
    %v5324 = vrot.slane %v5321, 7
    %v5325 = vrot.slane %v5323, 7
    %v5326 = vsel %vm27, %v5324, %v5321
    %v5327 = vsel %vm27, %v5325, %v5323
    %s5330 = scalar_lea.vmem [#allocation4], 28
    %5331 = vst.msk [vmem:[%s5330] ss:$8 sm:$0x3] %vm1109, %v5326
    %5332 = vst.msk [vmem:[%s5330] ss:$8 sm:$0x0] %vm1109, %v5326
    %s5333 = scalar_lea.vmem [#allocation4], 100
    %5334 = vst.msk [vmem:[%s5333] ss:$8 sm:$0x3] %vm1109, %v5327
    %5335 = vst.msk [vmem:[%s5333] ss:$8 sm:$0x0] %vm1109, %v5327
    %s5336 = scalar_lea.vmem [#allocation3], 70
    %v5337 = vld [vmem:[%s5336] ss:$8 sm:$0xf]
    %s5338 = scalar_lea.vmem [#allocation3], 198
    %v5339 = vld [vmem:[%s5338] ss:$8 sm:$0xf]
    %s5340 = scalar_lea.vmem [#allocation3], 71
    %v5341 = vld [vmem:[%s5340] ss:$8 sm:$0xf]
    %s5342 = scalar_lea.vmem [#allocation3], 199
    %v5343 = vld [vmem:[%s5342] ss:$8 sm:$0xf]
    %v5344 = vmax.f32 %v5337, %v5341
    %v5345 = vmax.f32 %v5339, %v5343
    %5348 = vrot.lane.b32.xlu0 %v5344, 112
    %v5349 = vpop.permute.xlu0 %5348
    %5350 = vrot.lane.b32.xlu0 %v5345, 112
    %v5351 = vpop.permute.xlu0 %5350
    %v5354 = vmax.f32 %v5344, %v5349
    %v5355 = vmax.f32 %v5345, %v5351
    %v5356 = vrot.slane %v5344, 1
    %v5357 = vrot.slane %v5345, 1
    %v5360 = vrot.slane %v5349, 1
    %v5361 = vrot.slane %v5351, 1
    %v5364 = vmax.f32 %v5356, %v5360
    %v5365 = vmax.f32 %v5357, %v5361
    %5366 = vrot.lane.b32.xlu0 %v5344, 96
    %v5367 = vpop.permute.xlu0 %5366
    %5368 = vrot.lane.b32.xlu0 %v5345, 96
    %v5369 = vpop.permute.xlu0 %5368
    %v5370 = vrot.slane %v5367, 1
    %v5371 = vrot.slane %v5369, 1
    %5374 = vrot.lane.b32.xlu0 %v5344, 80
    %v5375 = vpop.permute.xlu0 %5374
    %5376 = vrot.lane.b32.xlu0 %v5345, 80
    %v5377 = vpop.permute.xlu0 %5376
    %v5378 = vrot.slane %v5375, 1
    %v5379 = vrot.slane %v5377, 1
    %v5382 = vmax.f32 %v5370, %v5378
    %v5383 = vmax.f32 %v5371, %v5379
    %5384 = vrot.lane.b32.xlu0 %v5344, 64
    %v5385 = vpop.permute.xlu0 %5384
    %5386 = vrot.lane.b32.xlu0 %v5345, 64
    %v5387 = vpop.permute.xlu0 %5386
    %v5388 = vrot.slane %v5385, 1
    %v5389 = vrot.slane %v5387, 1
    %5392 = vrot.lane.b32.xlu0 %v5344, 48
    %v5393 = vpop.permute.xlu0 %5392
    %5394 = vrot.lane.b32.xlu0 %v5345, 48
    %v5395 = vpop.permute.xlu0 %5394
    %v5396 = vrot.slane %v5393, 1
    %v5397 = vrot.slane %v5395, 1
    %v5400 = vmax.f32 %v5388, %v5396
    %v5401 = vmax.f32 %v5389, %v5397
    %5402 = vrot.lane.b32.xlu0 %v5344, 32
    %v5403 = vpop.permute.xlu0 %5402
    %5404 = vrot.lane.b32.xlu0 %v5345, 32
    %v5405 = vpop.permute.xlu0 %5404
    %v5406 = vrot.slane %v5403, 1
    %v5407 = vrot.slane %v5405, 1
    %5410 = vrot.lane.b32.xlu0 %v5344, 16
    %v5411 = vpop.permute.xlu0 %5410
    %5412 = vrot.lane.b32.xlu0 %v5345, 16
    %v5413 = vpop.permute.xlu0 %5412
    %v5414 = vrot.slane %v5411, 1
    %v5415 = vrot.slane %v5413, 1
    %v5418 = vmax.f32 %v5406, %v5414
    %v5419 = vmax.f32 %v5407, %v5415
    %v5420 = vrot.slane %v5344, 2
    %v5421 = vrot.slane %v5345, 2
    %v5424 = vrot.slane %v5349, 2
    %v5425 = vrot.slane %v5351, 2
    %v5428 = vmax.f32 %v5420, %v5424
    %v5429 = vmax.f32 %v5421, %v5425
    %v5430 = vrot.slane %v5367, 2
    %v5431 = vrot.slane %v5369, 2
    %v5434 = vrot.slane %v5375, 2
    %v5435 = vrot.slane %v5377, 2
    %v5438 = vmax.f32 %v5430, %v5434
    %v5439 = vmax.f32 %v5431, %v5435
    %v5440 = vrot.slane %v5385, 2
    %v5441 = vrot.slane %v5387, 2
    %v5444 = vrot.slane %v5393, 2
    %v5445 = vrot.slane %v5395, 2
    %v5448 = vmax.f32 %v5440, %v5444
    %v5449 = vmax.f32 %v5441, %v5445
    %v5450 = vrot.slane %v5403, 2
    %v5451 = vrot.slane %v5405, 2
    %v5454 = vrot.slane %v5411, 2
    %v5455 = vrot.slane %v5413, 2
    %v5458 = vmax.f32 %v5450, %v5454
    %v5459 = vmax.f32 %v5451, %v5455
    %v5460 = vrot.slane %v5344, 3
    %v5461 = vrot.slane %v5345, 3
    %v5464 = vrot.slane %v5349, 3
    %v5465 = vrot.slane %v5351, 3
    %v5468 = vmax.f32 %v5460, %v5464
    %v5469 = vmax.f32 %v5461, %v5465
    %v5470 = vrot.slane %v5367, 3
    %v5471 = vrot.slane %v5369, 3
    %v5474 = vrot.slane %v5375, 3
    %v5475 = vrot.slane %v5377, 3
    %v5478 = vmax.f32 %v5470, %v5474
    %v5479 = vmax.f32 %v5471, %v5475
    %v5482 = vcombine.low %v5354, %v5355
    %v5484 = vunpack.c.l.s4 1966171168
    %v5485 = vunpack.c.0.s8 %v5484
    %v5486 = vlaneseq
    %v5487 = vshrl.u32 %v5486, 7
    %v5488 = vsub.s32 %v5485, %v5487
    %v5489 = vrot.slane %v5482, %v5488
    %v5491 = vunpack.c.l.s4 1966171168
    %v5492 = vunpack.c.0.s8 %v5491
    %v5493 = vlaneseq
    %v5494 = vshrl.u32 %v5493, 7
    %v5495 = vsub.s32 %v5492, %v5494
    %v5496 = vrot.slane %v5489, %v5495
    %5498 = vrot.lane.b32.xlu0 %v5496, 112
    %v5499 = vpop.permute.xlu0 %5498
    %5501 = vrot.lane.b32.xlu0 %v5496, 96
    %v5502 = vpop.permute.xlu0 %5501
    %5504 = vrot.lane.b32.xlu0 %v5496, 80
    %v5505 = vpop.permute.xlu0 %5504
    %v5509 = vcombine.low %v5364, %v5365
    %v5511 = vunpack.c.l.s4 1966171168
    %v5512 = vunpack.c.0.s8 %v5511
    %v5513 = vlaneseq
    %v5514 = vshrl.u32 %v5513, 7
    %v5515 = vsub.s32 %v5512, %v5514
    %v5516 = vrot.slane %v5509, %v5515
    %v5518 = vunpack.c.l.s4 1966171168
    %v5519 = vunpack.c.0.s8 %v5518
    %v5520 = vlaneseq
    %v5521 = vshrl.u32 %v5520, 7
    %v5522 = vsub.s32 %v5519, %v5521
    %v5523 = vrot.slane %v5516, %v5522
    %5524 = vrot.lane.b32.xlu0 %v5523, 64
    %v5525 = vpop.permute.xlu0 %5524
    %v5529 = vcombine.low %v5382, %v5383
    %v5531 = vunpack.c.l.s4 1966171168
    %v5532 = vunpack.c.0.s8 %v5531
    %v5533 = vlaneseq
    %v5534 = vshrl.u32 %v5533, 7
    %v5535 = vsub.s32 %v5532, %v5534
    %v5536 = vrot.slane %v5529, %v5535
    %v5538 = vunpack.c.l.s4 1966171168
    %v5539 = vunpack.c.0.s8 %v5538
    %v5540 = vlaneseq
    %v5541 = vshrl.u32 %v5540, 7
    %v5542 = vsub.s32 %v5539, %v5541
    %v5543 = vrot.slane %v5536, %v5542
    %5544 = vrot.lane.b32.xlu0 %v5543, 80
    %v5545 = vpop.permute.xlu0 %5544
    %v5549 = vcombine.low %v5400, %v5401
    %v5551 = vunpack.c.l.s4 1966171168
    %v5552 = vunpack.c.0.s8 %v5551
    %v5553 = vlaneseq
    %v5554 = vshrl.u32 %v5553, 7
    %v5555 = vsub.s32 %v5552, %v5554
    %v5556 = vrot.slane %v5549, %v5555
    %v5558 = vunpack.c.l.s4 1966171168
    %v5559 = vunpack.c.0.s8 %v5558
    %v5560 = vlaneseq
    %v5561 = vshrl.u32 %v5560, 7
    %v5562 = vsub.s32 %v5559, %v5561
    %v5563 = vrot.slane %v5556, %v5562
    %5564 = vrot.lane.b32.xlu0 %v5563, 96
    %v5565 = vpop.permute.xlu0 %5564
    %v5569 = vcombine.low %v5418, %v5419
    %v5571 = vunpack.c.l.s4 1966171168
    %v5572 = vunpack.c.0.s8 %v5571
    %v5573 = vlaneseq
    %v5574 = vshrl.u32 %v5573, 7
    %v5575 = vsub.s32 %v5572, %v5574
    %v5576 = vrot.slane %v5569, %v5575
    %v5578 = vunpack.c.l.s4 1966171168
    %v5579 = vunpack.c.0.s8 %v5578
    %v5580 = vlaneseq
    %v5581 = vshrl.u32 %v5580, 7
    %v5582 = vsub.s32 %v5579, %v5581
    %v5583 = vrot.slane %v5576, %v5582
    %5584 = vrot.lane.b32.xlu0 %v5583, 112
    %v5585 = vpop.permute.xlu0 %5584
    %v5589 = vcombine.low %v5428, %v5429
    %v5591 = vunpack.c.l.s4 1966171168
    %v5592 = vunpack.c.0.s8 %v5591
    %v5593 = vlaneseq
    %v5594 = vshrl.u32 %v5593, 7
    %v5595 = vsub.s32 %v5592, %v5594
    %v5596 = vrot.slane %v5589, %v5595
    %v5598 = vunpack.c.l.s4 1966171168
    %v5599 = vunpack.c.0.s8 %v5598
    %v5600 = vlaneseq
    %v5601 = vshrl.u32 %v5600, 7
    %v5602 = vsub.s32 %v5599, %v5601
    %v5603 = vrot.slane %v5596, %v5602
    %v5607 = vcombine.low %v5438, %v5439
    %v5609 = vunpack.c.l.s4 1966171168
    %v5610 = vunpack.c.0.s8 %v5609
    %v5611 = vlaneseq
    %v5612 = vshrl.u32 %v5611, 7
    %v5613 = vsub.s32 %v5610, %v5612
    %v5614 = vrot.slane %v5607, %v5613
    %v5616 = vunpack.c.l.s4 1966171168
    %v5617 = vunpack.c.0.s8 %v5616
    %v5618 = vlaneseq
    %v5619 = vshrl.u32 %v5618, 7
    %v5620 = vsub.s32 %v5617, %v5619
    %v5621 = vrot.slane %v5614, %v5620
    %5622 = vrot.lane.b32.xlu0 %v5621, 16
    %v5623 = vpop.permute.xlu0 %5622
    %v5627 = vcombine.low %v5448, %v5449
    %v5629 = vunpack.c.l.s4 1966171168
    %v5630 = vunpack.c.0.s8 %v5629
    %v5631 = vlaneseq
    %v5632 = vshrl.u32 %v5631, 7
    %v5633 = vsub.s32 %v5630, %v5632
    %v5634 = vrot.slane %v5627, %v5633
    %v5636 = vunpack.c.l.s4 1966171168
    %v5637 = vunpack.c.0.s8 %v5636
    %v5638 = vlaneseq
    %v5639 = vshrl.u32 %v5638, 7
    %v5640 = vsub.s32 %v5637, %v5639
    %v5641 = vrot.slane %v5634, %v5640
    %5642 = vrot.lane.b32.xlu0 %v5641, 32
    %v5643 = vpop.permute.xlu0 %5642
    %v5647 = vcombine.low %v5458, %v5459
    %v5649 = vunpack.c.l.s4 1966171168
    %v5650 = vunpack.c.0.s8 %v5649
    %v5651 = vlaneseq
    %v5652 = vshrl.u32 %v5651, 7
    %v5653 = vsub.s32 %v5650, %v5652
    %v5654 = vrot.slane %v5647, %v5653
    %v5656 = vunpack.c.l.s4 1966171168
    %v5657 = vunpack.c.0.s8 %v5656
    %v5658 = vlaneseq
    %v5659 = vshrl.u32 %v5658, 7
    %v5660 = vsub.s32 %v5657, %v5659
    %v5661 = vrot.slane %v5654, %v5660
    %5662 = vrot.lane.b32.xlu0 %v5661, 48
    %v5663 = vpop.permute.xlu0 %5662
    %v5667 = vcombine.low %v5468, %v5469
    %v5669 = vunpack.c.l.s4 1966171168
    %v5670 = vunpack.c.0.s8 %v5669
    %v5671 = vlaneseq
    %v5672 = vshrl.u32 %v5671, 7
    %v5673 = vsub.s32 %v5670, %v5672
    %v5674 = vrot.slane %v5667, %v5673
    %v5676 = vunpack.c.l.s4 1966171168
    %v5677 = vunpack.c.0.s8 %v5676
    %v5678 = vlaneseq
    %v5679 = vshrl.u32 %v5678, 7
    %v5680 = vsub.s32 %v5677, %v5679
    %v5681 = vrot.slane %v5674, %v5680
    %5682 = vrot.lane.b32.xlu0 %v5681, 64
    %v5683 = vpop.permute.xlu0 %5682
    %v5687 = vcombine.low %v5478, %v5479
    %v5689 = vunpack.c.l.s4 1966171168
    %v5690 = vunpack.c.0.s8 %v5689
    %v5691 = vlaneseq
    %v5692 = vshrl.u32 %v5691, 7
    %v5693 = vsub.s32 %v5690, %v5692
    %v5694 = vrot.slane %v5687, %v5693
    %v5696 = vunpack.c.l.s4 1966171168
    %v5697 = vunpack.c.0.s8 %v5696
    %v5698 = vlaneseq
    %v5699 = vshrl.u32 %v5698, 7
    %v5700 = vsub.s32 %v5697, %v5699
    %v5701 = vrot.slane %v5694, %v5700
    %5702 = vrot.lane.b32.xlu0 %v5701, 80
    %v5703 = vpop.permute.xlu0 %5702
    %v5705 = vsel %vm1055, %v5496, %v5499
    %v5706 = vsel %vm27, %v5705, %v5502
    %v5707 = vsel %vm1058, %v5706, %v5505
    %v5708 = vsel %vm234, %v5707, %v5525
    %v5709 = vsel %vm1061, %v5708, %v5545
    %v5710 = vsel %vm243, %v5709, %v5565
    %v5711 = vsel %vm1064, %v5710, %v5585
    %v5712 = vsel %vm1055, %v5603, %v5623
    %v5713 = vsel %vm27, %v5712, %v5643
    %v5714 = vsel %vm1058, %v5713, %v5663
    %v5715 = vsel %vm234, %v5714, %v5683
    %v5716 = vsel %vm1061, %v5715, %v5703
    %v5719 = vcombine.low %v5711, %v5716
    %v5721 = vunpack.c.l.s4 1966171168
    %v5722 = vunpack.c.0.s8 %v5721
    %v5723 = vlaneseq
    %v5724 = vshrl.u32 %v5723, 7
    %v5725 = vsub.s32 %v5722, %v5724
    %v5726 = vrot.slane %v5719, %v5725
    %v5727 = vcombine.high %v5726, %v5726
    %v5729 = vunpack.c.l.s4 1966171168
    %v5730 = vunpack.c.0.s8 %v5729
    %v5731 = vlaneseq
    %v5732 = vshrl.u32 %v5731, 7
    %v5733 = vsub.s32 %v5730, %v5732
    %v5734 = vrot.slane %v5726, %v5733
    %v5736 = vunpack.c.l.s4 1966171168
    %v5737 = vunpack.c.0.s8 %v5736
    %v5738 = vlaneseq
    %v5739 = vshrl.u32 %v5738, 7
    %v5740 = vsub.s32 %v5737, %v5739
    %v5741 = vrot.slane %v5727, %v5740
    %5742 = vrot.lane.b32.xlu0 %v5734, 32
    %v5743 = vpop.permute.xlu0 %5742
    %5744 = vrot.lane.b32.xlu0 %v5741, 32
    %v5745 = vpop.permute.xlu0 %5744
    %v5746 = vrot.slane %v5743, 7
    %v5747 = vrot.slane %v5745, 7
    %v5748 = vsel %vm27, %v5746, %v5743
    %v5749 = vsel %vm27, %v5747, %v5745
    %s5752 = scalar_lea.vmem [#allocation4], 29
    %5753 = vst.msk [vmem:[%s5752] ss:$8 sm:$0x3] %vm1109, %v5748
    %5754 = vst.msk [vmem:[%s5752] ss:$8 sm:$0x0] %vm1109, %v5748
    %s5755 = scalar_lea.vmem [#allocation4], 101
    %5756 = vst.msk [vmem:[%s5755] ss:$8 sm:$0x3] %vm1109, %v5749
    %5757 = vst.msk [vmem:[%s5755] ss:$8 sm:$0x0] %vm1109, %v5749
    %s5758 = scalar_lea.vmem [#allocation3], 96
    %v5759 = vld [vmem:[%s5758] ss:$8 sm:$0xf]
    %s5760 = scalar_lea.vmem [#allocation3], 224
    %v5761 = vld [vmem:[%s5760] ss:$8 sm:$0xf]
    %s5762 = scalar_lea.vmem [#allocation3], 97
    %v5763 = vld [vmem:[%s5762] ss:$8 sm:$0xf]
    %s5764 = scalar_lea.vmem [#allocation3], 225
    %v5765 = vld [vmem:[%s5764] ss:$8 sm:$0xf]
    %v5766 = vmax.f32 %v5759, %v5763
    %v5767 = vmax.f32 %v5761, %v5765
    %5770 = vrot.lane.b32.xlu0 %v5766, 112
    %v5771 = vpop.permute.xlu0 %5770
    %5772 = vrot.lane.b32.xlu0 %v5767, 112
    %v5773 = vpop.permute.xlu0 %5772
    %v5776 = vmax.f32 %v5766, %v5771
    %v5777 = vmax.f32 %v5767, %v5773
    %v5778 = vrot.slane %v5766, 1
    %v5779 = vrot.slane %v5767, 1
    %v5782 = vrot.slane %v5771, 1
    %v5783 = vrot.slane %v5773, 1
    %v5786 = vmax.f32 %v5778, %v5782
    %v5787 = vmax.f32 %v5779, %v5783
    %5788 = vrot.lane.b32.xlu0 %v5766, 96
    %v5789 = vpop.permute.xlu0 %5788
    %5790 = vrot.lane.b32.xlu0 %v5767, 96
    %v5791 = vpop.permute.xlu0 %5790
    %v5792 = vrot.slane %v5789, 1
    %v5793 = vrot.slane %v5791, 1
    %5796 = vrot.lane.b32.xlu0 %v5766, 80
    %v5797 = vpop.permute.xlu0 %5796
    %5798 = vrot.lane.b32.xlu0 %v5767, 80
    %v5799 = vpop.permute.xlu0 %5798
    %v5800 = vrot.slane %v5797, 1
    %v5801 = vrot.slane %v5799, 1
    %v5804 = vmax.f32 %v5792, %v5800
    %v5805 = vmax.f32 %v5793, %v5801
    %5806 = vrot.lane.b32.xlu0 %v5766, 64
    %v5807 = vpop.permute.xlu0 %5806
    %5808 = vrot.lane.b32.xlu0 %v5767, 64
    %v5809 = vpop.permute.xlu0 %5808
    %v5810 = vrot.slane %v5807, 1
    %v5811 = vrot.slane %v5809, 1
    %5814 = vrot.lane.b32.xlu0 %v5766, 48
    %v5815 = vpop.permute.xlu0 %5814
    %5816 = vrot.lane.b32.xlu0 %v5767, 48
    %v5817 = vpop.permute.xlu0 %5816
    %v5818 = vrot.slane %v5815, 1
    %v5819 = vrot.slane %v5817, 1
    %v5822 = vmax.f32 %v5810, %v5818
    %v5823 = vmax.f32 %v5811, %v5819
    %5824 = vrot.lane.b32.xlu0 %v5766, 32
    %v5825 = vpop.permute.xlu0 %5824
    %5826 = vrot.lane.b32.xlu0 %v5767, 32
    %v5827 = vpop.permute.xlu0 %5826
    %v5828 = vrot.slane %v5825, 1
    %v5829 = vrot.slane %v5827, 1
    %5832 = vrot.lane.b32.xlu0 %v5766, 16
    %v5833 = vpop.permute.xlu0 %5832
    %5834 = vrot.lane.b32.xlu0 %v5767, 16
    %v5835 = vpop.permute.xlu0 %5834
    %v5836 = vrot.slane %v5833, 1
    %v5837 = vrot.slane %v5835, 1
    %v5840 = vmax.f32 %v5828, %v5836
    %v5841 = vmax.f32 %v5829, %v5837
    %v5842 = vrot.slane %v5766, 2
    %v5843 = vrot.slane %v5767, 2
    %v5846 = vrot.slane %v5771, 2
    %v5847 = vrot.slane %v5773, 2
    %v5850 = vmax.f32 %v5842, %v5846
    %v5851 = vmax.f32 %v5843, %v5847
    %v5852 = vrot.slane %v5789, 2
    %v5853 = vrot.slane %v5791, 2
    %v5856 = vrot.slane %v5797, 2
    %v5857 = vrot.slane %v5799, 2
    %v5860 = vmax.f32 %v5852, %v5856
    %v5861 = vmax.f32 %v5853, %v5857
    %v5862 = vrot.slane %v5807, 2
    %v5863 = vrot.slane %v5809, 2
    %v5866 = vrot.slane %v5815, 2
    %v5867 = vrot.slane %v5817, 2
    %v5870 = vmax.f32 %v5862, %v5866
    %v5871 = vmax.f32 %v5863, %v5867
    %v5872 = vrot.slane %v5825, 2
    %v5873 = vrot.slane %v5827, 2
    %v5876 = vrot.slane %v5833, 2
    %v5877 = vrot.slane %v5835, 2
    %v5880 = vmax.f32 %v5872, %v5876
    %v5881 = vmax.f32 %v5873, %v5877
    %v5882 = vrot.slane %v5766, 3
    %v5883 = vrot.slane %v5767, 3
    %v5886 = vrot.slane %v5771, 3
    %v5887 = vrot.slane %v5773, 3
    %v5890 = vmax.f32 %v5882, %v5886
    %v5891 = vmax.f32 %v5883, %v5887
    %v5892 = vrot.slane %v5789, 3
    %v5893 = vrot.slane %v5791, 3
    %v5896 = vrot.slane %v5797, 3
    %v5897 = vrot.slane %v5799, 3
    %v5900 = vmax.f32 %v5892, %v5896
    %v5901 = vmax.f32 %v5893, %v5897
    %v5904 = vcombine.low %v5776, %v5777
    %v5906 = vunpack.c.l.s4 1966171168
    %v5907 = vunpack.c.0.s8 %v5906
    %v5908 = vlaneseq
    %v5909 = vshrl.u32 %v5908, 7
    %v5910 = vsub.s32 %v5907, %v5909
    %v5911 = vrot.slane %v5904, %v5910
    %v5913 = vunpack.c.l.s4 1966171168
    %v5914 = vunpack.c.0.s8 %v5913
    %v5915 = vlaneseq
    %v5916 = vshrl.u32 %v5915, 7
    %v5917 = vsub.s32 %v5914, %v5916
    %v5918 = vrot.slane %v5911, %v5917
    %5920 = vrot.lane.b32.xlu0 %v5918, 112
    %v5921 = vpop.permute.xlu0 %5920
    %5923 = vrot.lane.b32.xlu0 %v5918, 96
    %v5924 = vpop.permute.xlu0 %5923
    %5926 = vrot.lane.b32.xlu0 %v5918, 80
    %v5927 = vpop.permute.xlu0 %5926
    %v5931 = vcombine.low %v5786, %v5787
    %v5933 = vunpack.c.l.s4 1966171168
    %v5934 = vunpack.c.0.s8 %v5933
    %v5935 = vlaneseq
    %v5936 = vshrl.u32 %v5935, 7
    %v5937 = vsub.s32 %v5934, %v5936
    %v5938 = vrot.slane %v5931, %v5937
    %v5940 = vunpack.c.l.s4 1966171168
    %v5941 = vunpack.c.0.s8 %v5940
    %v5942 = vlaneseq
    %v5943 = vshrl.u32 %v5942, 7
    %v5944 = vsub.s32 %v5941, %v5943
    %v5945 = vrot.slane %v5938, %v5944
    %5946 = vrot.lane.b32.xlu0 %v5945, 64
    %v5947 = vpop.permute.xlu0 %5946
    %v5951 = vcombine.low %v5804, %v5805
    %v5953 = vunpack.c.l.s4 1966171168
    %v5954 = vunpack.c.0.s8 %v5953
    %v5955 = vlaneseq
    %v5956 = vshrl.u32 %v5955, 7
    %v5957 = vsub.s32 %v5954, %v5956
    %v5958 = vrot.slane %v5951, %v5957
    %v5960 = vunpack.c.l.s4 1966171168
    %v5961 = vunpack.c.0.s8 %v5960
    %v5962 = vlaneseq
    %v5963 = vshrl.u32 %v5962, 7
    %v5964 = vsub.s32 %v5961, %v5963
    %v5965 = vrot.slane %v5958, %v5964
    %5966 = vrot.lane.b32.xlu0 %v5965, 80
    %v5967 = vpop.permute.xlu0 %5966
    %v5971 = vcombine.low %v5822, %v5823
    %v5973 = vunpack.c.l.s4 1966171168
    %v5974 = vunpack.c.0.s8 %v5973
    %v5975 = vlaneseq
    %v5976 = vshrl.u32 %v5975, 7
    %v5977 = vsub.s32 %v5974, %v5976
    %v5978 = vrot.slane %v5971, %v5977
    %v5980 = vunpack.c.l.s4 1966171168
    %v5981 = vunpack.c.0.s8 %v5980
    %v5982 = vlaneseq
    %v5983 = vshrl.u32 %v5982, 7
    %v5984 = vsub.s32 %v5981, %v5983
    %v5985 = vrot.slane %v5978, %v5984
    %5986 = vrot.lane.b32.xlu0 %v5985, 96
    %v5987 = vpop.permute.xlu0 %5986
    %v5991 = vcombine.low %v5840, %v5841
    %v5993 = vunpack.c.l.s4 1966171168
    %v5994 = vunpack.c.0.s8 %v5993
    %v5995 = vlaneseq
    %v5996 = vshrl.u32 %v5995, 7
    %v5997 = vsub.s32 %v5994, %v5996
    %v5998 = vrot.slane %v5991, %v5997
    %v6000 = vunpack.c.l.s4 1966171168
    %v6001 = vunpack.c.0.s8 %v6000
    %v6002 = vlaneseq
    %v6003 = vshrl.u32 %v6002, 7
    %v6004 = vsub.s32 %v6001, %v6003
    %v6005 = vrot.slane %v5998, %v6004
    %6006 = vrot.lane.b32.xlu0 %v6005, 112
    %v6007 = vpop.permute.xlu0 %6006
    %v6011 = vcombine.low %v5850, %v5851
    %v6013 = vunpack.c.l.s4 1966171168
    %v6014 = vunpack.c.0.s8 %v6013
    %v6015 = vlaneseq
    %v6016 = vshrl.u32 %v6015, 7
    %v6017 = vsub.s32 %v6014, %v6016
    %v6018 = vrot.slane %v6011, %v6017
    %v6020 = vunpack.c.l.s4 1966171168
    %v6021 = vunpack.c.0.s8 %v6020
    %v6022 = vlaneseq
    %v6023 = vshrl.u32 %v6022, 7
    %v6024 = vsub.s32 %v6021, %v6023
    %v6025 = vrot.slane %v6018, %v6024
    %v6029 = vcombine.low %v5860, %v5861
    %v6031 = vunpack.c.l.s4 1966171168
    %v6032 = vunpack.c.0.s8 %v6031
    %v6033 = vlaneseq
    %v6034 = vshrl.u32 %v6033, 7
    %v6035 = vsub.s32 %v6032, %v6034
    %v6036 = vrot.slane %v6029, %v6035
    %v6038 = vunpack.c.l.s4 1966171168
    %v6039 = vunpack.c.0.s8 %v6038
    %v6040 = vlaneseq
    %v6041 = vshrl.u32 %v6040, 7
    %v6042 = vsub.s32 %v6039, %v6041
    %v6043 = vrot.slane %v6036, %v6042
    %6044 = vrot.lane.b32.xlu0 %v6043, 16
    %v6045 = vpop.permute.xlu0 %6044
    %v6049 = vcombine.low %v5870, %v5871
    %v6051 = vunpack.c.l.s4 1966171168
    %v6052 = vunpack.c.0.s8 %v6051
    %v6053 = vlaneseq
    %v6054 = vshrl.u32 %v6053, 7
    %v6055 = vsub.s32 %v6052, %v6054
    %v6056 = vrot.slane %v6049, %v6055
    %v6058 = vunpack.c.l.s4 1966171168
    %v6059 = vunpack.c.0.s8 %v6058
    %v6060 = vlaneseq
    %v6061 = vshrl.u32 %v6060, 7
    %v6062 = vsub.s32 %v6059, %v6061
    %v6063 = vrot.slane %v6056, %v6062
    %6064 = vrot.lane.b32.xlu0 %v6063, 32
    %v6065 = vpop.permute.xlu0 %6064
    %v6069 = vcombine.low %v5880, %v5881
    %v6071 = vunpack.c.l.s4 1966171168
    %v6072 = vunpack.c.0.s8 %v6071
    %v6073 = vlaneseq
    %v6074 = vshrl.u32 %v6073, 7
    %v6075 = vsub.s32 %v6072, %v6074
    %v6076 = vrot.slane %v6069, %v6075
    %v6078 = vunpack.c.l.s4 1966171168
    %v6079 = vunpack.c.0.s8 %v6078
    %v6080 = vlaneseq
    %v6081 = vshrl.u32 %v6080, 7
    %v6082 = vsub.s32 %v6079, %v6081
    %v6083 = vrot.slane %v6076, %v6082
    %6084 = vrot.lane.b32.xlu0 %v6083, 48
    %v6085 = vpop.permute.xlu0 %6084
    %v6089 = vcombine.low %v5890, %v5891
    %v6091 = vunpack.c.l.s4 1966171168
    %v6092 = vunpack.c.0.s8 %v6091
    %v6093 = vlaneseq
    %v6094 = vshrl.u32 %v6093, 7
    %v6095 = vsub.s32 %v6092, %v6094
    %v6096 = vrot.slane %v6089, %v6095
    %v6098 = vunpack.c.l.s4 1966171168
    %v6099 = vunpack.c.0.s8 %v6098
    %v6100 = vlaneseq
    %v6101 = vshrl.u32 %v6100, 7
    %v6102 = vsub.s32 %v6099, %v6101
    %v6103 = vrot.slane %v6096, %v6102
    %6104 = vrot.lane.b32.xlu0 %v6103, 64
    %v6105 = vpop.permute.xlu0 %6104
    %v6109 = vcombine.low %v5900, %v5901
    %v6111 = vunpack.c.l.s4 1966171168
    %v6112 = vunpack.c.0.s8 %v6111
    %v6113 = vlaneseq
    %v6114 = vshrl.u32 %v6113, 7
    %v6115 = vsub.s32 %v6112, %v6114
    %v6116 = vrot.slane %v6109, %v6115
    %v6118 = vunpack.c.l.s4 1966171168
    %v6119 = vunpack.c.0.s8 %v6118
    %v6120 = vlaneseq
    %v6121 = vshrl.u32 %v6120, 7
    %v6122 = vsub.s32 %v6119, %v6121
    %v6123 = vrot.slane %v6116, %v6122
    %6124 = vrot.lane.b32.xlu0 %v6123, 80
    %v6125 = vpop.permute.xlu0 %6124
    %v6127 = vsel %vm1055, %v5918, %v5921
    %v6128 = vsel %vm27, %v6127, %v5924
    %v6129 = vsel %vm1058, %v6128, %v5927
    %v6130 = vsel %vm234, %v6129, %v5947
    %v6131 = vsel %vm1061, %v6130, %v5967
    %v6132 = vsel %vm243, %v6131, %v5987
    %v6133 = vsel %vm1064, %v6132, %v6007
    %v6134 = vsel %vm1055, %v6025, %v6045
    %v6135 = vsel %vm27, %v6134, %v6065
    %v6136 = vsel %vm1058, %v6135, %v6085
    %v6137 = vsel %vm234, %v6136, %v6105
    %v6138 = vsel %vm1061, %v6137, %v6125
    %v6141 = vcombine.low %v6133, %v6138
    %v6143 = vunpack.c.l.s4 1966171168
    %v6144 = vunpack.c.0.s8 %v6143
    %v6145 = vlaneseq
    %v6146 = vshrl.u32 %v6145, 7
    %v6147 = vsub.s32 %v6144, %v6146
    %v6148 = vrot.slane %v6141, %v6147
    %v6149 = vcombine.high %v6148, %v6148
    %v6151 = vunpack.c.l.s4 1966171168
    %v6152 = vunpack.c.0.s8 %v6151
    %v6153 = vlaneseq
    %v6154 = vshrl.u32 %v6153, 7
    %v6155 = vsub.s32 %v6152, %v6154
    %v6156 = vrot.slane %v6148, %v6155
    %v6158 = vunpack.c.l.s4 1966171168
    %v6159 = vunpack.c.0.s8 %v6158
    %v6160 = vlaneseq
    %v6161 = vshrl.u32 %v6160, 7
    %v6162 = vsub.s32 %v6159, %v6161
    %v6163 = vrot.slane %v6149, %v6162
    %6164 = vrot.lane.b32.xlu0 %v6156, 32
    %v6165 = vpop.permute.xlu0 %6164
    %6166 = vrot.lane.b32.xlu0 %v6163, 32
    %v6167 = vpop.permute.xlu0 %6166
    %v6168 = vrot.slane %v6165, 7
    %v6169 = vrot.slane %v6167, 7
    %v6170 = vsel %vm27, %v6168, %v6165
    %v6171 = vsel %vm27, %v6169, %v6167
    %s6174 = scalar_lea.vmem [#allocation4], 30
    %6175 = vst.msk [vmem:[%s6174] ss:$8 sm:$0x3] %vm1109, %v6170
    %6176 = vst.msk [vmem:[%s6174] ss:$8 sm:$0x0] %vm1109, %v6170
    %s6177 = scalar_lea.vmem [#allocation4], 102
    %6178 = vst.msk [vmem:[%s6177] ss:$8 sm:$0x3] %vm1109, %v6171
    %6179 = vst.msk [vmem:[%s6177] ss:$8 sm:$0x0] %vm1109, %v6171
    %s6180 = scalar_lea.vmem [#allocation3], 98
    %v6181 = vld [vmem:[%s6180] ss:$8 sm:$0xf]
    %s6182 = scalar_lea.vmem [#allocation3], 226
    %v6183 = vld [vmem:[%s6182] ss:$8 sm:$0xf]
    %s6184 = scalar_lea.vmem [#allocation3], 99
    %v6185 = vld [vmem:[%s6184] ss:$8 sm:$0xf]
    %s6186 = scalar_lea.vmem [#allocation3], 227
    %v6187 = vld [vmem:[%s6186] ss:$8 sm:$0xf]
    %v6188 = vmax.f32 %v6181, %v6185
    %v6189 = vmax.f32 %v6183, %v6187
    %6192 = vrot.lane.b32.xlu0 %v6188, 112
    %v6193 = vpop.permute.xlu0 %6192
    %6194 = vrot.lane.b32.xlu0 %v6189, 112
    %v6195 = vpop.permute.xlu0 %6194
    %v6198 = vmax.f32 %v6188, %v6193
    %v6199 = vmax.f32 %v6189, %v6195
    %v6200 = vrot.slane %v6188, 1
    %v6201 = vrot.slane %v6189, 1
    %v6204 = vrot.slane %v6193, 1
    %v6205 = vrot.slane %v6195, 1
    %v6208 = vmax.f32 %v6200, %v6204
    %v6209 = vmax.f32 %v6201, %v6205
    %6210 = vrot.lane.b32.xlu0 %v6188, 96
    %v6211 = vpop.permute.xlu0 %6210
    %6212 = vrot.lane.b32.xlu0 %v6189, 96
    %v6213 = vpop.permute.xlu0 %6212
    %v6214 = vrot.slane %v6211, 1
    %v6215 = vrot.slane %v6213, 1
    %6218 = vrot.lane.b32.xlu0 %v6188, 80
    %v6219 = vpop.permute.xlu0 %6218
    %6220 = vrot.lane.b32.xlu0 %v6189, 80
    %v6221 = vpop.permute.xlu0 %6220
    %v6222 = vrot.slane %v6219, 1
    %v6223 = vrot.slane %v6221, 1
    %v6226 = vmax.f32 %v6214, %v6222
    %v6227 = vmax.f32 %v6215, %v6223
    %6228 = vrot.lane.b32.xlu0 %v6188, 64
    %v6229 = vpop.permute.xlu0 %6228
    %6230 = vrot.lane.b32.xlu0 %v6189, 64
    %v6231 = vpop.permute.xlu0 %6230
    %v6232 = vrot.slane %v6229, 1
    %v6233 = vrot.slane %v6231, 1
    %6236 = vrot.lane.b32.xlu0 %v6188, 48
    %v6237 = vpop.permute.xlu0 %6236
    %6238 = vrot.lane.b32.xlu0 %v6189, 48
    %v6239 = vpop.permute.xlu0 %6238
    %v6240 = vrot.slane %v6237, 1
    %v6241 = vrot.slane %v6239, 1
    %v6244 = vmax.f32 %v6232, %v6240
    %v6245 = vmax.f32 %v6233, %v6241
    %6246 = vrot.lane.b32.xlu0 %v6188, 32
    %v6247 = vpop.permute.xlu0 %6246
    %6248 = vrot.lane.b32.xlu0 %v6189, 32
    %v6249 = vpop.permute.xlu0 %6248
    %v6250 = vrot.slane %v6247, 1
    %v6251 = vrot.slane %v6249, 1
    %6254 = vrot.lane.b32.xlu0 %v6188, 16
    %v6255 = vpop.permute.xlu0 %6254
    %6256 = vrot.lane.b32.xlu0 %v6189, 16
    %v6257 = vpop.permute.xlu0 %6256
    %v6258 = vrot.slane %v6255, 1
    %v6259 = vrot.slane %v6257, 1
    %v6262 = vmax.f32 %v6250, %v6258
    %v6263 = vmax.f32 %v6251, %v6259
    %v6264 = vrot.slane %v6188, 2
    %v6265 = vrot.slane %v6189, 2
    %v6268 = vrot.slane %v6193, 2
    %v6269 = vrot.slane %v6195, 2
    %v6272 = vmax.f32 %v6264, %v6268
    %v6273 = vmax.f32 %v6265, %v6269
    %v6274 = vrot.slane %v6211, 2
    %v6275 = vrot.slane %v6213, 2
    %v6278 = vrot.slane %v6219, 2
    %v6279 = vrot.slane %v6221, 2
    %v6282 = vmax.f32 %v6274, %v6278
    %v6283 = vmax.f32 %v6275, %v6279
    %v6284 = vrot.slane %v6229, 2
    %v6285 = vrot.slane %v6231, 2
    %v6288 = vrot.slane %v6237, 2
    %v6289 = vrot.slane %v6239, 2
    %v6292 = vmax.f32 %v6284, %v6288
    %v6293 = vmax.f32 %v6285, %v6289
    %v6294 = vrot.slane %v6247, 2
    %v6295 = vrot.slane %v6249, 2
    %v6298 = vrot.slane %v6255, 2
    %v6299 = vrot.slane %v6257, 2
    %v6302 = vmax.f32 %v6294, %v6298
    %v6303 = vmax.f32 %v6295, %v6299
    %v6304 = vrot.slane %v6188, 3
    %v6305 = vrot.slane %v6189, 3
    %v6308 = vrot.slane %v6193, 3
    %v6309 = vrot.slane %v6195, 3
    %v6312 = vmax.f32 %v6304, %v6308
    %v6313 = vmax.f32 %v6305, %v6309
    %v6314 = vrot.slane %v6211, 3
    %v6315 = vrot.slane %v6213, 3
    %v6318 = vrot.slane %v6219, 3
    %v6319 = vrot.slane %v6221, 3
    %v6322 = vmax.f32 %v6314, %v6318
    %v6323 = vmax.f32 %v6315, %v6319
    %v6326 = vcombine.low %v6198, %v6199
    %v6328 = vunpack.c.l.s4 1966171168
    %v6329 = vunpack.c.0.s8 %v6328
    %v6330 = vlaneseq
    %v6331 = vshrl.u32 %v6330, 7
    %v6332 = vsub.s32 %v6329, %v6331
    %v6333 = vrot.slane %v6326, %v6332
    %v6335 = vunpack.c.l.s4 1966171168
    %v6336 = vunpack.c.0.s8 %v6335
    %v6337 = vlaneseq
    %v6338 = vshrl.u32 %v6337, 7
    %v6339 = vsub.s32 %v6336, %v6338
    %v6340 = vrot.slane %v6333, %v6339
    %6342 = vrot.lane.b32.xlu0 %v6340, 112
    %v6343 = vpop.permute.xlu0 %6342
    %6345 = vrot.lane.b32.xlu0 %v6340, 96
    %v6346 = vpop.permute.xlu0 %6345
    %6348 = vrot.lane.b32.xlu0 %v6340, 80
    %v6349 = vpop.permute.xlu0 %6348
    %v6353 = vcombine.low %v6208, %v6209
    %v6355 = vunpack.c.l.s4 1966171168
    %v6356 = vunpack.c.0.s8 %v6355
    %v6357 = vlaneseq
    %v6358 = vshrl.u32 %v6357, 7
    %v6359 = vsub.s32 %v6356, %v6358
    %v6360 = vrot.slane %v6353, %v6359
    %v6362 = vunpack.c.l.s4 1966171168
    %v6363 = vunpack.c.0.s8 %v6362
    %v6364 = vlaneseq
    %v6365 = vshrl.u32 %v6364, 7
    %v6366 = vsub.s32 %v6363, %v6365
    %v6367 = vrot.slane %v6360, %v6366
    %6368 = vrot.lane.b32.xlu0 %v6367, 64
    %v6369 = vpop.permute.xlu0 %6368
    %v6373 = vcombine.low %v6226, %v6227
    %v6375 = vunpack.c.l.s4 1966171168
    %v6376 = vunpack.c.0.s8 %v6375
    %v6377 = vlaneseq
    %v6378 = vshrl.u32 %v6377, 7
    %v6379 = vsub.s32 %v6376, %v6378
    %v6380 = vrot.slane %v6373, %v6379
    %v6382 = vunpack.c.l.s4 1966171168
    %v6383 = vunpack.c.0.s8 %v6382
    %v6384 = vlaneseq
    %v6385 = vshrl.u32 %v6384, 7
    %v6386 = vsub.s32 %v6383, %v6385
    %v6387 = vrot.slane %v6380, %v6386
    %6388 = vrot.lane.b32.xlu0 %v6387, 80
    %v6389 = vpop.permute.xlu0 %6388
    %v6393 = vcombine.low %v6244, %v6245
    %v6395 = vunpack.c.l.s4 1966171168
    %v6396 = vunpack.c.0.s8 %v6395
    %v6397 = vlaneseq
    %v6398 = vshrl.u32 %v6397, 7
    %v6399 = vsub.s32 %v6396, %v6398
    %v6400 = vrot.slane %v6393, %v6399
    %v6402 = vunpack.c.l.s4 1966171168
    %v6403 = vunpack.c.0.s8 %v6402
    %v6404 = vlaneseq
    %v6405 = vshrl.u32 %v6404, 7
    %v6406 = vsub.s32 %v6403, %v6405
    %v6407 = vrot.slane %v6400, %v6406
    %6408 = vrot.lane.b32.xlu0 %v6407, 96
    %v6409 = vpop.permute.xlu0 %6408
    %v6413 = vcombine.low %v6262, %v6263
    %v6415 = vunpack.c.l.s4 1966171168
    %v6416 = vunpack.c.0.s8 %v6415
    %v6417 = vlaneseq
    %v6418 = vshrl.u32 %v6417, 7
    %v6419 = vsub.s32 %v6416, %v6418
    %v6420 = vrot.slane %v6413, %v6419
    %v6422 = vunpack.c.l.s4 1966171168
    %v6423 = vunpack.c.0.s8 %v6422
    %v6424 = vlaneseq
    %v6425 = vshrl.u32 %v6424, 7
    %v6426 = vsub.s32 %v6423, %v6425
    %v6427 = vrot.slane %v6420, %v6426
    %6428 = vrot.lane.b32.xlu0 %v6427, 112
    %v6429 = vpop.permute.xlu0 %6428
    %v6433 = vcombine.low %v6272, %v6273
    %v6435 = vunpack.c.l.s4 1966171168
    %v6436 = vunpack.c.0.s8 %v6435
    %v6437 = vlaneseq
    %v6438 = vshrl.u32 %v6437, 7
    %v6439 = vsub.s32 %v6436, %v6438
    %v6440 = vrot.slane %v6433, %v6439
    %v6442 = vunpack.c.l.s4 1966171168
    %v6443 = vunpack.c.0.s8 %v6442
    %v6444 = vlaneseq
    %v6445 = vshrl.u32 %v6444, 7
    %v6446 = vsub.s32 %v6443, %v6445
    %v6447 = vrot.slane %v6440, %v6446
    %v6451 = vcombine.low %v6282, %v6283
    %v6453 = vunpack.c.l.s4 1966171168
    %v6454 = vunpack.c.0.s8 %v6453
    %v6455 = vlaneseq
    %v6456 = vshrl.u32 %v6455, 7
    %v6457 = vsub.s32 %v6454, %v6456
    %v6458 = vrot.slane %v6451, %v6457
    %v6460 = vunpack.c.l.s4 1966171168
    %v6461 = vunpack.c.0.s8 %v6460
    %v6462 = vlaneseq
    %v6463 = vshrl.u32 %v6462, 7
    %v6464 = vsub.s32 %v6461, %v6463
    %v6465 = vrot.slane %v6458, %v6464
    %6466 = vrot.lane.b32.xlu0 %v6465, 16
    %v6467 = vpop.permute.xlu0 %6466
    %v6471 = vcombine.low %v6292, %v6293
    %v6473 = vunpack.c.l.s4 1966171168
    %v6474 = vunpack.c.0.s8 %v6473
    %v6475 = vlaneseq
    %v6476 = vshrl.u32 %v6475, 7
    %v6477 = vsub.s32 %v6474, %v6476
    %v6478 = vrot.slane %v6471, %v6477
    %v6480 = vunpack.c.l.s4 1966171168
    %v6481 = vunpack.c.0.s8 %v6480
    %v6482 = vlaneseq
    %v6483 = vshrl.u32 %v6482, 7
    %v6484 = vsub.s32 %v6481, %v6483
    %v6485 = vrot.slane %v6478, %v6484
    %6486 = vrot.lane.b32.xlu0 %v6485, 32
    %v6487 = vpop.permute.xlu0 %6486
    %v6491 = vcombine.low %v6302, %v6303
    %v6493 = vunpack.c.l.s4 1966171168
    %v6494 = vunpack.c.0.s8 %v6493
    %v6495 = vlaneseq
    %v6496 = vshrl.u32 %v6495, 7
    %v6497 = vsub.s32 %v6494, %v6496
    %v6498 = vrot.slane %v6491, %v6497
    %v6500 = vunpack.c.l.s4 1966171168
    %v6501 = vunpack.c.0.s8 %v6500
    %v6502 = vlaneseq
    %v6503 = vshrl.u32 %v6502, 7
    %v6504 = vsub.s32 %v6501, %v6503
    %v6505 = vrot.slane %v6498, %v6504
    %6506 = vrot.lane.b32.xlu0 %v6505, 48
    %v6507 = vpop.permute.xlu0 %6506
    %v6511 = vcombine.low %v6312, %v6313
    %v6513 = vunpack.c.l.s4 1966171168
    %v6514 = vunpack.c.0.s8 %v6513
    %v6515 = vlaneseq
    %v6516 = vshrl.u32 %v6515, 7
    %v6517 = vsub.s32 %v6514, %v6516
    %v6518 = vrot.slane %v6511, %v6517
    %v6520 = vunpack.c.l.s4 1966171168
    %v6521 = vunpack.c.0.s8 %v6520
    %v6522 = vlaneseq
    %v6523 = vshrl.u32 %v6522, 7
    %v6524 = vsub.s32 %v6521, %v6523
    %v6525 = vrot.slane %v6518, %v6524
    %6526 = vrot.lane.b32.xlu0 %v6525, 64
    %v6527 = vpop.permute.xlu0 %6526
    %v6531 = vcombine.low %v6322, %v6323
    %v6533 = vunpack.c.l.s4 1966171168
    %v6534 = vunpack.c.0.s8 %v6533
    %v6535 = vlaneseq
    %v6536 = vshrl.u32 %v6535, 7
    %v6537 = vsub.s32 %v6534, %v6536
    %v6538 = vrot.slane %v6531, %v6537
    %v6540 = vunpack.c.l.s4 1966171168
    %v6541 = vunpack.c.0.s8 %v6540
    %v6542 = vlaneseq
    %v6543 = vshrl.u32 %v6542, 7
    %v6544 = vsub.s32 %v6541, %v6543
    %v6545 = vrot.slane %v6538, %v6544
    %6546 = vrot.lane.b32.xlu0 %v6545, 80
    %v6547 = vpop.permute.xlu0 %6546
    %v6549 = vsel %vm1055, %v6340, %v6343
    %v6550 = vsel %vm27, %v6549, %v6346
    %v6551 = vsel %vm1058, %v6550, %v6349
    %v6552 = vsel %vm234, %v6551, %v6369
    %v6553 = vsel %vm1061, %v6552, %v6389
    %v6554 = vsel %vm243, %v6553, %v6409
    %v6555 = vsel %vm1064, %v6554, %v6429
    %v6556 = vsel %vm1055, %v6447, %v6467
    %v6557 = vsel %vm27, %v6556, %v6487
    %v6558 = vsel %vm1058, %v6557, %v6507
    %v6559 = vsel %vm234, %v6558, %v6527
    %v6560 = vsel %vm1061, %v6559, %v6547
    %v6563 = vcombine.low %v6555, %v6560
    %v6565 = vunpack.c.l.s4 1966171168
    %v6566 = vunpack.c.0.s8 %v6565
    %v6567 = vlaneseq
    %v6568 = vshrl.u32 %v6567, 7
    %v6569 = vsub.s32 %v6566, %v6568
    %v6570 = vrot.slane %v6563, %v6569
    %v6571 = vcombine.high %v6570, %v6570
    %v6573 = vunpack.c.l.s4 1966171168
    %v6574 = vunpack.c.0.s8 %v6573
    %v6575 = vlaneseq
    %v6576 = vshrl.u32 %v6575, 7
    %v6577 = vsub.s32 %v6574, %v6576
    %v6578 = vrot.slane %v6570, %v6577
    %v6580 = vunpack.c.l.s4 1966171168
    %v6581 = vunpack.c.0.s8 %v6580
    %v6582 = vlaneseq
    %v6583 = vshrl.u32 %v6582, 7
    %v6584 = vsub.s32 %v6581, %v6583
    %v6585 = vrot.slane %v6571, %v6584
    %6586 = vrot.lane.b32.xlu0 %v6578, 32
    %v6587 = vpop.permute.xlu0 %6586
    %6588 = vrot.lane.b32.xlu0 %v6585, 32
    %v6589 = vpop.permute.xlu0 %6588
    %v6590 = vrot.slane %v6587, 7
    %v6591 = vrot.slane %v6589, 7
    %v6592 = vsel %vm27, %v6590, %v6587
    %v6593 = vsel %vm27, %v6591, %v6589
    %s6596 = scalar_lea.vmem [#allocation4], 31
    %6597 = vst.msk [vmem:[%s6596] ss:$8 sm:$0x3] %vm1109, %v6592
    %6598 = vst.msk [vmem:[%s6596] ss:$8 sm:$0x0] %vm1109, %v6592
    %s6599 = scalar_lea.vmem [#allocation4], 103
    %6600 = vst.msk [vmem:[%s6599] ss:$8 sm:$0x3] %vm1109, %v6593
    %6601 = vst.msk [vmem:[%s6599] ss:$8 sm:$0x0] %vm1109, %v6593
    %v6602 = vld [vmem:[#allocation4] sm:$0xff]
    %v6603 = vld [vmem:[#allocation4 + $0x8] sm:$0xff]
    %v6604 = vld [vmem:[#allocation4 + $0x10] sm:$0xff]
    %v6605 = vld [vmem:[#allocation4 + $0x18] sm:$0xff]
    %v6606 = vld [vmem:[#allocation4 + $0x20] sm:$0xff]
    %v6607 = vld [vmem:[#allocation4 + $0x28] sm:$0xff]
    %s6608 = scalar_lea.vmem [#allocation4], 72
    %v6609 = vld [vmem:[%s6608] sm:$0xff]
    %v6610 = vld [vmem:[%s6608 + $0x8] sm:$0xff]
    %v6611 = vld [vmem:[%s6608 + $0x10] sm:$0xff]
    %v6612 = vld [vmem:[%s6608 + $0x18] sm:$0xff]
    %v6613 = vld [vmem:[%s6608 + $0x20] sm:$0xff]
    %v6614 = vld [vmem:[%s6608 + $0x28] sm:$0xff]
    %v6615 = vld [vmem:[#allocation4] sm:$0xfe]
    %v6616 = vld [vmem:[#allocation4 + $0x8] sm:$0xfe]
    %v6617 = vld [vmem:[#allocation4 + $0x10] sm:$0xfe]
    %v6618 = vld [vmem:[#allocation4 + $0x30] sm:$0x1]
    %v6619 = vld [vmem:[#allocation4 + $0x38] sm:$0x1]
    %v6620 = vld [vmem:[#allocation4 + $0x40] sm:$0x1]
    %v6621 = vld [vmem:[%s6608] sm:$0xfe]
    %v6622 = vld [vmem:[%s6608 + $0x8] sm:$0xfe]
    %v6623 = vld [vmem:[%s6608 + $0x10] sm:$0xfe]
    %v6624 = vld [vmem:[%s6608 + $0x30] sm:$0x1]
    %v6625 = vld [vmem:[%s6608 + $0x38] sm:$0x1]
    %v6626 = vld [vmem:[%s6608 + $0x40] sm:$0x1]
    %vm6636 = vcmask 1046528
    %v6637 = vrot.slane %v6615, 1
    %v6638 = vrot.slane %v6605, 1
    %v6639 = vsel %vm6636, %v6637, %v6638
    %v6640 = vrot.slane %v6616, 1
    %v6641 = vrot.slane %v6606, 1
    %v6642 = vsel %vm6636, %v6640, %v6641
    %v6643 = vrot.slane %v6617, 1
    %v6644 = vrot.slane %v6607, 1
    %v6645 = vsel %vm6636, %v6643, %v6644
    %v6646 = vrot.slane %v6618, 1
    %v6647 = vsel %vm6636, %v6638, %v6646
    %v6648 = vrot.slane %v6619, 1
    %v6649 = vsel %vm6636, %v6641, %v6648
    %v6650 = vrot.slane %v6620, 1
    %v6651 = vsel %vm6636, %v6644, %v6650
    %v6661 = vrot.slane %v6621, 1
    %v6662 = vrot.slane %v6612, 1
    %v6663 = vsel %vm6636, %v6661, %v6662
    %v6664 = vrot.slane %v6622, 1
    %v6665 = vrot.slane %v6613, 1
    %v6666 = vsel %vm6636, %v6664, %v6665
    %v6667 = vrot.slane %v6623, 1
    %v6668 = vrot.slane %v6614, 1
    %v6669 = vsel %vm6636, %v6667, %v6668
    %v6670 = vrot.slane %v6624, 1
    %v6671 = vsel %vm6636, %v6662, %v6670
    %v6672 = vrot.slane %v6625, 1
    %v6673 = vsel %vm6636, %v6665, %v6672
    %v6674 = vrot.slane %v6626, 1
    %v6675 = vsel %vm6636, %v6668, %v6674
    %v6676 = vld [vmem:[#allocation4] sm:$0xfc]
    %v6677 = vld [vmem:[#allocation4 + $0x8] sm:$0xfc]
    %v6678 = vld [vmem:[#allocation4 + $0x10] sm:$0xfc]
    %v6679 = vld [vmem:[#allocation4 + $0x30] sm:$0x3]
    %v6680 = vld [vmem:[#allocation4 + $0x38] sm:$0x3]
    %v6681 = vld [vmem:[#allocation4 + $0x40] sm:$0x3]
    %v6682 = vld [vmem:[%s6608] sm:$0xfc]
    %v6683 = vld [vmem:[%s6608 + $0x8] sm:$0xfc]
    %v6684 = vld [vmem:[%s6608 + $0x10] sm:$0xfc]
    %v6685 = vld [vmem:[%s6608 + $0x30] sm:$0x3]
    %v6686 = vld [vmem:[%s6608 + $0x38] sm:$0x3]
    %v6687 = vld [vmem:[%s6608 + $0x40] sm:$0x3]
    %vm6694 = vcmask 1045504
    %v6695 = vrot.slane %v6676, 2
    %v6696 = vrot.slane %v6605, 2
    %v6697 = vsel %vm6694, %v6695, %v6696
    %v6698 = vrot.slane %v6677, 2
    %v6699 = vrot.slane %v6606, 2
    %v6700 = vsel %vm6694, %v6698, %v6699
    %v6701 = vrot.slane %v6678, 2
    %v6702 = vrot.slane %v6607, 2
    %v6703 = vsel %vm6694, %v6701, %v6702
    %v6704 = vrot.slane %v6679, 2
    %v6705 = vsel %vm6694, %v6696, %v6704
    %v6706 = vrot.slane %v6680, 2
    %v6707 = vsel %vm6694, %v6699, %v6706
    %v6708 = vrot.slane %v6681, 2
    %v6709 = vsel %vm6694, %v6702, %v6708
    %v6716 = vrot.slane %v6682, 2
    %v6717 = vrot.slane %v6612, 2
    %v6718 = vsel %vm6694, %v6716, %v6717
    %v6719 = vrot.slane %v6683, 2
    %v6720 = vrot.slane %v6613, 2
    %v6721 = vsel %vm6694, %v6719, %v6720
    %v6722 = vrot.slane %v6684, 2
    %v6723 = vrot.slane %v6614, 2
    %v6724 = vsel %vm6694, %v6722, %v6723
    %v6725 = vrot.slane %v6685, 2
    %v6726 = vsel %vm6694, %v6717, %v6725
    %v6727 = vrot.slane %v6686, 2
    %v6728 = vsel %vm6694, %v6720, %v6727
    %v6729 = vrot.slane %v6687, 2
    %v6730 = vsel %vm6694, %v6723, %v6729
    %v6731 = vld [vmem:[#allocation4] sm:$0xf8]
    %v6732 = vld [vmem:[#allocation4 + $0x8] sm:$0xf8]
    %v6733 = vld [vmem:[#allocation4 + $0x10] sm:$0xf8]
    %v6734 = vld [vmem:[#allocation4 + $0x30] sm:$0x7]
    %v6735 = vld [vmem:[#allocation4 + $0x38] sm:$0x7]
    %v6736 = vld [vmem:[#allocation4 + $0x40] sm:$0x7]
    %v6737 = vld [vmem:[%s6608] sm:$0xf8]
    %v6738 = vld [vmem:[%s6608 + $0x8] sm:$0xf8]
    %v6739 = vld [vmem:[%s6608 + $0x10] sm:$0xf8]
    %v6740 = vld [vmem:[%s6608 + $0x30] sm:$0x7]
    %v6741 = vld [vmem:[%s6608 + $0x38] sm:$0x7]
    %v6742 = vld [vmem:[%s6608 + $0x40] sm:$0x7]
    %vm6749 = vcmask 1044480
    %v6750 = vrot.slane %v6731, 3
    %v6751 = vrot.slane %v6605, 3
    %v6752 = vsel %vm6749, %v6750, %v6751
    %v6753 = vrot.slane %v6732, 3
    %v6754 = vrot.slane %v6606, 3
    %v6755 = vsel %vm6749, %v6753, %v6754
    %v6756 = vrot.slane %v6733, 3
    %v6757 = vrot.slane %v6607, 3
    %v6758 = vsel %vm6749, %v6756, %v6757
    %v6759 = vrot.slane %v6734, 3
    %v6760 = vsel %vm6749, %v6751, %v6759
    %v6761 = vrot.slane %v6735, 3
    %v6762 = vsel %vm6749, %v6754, %v6761
    %v6763 = vrot.slane %v6736, 3
    %v6764 = vsel %vm6749, %v6757, %v6763
    %v6771 = vrot.slane %v6737, 3
    %v6772 = vrot.slane %v6612, 3
    %v6773 = vsel %vm6749, %v6771, %v6772
    %v6774 = vrot.slane %v6738, 3
    %v6775 = vrot.slane %v6613, 3
    %v6776 = vsel %vm6749, %v6774, %v6775
    %v6777 = vrot.slane %v6739, 3
    %v6778 = vrot.slane %v6614, 3
    %v6779 = vsel %vm6749, %v6777, %v6778
    %v6780 = vrot.slane %v6740, 3
    %v6781 = vsel %vm6749, %v6772, %v6780
    %v6782 = vrot.slane %v6741, 3
    %v6783 = vsel %vm6749, %v6775, %v6782
    %v6784 = vrot.slane %v6742, 3
    %v6785 = vsel %vm6749, %v6778, %v6784
    %v6786 = vld [vmem:[#allocation4] sm:$0xf0]
    %v6787 = vld [vmem:[#allocation4 + $0x8] sm:$0xf0]
    %v6788 = vld [vmem:[#allocation4 + $0x10] sm:$0xf0]
    %v6789 = vld [vmem:[#allocation4 + $0x30] sm:$0xf]
    %v6790 = vld [vmem:[#allocation4 + $0x38] sm:$0xf]
    %v6791 = vld [vmem:[#allocation4 + $0x40] sm:$0xf]
    %v6792 = vld [vmem:[%s6608] sm:$0xf0]
    %v6793 = vld [vmem:[%s6608 + $0x8] sm:$0xf0]
    %v6794 = vld [vmem:[%s6608 + $0x10] sm:$0xf0]
    %v6795 = vld [vmem:[%s6608 + $0x30] sm:$0xf]
    %v6796 = vld [vmem:[%s6608 + $0x38] sm:$0xf]
    %v6797 = vld [vmem:[%s6608 + $0x40] sm:$0xf]
    %vm6804 = vcmask 1043456
    %v6805 = vrot.slane %v6786, 4
    %v6806 = vrot.slane %v6605, 4
    %v6807 = vsel %vm6804, %v6805, %v6806
    %v6808 = vrot.slane %v6787, 4
    %v6809 = vrot.slane %v6606, 4
    %v6810 = vsel %vm6804, %v6808, %v6809
    %v6811 = vrot.slane %v6788, 4
    %v6812 = vrot.slane %v6607, 4
    %v6813 = vsel %vm6804, %v6811, %v6812
    %v6814 = vrot.slane %v6789, 4
    %v6815 = vsel %vm6804, %v6806, %v6814
    %v6816 = vrot.slane %v6790, 4
    %v6817 = vsel %vm6804, %v6809, %v6816
    %v6818 = vrot.slane %v6791, 4
    %v6819 = vsel %vm6804, %v6812, %v6818
    %v6830 = vrot.slane %v6792, 4
    %v6831 = vrot.slane %v6612, 4
    %v6832 = vsel %vm6804, %v6830, %v6831
    %v6833 = vrot.slane %v6793, 4
    %v6834 = vrot.slane %v6613, 4
    %v6835 = vsel %vm6804, %v6833, %v6834
    %v6836 = vrot.slane %v6794, 4
    %v6837 = vrot.slane %v6614, 4
    %v6838 = vsel %vm6804, %v6836, %v6837
    %v6839 = vrot.slane %v6795, 4
    %v6840 = vsel %vm6804, %v6831, %v6839
    %v6841 = vrot.slane %v6796, 4
    %v6842 = vsel %vm6804, %v6834, %v6841
    %v6843 = vrot.slane %v6797, 4
    %v6844 = vsel %vm6804, %v6837, %v6843
    %6849 = vrot.lane.b32.xlu0 %v6639, 32
    %v6850 = vpop.permute.xlu0 %6849
    %6851 = vrot.lane.b32.xlu0 %v6642, 32
    %v6852 = vpop.permute.xlu0 %6851
    %6853 = vrot.lane.b32.xlu0 %v6645, 32
    %v6854 = vpop.permute.xlu0 %6853
    %6855 = vrot.lane.b32.xlu0 %v6647, 32
    %v6856 = vpop.permute.xlu0 %6855
    %6857 = vrot.lane.b32.xlu0 %v6649, 32
    %v6858 = vpop.permute.xlu0 %6857
    %6859 = vrot.lane.b32.xlu0 %v6651, 32
    %v6860 = vpop.permute.xlu0 %6859
    %6861 = vrot.lane.b32.xlu0 %v6663, 32
    %v6862 = vpop.permute.xlu0 %6861
    %6863 = vrot.lane.b32.xlu0 %v6666, 32
    %v6864 = vpop.permute.xlu0 %6863
    %6865 = vrot.lane.b32.xlu0 %v6669, 32
    %v6866 = vpop.permute.xlu0 %6865
    %6867 = vrot.lane.b32.xlu0 %v6671, 32
    %v6868 = vpop.permute.xlu0 %6867
    %6869 = vrot.lane.b32.xlu0 %v6673, 32
    %v6870 = vpop.permute.xlu0 %6869
    %6871 = vrot.lane.b32.xlu0 %v6675, 32
    %v6872 = vpop.permute.xlu0 %6871
    %v6873 = vsel %vm27, %v6850, %v6852
    %v6874 = vsel %vm27, %v6852, %v6854
    %v6875 = vsel %vm27, %v6856, %v6858
    %v6876 = vsel %vm27, %v6858, %v6860
    %v6877 = vsel %vm27, %v6862, %v6864
    %v6878 = vsel %vm27, %v6864, %v6866
    %v6879 = vsel %vm27, %v6868, %v6870
    %v6880 = vsel %vm27, %v6870, %v6872
    %6893 = vrot.lane.b32.xlu0 %v6697, 64
    %v6894 = vpop.permute.xlu0 %6893
    %6895 = vrot.lane.b32.xlu0 %v6700, 64
    %v6896 = vpop.permute.xlu0 %6895
    %6897 = vrot.lane.b32.xlu0 %v6703, 64
    %v6898 = vpop.permute.xlu0 %6897
    %6899 = vrot.lane.b32.xlu0 %v6705, 64
    %v6900 = vpop.permute.xlu0 %6899
    %6901 = vrot.lane.b32.xlu0 %v6707, 64
    %v6902 = vpop.permute.xlu0 %6901
    %6903 = vrot.lane.b32.xlu0 %v6709, 64
    %v6904 = vpop.permute.xlu0 %6903
    %6905 = vrot.lane.b32.xlu0 %v6718, 64
    %v6906 = vpop.permute.xlu0 %6905
    %6907 = vrot.lane.b32.xlu0 %v6721, 64
    %v6908 = vpop.permute.xlu0 %6907
    %6909 = vrot.lane.b32.xlu0 %v6724, 64
    %v6910 = vpop.permute.xlu0 %6909
    %6911 = vrot.lane.b32.xlu0 %v6726, 64
    %v6912 = vpop.permute.xlu0 %6911
    %6913 = vrot.lane.b32.xlu0 %v6728, 64
    %v6914 = vpop.permute.xlu0 %6913
    %6915 = vrot.lane.b32.xlu0 %v6730, 64
    %v6916 = vpop.permute.xlu0 %6915
    %v6917 = vsel %vm234, %v6894, %v6896
    %v6918 = vsel %vm234, %v6896, %v6898
    %v6919 = vsel %vm234, %v6900, %v6902
    %v6920 = vsel %vm234, %v6902, %v6904
    %v6921 = vsel %vm234, %v6906, %v6908
    %v6922 = vsel %vm234, %v6908, %v6910
    %v6923 = vsel %vm234, %v6912, %v6914
    %v6924 = vsel %vm234, %v6914, %v6916
    %6937 = vrot.lane.b32.xlu0 %v6752, 96
    %v6938 = vpop.permute.xlu0 %6937
    %6939 = vrot.lane.b32.xlu0 %v6755, 96
    %v6940 = vpop.permute.xlu0 %6939
    %6941 = vrot.lane.b32.xlu0 %v6758, 96
    %v6942 = vpop.permute.xlu0 %6941
    %6943 = vrot.lane.b32.xlu0 %v6760, 96
    %v6944 = vpop.permute.xlu0 %6943
    %6945 = vrot.lane.b32.xlu0 %v6762, 96
    %v6946 = vpop.permute.xlu0 %6945
    %6947 = vrot.lane.b32.xlu0 %v6764, 96
    %v6948 = vpop.permute.xlu0 %6947
    %6949 = vrot.lane.b32.xlu0 %v6773, 96
    %v6950 = vpop.permute.xlu0 %6949
    %6951 = vrot.lane.b32.xlu0 %v6776, 96
    %v6952 = vpop.permute.xlu0 %6951
    %6953 = vrot.lane.b32.xlu0 %v6779, 96
    %v6954 = vpop.permute.xlu0 %6953
    %6955 = vrot.lane.b32.xlu0 %v6781, 96
    %v6956 = vpop.permute.xlu0 %6955
    %6957 = vrot.lane.b32.xlu0 %v6783, 96
    %v6958 = vpop.permute.xlu0 %6957
    %6959 = vrot.lane.b32.xlu0 %v6785, 96
    %v6960 = vpop.permute.xlu0 %6959
    %v6961 = vsel %vm243, %v6938, %v6940
    %v6962 = vsel %vm243, %v6940, %v6942
    %v6963 = vsel %vm243, %v6944, %v6946
    %v6964 = vsel %vm243, %v6946, %v6948
    %v6965 = vsel %vm243, %v6950, %v6952
    %v6966 = vsel %vm243, %v6952, %v6954
    %v6967 = vsel %vm243, %v6956, %v6958
    %v6968 = vsel %vm243, %v6958, %v6960
    %v6981 = vsel %vm27, %v6604, %v6850
    %v6982 = vsel %vm27, %v6607, %v6856
    %v6983 = vsel %vm27, %v6611, %v6862
    %v6984 = vsel %vm27, %v6614, %v6868
    %v6985 = vsel %vm234, %v6874, %v6894
    %v6986 = vsel %vm234, %v6876, %v6900
    %v6987 = vsel %vm234, %v6878, %v6906
    %v6988 = vsel %vm234, %v6880, %v6912
    %v6989 = vsel %vm243, %v6918, %v6938
    %v6990 = vsel %vm243, %v6920, %v6944
    %v6991 = vsel %vm243, %v6922, %v6950
    %v6992 = vsel %vm243, %v6924, %v6956
    %v6993 = vld [vmem:[%s3] sm:$0xff]
    %v6994 = vld [vmem:[%s3 + $0x8] sm:$0xff]
    %v6995 = vld [vmem:[%s3 + $0x10] sm:$0xff]
    %v6996 = vld [vmem:[%s3 + $0x18] sm:$0xff]
    %v6997 = vld [vmem:[%s3 + $0x20] sm:$0xff]
    %v6998 = vld [vmem:[%s3 + $0x28] sm:$0xff]
    %v6999 = vld [vmem:[%s3 + $0x30] sm:$0xff]
    %v7000 = vld [vmem:[%s3 + $0x38] sm:$0xff]
    %v7001 = vld [vmem:[%s3 + $0x40] sm:$0xff]
    %v7002 = vld [vmem:[%s3 + $0x48] sm:$0xff]
    %v7003 = vld [vmem:[%s3 + $0x50] sm:$0xff]
    %v7004 = vld [vmem:[%s3 + $0x58] sm:$0xff]
    %v7005 = vld [vmem:[%s3 + $0x60] sm:$0xff]
    %v7006 = vld [vmem:[%s3 + $0x68] sm:$0xff]
    %v7007 = vld [vmem:[%s3 + $0x70] sm:$0xff]
    %v7008 = vld [vmem:[%s3 + $0x78] sm:$0xff]
    %v7009 = vld [vmem:[%s3 + $0x80] sm:$0xff]
    %v7010 = vld [vmem:[%s3 + $0x88] sm:$0xff]
    %v7011 = vld [vmem:[%s3 + $0x90] sm:$0xff]
    %v7012 = vld [vmem:[%s3 + $0x98] sm:$0xff]
    %v7013 = vld [vmem:[%s3 + $0xa0] sm:$0xff]
    %v7014 = vld [vmem:[%s3 + $0xa8] sm:$0xff]
    %v7015 = vld [vmem:[%s3 + $0xb0] sm:$0xff]
    %v7016 = vld [vmem:[%s3 + $0xb8] sm:$0xff]
    %v7017 = vld [vmem:[%s3 + $0xc0] sm:$0xff]
    %v7018 = vld [vmem:[%s3 + $0xc8] sm:$0xff]
    %v7019 = vld [vmem:[%s3 + $0xd0] sm:$0xff]
    %v7020 = vld [vmem:[%s3 + $0xd8] sm:$0xff]
    %v7021 = vld [vmem:[%s3 + $0xe0] sm:$0xff]
    %v7022 = vld [vmem:[%s3 + $0xe8] sm:$0xff]
    %v7023 = vld [vmem:[%s3 + $0xf0] sm:$0xff]
    %v7024 = vld [vmem:[%s3 + $0xf8] sm:$0xff]
    %v7025 = vld [vmem:[%s3 + $0x100] sm:$0xff]
    %v7026 = vld [vmem:[%s3 + $0x108] sm:$0xff]
    %v7027 = vld [vmem:[%s3 + $0x110] sm:$0xff]
    %v7028 = vld [vmem:[%s3 + $0x118] sm:$0xff]
    %v7029 = vld [vmem:[%s3 + $0x120] sm:$0xff]
    %v7030 = vld [vmem:[%s3 + $0x128] sm:$0xff]
    %v7031 = vld [vmem:[%s3 + $0x130] sm:$0xff]
    %v7032 = vld [vmem:[%s3 + $0x138] sm:$0xff]
    %v7033 = vld [vmem:[%s3 + $0x140] sm:$0xff]
    %v7034 = vld [vmem:[%s3 + $0x148] sm:$0xff]
    %v7035 = vld [vmem:[%s3 + $0x150] sm:$0xff]
    %v7036 = vld [vmem:[%s3 + $0x158] sm:$0xff]
    %v7037 = vld [vmem:[%s3 + $0x160] sm:$0xff]
    %v7038 = vld [vmem:[%s3 + $0x168] sm:$0xff]
    %v7039 = vld [vmem:[%s3 + $0x170] sm:$0xff]
    %v7040 = vld [vmem:[%s3 + $0x178] sm:$0xff]
    %v7041 = vld [vmem:[%s3 + $0x180] sm:$0xff]
    %v7042 = vld [vmem:[%s3 + $0x188] sm:$0xff]
    %v7043 = vld [vmem:[%s3 + $0x190] sm:$0xff]
    %v7044 = vld [vmem:[%s3 + $0x198] sm:$0xff]
    %v7045 = vld [vmem:[%s3 + $0x1a0] sm:$0xff]
    %v7046 = vld [vmem:[%s3 + $0x1a8] sm:$0xff]
    %v7047 = vld [vmem:[%s3 + $0x1b0] sm:$0xff]
    %v7048 = vld [vmem:[%s3 + $0x1b8] sm:$0xff]
    %v7049 = vld [vmem:[%s3 + $0x1c0] sm:$0xff]
    %v7050 = vld [vmem:[%s3 + $0x1c8] sm:$0xff]
    %v7051 = vld [vmem:[%s3 + $0x1d0] sm:$0xff]
    %v7052 = vld [vmem:[%s3 + $0x1d8] sm:$0xff]
    %v7053 = vld [vmem:[%s3 + $0x1e0] sm:$0xff]
    %v7054 = vld [vmem:[%s3 + $0x1e8] sm:$0xff]
    %v7055 = vld [vmem:[%s3 + $0x1f0] sm:$0xff]
    %v7056 = vld [vmem:[%s3 + $0x1f8] sm:$0xff]
    %v7057 = vld [vmem:[%s3 + $0x200] sm:$0xff]
    %v7058 = vld [vmem:[%s3 + $0x208] sm:$0xff]
    %v7059 = vld [vmem:[%s3 + $0x210] sm:$0xff]
    %v7060 = vld [vmem:[%s3 + $0x218] sm:$0xff]
    %v7061 = vld [vmem:[%s3 + $0x220] sm:$0xff]
    %v7062 = vld [vmem:[%s3 + $0x228] sm:$0xff]
    %v7063 = vld [vmem:[%s3 + $0x230] sm:$0xff]
    %v7064 = vld [vmem:[%s3 + $0x238] sm:$0xff]
    %v7065 = vld [vmem:[%s3 + $0x240] sm:$0xff]
    %v7066 = vld [vmem:[%s3 + $0x248] sm:$0xff]
    %v7067 = vld [vmem:[%s3 + $0x250] sm:$0xff]
    %v7068 = vld [vmem:[%s3 + $0x258] sm:$0xff]
    %v7069 = vld [vmem:[%s3 + $0x260] sm:$0xff]
    %v7070 = vld [vmem:[%s3 + $0x268] sm:$0xff]
    %v7071 = vld [vmem:[%s3 + $0x270] sm:$0xff]
    %v7072 = vld [vmem:[%s3 + $0x278] sm:$0xff]
    %v7073 = vld [vmem:[%s3 + $0x280] sm:$0xff]
    %v7074 = vld [vmem:[%s3 + $0x288] sm:$0xff]
    %v7075 = vld [vmem:[%s3 + $0x290] sm:$0xff]
    %v7076 = vld [vmem:[%s3 + $0x298] sm:$0xff]
    %v7077 = vld [vmem:[%s3 + $0x2a0] sm:$0xff]
    %v7078 = vld [vmem:[%s3 + $0x2a8] sm:$0xff]
    %v7079 = vld [vmem:[%s3 + $0x2b0] sm:$0xff]
    %v7080 = vld [vmem:[%s3 + $0x2b8] sm:$0xff]
    %v7081 = vld [vmem:[%s3 + $0x2c0] sm:$0xff]
    %v7082 = vld [vmem:[%s3 + $0x2c8] sm:$0xff]
    %v7083 = vld [vmem:[%s3 + $0x2d0] sm:$0xff]
    %v7084 = vld [vmem:[%s3 + $0x2d8] sm:$0xff]
    %v7085 = vld [vmem:[%s3 + $0x2e0] sm:$0xff]
    %v7086 = vld [vmem:[%s3 + $0x2e8] sm:$0xff]
    %v7087 = vld [vmem:[%s3 + $0x2f0] sm:$0xff]
    %v7088 = vld [vmem:[%s3 + $0x2f8] sm:$0xff]
    %v7089 = vld [vmem:[%s3 + $0x300] sm:$0xff]
    %v7090 = vld [vmem:[%s3 + $0x308] sm:$0xff]
    %v7091 = vld [vmem:[%s3 + $0x310] sm:$0xff]
    %v7092 = vld [vmem:[%s3 + $0x318] sm:$0xff]
    %v7093 = vld [vmem:[%s3 + $0x320] sm:$0xff]
    %v7094 = vld [vmem:[%s3 + $0x328] sm:$0xff]
    %v7095 = vld [vmem:[%s3 + $0x330] sm:$0xff]
    %v7096 = vld [vmem:[%s3 + $0x338] sm:$0xff]
    %v7097 = vld [vmem:[%s3 + $0x340] sm:$0xff]
    %v7098 = vld [vmem:[%s3 + $0x348] sm:$0xff]
    %v7099 = vld [vmem:[%s3 + $0x350] sm:$0xff]
    %v7100 = vld [vmem:[%s3 + $0x358] sm:$0xff]
    %v7101 = vld [vmem:[%s3 + $0x360] sm:$0xff]
    %v7102 = vld [vmem:[%s3 + $0x368] sm:$0xff]
    %v7103 = vld [vmem:[%s3 + $0x370] sm:$0xff]
    %v7104 = vld [vmem:[%s3 + $0x378] sm:$0xff]
    %v7105 = vld [vmem:[%s3 + $0x380] sm:$0xff]
    %v7106 = vld [vmem:[%s3 + $0x388] sm:$0xff]
    %v7107 = vld [vmem:[%s3 + $0x390] sm:$0xff]
    %v7108 = vld [vmem:[%s3 + $0x398] sm:$0xff]
    %v7109 = vld [vmem:[%s3 + $0x3a0] sm:$0xff]
    %v7110 = vld [vmem:[%s3 + $0x3a8] sm:$0xff]
    %v7111 = vld [vmem:[%s3 + $0x3b0] sm:$0xff]
    %v7112 = vld [vmem:[%s3 + $0x3b8] sm:$0xff]
    %v7113 = vld [vmem:[%s3 + $0x3c0] sm:$0xff]
    %v7114 = vld [vmem:[%s3 + $0x3c8] sm:$0xff]
    %v7115 = vld [vmem:[%s3 + $0x3d0] sm:$0xff]
    %v7116 = vld [vmem:[%s3 + $0x3d8] sm:$0xff]
    %v7117 = vld [vmem:[%s3 + $0x3e0] sm:$0xff]
    %v7118 = vld [vmem:[%s3 + $0x3e8] sm:$0xff]
    %v7119 = vld [vmem:[%s3 + $0x3f0] sm:$0xff]
    %v7120 = vld [vmem:[%s3 + $0x3f8] sm:$0xff]
    %v7121 = vld [vmem:[%s3 + $0x400] sm:$0xff]
    %v7122 = vld [vmem:[%s3 + $0x408] sm:$0xff]
    %v7123 = vld [vmem:[%s3 + $0x410] sm:$0xff]
    %v7124 = vld [vmem:[%s3 + $0x418] sm:$0xff]
    %v7125 = vld [vmem:[%s3 + $0x420] sm:$0xff]
    %v7126 = vld [vmem:[%s3 + $0x428] sm:$0xff]
    %v7127 = vld [vmem:[%s3 + $0x430] sm:$0xff]
    %v7128 = vld [vmem:[%s3 + $0x438] sm:$0xff]
    %v7129 = vld [vmem:[%s3 + $0x440] sm:$0xff]
    %v7130 = vld [vmem:[%s3 + $0x448] sm:$0xff]
    %v7131 = vld [vmem:[%s3 + $0x450] sm:$0xff]
    %v7132 = vld [vmem:[%s3 + $0x458] sm:$0xff]
    %v7133 = vld [vmem:[%s3 + $0x460] sm:$0xff]
    %v7134 = vld [vmem:[%s3 + $0x468] sm:$0xff]
    %v7135 = vld [vmem:[%s3 + $0x470] sm:$0xff]
    %v7136 = vld [vmem:[%s3 + $0x478] sm:$0xff]
    %v7137 = vld [vmem:[%s3 + $0x480] sm:$0xff]
    %v7138 = vld [vmem:[%s3 + $0x488] sm:$0xff]
    %v7139 = vld [vmem:[%s3 + $0x490] sm:$0xff]
    %v7140 = vld [vmem:[%s3 + $0x498] sm:$0xff]
    %v7141 = vld [vmem:[%s3 + $0x4a0] sm:$0xff]
    %v7142 = vld [vmem:[%s3 + $0x4a8] sm:$0xff]
    %v7143 = vld [vmem:[%s3 + $0x4b0] sm:$0xff]
    %v7144 = vld [vmem:[%s3 + $0x4b8] sm:$0xff]
    %v7145 = vld [vmem:[%s3 + $0x4c0] sm:$0xff]
    %v7146 = vld [vmem:[%s3 + $0x4c8] sm:$0xff]
    %v7147 = vld [vmem:[%s3 + $0x4d0] sm:$0xff]
    %v7148 = vld [vmem:[%s3 + $0x4d8] sm:$0xff]
    %v7149 = vld [vmem:[%s3 + $0x4e0] sm:$0xff]
    %v7150 = vld [vmem:[%s3 + $0x4e8] sm:$0xff]
    %v7151 = vld [vmem:[%s3 + $0x4f0] sm:$0xff]
    %v7152 = vld [vmem:[%s3 + $0x4f8] sm:$0xff]
    %v7153 = vld [vmem:[%s3 + $0x500] sm:$0xff]
    %v7154 = vld [vmem:[%s3 + $0x508] sm:$0xff]
    %v7155 = vld [vmem:[%s3 + $0x510] sm:$0xff]
    %v7156 = vld [vmem:[%s3 + $0x518] sm:$0xff]
    %v7157 = vld [vmem:[%s3 + $0x520] sm:$0xff]
    %v7158 = vld [vmem:[%s3 + $0x528] sm:$0xff]
    %v7159 = vld [vmem:[%s3 + $0x530] sm:$0xff]
    %v7160 = vld [vmem:[%s3 + $0x538] sm:$0xff]
    %v7161 = vld [vmem:[%s3 + $0x540] sm:$0xff]
    %v7162 = vld [vmem:[%s3 + $0x548] sm:$0xff]
    %v7163 = vld [vmem:[%s3 + $0x550] sm:$0xff]
    %v7164 = vld [vmem:[%s3 + $0x558] sm:$0xff]
    %v7165 = vld [vmem:[%s3 + $0x560] sm:$0xff]
    %v7166 = vld [vmem:[%s3 + $0x568] sm:$0xff]
    %v7167 = vld [vmem:[%s3 + $0x570] sm:$0xff]
    %v7168 = vld [vmem:[%s3 + $0x578] sm:$0xff]
    %v7169 = vld [vmem:[%s3 + $0x580] sm:$0xff]
    %v7170 = vld [vmem:[%s3 + $0x588] sm:$0xff]
    %v7171 = vld [vmem:[%s3 + $0x590] sm:$0xff]
    %v7172 = vld [vmem:[%s3 + $0x598] sm:$0xff]
    %v7173 = vld [vmem:[%s3 + $0x5a0] sm:$0xff]
    %v7174 = vld [vmem:[%s3 + $0x5a8] sm:$0xff]
    %v7175 = vld [vmem:[%s3 + $0x5b0] sm:$0xff]
    %v7176 = vld [vmem:[%s3 + $0x5b8] sm:$0xff]
    %v7177 = vld [vmem:[%s3 + $0x5c0] sm:$0xff]
    %v7178 = vld [vmem:[%s3 + $0x5c8] sm:$0xff]
    %v7179 = vld [vmem:[%s3 + $0x5d0] sm:$0xff]
    %v7180 = vld [vmem:[%s3 + $0x5d8] sm:$0xff]
    %v7181 = vld [vmem:[%s3 + $0x5e0] sm:$0xff]
    %v7182 = vld [vmem:[%s3 + $0x5e8] sm:$0xff]
    %v7183 = vld [vmem:[%s3 + $0x5f0] sm:$0xff]
    %v7184 = vld [vmem:[%s3 + $0x5f8] sm:$0xff]
    %v7185 = vld [vmem:[%s3 + $0x600] sm:$0xff]
    %v7186 = vld [vmem:[%s3 + $0x608] sm:$0xff]
    %v7187 = vld [vmem:[%s3 + $0x610] sm:$0xff]
    %v7188 = vld [vmem:[%s3 + $0x618] sm:$0xff]
    %v7189 = vld [vmem:[%s3 + $0x620] sm:$0xff]
    %v7190 = vld [vmem:[%s3 + $0x628] sm:$0xff]
    %v7191 = vld [vmem:[%s3 + $0x630] sm:$0xff]
    %v7192 = vld [vmem:[%s3 + $0x638] sm:$0xff]
    %v7193 = vld [vmem:[%s3 + $0x640] sm:$0xff]
    %v7194 = vld [vmem:[%s3 + $0x648] sm:$0xff]
    %v7195 = vld [vmem:[%s3 + $0x650] sm:$0xff]
    %v7196 = vld [vmem:[%s3 + $0x658] sm:$0xff]
    %v7197 = vld [vmem:[%s3 + $0x660] sm:$0xff]
    %v7198 = vld [vmem:[%s3 + $0x668] sm:$0xff]
    %v7199 = vld [vmem:[%s3 + $0x670] sm:$0xff]
    %v7200 = vld [vmem:[%s3 + $0x678] sm:$0xff]
    %v7201 = vld [vmem:[%s3 + $0x680] sm:$0xff]
    %v7202 = vld [vmem:[%s3 + $0x688] sm:$0xff]
    %v7203 = vld [vmem:[%s3 + $0x690] sm:$0xff]
    %v7204 = vld [vmem:[%s3 + $0x698] sm:$0xff]
    %v7205 = vld [vmem:[%s3 + $0x6a0] sm:$0xff]
    %v7206 = vld [vmem:[%s3 + $0x6a8] sm:$0xff]
    %v7207 = vld [vmem:[%s3 + $0x6b0] sm:$0xff]
    %v7208 = vld [vmem:[%s3 + $0x6b8] sm:$0xff]
    %v7209 = vld [vmem:[%s3 + $0x6c0] sm:$0xff]
    %v7210 = vld [vmem:[%s3 + $0x6c8] sm:$0xff]
    %v7211 = vld [vmem:[%s3 + $0x6d0] sm:$0xff]
    %v7212 = vld [vmem:[%s3 + $0x6d8] sm:$0xff]
    %v7213 = vld [vmem:[%s3 + $0x6e0] sm:$0xff]
    %v7214 = vld [vmem:[%s3 + $0x6e8] sm:$0xff]
    %v7215 = vld [vmem:[%s3 + $0x6f0] sm:$0xff]
    %v7216 = vld [vmem:[%s3 + $0x6f8] sm:$0xff]
    %v7217 = vld [vmem:[%s3 + $0x700] sm:$0xff]
    %v7218 = vld [vmem:[%s3 + $0x708] sm:$0xff]
    %v7219 = vld [vmem:[%s3 + $0x710] sm:$0xff]
    %v7220 = vld [vmem:[%s3 + $0x718] sm:$0xff]
    %v7221 = vld [vmem:[%s3 + $0x720] sm:$0xff]
    %v7222 = vld [vmem:[%s3 + $0x728] sm:$0xff]
    %v7223 = vld [vmem:[%s3 + $0x730] sm:$0xff]
    %v7224 = vld [vmem:[%s3 + $0x738] sm:$0xff]
    %v7225 = vld [vmem:[%s3 + $0x740] sm:$0xff]
    %v7226 = vld [vmem:[%s3 + $0x748] sm:$0xff]
    %v7227 = vld [vmem:[%s3 + $0x750] sm:$0xff]
    %v7228 = vld [vmem:[%s3 + $0x758] sm:$0xff]
    %v7229 = vld [vmem:[%s3 + $0x760] sm:$0xff]
    %v7230 = vld [vmem:[%s3 + $0x768] sm:$0xff]
    %v7231 = vld [vmem:[%s3 + $0x770] sm:$0xff]
    %v7232 = vld [vmem:[%s3 + $0x778] sm:$0xff]
    %v7233 = vld [vmem:[%s3 + $0x780] sm:$0xff]
    %v7234 = vld [vmem:[%s3 + $0x788] sm:$0xff]
    %v7235 = vld [vmem:[%s3 + $0x790] sm:$0xff]
    %v7236 = vld [vmem:[%s3 + $0x798] sm:$0xff]
    %v7237 = vld [vmem:[%s3 + $0x7a0] sm:$0xff]
    %v7238 = vld [vmem:[%s3 + $0x7a8] sm:$0xff]
    %v7239 = vld [vmem:[%s3 + $0x7b0] sm:$0xff]
    %v7240 = vld [vmem:[%s3 + $0x7b8] sm:$0xff]
    %v7241 = vld [vmem:[%s3 + $0x7c0] sm:$0xff]
    %v7242 = vld [vmem:[%s3 + $0x7c8] sm:$0xff]
    %v7243 = vld [vmem:[%s3 + $0x7d0] sm:$0xff]
    %v7244 = vld [vmem:[%s3 + $0x7d8] sm:$0xff]
    %v7245 = vld [vmem:[%s3 + $0x7e0] sm:$0xff]
    %v7246 = vld [vmem:[%s3 + $0x7e8] sm:$0xff]
    %v7247 = vld [vmem:[%s3 + $0x7f0] sm:$0xff]
    %v7248 = vld [vmem:[%s3 + $0x7f8] sm:$0xff]
    %v7249 = vld [vmem:[%s3 + $0x800] sm:$0xff]
    %v7250 = vld [vmem:[%s3 + $0x808] sm:$0xff]
    %v7251 = vld [vmem:[%s3 + $0x810] sm:$0xff]
    %v7252 = vld [vmem:[%s3 + $0x818] sm:$0xff]
    %v7253 = vld [vmem:[%s3 + $0x820] sm:$0xff]
    %v7254 = vld [vmem:[%s3 + $0x828] sm:$0xff]
    %v7255 = vld [vmem:[%s3 + $0x830] sm:$0xff]
    %v7256 = vld [vmem:[%s3 + $0x838] sm:$0xff]
    %v7257 = vld [vmem:[%s3 + $0x840] sm:$0xff]
    %v7258 = vld [vmem:[%s3 + $0x848] sm:$0xff]
    %v7259 = vld [vmem:[%s3 + $0x850] sm:$0xff]
    %v7260 = vld [vmem:[%s3 + $0x858] sm:$0xff]
    %v7261 = vld [vmem:[%s3 + $0x860] sm:$0xff]
    %v7262 = vld [vmem:[%s3 + $0x868] sm:$0xff]
    %v7263 = vld [vmem:[%s3 + $0x870] sm:$0xff]
    %v7264 = vld [vmem:[%s3 + $0x878] sm:$0xff]
    %v7265 = vld [vmem:[%s3 + $0x880] sm:$0xff]
    %v7266 = vld [vmem:[%s3 + $0x888] sm:$0xff]
    %v7267 = vld [vmem:[%s3 + $0x890] sm:$0xff]
    %v7268 = vld [vmem:[%s3 + $0x898] sm:$0xff]
    %v7269 = vld [vmem:[%s3 + $0x8a0] sm:$0xff]
    %v7270 = vld [vmem:[%s3 + $0x8a8] sm:$0xff]
    %v7271 = vld [vmem:[%s3 + $0x8b0] sm:$0xff]
    %v7272 = vld [vmem:[%s3 + $0x8b8] sm:$0xff]
    %v7273 = vld [vmem:[%s3 + $0x8c0] sm:$0xff]
    %v7274 = vld [vmem:[%s3 + $0x8c8] sm:$0xff]
    %v7275 = vld [vmem:[%s3 + $0x8d0] sm:$0xff]
    %v7276 = vld [vmem:[%s3 + $0x8d8] sm:$0xff]
    %v7277 = vld [vmem:[%s3 + $0x8e0] sm:$0xff]
    %v7278 = vld [vmem:[%s3 + $0x8e8] sm:$0xff]
    %v7279 = vld [vmem:[%s3 + $0x8f0] sm:$0xff]
    %v7280 = vld [vmem:[%s3 + $0x8f8] sm:$0xff]
    %v7281 = vld [vmem:[%s3 + $0x900] sm:$0xff]
    %v7282 = vld [vmem:[%s3 + $0x908] sm:$0xff]
    %v7283 = vld [vmem:[%s3 + $0x910] sm:$0xff]
    %v7284 = vld [vmem:[%s3 + $0x918] sm:$0xff]
    %v7285 = vld [vmem:[%s3 + $0x920] sm:$0xff]
    %v7286 = vld [vmem:[%s3 + $0x928] sm:$0xff]
    %v7287 = vld [vmem:[%s3 + $0x930] sm:$0xff]
    %v7288 = vld [vmem:[%s3 + $0x938] sm:$0xff]
    %v7289 = vld [vmem:[%s3 + $0x940] sm:$0xff]
    %v7290 = vld [vmem:[%s3 + $0x948] sm:$0xff]
    %v7291 = vld [vmem:[%s3 + $0x950] sm:$0xff]
    %v7292 = vld [vmem:[%s3 + $0x958] sm:$0xff]
    %v7293 = vld [vmem:[%s3 + $0x960] sm:$0xff]
    %v7294 = vld [vmem:[%s3 + $0x968] sm:$0xff]
    %v7295 = vld [vmem:[%s3 + $0x970] sm:$0xff]
    %v7296 = vld [vmem:[%s3 + $0x978] sm:$0xff]
    %v7297 = vld [vmem:[%s3 + $0x980] sm:$0xff]
    %v7298 = vld [vmem:[%s3 + $0x988] sm:$0xff]
    %v7299 = vld [vmem:[%s3 + $0x990] sm:$0xff]
    %v7300 = vld [vmem:[%s3 + $0x998] sm:$0xff]
    %v7301 = vld [vmem:[%s3 + $0x9a0] sm:$0xff]
    %v7302 = vld [vmem:[%s3 + $0x9a8] sm:$0xff]
    %v7303 = vld [vmem:[%s3 + $0x9b0] sm:$0xff]
    %v7304 = vld [vmem:[%s3 + $0x9b8] sm:$0xff]
    %v7305 = vld [vmem:[%s3 + $0x9c0] sm:$0xff]
    %v7306 = vld [vmem:[%s3 + $0x9c8] sm:$0xff]
    %v7307 = vld [vmem:[%s3 + $0x9d0] sm:$0xff]
    %v7308 = vld [vmem:[%s3 + $0x9d8] sm:$0xff]
    %v7309 = vld [vmem:[%s3 + $0x9e0] sm:$0xff]
    %v7310 = vld [vmem:[%s3 + $0x9e8] sm:$0xff]
    %v7311 = vld [vmem:[%s3 + $0x9f0] sm:$0xff]
    %v7312 = vld [vmem:[%s3 + $0x9f8] sm:$0xff]
    %v7313 = vld [vmem:[%s3 + $0xa00] sm:$0xff]
    %v7314 = vld [vmem:[%s3 + $0xa08] sm:$0xff]
    %v7315 = vld [vmem:[%s3 + $0xa10] sm:$0xff]
    %v7316 = vld [vmem:[%s3 + $0xa18] sm:$0xff]
    %v7317 = vld [vmem:[%s3 + $0xa20] sm:$0xff]
    %v7318 = vld [vmem:[%s3 + $0xa28] sm:$0xff]
    %v7319 = vld [vmem:[%s3 + $0xa30] sm:$0xff]
    %v7320 = vld [vmem:[%s3 + $0xa38] sm:$0xff]
    %v7321 = vld [vmem:[%s3 + $0xa40] sm:$0xff]
    %v7322 = vld [vmem:[%s3 + $0xa48] sm:$0xff]
    %v7323 = vld [vmem:[%s3 + $0xa50] sm:$0xff]
    %v7324 = vld [vmem:[%s3 + $0xa58] sm:$0xff]
    %v7325 = vld [vmem:[%s3 + $0xa60] sm:$0xff]
    %v7326 = vld [vmem:[%s3 + $0xa68] sm:$0xff]
    %v7327 = vld [vmem:[%s3 + $0xa70] sm:$0xff]
    %v7328 = vld [vmem:[%s3 + $0xa78] sm:$0xff]
    %v7329 = vld [vmem:[%s3 + $0xa80] sm:$0xff]
    %v7330 = vld [vmem:[%s3 + $0xa88] sm:$0xff]
    %v7331 = vld [vmem:[%s3 + $0xa90] sm:$0xff]
    %v7332 = vld [vmem:[%s3 + $0xa98] sm:$0xff]
    %v7333 = vld [vmem:[%s3 + $0xaa0] sm:$0xff]
    %v7334 = vld [vmem:[%s3 + $0xaa8] sm:$0xff]
    %v7335 = vld [vmem:[%s3 + $0xab0] sm:$0xff]
    %v7336 = vld [vmem:[%s3 + $0xab8] sm:$0xff]
    %v7337 = vld [vmem:[%s3 + $0xac0] sm:$0xff]
    %v7338 = vld [vmem:[%s3 + $0xac8] sm:$0xff]
    %v7339 = vld [vmem:[%s3 + $0xad0] sm:$0xff]
    %v7340 = vld [vmem:[%s3 + $0xad8] sm:$0xff]
    %v7341 = vld [vmem:[%s3 + $0xae0] sm:$0xff]
    %v7342 = vld [vmem:[%s3 + $0xae8] sm:$0xff]
    %v7343 = vld [vmem:[%s3 + $0xaf0] sm:$0xff]
    %v7344 = vld [vmem:[%s3 + $0xaf8] sm:$0xff]
    %v7345 = vld [vmem:[%s3 + $0xb00] sm:$0xff]
    %v7346 = vld [vmem:[%s3 + $0xb08] sm:$0xff]
    %v7347 = vld [vmem:[%s3 + $0xb10] sm:$0xff]
    %v7348 = vld [vmem:[%s3 + $0xb18] sm:$0xff]
    %v7349 = vld [vmem:[%s3 + $0xb20] sm:$0xff]
    %v7350 = vld [vmem:[%s3 + $0xb28] sm:$0xff]
    %v7351 = vld [vmem:[%s3 + $0xb30] sm:$0xff]
    %v7352 = vld [vmem:[%s3 + $0xb38] sm:$0xff]
    %v7353 = vld [vmem:[%s3 + $0xb40] sm:$0xff]
    %v7354 = vld [vmem:[%s3 + $0xb48] sm:$0xff]
    %v7355 = vld [vmem:[%s3 + $0xb50] sm:$0xff]
    %v7356 = vld [vmem:[%s3 + $0xb58] sm:$0xff]
    %v7357 = vld [vmem:[%s3 + $0xb60] sm:$0xff]
    %v7358 = vld [vmem:[%s3 + $0xb68] sm:$0xff]
    %v7359 = vld [vmem:[%s3 + $0xb70] sm:$0xff]
    %v7360 = vld [vmem:[%s3 + $0xb78] sm:$0xff]
    %v7361 = vld [vmem:[%s3 + $0xb80] sm:$0xff]
    %v7362 = vld [vmem:[%s3 + $0xb88] sm:$0xff]
    %v7363 = vld [vmem:[%s3 + $0xb90] sm:$0xff]
    %v7364 = vld [vmem:[%s3 + $0xb98] sm:$0xff]
    %v7365 = vld [vmem:[%s3 + $0xba0] sm:$0xff]
    %v7366 = vld [vmem:[%s3 + $0xba8] sm:$0xff]
    %v7367 = vld [vmem:[%s3 + $0xbb0] sm:$0xff]
    %v7368 = vld [vmem:[%s3 + $0xbb8] sm:$0xff]
    %v7369 = vld [vmem:[%s3 + $0xbc0] sm:$0xff]
    %v7370 = vld [vmem:[%s3 + $0xbc8] sm:$0xff]
    %v7371 = vld [vmem:[%s3 + $0xbd0] sm:$0xff]
    %v7372 = vld [vmem:[%s3 + $0xbd8] sm:$0xff]
    %v7373 = vld [vmem:[%s3 + $0xbe0] sm:$0xff]
    %v7374 = vld [vmem:[%s3 + $0xbe8] sm:$0xff]
    %v7375 = vld [vmem:[%s3 + $0xbf0] sm:$0xff]
    %v7376 = vld [vmem:[%s3 + $0xbf8] sm:$0xff]
    %v7377 = vld [vmem:[%s3 + $0xc00] sm:$0xff]
    %v7378 = vld [vmem:[%s3 + $0xc08] sm:$0xff]
    %v7379 = vld [vmem:[%s3 + $0xc10] sm:$0xff]
    %v7380 = vld [vmem:[%s3 + $0xc18] sm:$0xff]
    %v7381 = vld [vmem:[%s3 + $0xc20] sm:$0xff]
    %v7382 = vld [vmem:[%s3 + $0xc28] sm:$0xff]
    %v7383 = vld [vmem:[%s3 + $0xc30] sm:$0xff]
    %v7384 = vld [vmem:[%s3 + $0xc38] sm:$0xff]
    %v7385 = vld [vmem:[%s3 + $0xc40] sm:$0xff]
    %v7386 = vld [vmem:[%s3 + $0xc48] sm:$0xff]
    %v7387 = vld [vmem:[%s3 + $0xc50] sm:$0xff]
    %v7388 = vld [vmem:[%s3 + $0xc58] sm:$0xff]
    %v7389 = vld [vmem:[%s3 + $0xc60] sm:$0xff]
    %v7390 = vld [vmem:[%s3 + $0xc68] sm:$0xff]
    %v7391 = vld [vmem:[%s3 + $0xc70] sm:$0xff]
    %v7392 = vld [vmem:[%s3 + $0xc78] sm:$0xff]
    %v7393 = vld [vmem:[%s3 + $0xc80] sm:$0xff]
    %v7394 = vld [vmem:[%s3 + $0xc88] sm:$0xff]
    %v7395 = vld [vmem:[%s3 + $0xc90] sm:$0xff]
    %v7396 = vld [vmem:[%s3 + $0xc98] sm:$0xff]
    %v7397 = vld [vmem:[%s3 + $0xca0] sm:$0xff]
    %v7398 = vld [vmem:[%s3 + $0xca8] sm:$0xff]
    %v7399 = vld [vmem:[%s3 + $0xcb0] sm:$0xff]
    %v7400 = vld [vmem:[%s3 + $0xcb8] sm:$0xff]
    %v7401 = vld [vmem:[%s3 + $0xcc0] sm:$0xff]
    %v7402 = vld [vmem:[%s3 + $0xcc8] sm:$0xff]
    %v7403 = vld [vmem:[%s3 + $0xcd0] sm:$0xff]
    %v7404 = vld [vmem:[%s3 + $0xcd8] sm:$0xff]
    %v7405 = vld [vmem:[%s3 + $0xce0] sm:$0xff]
    %v7406 = vld [vmem:[%s3 + $0xce8] sm:$0xff]
    %v7407 = vld [vmem:[%s3 + $0xcf0] sm:$0xff]
    %v7408 = vld [vmem:[%s3 + $0xcf8] sm:$0xff]
    %v7409 = vld [vmem:[%s3 + $0xd00] sm:$0xff]
    %v7410 = vld [vmem:[%s3 + $0xd08] sm:$0xff]
    %v7411 = vld [vmem:[%s3 + $0xd10] sm:$0xff]
    %v7412 = vld [vmem:[%s3 + $0xd18] sm:$0xff]
    %v7413 = vld [vmem:[%s3 + $0xd20] sm:$0xff]
    %v7414 = vld [vmem:[%s3 + $0xd28] sm:$0xff]
    %v7415 = vld [vmem:[%s3 + $0xd30] sm:$0xff]
    %v7416 = vld [vmem:[%s3 + $0xd38] sm:$0xff]
    %v7417 = vld [vmem:[%s3 + $0xd40] sm:$0xff]
    %v7418 = vld [vmem:[%s3 + $0xd48] sm:$0xff]
    %v7419 = vld [vmem:[%s3 + $0xd50] sm:$0xff]
    %v7420 = vld [vmem:[%s3 + $0xd58] sm:$0xff]
    %v7421 = vld [vmem:[%s3 + $0xd60] sm:$0xff]
    %v7422 = vld [vmem:[%s3 + $0xd68] sm:$0xff]
    %v7423 = vld [vmem:[%s3 + $0xd70] sm:$0xff]
    %v7424 = vld [vmem:[%s3 + $0xd78] sm:$0xff]
    %v7425 = vld [vmem:[%s3 + $0xd80] sm:$0xff]
    %v7426 = vld [vmem:[%s3 + $0xd88] sm:$0xff]
    %v7427 = vld [vmem:[%s3 + $0xd90] sm:$0xff]
    %v7428 = vld [vmem:[%s3 + $0xd98] sm:$0xff]
    %v7429 = vld [vmem:[%s3 + $0xda0] sm:$0xff]
    %v7430 = vld [vmem:[%s3 + $0xda8] sm:$0xff]
    %v7431 = vld [vmem:[%s3 + $0xdb0] sm:$0xff]
    %v7432 = vld [vmem:[%s3 + $0xdb8] sm:$0xff]
    %v7433 = vld [vmem:[%s3 + $0xdc0] sm:$0xff]
    %v7434 = vld [vmem:[%s3 + $0xdc8] sm:$0xff]
    %v7435 = vld [vmem:[%s3 + $0xdd0] sm:$0xff]
    %v7436 = vld [vmem:[%s3 + $0xdd8] sm:$0xff]
    %v7437 = vld [vmem:[%s3 + $0xde0] sm:$0xff]
    %v7438 = vld [vmem:[%s3 + $0xde8] sm:$0xff]
    %v7439 = vld [vmem:[%s3 + $0xdf0] sm:$0xff]
    %v7440 = vld [vmem:[%s3 + $0xdf8] sm:$0xff]
    %v7441 = vld [vmem:[%s3 + $0xe00] sm:$0xff]
    %v7442 = vld [vmem:[%s3 + $0xe08] sm:$0xff]
    %v7443 = vld [vmem:[%s3 + $0xe10] sm:$0xff]
    %v7444 = vld [vmem:[%s3 + $0xe18] sm:$0xff]
    %v7445 = vld [vmem:[%s3 + $0xe20] sm:$0xff]
    %v7446 = vld [vmem:[%s3 + $0xe28] sm:$0xff]
    %v7447 = vld [vmem:[%s3 + $0xe30] sm:$0xff]
    %v7448 = vld [vmem:[%s3 + $0xe38] sm:$0xff]
    %v7449 = vld [vmem:[%s3 + $0xe40] sm:$0xff]
    %v7450 = vld [vmem:[%s3 + $0xe48] sm:$0xff]
    %v7451 = vld [vmem:[%s3 + $0xe50] sm:$0xff]
    %v7452 = vld [vmem:[%s3 + $0xe58] sm:$0xff]
    %v7453 = vld [vmem:[%s3 + $0xe60] sm:$0xff]
    %v7454 = vld [vmem:[%s3 + $0xe68] sm:$0xff]
    %v7455 = vld [vmem:[%s3 + $0xe70] sm:$0xff]
    %v7456 = vld [vmem:[%s3 + $0xe78] sm:$0xff]
    %v7457 = vld [vmem:[%s3 + $0xe80] sm:$0xff]
    %v7458 = vld [vmem:[%s3 + $0xe88] sm:$0xff]
    %v7459 = vld [vmem:[%s3 + $0xe90] sm:$0xff]
    %v7460 = vld [vmem:[%s3 + $0xe98] sm:$0xff]
    %v7461 = vld [vmem:[%s3 + $0xea0] sm:$0xff]
    %v7462 = vld [vmem:[%s3 + $0xea8] sm:$0xff]
    %v7463 = vld [vmem:[%s3 + $0xeb0] sm:$0xff]
    %v7464 = vld [vmem:[%s3 + $0xeb8] sm:$0xff]
    %v7465 = vld [vmem:[%s3 + $0xec0] sm:$0xff]
    %v7466 = vld [vmem:[%s3 + $0xec8] sm:$0xff]
    %v7467 = vld [vmem:[%s3 + $0xed0] sm:$0xff]
    %v7468 = vld [vmem:[%s3 + $0xed8] sm:$0xff]
    %v7469 = vld [vmem:[%s3 + $0xee0] sm:$0xff]
    %v7470 = vld [vmem:[%s3 + $0xee8] sm:$0xff]
    %v7471 = vld [vmem:[%s3 + $0xef0] sm:$0xff]
    %v7472 = vld [vmem:[%s3 + $0xef8] sm:$0xff]
    %v7473 = vld [vmem:[%s3 + $0xf00] sm:$0xff]
    %v7474 = vld [vmem:[%s3 + $0xf08] sm:$0xff]
    %v7475 = vld [vmem:[%s3 + $0xf10] sm:$0xff]
    %v7476 = vld [vmem:[%s3 + $0xf18] sm:$0xff]
    %v7477 = vld [vmem:[%s3 + $0xf20] sm:$0xff]
    %v7478 = vld [vmem:[%s3 + $0xf28] sm:$0xff]
    %v7479 = vld [vmem:[%s3 + $0xf30] sm:$0xff]
    %v7480 = vld [vmem:[%s3 + $0xf38] sm:$0xff]
    %v7481 = vld [vmem:[%s3 + $0xf40] sm:$0xff]
    %v7482 = vld [vmem:[%s3 + $0xf48] sm:$0xff]
    %v7483 = vld [vmem:[%s3 + $0xf50] sm:$0xff]
    %v7484 = vld [vmem:[%s3 + $0xf58] sm:$0xff]
    %v7485 = vld [vmem:[%s3 + $0xf60] sm:$0xff]
    %v7486 = vld [vmem:[%s3 + $0xf68] sm:$0xff]
    %v7487 = vld [vmem:[%s3 + $0xf70] sm:$0xff]
    %v7488 = vld [vmem:[%s3 + $0xf78] sm:$0xff]
    %v7489 = vld [vmem:[%s3 + $0xf80] sm:$0xff]
    %v7490 = vld [vmem:[%s3 + $0xf88] sm:$0xff]
    %v7491 = vld [vmem:[%s3 + $0xf90] sm:$0xff]
    %v7492 = vld [vmem:[%s3 + $0xf98] sm:$0xff]
    %v7493 = vld [vmem:[%s3 + $0xfa0] sm:$0xff]
    %v7494 = vld [vmem:[%s3 + $0xfa8] sm:$0xff]
    %v7495 = vld [vmem:[%s3 + $0xfb0] sm:$0xff]
    %v7496 = vld [vmem:[%s3 + $0xfb8] sm:$0xff]
    %v7497 = vld [vmem:[%s3 + $0xfc0] sm:$0xff]
    %v7498 = vld [vmem:[%s3 + $0xfc8] sm:$0xff]
    %v7499 = vld [vmem:[%s3 + $0xfd0] sm:$0xff]
    %v7500 = vld [vmem:[%s3 + $0xfd8] sm:$0xff]
    %v7501 = vld [vmem:[%s3 + $0xfe0] sm:$0xff]
    %v7502 = vld [vmem:[%s3 + $0xfe8] sm:$0xff]
    %v7503 = vld [vmem:[%s3 + $0xff0] sm:$0xff]
    %v7504 = vld [vmem:[%s3 + $0xff8] sm:$0xff]
    %v7505 = vld [vmem:[%s3 + $0x1000] sm:$0xff]
    %v7506 = vld [vmem:[%s3 + $0x1008] sm:$0xff]
    %v7507 = vld [vmem:[%s3 + $0x1010] sm:$0xff]
    %v7508 = vld [vmem:[%s3 + $0x1018] sm:$0xff]
    %v7509 = vld [vmem:[%s3 + $0x1020] sm:$0xff]
    %v7510 = vld [vmem:[%s3 + $0x1028] sm:$0xff]
    %v7511 = vld [vmem:[%s3 + $0x1030] sm:$0xff]
    %v7512 = vld [vmem:[%s3 + $0x1038] sm:$0xff]
    %v7513 = vld [vmem:[%s3 + $0x1040] sm:$0xff]
    %v7514 = vld [vmem:[%s3 + $0x1048] sm:$0xff]
    %v7515 = vld [vmem:[%s3 + $0x1050] sm:$0xff]
    %v7516 = vld [vmem:[%s3 + $0x1058] sm:$0xff]
    %v7517 = vld [vmem:[%s3 + $0x1060] sm:$0xff]
    %v7518 = vld [vmem:[%s3 + $0x1068] sm:$0xff]
    %v7519 = vld [vmem:[%s3 + $0x1070] sm:$0xff]
    %v7520 = vld [vmem:[%s3 + $0x1078] sm:$0xff]
    %v7521 = vld [vmem:[%s3 + $0x1080] sm:$0xff]
    %v7522 = vld [vmem:[%s3 + $0x1088] sm:$0xff]
    %v7523 = vld [vmem:[%s3 + $0x1090] sm:$0xff]
    %v7524 = vld [vmem:[%s3 + $0x1098] sm:$0xff]
    %v7525 = vld [vmem:[%s3 + $0x10a0] sm:$0xff]
    %v7526 = vld [vmem:[%s3 + $0x10a8] sm:$0xff]
    %v7527 = vld [vmem:[%s3 + $0x10b0] sm:$0xff]
    %v7528 = vld [vmem:[%s3 + $0x10b8] sm:$0xff]
    %v7529 = vld [vmem:[%s3 + $0x10c0] sm:$0xff]
    %v7530 = vld [vmem:[%s3 + $0x10c8] sm:$0xff]
    %v7531 = vld [vmem:[%s3 + $0x10d0] sm:$0xff]
    %v7532 = vld [vmem:[%s3 + $0x10d8] sm:$0xff]
    %v7533 = vld [vmem:[%s3 + $0x10e0] sm:$0xff]
    %v7534 = vld [vmem:[%s3 + $0x10e8] sm:$0xff]
    %v7535 = vld [vmem:[%s3 + $0x10f0] sm:$0xff]
    %v7536 = vld [vmem:[%s3 + $0x10f8] sm:$0xff]
    %v7537 = vld [vmem:[%s3 + $0x1100] sm:$0xff]
    %v7538 = vld [vmem:[%s3 + $0x1108] sm:$0xff]
    %v7539 = vld [vmem:[%s3 + $0x1110] sm:$0xff]
    %v7540 = vld [vmem:[%s3 + $0x1118] sm:$0xff]
    %v7541 = vld [vmem:[%s3 + $0x1120] sm:$0xff]
    %v7542 = vld [vmem:[%s3 + $0x1128] sm:$0xff]
    %v7543 = vld [vmem:[%s3 + $0x1130] sm:$0xff]
    %v7544 = vld [vmem:[%s3 + $0x1138] sm:$0xff]
    %v7545 = vld [vmem:[%s3 + $0x1140] sm:$0xff]
    %v7546 = vld [vmem:[%s3 + $0x1148] sm:$0xff]
    %v7547 = vld [vmem:[%s3 + $0x1150] sm:$0xff]
    %v7548 = vld [vmem:[%s3 + $0x1158] sm:$0xff]
    %v7549 = vld [vmem:[%s3 + $0x1160] sm:$0xff]
    %v7550 = vld [vmem:[%s3 + $0x1168] sm:$0xff]
    %v7551 = vld [vmem:[%s3 + $0x1170] sm:$0xff]
    %v7552 = vld [vmem:[%s3 + $0x1178] sm:$0xff]
    %v7553 = vld [vmem:[%s3 + $0x1180] sm:$0xff]
    %v7554 = vld [vmem:[%s3 + $0x1188] sm:$0xff]
    %v7555 = vld [vmem:[%s3 + $0x1190] sm:$0xff]
    %v7556 = vld [vmem:[%s3 + $0x1198] sm:$0xff]
    %v7557 = vld [vmem:[%s3 + $0x11a0] sm:$0xff]
    %v7558 = vld [vmem:[%s3 + $0x11a8] sm:$0xff]
    %v7559 = vld [vmem:[%s3 + $0x11b0] sm:$0xff]
    %v7560 = vld [vmem:[%s3 + $0x11b8] sm:$0xff]
    %v7561 = vld [vmem:[%s3 + $0x11c0] sm:$0xff]
    %v7562 = vld [vmem:[%s3 + $0x11c8] sm:$0xff]
    %v7563 = vld [vmem:[%s3 + $0x11d0] sm:$0xff]
    %v7564 = vld [vmem:[%s3 + $0x11d8] sm:$0xff]
    %v7565 = vld [vmem:[%s3 + $0x11e0] sm:$0xff]
    %v7566 = vld [vmem:[%s3 + $0x11e8] sm:$0xff]
    %v7567 = vld [vmem:[%s3 + $0x11f0] sm:$0xff]
    %v7568 = vld [vmem:[%s3 + $0x11f8] sm:$0xff]
    %v7569 = vld [vmem:[%s3 + $0x1200] sm:$0xff]
    %v7570 = vld [vmem:[%s3 + $0x1208] sm:$0xff]
    %v7571 = vld [vmem:[%s3 + $0x1210] sm:$0xff]
    %v7572 = vld [vmem:[%s3 + $0x1218] sm:$0xff]
    %v7573 = vld [vmem:[%s3 + $0x1220] sm:$0xff]
    %v7574 = vld [vmem:[%s3 + $0x1228] sm:$0xff]
    %v7575 = vld [vmem:[%s3 + $0x1230] sm:$0xff]
    %v7576 = vld [vmem:[%s3 + $0x1238] sm:$0xff]
    %v7577 = vld [vmem:[%s3 + $0x1240] sm:$0xff]
    %v7578 = vld [vmem:[%s3 + $0x1248] sm:$0xff]
    %v7579 = vld [vmem:[%s3 + $0x1250] sm:$0xff]
    %v7580 = vld [vmem:[%s3 + $0x1258] sm:$0xff]
    %v7581 = vld [vmem:[%s3 + $0x1260] sm:$0xff]
    %v7582 = vld [vmem:[%s3 + $0x1268] sm:$0xff]
    %v7583 = vld [vmem:[%s3 + $0x1270] sm:$0xff]
    %v7584 = vld [vmem:[%s3 + $0x1278] sm:$0xff]
    %v7585 = vld [vmem:[%s3 + $0x1280] sm:$0xff]
    %v7586 = vld [vmem:[%s3 + $0x1288] sm:$0xff]
    %v7587 = vld [vmem:[%s3 + $0x1290] sm:$0xff]
    %v7588 = vld [vmem:[%s3 + $0x1298] sm:$0xff]
    %v7589 = vld [vmem:[%s3 + $0x12a0] sm:$0xff]
    %v7590 = vld [vmem:[%s3 + $0x12a8] sm:$0xff]
    %v7591 = vld [vmem:[%s3 + $0x12b0] sm:$0xff]
    %v7592 = vld [vmem:[%s3 + $0x12b8] sm:$0xff]
    %v7593 = vld [vmem:[%s3 + $0x12c0] sm:$0xff]
    %v7594 = vld [vmem:[%s3 + $0x12c8] sm:$0xff]
    %v7595 = vld [vmem:[%s3 + $0x12d0] sm:$0xff]
    %v7596 = vld [vmem:[%s3 + $0x12d8] sm:$0xff]
    %v7597 = vld [vmem:[%s3 + $0x12e0] sm:$0xff]
    %v7598 = vld [vmem:[%s3 + $0x12e8] sm:$0xff]
    %v7599 = vld [vmem:[%s3 + $0x12f0] sm:$0xff]
    %v7600 = vld [vmem:[%s3 + $0x12f8] sm:$0xff]
    %v7601 = vld [vmem:[%s3 + $0x1300] sm:$0xff]
    %v7602 = vld [vmem:[%s3 + $0x1308] sm:$0xff]
    %v7603 = vld [vmem:[%s3 + $0x1310] sm:$0xff]
    %v7604 = vld [vmem:[%s3 + $0x1318] sm:$0xff]
    %v7605 = vld [vmem:[%s3 + $0x1320] sm:$0xff]
    %v7606 = vld [vmem:[%s3 + $0x1328] sm:$0xff]
    %v7607 = vld [vmem:[%s3 + $0x1330] sm:$0xff]
    %v7608 = vld [vmem:[%s3 + $0x1338] sm:$0xff]
    %v7609 = vld [vmem:[%s3 + $0x1340] sm:$0xff]
    %v7610 = vld [vmem:[%s3 + $0x1348] sm:$0xff]
    %v7611 = vld [vmem:[%s3 + $0x1350] sm:$0xff]
    %v7612 = vld [vmem:[%s3 + $0x1358] sm:$0xff]
    %v7613 = vld [vmem:[%s3 + $0x1360] sm:$0xff]
    %v7614 = vld [vmem:[%s3 + $0x1368] sm:$0xff]
    %v7615 = vld [vmem:[%s3 + $0x1370] sm:$0xff]
    %v7616 = vld [vmem:[%s3 + $0x1378] sm:$0xff]
    %v7617 = vld [vmem:[%s3 + $0x1380] sm:$0xff]
    %v7618 = vld [vmem:[%s3 + $0x1388] sm:$0xff]
    %v7619 = vld [vmem:[%s3 + $0x1390] sm:$0xff]
    %v7620 = vld [vmem:[%s3 + $0x1398] sm:$0xff]
    %v7621 = vld [vmem:[%s3 + $0x13a0] sm:$0xff]
    %v7622 = vld [vmem:[%s3 + $0x13a8] sm:$0xff]
    %v7623 = vld [vmem:[%s3 + $0x13b0] sm:$0xff]
    %v7624 = vld [vmem:[%s3 + $0x13b8] sm:$0xff]
    %v7625 = vld [vmem:[%s3 + $0x13c0] sm:$0xff]
    %v7626 = vld [vmem:[%s3 + $0x13c8] sm:$0xff]
    %v7627 = vld [vmem:[%s3 + $0x13d0] sm:$0xff]
    %v7628 = vld [vmem:[%s3 + $0x13d8] sm:$0xff]
    %v7629 = vld [vmem:[%s3 + $0x13e0] sm:$0xff]
    %v7630 = vld [vmem:[%s3 + $0x13e8] sm:$0xff]
    %v7631 = vld [vmem:[%s3 + $0x13f0] sm:$0xff]
    %v7632 = vld [vmem:[%s3 + $0x13f8] sm:$0xff]
    %v7633 = vld [vmem:[%s3 + $0x1400] sm:$0xff]
    %v7634 = vld [vmem:[%s3 + $0x1408] sm:$0xff]
    %v7635 = vld [vmem:[%s3 + $0x1410] sm:$0xff]
    %v7636 = vld [vmem:[%s3 + $0x1418] sm:$0xff]
    %v7637 = vld [vmem:[%s3 + $0x1420] sm:$0xff]
    %v7638 = vld [vmem:[%s3 + $0x1428] sm:$0xff]
    %v7639 = vld [vmem:[%s3 + $0x1430] sm:$0xff]
    %v7640 = vld [vmem:[%s3 + $0x1438] sm:$0xff]
    %v7641 = vld [vmem:[%s3 + $0x1440] sm:$0xff]
    %v7642 = vld [vmem:[%s3 + $0x1448] sm:$0xff]
    %v7643 = vld [vmem:[%s3 + $0x1450] sm:$0xff]
    %v7644 = vld [vmem:[%s3 + $0x1458] sm:$0xff]
    %v7645 = vld [vmem:[%s3 + $0x1460] sm:$0xff]
    %v7646 = vld [vmem:[%s3 + $0x1468] sm:$0xff]
    %v7647 = vld [vmem:[%s3 + $0x1470] sm:$0xff]
    %v7648 = vld [vmem:[%s3 + $0x1478] sm:$0xff]
    %v7649 = vld [vmem:[%s3 + $0x1480] sm:$0xff]
    %v7650 = vld [vmem:[%s3 + $0x1488] sm:$0xff]
    %v7651 = vld [vmem:[%s3 + $0x1490] sm:$0xff]
    %v7652 = vld [vmem:[%s3 + $0x1498] sm:$0xff]
    %v7653 = vld [vmem:[%s3 + $0x14a0] sm:$0xff]
    %v7654 = vld [vmem:[%s3 + $0x14a8] sm:$0xff]
    %v7655 = vld [vmem:[%s3 + $0x14b0] sm:$0xff]
    %v7656 = vld [vmem:[%s3 + $0x14b8] sm:$0xff]
    %v7657 = vld [vmem:[%s3 + $0x14c0] sm:$0xff]
    %v7658 = vld [vmem:[%s3 + $0x14c8] sm:$0xff]
    %v7659 = vld [vmem:[%s3 + $0x14d0] sm:$0xff]
    %v7660 = vld [vmem:[%s3 + $0x14d8] sm:$0xff]
    %v7661 = vld [vmem:[%s3 + $0x14e0] sm:$0xff]
    %v7662 = vld [vmem:[%s3 + $0x14e8] sm:$0xff]
    %v7663 = vld [vmem:[%s3 + $0x14f0] sm:$0xff]
    %v7664 = vld [vmem:[%s3 + $0x14f8] sm:$0xff]
    %v7665 = vld [vmem:[%s3 + $0x1500] sm:$0xff]
    %v7666 = vld [vmem:[%s3 + $0x1508] sm:$0xff]
    %v7667 = vld [vmem:[%s3 + $0x1510] sm:$0xff]
    %v7668 = vld [vmem:[%s3 + $0x1518] sm:$0xff]
    %v7669 = vld [vmem:[%s3 + $0x1520] sm:$0xff]
    %v7670 = vld [vmem:[%s3 + $0x1528] sm:$0xff]
    %v7671 = vld [vmem:[%s3 + $0x1530] sm:$0xff]
    %v7672 = vld [vmem:[%s3 + $0x1538] sm:$0xff]
    %v7673 = vld [vmem:[%s3 + $0x1540] sm:$0xff]
    %v7674 = vld [vmem:[%s3 + $0x1548] sm:$0xff]
    %v7675 = vld [vmem:[%s3 + $0x1550] sm:$0xff]
    %v7676 = vld [vmem:[%s3 + $0x1558] sm:$0xff]
    %v7677 = vld [vmem:[%s3 + $0x1560] sm:$0xff]
    %v7678 = vld [vmem:[%s3 + $0x1568] sm:$0xff]
    %v7679 = vld [vmem:[%s3 + $0x1570] sm:$0xff]
    %v7680 = vld [vmem:[%s3 + $0x1578] sm:$0xff]
    %v7681 = vld [vmem:[%s3 + $0x1580] sm:$0xff]
    %v7682 = vld [vmem:[%s3 + $0x1588] sm:$0xff]
    %v7683 = vld [vmem:[%s3 + $0x1590] sm:$0xff]
    %v7684 = vld [vmem:[%s3 + $0x1598] sm:$0xff]
    %v7685 = vld [vmem:[%s3 + $0x15a0] sm:$0xff]
    %v7686 = vld [vmem:[%s3 + $0x15a8] sm:$0xff]
    %v7687 = vld [vmem:[%s3 + $0x15b0] sm:$0xff]
    %v7688 = vld [vmem:[%s3 + $0x15b8] sm:$0xff]
    %v7689 = vld [vmem:[%s3 + $0x15c0] sm:$0xff]
    %v7690 = vld [vmem:[%s3 + $0x15c8] sm:$0xff]
    %v7691 = vld [vmem:[%s3 + $0x15d0] sm:$0xff]
    %v7692 = vld [vmem:[%s3 + $0x15d8] sm:$0xff]
    %v7693 = vld [vmem:[%s3 + $0x15e0] sm:$0xff]
    %v7694 = vld [vmem:[%s3 + $0x15e8] sm:$0xff]
    %v7695 = vld [vmem:[%s3 + $0x15f0] sm:$0xff]
    %v7696 = vld [vmem:[%s3 + $0x15f8] sm:$0xff]
    %v7697 = vld [vmem:[%s3 + $0x1600] sm:$0xff]
    %v7698 = vld [vmem:[%s3 + $0x1608] sm:$0xff]
    %v7699 = vld [vmem:[%s3 + $0x1610] sm:$0xff]
    %v7700 = vld [vmem:[%s3 + $0x1618] sm:$0xff]
    %v7701 = vld [vmem:[%s3 + $0x1620] sm:$0xff]
    %v7702 = vld [vmem:[%s3 + $0x1628] sm:$0xff]
    %v7703 = vld [vmem:[%s3 + $0x1630] sm:$0xff]
    %v7704 = vld [vmem:[%s3 + $0x1638] sm:$0xff]
    %v7705 = vld [vmem:[%s3 + $0x1640] sm:$0xff]
    %v7706 = vld [vmem:[%s3 + $0x1648] sm:$0xff]
    %v7707 = vld [vmem:[%s3 + $0x1650] sm:$0xff]
    %v7708 = vld [vmem:[%s3 + $0x1658] sm:$0xff]
    %v7709 = vld [vmem:[%s3 + $0x1660] sm:$0xff]
    %v7710 = vld [vmem:[%s3 + $0x1668] sm:$0xff]
    %v7711 = vld [vmem:[%s3 + $0x1670] sm:$0xff]
    %v7712 = vld [vmem:[%s3 + $0x1678] sm:$0xff]
    %v7713 = vld [vmem:[%s4] sm:$0xf]
    %v7715 = vlaneseq
    %v7716 = vshrl.u32 %v7715, 7
    %v7717 = vsub.s32 0, %v7716
    %v7718 = vrot.slane %v7713, %v7717
    %v7719 = vlaneseq
    %v7720 = vshrl.u32 %v7719, 7
    %v7721 = vsub.s32 1, %v7720
    %v7722 = vrot.slane %v7713, %v7721
    %v7723 = vlaneseq
    %v7724 = vshrl.u32 %v7723, 7
    %v7725 = vsub.s32 2, %v7724
    %v7726 = vrot.slane %v7713, %v7725
    %v7727 = vlaneseq
    %v7728 = vshrl.u32 %v7727, 7
    %v7729 = vsub.s32 3, %v7728
    %v7730 = vrot.slane %v7713, %v7729
    %v7735 = vsel %vm27, %v6813, 0
    %v7737 = vsel %vm27, %v6819, 0
    %v7739 = vsel %vm27, %v6838, 0
    %v7741 = vsel %vm27, %v6844, 0
    %7743 = vmatprep.subr.mxu0 %v6994
    %7744 = vmatpush1.msra.mxu0 %v6993
    %7745 = vmatprep.subr.mxu0 %v6998
    %7746 = vmatpush1.msra.mxu0 %v6997
    %7747 = vmatprep.subr.mxu0 %v7002
    %7748 = vmatpush1.msra.mxu0 %v7001
    %7749 = vmatprep.subr.mxu0 %v7006
    %7750 = vmatpush1.msra.mxu0 %v7005
    %7751 = vmatprep.subr.mxu0 %v7010
    %7752 = vmatpush1.msra.mxu0 %v7009
    %7753 = vmatprep.subr.mxu0 %v7014
    %7754 = vmatpush1.msra.mxu0 %v7013
    %7755 = vmatprep.subr.mxu0 %v7018
    %7756 = vmatpush1.msra.mxu0 %v7017
    %7757 = vmatprep.subr.mxu0 %v7022
    %7758 = vmatpush1.msra.mxu0 %v7021
    %7759 = vmatprep.subr.mxu0 %v7026
    %7760 = vmatpush1.msra.mxu0 %v7025
    %7761 = vmatprep.subr.mxu0 %v7030
    %7762 = vmatpush1.msra.mxu0 %v7029
    %7763 = vmatprep.subr.mxu0 %v7034
    %7764 = vmatpush1.msra.mxu0 %v7033
    %7765 = vmatprep.subr.mxu0 %v7038
    %7766 = vmatpush1.msra.mxu0 %v7037
    %7767 = vmatprep.subr.mxu0 %v7042
    %7768 = vmatpush1.msra.mxu0 %v7041
    %7769 = vmatprep.subr.mxu0 %v7046
    %7770 = vmatpush1.msra.mxu0 %v7045
    %7771 = vmatprep.subr.mxu0 %v7050
    %7772 = vmatpush1.msra.mxu0 %v7049
    %7773 = vmatprep.subr.mxu0 %v7054
    %7774 = vmatpush1.msra.mxu0 %v7053
    %7775 = vmatprep.subr.mxu0 %v7058
    %7776 = vmatpush1.msra.mxu0 %v7057
    %7777 = vmatprep.subr.mxu0 %v7062
    %7778 = vmatpush1.msra.mxu0 %v7061
    %7779 = vmatprep.subr.mxu0 %v7066
    %7780 = vmatpush1.msra.mxu0 %v7065
    %7781 = vmatprep.subr.mxu0 %v7070
    %7782 = vmatpush1.msra.mxu0 %v7069
    %7783 = vmatprep.subr.mxu0 %v7074
    %7784 = vmatpush1.msra.mxu0 %v7073
    %7785 = vmatprep.subr.mxu0 %v7078
    %7786 = vmatpush1.msra.mxu0 %v7077
    %7787 = vmatprep.subr.mxu0 %v7082
    %7788 = vmatpush1.msra.mxu0 %v7081
    %7789 = vmatprep.subr.mxu0 %v7086
    %7790 = vmatpush1.msra.mxu0 %v7085
    %7791 = vmatprep.subr.mxu0 %v7090
    %7792 = vmatpush1.msra.mxu0 %v7089
    %7793 = vmatprep.subr.mxu0 %v7094
    %7794 = vmatpush1.msra.mxu0 %v7093
    %7795 = vmatprep.subr.mxu0 %v7098
    %7796 = vmatpush1.msra.mxu0 %v7097
    %7797 = vmatprep.subr.mxu0 %v7102
    %7798 = vmatpush1.msra.mxu0 %v7101
    %7799 = vmatprep.subr.mxu0 %v7106
    %7800 = vmatpush1.msra.mxu0 %v7105
    %7801 = vmatprep.subr.mxu0 %v7110
    %7802 = vmatpush1.msra.mxu0 %v7109
    %7803 = vmatprep.subr.mxu0 %v7114
    %7804 = vmatpush1.msra.mxu0 %v7113
    %7805 = vmatprep.subr.mxu0 %v7118
    %7806 = vmatpush1.msra.mxu0 %v7117
    %7807 = vmatprep.mubr.f32.mxu0 %v6603
    %7808 = vmatmul.mubr.f32.gmra.mrb[0].mxu0 %v6602
    %v7809 = vpop.f32.mrb[0].mxu0
    %v7810 = vadd.f32 %v7718, %v7809
    %v7811 = vpop.f32.mrb[0].mxu0
    %v7812 = vadd.f32 %v7722, %v7811
    %7813 = vmatprep.mubr.f32.mxu0 %v6606
    %7814 = vmatmul.mubr.f32.gmra.mrb[0].mxu0 %v6605
    %v7815 = vpop.f32.mrb[0].mxu0
    %v7816 = vadd.f32 %v7718, %v7815
    %v7817 = vpop.f32.mrb[0].mxu0
    %v7818 = vadd.f32 %v7722, %v7817
    %7819 = vmatprep.mubr.f32.mxu0 %v6610
    %7820 = vmatmul.mubr.f32.gmra.mrb[0].mxu0 %v6609
    %v7821 = vpop.f32.mrb[0].mxu0
    %v7822 = vadd.f32 %v7718, %v7821
    %v7823 = vpop.f32.mrb[0].mxu0
    %v7824 = vadd.f32 %v7722, %v7823
    %7825 = vmatprep.mubr.f32.mxu0 %v6613
    %7826 = vmatmul.mubr.f32.gmra.mrb[0].mxu0 %v6612
    %v7827 = vpop.f32.mrb[0].mxu0
    %v7828 = vadd.f32 %v7718, %v7827
    %v7829 = vpop.f32.mrb[0].mxu0
    %v7830 = vadd.f32 %v7722, %v7829
    %7831 = vdwg.mxu0
    %7832 = vmatprep.subr.mxu0 %v7122
    %7833 = vmatpush1.msra.mxu0 %v7121
    %7834 = vmatprep.subr.mxu0 %v7126
    %7835 = vmatpush1.msra.mxu0 %v7125
    %7836 = vmatprep.subr.mxu0 %v7130
    %7837 = vmatpush1.msra.mxu0 %v7129
    %7838 = vmatprep.subr.mxu0 %v7134
    %7839 = vmatpush1.msra.mxu0 %v7133
    %7840 = vmatprep.subr.mxu0 %v7138
    %7841 = vmatpush1.msra.mxu0 %v7137
    %7842 = vmatprep.subr.mxu0 %v7142
    %7843 = vmatpush1.msra.mxu0 %v7141
    %7844 = vmatprep.subr.mxu0 %v7146
    %7845 = vmatpush1.msra.mxu0 %v7145
    %7846 = vmatprep.subr.mxu0 %v7150
    %7847 = vmatpush1.msra.mxu0 %v7149
    %7848 = vmatprep.subr.mxu0 %v7154
    %7849 = vmatpush1.msra.mxu0 %v7153
    %7850 = vmatprep.subr.mxu0 %v7158
    %7851 = vmatpush1.msra.mxu0 %v7157
    %7852 = vmatprep.subr.mxu0 %v7162
    %7853 = vmatpush1.msra.mxu0 %v7161
    %7854 = vmatprep.subr.mxu0 %v7166
    %7855 = vmatpush1.msra.mxu0 %v7165
    %7856 = vmatprep.subr.mxu0 %v7170
    %7857 = vmatpush1.msra.mxu0 %v7169
    %7858 = vmatprep.subr.mxu0 %v7174
    %7859 = vmatpush1.msra.mxu0 %v7173
    %7860 = vmatprep.subr.mxu0 %v7178
    %7861 = vmatpush1.msra.mxu0 %v7177
    %7862 = vmatprep.subr.mxu0 %v7182
    %7863 = vmatpush1.msra.mxu0 %v7181
    %7864 = vmatprep.subr.mxu0 %v7186
    %7865 = vmatpush1.msra.mxu0 %v7185
    %7866 = vmatprep.subr.mxu0 %v7190
    %7867 = vmatpush1.msra.mxu0 %v7189
    %7868 = vmatprep.subr.mxu0 %v7194
    %7869 = vmatpush1.msra.mxu0 %v7193
    %7870 = vmatprep.subr.mxu0 %v7198
    %7871 = vmatpush1.msra.mxu0 %v7197
    %7872 = vmatprep.subr.mxu0 %v7202
    %7873 = vmatpush1.msra.mxu0 %v7201
    %7874 = vmatprep.subr.mxu0 %v7206
    %7875 = vmatpush1.msra.mxu0 %v7205
    %7876 = vmatprep.subr.mxu0 %v7210
    %7877 = vmatpush1.msra.mxu0 %v7209
    %7878 = vmatprep.subr.mxu0 %v7214
    %7879 = vmatpush1.msra.mxu0 %v7213
    %7880 = vmatprep.subr.mxu0 %v7218
    %7881 = vmatpush1.msra.mxu0 %v7217
    %7882 = vmatprep.subr.mxu0 %v7222
    %7883 = vmatpush1.msra.mxu0 %v7221
    %7884 = vmatprep.subr.mxu0 %v7226
    %7885 = vmatpush1.msra.mxu0 %v7225
    %7886 = vmatprep.subr.mxu0 %v7230
    %7887 = vmatpush1.msra.mxu0 %v7229
    %7888 = vmatprep.subr.mxu0 %v7234
    %7889 = vmatpush1.msra.mxu0 %v7233
    %7890 = vmatprep.subr.mxu0 %v7238
    %7891 = vmatpush1.msra.mxu0 %v7237
    %7892 = vmatprep.subr.mxu0 %v7242
    %7893 = vmatpush1.msra.mxu0 %v7241
    %7894 = vmatprep.subr.mxu0 %v7246
    %7895 = vmatpush1.msra.mxu0 %v7245
    %7896 = vmatprep.mubr.f32.mxu0 %v6873
    %7897 = vmatmul.mubr.f32.gmra.mrb[0].mxu0 %v6981
    %v7898 = vpop.f32.mrb[0].mxu0
    %v7899 = vadd.f32 %v7810, %v7898
    %v7900 = vpop.f32.mrb[0].mxu0
    %v7901 = vadd.f32 %v7812, %v7900
    %7902 = vmatprep.mubr.f32.mxu0 %v6875
    %7903 = vmatmul.mubr.f32.gmra.mrb[0].mxu0 %v6982
    %v7904 = vpop.f32.mrb[0].mxu0
    %v7905 = vadd.f32 %v7816, %v7904
    %v7906 = vpop.f32.mrb[0].mxu0
    %v7907 = vadd.f32 %v7818, %v7906
    %7908 = vmatprep.mubr.f32.mxu0 %v6877
    %7909 = vmatmul.mubr.f32.gmra.mrb[0].mxu0 %v6983
    %v7910 = vpop.f32.mrb[0].mxu0
    %v7911 = vadd.f32 %v7822, %v7910
    %v7912 = vpop.f32.mrb[0].mxu0
    %v7913 = vadd.f32 %v7824, %v7912
    %7914 = vmatprep.mubr.f32.mxu0 %v6879
    %7915 = vmatmul.mubr.f32.gmra.mrb[0].mxu0 %v6984
    %v7916 = vpop.f32.mrb[0].mxu0
    %v7917 = vadd.f32 %v7828, %v7916
    %v7918 = vpop.f32.mrb[0].mxu0
    %v7919 = vadd.f32 %v7830, %v7918
    %7920 = vdwg.mxu0
    %7921 = vmatprep.subr.mxu0 %v7250
    %7922 = vmatpush1.msra.mxu0 %v7249
    %7923 = vmatprep.subr.mxu0 %v7254
    %7924 = vmatpush1.msra.mxu0 %v7253
    %7925 = vmatprep.subr.mxu0 %v7258
    %7926 = vmatpush1.msra.mxu0 %v7257
    %7927 = vmatprep.subr.mxu0 %v7262
    %7928 = vmatpush1.msra.mxu0 %v7261
    %7929 = vmatprep.subr.mxu0 %v7266
    %7930 = vmatpush1.msra.mxu0 %v7265
    %7931 = vmatprep.subr.mxu0 %v7270
    %7932 = vmatpush1.msra.mxu0 %v7269
    %7933 = vmatprep.subr.mxu0 %v7274
    %7934 = vmatpush1.msra.mxu0 %v7273
    %7935 = vmatprep.subr.mxu0 %v7278
    %7936 = vmatpush1.msra.mxu0 %v7277
    %7937 = vmatprep.subr.mxu0 %v7282
    %7938 = vmatpush1.msra.mxu0 %v7281
    %7939 = vmatprep.subr.mxu0 %v7286
    %7940 = vmatpush1.msra.mxu0 %v7285
    %7941 = vmatprep.subr.mxu0 %v7290
    %7942 = vmatpush1.msra.mxu0 %v7289
    %7943 = vmatprep.subr.mxu0 %v7294
    %7944 = vmatpush1.msra.mxu0 %v7293
    %7945 = vmatprep.subr.mxu0 %v7298
    %7946 = vmatpush1.msra.mxu0 %v7297
    %7947 = vmatprep.subr.mxu0 %v7302
    %7948 = vmatpush1.msra.mxu0 %v7301
    %7949 = vmatprep.subr.mxu0 %v7306
    %7950 = vmatpush1.msra.mxu0 %v7305
    %7951 = vmatprep.subr.mxu0 %v7310
    %7952 = vmatpush1.msra.mxu0 %v7309
    %7953 = vmatprep.subr.mxu0 %v7314
    %7954 = vmatpush1.msra.mxu0 %v7313
    %7955 = vmatprep.subr.mxu0 %v7318
    %7956 = vmatpush1.msra.mxu0 %v7317
    %7957 = vmatprep.subr.mxu0 %v7322
    %7958 = vmatpush1.msra.mxu0 %v7321
    %7959 = vmatprep.subr.mxu0 %v7326
    %7960 = vmatpush1.msra.mxu0 %v7325
    %7961 = vmatprep.subr.mxu0 %v7330
    %7962 = vmatpush1.msra.mxu0 %v7329
    %7963 = vmatprep.subr.mxu0 %v7334
    %7964 = vmatpush1.msra.mxu0 %v7333
    %7965 = vmatprep.subr.mxu0 %v7338
    %7966 = vmatpush1.msra.mxu0 %v7337
    %7967 = vmatprep.subr.mxu0 %v7342
    %7968 = vmatpush1.msra.mxu0 %v7341
    %7969 = vmatprep.subr.mxu0 %v7346
    %7970 = vmatpush1.msra.mxu0 %v7345
    %7971 = vmatprep.subr.mxu0 %v7350
    %7972 = vmatpush1.msra.mxu0 %v7349
    %7973 = vmatprep.subr.mxu0 %v7354
    %7974 = vmatpush1.msra.mxu0 %v7353
    %7975 = vmatprep.subr.mxu0 %v7358
    %7976 = vmatpush1.msra.mxu0 %v7357
    %7977 = vmatprep.subr.mxu0 %v7362
    %7978 = vmatpush1.msra.mxu0 %v7361
    %7979 = vmatprep.subr.mxu0 %v7366
    %7980 = vmatpush1.msra.mxu0 %v7365
    %7981 = vmatprep.subr.mxu0 %v7370
    %7982 = vmatpush1.msra.mxu0 %v7369
    %7983 = vmatprep.subr.mxu0 %v7374
    %7984 = vmatpush1.msra.mxu0 %v7373
    %7985 = vmatprep.mubr.f32.mxu0 %v6917
    %7986 = vmatmul.mubr.f32.gmra.mrb[0].mxu0 %v6985
    %v7987 = vpop.f32.mrb[0].mxu0
    %v7988 = vadd.f32 %v7899, %v7987
    %v7989 = vpop.f32.mrb[0].mxu0
    %v7990 = vadd.f32 %v7901, %v7989
    %7991 = vmatprep.mubr.f32.mxu0 %v6919
    %7992 = vmatmul.mubr.f32.gmra.mrb[0].mxu0 %v6986
    %v7993 = vpop.f32.mrb[0].mxu0
    %v7994 = vadd.f32 %v7905, %v7993
    %v7995 = vpop.f32.mrb[0].mxu0
    %v7996 = vadd.f32 %v7907, %v7995
    %7997 = vmatprep.mubr.f32.mxu0 %v6921
    %7998 = vmatmul.mubr.f32.gmra.mrb[0].mxu0 %v6987
    %v7999 = vpop.f32.mrb[0].mxu0
    %v8000 = vadd.f32 %v7911, %v7999
    %v8001 = vpop.f32.mrb[0].mxu0
    %v8002 = vadd.f32 %v7913, %v8001
    %8003 = vmatprep.mubr.f32.mxu0 %v6923
    %8004 = vmatmul.mubr.f32.gmra.mrb[0].mxu0 %v6988
    %v8005 = vpop.f32.mrb[0].mxu0
    %v8006 = vadd.f32 %v7917, %v8005
    %v8007 = vpop.f32.mrb[0].mxu0
    %v8008 = vadd.f32 %v7919, %v8007
    %8009 = vdwg.mxu0
    %8010 = vmatprep.subr.mxu0 %v7378
    %8011 = vmatpush1.msra.mxu0 %v7377
    %8012 = vmatprep.subr.mxu0 %v7382
    %8013 = vmatpush1.msra.mxu0 %v7381
    %8014 = vmatprep.subr.mxu0 %v7386
    %8015 = vmatpush1.msra.mxu0 %v7385
    %8016 = vmatprep.subr.mxu0 %v7390
    %8017 = vmatpush1.msra.mxu0 %v7389
    %8018 = vmatprep.subr.mxu0 %v7394
    %8019 = vmatpush1.msra.mxu0 %v7393
    %8020 = vmatprep.subr.mxu0 %v7398
    %8021 = vmatpush1.msra.mxu0 %v7397
    %8022 = vmatprep.subr.mxu0 %v7402
    %8023 = vmatpush1.msra.mxu0 %v7401
    %8024 = vmatprep.subr.mxu0 %v7406
    %8025 = vmatpush1.msra.mxu0 %v7405
    %8026 = vmatprep.subr.mxu0 %v7410
    %8027 = vmatpush1.msra.mxu0 %v7409
    %8028 = vmatprep.subr.mxu0 %v7414
    %8029 = vmatpush1.msra.mxu0 %v7413
    %8030 = vmatprep.subr.mxu0 %v7418
    %8031 = vmatpush1.msra.mxu0 %v7417
    %8032 = vmatprep.subr.mxu0 %v7422
    %8033 = vmatpush1.msra.mxu0 %v7421
    %8034 = vmatprep.subr.mxu0 %v7426
    %8035 = vmatpush1.msra.mxu0 %v7425
    %8036 = vmatprep.subr.mxu0 %v7430
    %8037 = vmatpush1.msra.mxu0 %v7429
    %8038 = vmatprep.subr.mxu0 %v7434
    %8039 = vmatpush1.msra.mxu0 %v7433
    %8040 = vmatprep.subr.mxu0 %v7438
    %8041 = vmatpush1.msra.mxu0 %v7437
    %8042 = vmatprep.subr.mxu0 %v7442
    %8043 = vmatpush1.msra.mxu0 %v7441
    %8044 = vmatprep.subr.mxu0 %v7446
    %8045 = vmatpush1.msra.mxu0 %v7445
    %8046 = vmatprep.subr.mxu0 %v7450
    %8047 = vmatpush1.msra.mxu0 %v7449
    %8048 = vmatprep.subr.mxu0 %v7454
    %8049 = vmatpush1.msra.mxu0 %v7453
    %8050 = vmatprep.subr.mxu0 %v7458
    %8051 = vmatpush1.msra.mxu0 %v7457
    %8052 = vmatprep.subr.mxu0 %v7462
    %8053 = vmatpush1.msra.mxu0 %v7461
    %8054 = vmatprep.subr.mxu0 %v7466
    %8055 = vmatpush1.msra.mxu0 %v7465
    %8056 = vmatprep.subr.mxu0 %v7470
    %8057 = vmatpush1.msra.mxu0 %v7469
    %8058 = vmatprep.subr.mxu0 %v7474
    %8059 = vmatpush1.msra.mxu0 %v7473
    %8060 = vmatprep.subr.mxu0 %v7478
    %8061 = vmatpush1.msra.mxu0 %v7477
    %8062 = vmatprep.subr.mxu0 %v7482
    %8063 = vmatpush1.msra.mxu0 %v7481
    %8064 = vmatprep.subr.mxu0 %v7486
    %8065 = vmatpush1.msra.mxu0 %v7485
    %8066 = vmatprep.subr.mxu0 %v7490
    %8067 = vmatpush1.msra.mxu0 %v7489
    %8068 = vmatprep.subr.mxu0 %v7494
    %8069 = vmatpush1.msra.mxu0 %v7493
    %8070 = vmatprep.subr.mxu0 %v7498
    %8071 = vmatpush1.msra.mxu0 %v7497
    %8072 = vmatprep.subr.mxu0 %v7502
    %8073 = vmatpush1.msra.mxu0 %v7501
    %8074 = vmatprep.mubr.f32.mxu0 %v6961
    %8075 = vmatmul.mubr.f32.gmra.mrb[0].mxu0 %v6989
    %v8076 = vpop.f32.mrb[0].mxu0
    %v8077 = vadd.f32 %v7988, %v8076
    %v8078 = vpop.f32.mrb[0].mxu0
    %v8079 = vadd.f32 %v7990, %v8078
    %8080 = vmatprep.mubr.f32.mxu0 %v6963
    %8081 = vmatmul.mubr.f32.gmra.mrb[0].mxu0 %v6990
    %v8082 = vpop.f32.mrb[0].mxu0
    %v8083 = vadd.f32 %v7994, %v8082
    %v8084 = vpop.f32.mrb[0].mxu0
    %v8085 = vadd.f32 %v7996, %v8084
    %8086 = vmatprep.mubr.f32.mxu0 %v6965
    %8087 = vmatmul.mubr.f32.gmra.mrb[0].mxu0 %v6991
    %v8088 = vpop.f32.mrb[0].mxu0
    %v8089 = vadd.f32 %v8000, %v8088
    %v8090 = vpop.f32.mrb[0].mxu0
    %v8091 = vadd.f32 %v8002, %v8090
    %8092 = vmatprep.mubr.f32.mxu0 %v6967
    %8093 = vmatmul.mubr.f32.gmra.mrb[0].mxu0 %v6992
    %v8094 = vpop.f32.mrb[0].mxu0
    %v8095 = vadd.f32 %v8006, %v8094
    %v8096 = vpop.f32.mrb[0].mxu0
    %v8097 = vadd.f32 %v8008, %v8096
    %8098 = vdwg.mxu0
    %8099 = vmatprep.subr.mxu0 %v7506
    %8100 = vmatpush1.msra.mxu0 %v7505
    %8101 = vmatprep.subr.mxu0 %v7510
    %8102 = vmatpush1.msra.mxu0 %v7509
    %8103 = vmatprep.subr.mxu0 %v7514
    %8104 = vmatpush1.msra.mxu0 %v7513
    %8105 = vmatprep.subr.mxu0 %v7518
    %8106 = vmatpush1.msra.mxu0 %v7517
    %8107 = vmatprep.subr.mxu0 %v7522
    %8108 = vmatpush1.msra.mxu0 %v7521
    %8109 = vmatprep.subr.mxu0 %v7526
    %8110 = vmatpush1.msra.mxu0 %v7525
    %8111 = vmatprep.subr.mxu0 %v7530
    %8112 = vmatpush1.msra.mxu0 %v7529
    %8113 = vmatprep.subr.mxu0 %v7534
    %8114 = vmatpush1.msra.mxu0 %v7533
    %8115 = vmatprep.subr.mxu0 %v7538
    %8116 = vmatpush1.msra.mxu0 %v7537
    %8117 = vmatprep.subr.mxu0 %v7542
    %8118 = vmatpush1.msra.mxu0 %v7541
    %8119 = vmatprep.subr.mxu0 %v7546
    %8120 = vmatpush1.msra.mxu0 %v7545
    %8121 = vmatprep.subr.mxu0 %v7550
    %8122 = vmatpush1.msra.mxu0 %v7549
    %8123 = vmatprep.subr.mxu0 %v7554
    %8124 = vmatpush1.msra.mxu0 %v7553
    %8125 = vmatprep.subr.mxu0 %v7558
    %8126 = vmatpush1.msra.mxu0 %v7557
    %8127 = vmatprep.subr.mxu0 %v7562
    %8128 = vmatpush1.msra.mxu0 %v7561
    %8129 = vmatprep.subr.mxu0 %v7566
    %8130 = vmatpush1.msra.mxu0 %v7565
    %8131 = vmatprep.subr.mxu0 %v7570
    %8132 = vmatpush1.msra.mxu0 %v7569
    %8133 = vmatprep.subr.mxu0 %v7574
    %8134 = vmatpush1.msra.mxu0 %v7573
    %8135 = vmatprep.subr.mxu0 %v7578
    %8136 = vmatpush1.msra.mxu0 %v7577
    %8137 = vmatprep.subr.mxu0 %v7582
    %8138 = vmatpush1.msra.mxu0 %v7581
    %8139 = vmatprep.subr.mxu0 %v7586
    %8140 = vmatpush1.msra.mxu0 %v7585
    %8141 = vmatprep.subr.mxu0 %v7590
    %8142 = vmatpush1.msra.mxu0 %v7589
    %8143 = vmatprep.subr.mxu0 %v7594
    %8144 = vmatpush1.msra.mxu0 %v7593
    %8145 = vmatprep.subr.mxu0 %v7598
    %8146 = vmatpush1.msra.mxu0 %v7597
    %8147 = vmatprep.subr.mxu0 %v7602
    %8148 = vmatpush1.msra.mxu0 %v7601
    %8149 = vmatprep.subr.mxu0 %v7606
    %8150 = vmatpush1.msra.mxu0 %v7605
    %8151 = vmatprep.subr.mxu0 %v7610
    %8152 = vmatpush1.msra.mxu0 %v7609
    %8153 = vmatprep.subr.mxu0 %v7614
    %8154 = vmatpush1.msra.mxu0 %v7613
    %8155 = vmatprep.subr.mxu0 %v7618
    %8156 = vmatpush1.msra.mxu0 %v7617
    %8157 = vmatprep.subr.mxu0 %v7622
    %8158 = vmatpush1.msra.mxu0 %v7621
    %8159 = vmatprep.subr.mxu0 %v7626
    %8160 = vmatpush1.msra.mxu0 %v7625
    %8161 = vmatprep.subr.mxu0 %v7630
    %8162 = vmatpush1.msra.mxu0 %v7629
    %8163 = vmatprep.mubr.f32.mxu0 %v6807
    %8164 = vmatmul.mubr.f32.gmra.mrb[0].mxu0 %v6962
    %v8165 = vpop.f32.mrb[0].mxu0
    %v8166 = vadd.f32 %v8077, %v8165
    %v8167 = vpop.f32.mrb[0].mxu0
    %v8168 = vadd.f32 %v8079, %v8167
    %8169 = vmatprep.mubr.f32.mxu0 %v6815
    %8170 = vmatmul.mubr.f32.gmra.mrb[0].mxu0 %v6964
    %v8171 = vpop.f32.mrb[0].mxu0
    %v8172 = vadd.f32 %v8083, %v8171
    %v8173 = vpop.f32.mrb[0].mxu0
    %v8174 = vadd.f32 %v8085, %v8173
    %8175 = vmatprep.mubr.f32.mxu0 %v6832
    %8176 = vmatmul.mubr.f32.gmra.mrb[0].mxu0 %v6966
    %v8177 = vpop.f32.mrb[0].mxu0
    %v8178 = vadd.f32 %v8089, %v8177
    %v8179 = vpop.f32.mrb[0].mxu0
    %v8180 = vadd.f32 %v8091, %v8179
    %8181 = vmatprep.mubr.f32.mxu0 %v6840
    %8182 = vmatmul.mubr.f32.gmra.mrb[0].mxu0 %v6968
    %v8183 = vpop.f32.mrb[0].mxu0
    %v8184 = vadd.f32 %v8095, %v8183
    %v8185 = vpop.f32.mrb[0].mxu0
    %v8186 = vadd.f32 %v8097, %v8185
    %8187 = vdwg.mxu0
    %8188 = vmatprep.subr.mxu0 %v7634
    %8189 = vmatpush1.msra.mxu0 %v7633
    %8190 = vmatprep.subr.mxu0 %v7638
    %8191 = vmatpush1.msra.mxu0 %v7637
    %8192 = vmatprep.subr.mxu0 %v7642
    %8193 = vmatpush1.msra.mxu0 %v7641
    %8194 = vmatprep.subr.mxu0 %v7646
    %8195 = vmatpush1.msra.mxu0 %v7645
    %8196 = vmatprep.subr.mxu0 %v7650
    %8197 = vmatpush1.msra.mxu0 %v7649
    %8198 = vmatprep.subr.mxu0 %v7654
    %8199 = vmatpush1.msra.mxu0 %v7653
    %8200 = vmatprep.subr.mxu0 %v7658
    %8201 = vmatpush1.msra.mxu0 %v7657
    %8202 = vmatprep.subr.mxu0 %v7662
    %8203 = vmatpush1.msra.mxu0 %v7661
    %8204 = vmatprep.subr.mxu0 %v7666
    %8205 = vmatpush1.msra.mxu0 %v7665
    %8206 = vmatprep.subr.mxu0 %v7670
    %8207 = vmatpush1.msra.mxu0 %v7669
    %8208 = vmatprep.subr.mxu0 %v7674
    %8209 = vmatpush1.msra.mxu0 %v7673
    %8210 = vmatprep.subr.mxu0 %v7678
    %8211 = vmatpush1.msra.mxu0 %v7677
    %8212 = vmatprep.subr.mxu0 %v7682
    %8213 = vmatpush1.msra.mxu0 %v7681
    %8214 = vmatprep.subr.mxu0 %v7686
    %8215 = vmatpush1.msra.mxu0 %v7685
    %8216 = vmatprep.subr.mxu0 %v7690
    %8217 = vmatpush1.msra.mxu0 %v7689
    %8218 = vmatprep.subr.mxu0 %v7694
    %8219 = vmatpush1.msra.mxu0 %v7693
    %8220 = vmatprep.subr.mxu0 %v7698
    %8221 = vmatpush1.msra.mxu0 %v7697
    %8222 = vmatprep.subr.mxu0 %v7702
    %8223 = vmatpush1.msra.mxu0 %v7701
    %8224 = vmatprep.subr.mxu0 %v7706
    %8225 = vmatpush1.msra.mxu0 %v7705
    %8226 = vmatprep.subr.mxu0 %v7710
    %8227 = vmatpush1.msra.mxu0 %v7709
    %8228 = vmatprep.subr.mxu0 0.0
    %8229 = vmatpush1.msra.mxu0 0.0
    %8230 = vmatprep.subr.mxu0 0.0
    %8231 = vmatpush1.msra.mxu0 0.0
    %8232 = vmatprep.subr.mxu0 0.0
    %8233 = vmatpush1.msra.mxu0 0.0
    %8234 = vmatprep.subr.mxu0 0.0
    %8235 = vmatpush1.msra.mxu0 0.0
    %8236 = vmatprep.subr.mxu0 0.0
    %8237 = vmatpush1.msra.mxu0 0.0
    %8238 = vmatprep.subr.mxu0 0.0
    %8239 = vmatpush1.msra.mxu0 0.0
    %8240 = vmatprep.subr.mxu0 0.0
    %8241 = vmatpush1.msra.mxu0 0.0
    %8242 = vmatprep.subr.mxu0 0.0
    %8243 = vmatpush1.msra.mxu0 0.0
    %8244 = vmatprep.subr.mxu0 0.0
    %8245 = vmatpush1.msra.mxu0 0.0
    %8246 = vmatprep.subr.mxu0 0.0
    %8247 = vmatpush1.msra.mxu0 0.0
    %8248 = vmatprep.subr.mxu0 0.0
    %8249 = vmatpush1.msra.mxu0 0.0
    %8250 = vmatprep.subr.mxu0 0.0
    %8251 = vmatpush1.msra.mxu0 0.0
    %8252 = vmatprep.mubr.f32.mxu0 %v7735
    %8253 = vmatmul.mubr.f32.gmra.mrb[0].mxu0 %v6810
    %v8254 = vpop.f32.mrb[0].mxu0
    %v8255 = vadd.f32 %v8166, %v8254
    %v8256 = vpop.f32.mrb[0].mxu0
    %v8257 = vadd.f32 %v8168, %v8256
    %8258 = vmatprep.mubr.f32.mxu0 %v7737
    %8259 = vmatmul.mubr.f32.gmra.mrb[0].mxu0 %v6817
    %v8260 = vpop.f32.mrb[0].mxu0
    %v8261 = vadd.f32 %v8172, %v8260
    %v8262 = vpop.f32.mrb[0].mxu0
    %v8263 = vadd.f32 %v8174, %v8262
    %8264 = vmatprep.mubr.f32.mxu0 %v7739
    %8265 = vmatmul.mubr.f32.gmra.mrb[0].mxu0 %v6835
    %v8266 = vpop.f32.mrb[0].mxu0
    %v8267 = vadd.f32 %v8178, %v8266
    %v8268 = vpop.f32.mrb[0].mxu0
    %v8269 = vadd.f32 %v8180, %v8268
    %8270 = vmatprep.mubr.f32.mxu0 %v7741
    %8271 = vmatmul.mubr.f32.gmra.mrb[0].mxu0 %v6842
    %v8272 = vpop.f32.mrb[0].mxu0
    %v8273 = vadd.f32 %v8184, %v8272
    %v8274 = vpop.f32.mrb[0].mxu0
    %v8275 = vadd.f32 %v8186, %v8274
    %8276 = vdwg.mxu0
    %8277 = vmatprep.subr.mxu0 %v6996
    %8278 = vmatpush1.msra.mxu0 %v6995
    %8279 = vmatprep.subr.mxu0 %v7000
    %8280 = vmatpush1.msra.mxu0 %v6999
    %8281 = vmatprep.subr.mxu0 %v7004
    %8282 = vmatpush1.msra.mxu0 %v7003
    %8283 = vmatprep.subr.mxu0 %v7008
    %8284 = vmatpush1.msra.mxu0 %v7007
    %8285 = vmatprep.subr.mxu0 %v7012
    %8286 = vmatpush1.msra.mxu0 %v7011
    %8287 = vmatprep.subr.mxu0 %v7016
    %8288 = vmatpush1.msra.mxu0 %v7015
    %8289 = vmatprep.subr.mxu0 %v7020
    %8290 = vmatpush1.msra.mxu0 %v7019
    %8291 = vmatprep.subr.mxu0 %v7024
    %8292 = vmatpush1.msra.mxu0 %v7023
    %8293 = vmatprep.subr.mxu0 %v7028
    %8294 = vmatpush1.msra.mxu0 %v7027
    %8295 = vmatprep.subr.mxu0 %v7032
    %8296 = vmatpush1.msra.mxu0 %v7031
    %8297 = vmatprep.subr.mxu0 %v7036
    %8298 = vmatpush1.msra.mxu0 %v7035
    %8299 = vmatprep.subr.mxu0 %v7040
    %8300 = vmatpush1.msra.mxu0 %v7039
    %8301 = vmatprep.subr.mxu0 %v7044
    %8302 = vmatpush1.msra.mxu0 %v7043
    %8303 = vmatprep.subr.mxu0 %v7048
    %8304 = vmatpush1.msra.mxu0 %v7047
    %8305 = vmatprep.subr.mxu0 %v7052
    %8306 = vmatpush1.msra.mxu0 %v7051
    %8307 = vmatprep.subr.mxu0 %v7056
    %8308 = vmatpush1.msra.mxu0 %v7055
    %8309 = vmatprep.subr.mxu0 %v7060
    %8310 = vmatpush1.msra.mxu0 %v7059
    %8311 = vmatprep.subr.mxu0 %v7064
    %8312 = vmatpush1.msra.mxu0 %v7063
    %8313 = vmatprep.subr.mxu0 %v7068
    %8314 = vmatpush1.msra.mxu0 %v7067
    %8315 = vmatprep.subr.mxu0 %v7072
    %8316 = vmatpush1.msra.mxu0 %v7071
    %8317 = vmatprep.subr.mxu0 %v7076
    %8318 = vmatpush1.msra.mxu0 %v7075
    %8319 = vmatprep.subr.mxu0 %v7080
    %8320 = vmatpush1.msra.mxu0 %v7079
    %8321 = vmatprep.subr.mxu0 %v7084
    %8322 = vmatpush1.msra.mxu0 %v7083
    %8323 = vmatprep.subr.mxu0 %v7088
    %8324 = vmatpush1.msra.mxu0 %v7087
    %8325 = vmatprep.subr.mxu0 %v7092
    %8326 = vmatpush1.msra.mxu0 %v7091
    %8327 = vmatprep.subr.mxu0 %v7096
    %8328 = vmatpush1.msra.mxu0 %v7095
    %8329 = vmatprep.subr.mxu0 %v7100
    %8330 = vmatpush1.msra.mxu0 %v7099
    %8331 = vmatprep.subr.mxu0 %v7104
    %8332 = vmatpush1.msra.mxu0 %v7103
    %8333 = vmatprep.subr.mxu0 %v7108
    %8334 = vmatpush1.msra.mxu0 %v7107
    %8335 = vmatprep.subr.mxu0 %v7112
    %8336 = vmatpush1.msra.mxu0 %v7111
    %8337 = vmatprep.subr.mxu0 %v7116
    %8338 = vmatpush1.msra.mxu0 %v7115
    %8339 = vmatprep.subr.mxu0 %v7120
    %8340 = vmatpush1.msra.mxu0 %v7119
    %8341 = vmatprep.mubr.f32.mxu0 %v6603
    %8342 = vmatmul.mubr.f32.gmra.mrb[0].mxu0 %v6602
    %v8343 = vpop.f32.mrb[0].mxu0
    %v8344 = vadd.f32 %v7726, %v8343
    %v8345 = vpop.f32.mrb[0].mxu0
    %v8346 = vadd.f32 %v7730, %v8345
    %8347 = vmatprep.mubr.f32.mxu0 %v6606
    %8348 = vmatmul.mubr.f32.gmra.mrb[0].mxu0 %v6605
    %v8349 = vpop.f32.mrb[0].mxu0
    %v8350 = vadd.f32 %v7726, %v8349
    %v8351 = vpop.f32.mrb[0].mxu0
    %v8352 = vadd.f32 %v7730, %v8351
    %8353 = vmatprep.mubr.f32.mxu0 %v6610
    %8354 = vmatmul.mubr.f32.gmra.mrb[0].mxu0 %v6609
    %v8355 = vpop.f32.mrb[0].mxu0
    %v8356 = vadd.f32 %v7726, %v8355
    %v8357 = vpop.f32.mrb[0].mxu0
    %v8358 = vadd.f32 %v7730, %v8357
    %8359 = vmatprep.mubr.f32.mxu0 %v6613
    %8360 = vmatmul.mubr.f32.gmra.mrb[0].mxu0 %v6612
    %v8361 = vpop.f32.mrb[0].mxu0
    %v8362 = vadd.f32 %v7726, %v8361
    %v8363 = vpop.f32.mrb[0].mxu0
    %v8364 = vadd.f32 %v7730, %v8363
    %8365 = vdwg.mxu0
    %8366 = vmatprep.subr.mxu0 %v7124
    %8367 = vmatpush1.msra.mxu0 %v7123
    %8368 = vmatprep.subr.mxu0 %v7128
    %8369 = vmatpush1.msra.mxu0 %v7127
    %8370 = vmatprep.subr.mxu0 %v7132
    %8371 = vmatpush1.msra.mxu0 %v7131
    %8372 = vmatprep.subr.mxu0 %v7136
    %8373 = vmatpush1.msra.mxu0 %v7135
    %8374 = vmatprep.subr.mxu0 %v7140
    %8375 = vmatpush1.msra.mxu0 %v7139
    %8376 = vmatprep.subr.mxu0 %v7144
    %8377 = vmatpush1.msra.mxu0 %v7143
    %8378 = vmatprep.subr.mxu0 %v7148
    %8379 = vmatpush1.msra.mxu0 %v7147
    %8380 = vmatprep.subr.mxu0 %v7152
    %8381 = vmatpush1.msra.mxu0 %v7151
    %8382 = vmatprep.subr.mxu0 %v7156
    %8383 = vmatpush1.msra.mxu0 %v7155
    %8384 = vmatprep.subr.mxu0 %v7160
    %8385 = vmatpush1.msra.mxu0 %v7159
    %8386 = vmatprep.subr.mxu0 %v7164
    %8387 = vmatpush1.msra.mxu0 %v7163
    %8388 = vmatprep.subr.mxu0 %v7168
    %8389 = vmatpush1.msra.mxu0 %v7167
    %8390 = vmatprep.subr.mxu0 %v7172
    %8391 = vmatpush1.msra.mxu0 %v7171
    %8392 = vmatprep.subr.mxu0 %v7176
    %8393 = vmatpush1.msra.mxu0 %v7175
    %8394 = vmatprep.subr.mxu0 %v7180
    %8395 = vmatpush1.msra.mxu0 %v7179
    %8396 = vmatprep.subr.mxu0 %v7184
    %8397 = vmatpush1.msra.mxu0 %v7183
    %8398 = vmatprep.subr.mxu0 %v7188
    %8399 = vmatpush1.msra.mxu0 %v7187
    %8400 = vmatprep.subr.mxu0 %v7192
    %8401 = vmatpush1.msra.mxu0 %v7191
    %8402 = vmatprep.subr.mxu0 %v7196
    %8403 = vmatpush1.msra.mxu0 %v7195
    %8404 = vmatprep.subr.mxu0 %v7200
    %8405 = vmatpush1.msra.mxu0 %v7199
    %8406 = vmatprep.subr.mxu0 %v7204
    %8407 = vmatpush1.msra.mxu0 %v7203
    %8408 = vmatprep.subr.mxu0 %v7208
    %8409 = vmatpush1.msra.mxu0 %v7207
    %8410 = vmatprep.subr.mxu0 %v7212
    %8411 = vmatpush1.msra.mxu0 %v7211
    %8412 = vmatprep.subr.mxu0 %v7216
    %8413 = vmatpush1.msra.mxu0 %v7215
    %8414 = vmatprep.subr.mxu0 %v7220
    %8415 = vmatpush1.msra.mxu0 %v7219
    %8416 = vmatprep.subr.mxu0 %v7224
    %8417 = vmatpush1.msra.mxu0 %v7223
    %8418 = vmatprep.subr.mxu0 %v7228
    %8419 = vmatpush1.msra.mxu0 %v7227
    %8420 = vmatprep.subr.mxu0 %v7232
    %8421 = vmatpush1.msra.mxu0 %v7231
    %8422 = vmatprep.subr.mxu0 %v7236
    %8423 = vmatpush1.msra.mxu0 %v7235
    %8424 = vmatprep.subr.mxu0 %v7240
    %8425 = vmatpush1.msra.mxu0 %v7239
    %8426 = vmatprep.subr.mxu0 %v7244
    %8427 = vmatpush1.msra.mxu0 %v7243
    %8428 = vmatprep.subr.mxu0 %v7248
    %8429 = vmatpush1.msra.mxu0 %v7247
    %8430 = vmatprep.mubr.f32.mxu0 %v6873
    %8431 = vmatmul.mubr.f32.gmra.mrb[0].mxu0 %v6981
    %v8432 = vpop.f32.mrb[0].mxu0
    %v8433 = vadd.f32 %v8344, %v8432
    %v8434 = vpop.f32.mrb[0].mxu0
    %v8435 = vadd.f32 %v8346, %v8434
    %8436 = vmatprep.mubr.f32.mxu0 %v6875
    %8437 = vmatmul.mubr.f32.gmra.mrb[0].mxu0 %v6982
    %v8438 = vpop.f32.mrb[0].mxu0
    %v8439 = vadd.f32 %v8350, %v8438
    %v8440 = vpop.f32.mrb[0].mxu0
    %v8441 = vadd.f32 %v8352, %v8440
    %8442 = vmatprep.mubr.f32.mxu0 %v6877
    %8443 = vmatmul.mubr.f32.gmra.mrb[0].mxu0 %v6983
    %v8444 = vpop.f32.mrb[0].mxu0
    %v8445 = vadd.f32 %v8356, %v8444
    %v8446 = vpop.f32.mrb[0].mxu0
    %v8447 = vadd.f32 %v8358, %v8446
    %8448 = vmatprep.mubr.f32.mxu0 %v6879
    %8449 = vmatmul.mubr.f32.gmra.mrb[0].mxu0 %v6984
    %v8450 = vpop.f32.mrb[0].mxu0
    %v8451 = vadd.f32 %v8362, %v8450
    %v8452 = vpop.f32.mrb[0].mxu0
    %v8453 = vadd.f32 %v8364, %v8452
    %8454 = vdwg.mxu0
    %8455 = vmatprep.subr.mxu0 %v7252
    %8456 = vmatpush1.msra.mxu0 %v7251
    %8457 = vmatprep.subr.mxu0 %v7256
    %8458 = vmatpush1.msra.mxu0 %v7255
    %8459 = vmatprep.subr.mxu0 %v7260
    %8460 = vmatpush1.msra.mxu0 %v7259
    %8461 = vmatprep.subr.mxu0 %v7264
    %8462 = vmatpush1.msra.mxu0 %v7263
    %8463 = vmatprep.subr.mxu0 %v7268
    %8464 = vmatpush1.msra.mxu0 %v7267
    %8465 = vmatprep.subr.mxu0 %v7272
    %8466 = vmatpush1.msra.mxu0 %v7271
    %8467 = vmatprep.subr.mxu0 %v7276
    %8468 = vmatpush1.msra.mxu0 %v7275
    %8469 = vmatprep.subr.mxu0 %v7280
    %8470 = vmatpush1.msra.mxu0 %v7279
    %8471 = vmatprep.subr.mxu0 %v7284
    %8472 = vmatpush1.msra.mxu0 %v7283
    %8473 = vmatprep.subr.mxu0 %v7288
    %8474 = vmatpush1.msra.mxu0 %v7287
    %8475 = vmatprep.subr.mxu0 %v7292
    %8476 = vmatpush1.msra.mxu0 %v7291
    %8477 = vmatprep.subr.mxu0 %v7296
    %8478 = vmatpush1.msra.mxu0 %v7295
    %8479 = vmatprep.subr.mxu0 %v7300
    %8480 = vmatpush1.msra.mxu0 %v7299
    %8481 = vmatprep.subr.mxu0 %v7304
    %8482 = vmatpush1.msra.mxu0 %v7303
    %8483 = vmatprep.subr.mxu0 %v7308
    %8484 = vmatpush1.msra.mxu0 %v7307
    %8485 = vmatprep.subr.mxu0 %v7312
    %8486 = vmatpush1.msra.mxu0 %v7311
    %8487 = vmatprep.subr.mxu0 %v7316
    %8488 = vmatpush1.msra.mxu0 %v7315
    %8489 = vmatprep.subr.mxu0 %v7320
    %8490 = vmatpush1.msra.mxu0 %v7319
    %8491 = vmatprep.subr.mxu0 %v7324
    %8492 = vmatpush1.msra.mxu0 %v7323
    %8493 = vmatprep.subr.mxu0 %v7328
    %8494 = vmatpush1.msra.mxu0 %v7327
    %8495 = vmatprep.subr.mxu0 %v7332
    %8496 = vmatpush1.msra.mxu0 %v7331
    %8497 = vmatprep.subr.mxu0 %v7336
    %8498 = vmatpush1.msra.mxu0 %v7335
    %8499 = vmatprep.subr.mxu0 %v7340
    %8500 = vmatpush1.msra.mxu0 %v7339
    %8501 = vmatprep.subr.mxu0 %v7344
    %8502 = vmatpush1.msra.mxu0 %v7343
    %8503 = vmatprep.subr.mxu0 %v7348
    %8504 = vmatpush1.msra.mxu0 %v7347
    %8505 = vmatprep.subr.mxu0 %v7352
    %8506 = vmatpush1.msra.mxu0 %v7351
    %8507 = vmatprep.subr.mxu0 %v7356
    %8508 = vmatpush1.msra.mxu0 %v7355
    %8509 = vmatprep.subr.mxu0 %v7360
    %8510 = vmatpush1.msra.mxu0 %v7359
    %8511 = vmatprep.subr.mxu0 %v7364
    %8512 = vmatpush1.msra.mxu0 %v7363
    %8513 = vmatprep.subr.mxu0 %v7368
    %8514 = vmatpush1.msra.mxu0 %v7367
    %8515 = vmatprep.subr.mxu0 %v7372
    %8516 = vmatpush1.msra.mxu0 %v7371
    %8517 = vmatprep.subr.mxu0 %v7376
    %8518 = vmatpush1.msra.mxu0 %v7375
    %8519 = vmatprep.mubr.f32.mxu0 %v6917
    %8520 = vmatmul.mubr.f32.gmra.mrb[0].mxu0 %v6985
    %v8521 = vpop.f32.mrb[0].mxu0
    %v8522 = vadd.f32 %v8433, %v8521
    %v8523 = vpop.f32.mrb[0].mxu0
    %v8524 = vadd.f32 %v8435, %v8523
    %8525 = vmatprep.mubr.f32.mxu0 %v6919
    %8526 = vmatmul.mubr.f32.gmra.mrb[0].mxu0 %v6986
    %v8527 = vpop.f32.mrb[0].mxu0
    %v8528 = vadd.f32 %v8439, %v8527
    %v8529 = vpop.f32.mrb[0].mxu0
    %v8530 = vadd.f32 %v8441, %v8529
    %8531 = vmatprep.mubr.f32.mxu0 %v6921
    %8532 = vmatmul.mubr.f32.gmra.mrb[0].mxu0 %v6987
    %v8533 = vpop.f32.mrb[0].mxu0
    %v8534 = vadd.f32 %v8445, %v8533
    %v8535 = vpop.f32.mrb[0].mxu0
    %v8536 = vadd.f32 %v8447, %v8535
    %8537 = vmatprep.mubr.f32.mxu0 %v6923
    %8538 = vmatmul.mubr.f32.gmra.mrb[0].mxu0 %v6988
    %v8539 = vpop.f32.mrb[0].mxu0
    %v8540 = vadd.f32 %v8451, %v8539
    %v8541 = vpop.f32.mrb[0].mxu0
    %v8542 = vadd.f32 %v8453, %v8541
    %8543 = vdwg.mxu0
    %8544 = vmatprep.subr.mxu0 %v7380
    %8545 = vmatpush1.msra.mxu0 %v7379
    %8546 = vmatprep.subr.mxu0 %v7384
    %8547 = vmatpush1.msra.mxu0 %v7383
    %8548 = vmatprep.subr.mxu0 %v7388
    %8549 = vmatpush1.msra.mxu0 %v7387
    %8550 = vmatprep.subr.mxu0 %v7392
    %8551 = vmatpush1.msra.mxu0 %v7391
    %8552 = vmatprep.subr.mxu0 %v7396
    %8553 = vmatpush1.msra.mxu0 %v7395
    %8554 = vmatprep.subr.mxu0 %v7400
    %8555 = vmatpush1.msra.mxu0 %v7399
    %8556 = vmatprep.subr.mxu0 %v7404
    %8557 = vmatpush1.msra.mxu0 %v7403
    %8558 = vmatprep.subr.mxu0 %v7408
    %8559 = vmatpush1.msra.mxu0 %v7407
    %8560 = vmatprep.subr.mxu0 %v7412
    %8561 = vmatpush1.msra.mxu0 %v7411
    %8562 = vmatprep.subr.mxu0 %v7416
    %8563 = vmatpush1.msra.mxu0 %v7415
    %8564 = vmatprep.subr.mxu0 %v7420
    %8565 = vmatpush1.msra.mxu0 %v7419
    %8566 = vmatprep.subr.mxu0 %v7424
    %8567 = vmatpush1.msra.mxu0 %v7423
    %8568 = vmatprep.subr.mxu0 %v7428
    %8569 = vmatpush1.msra.mxu0 %v7427
    %8570 = vmatprep.subr.mxu0 %v7432
    %8571 = vmatpush1.msra.mxu0 %v7431
    %8572 = vmatprep.subr.mxu0 %v7436
    %8573 = vmatpush1.msra.mxu0 %v7435
    %8574 = vmatprep.subr.mxu0 %v7440
    %8575 = vmatpush1.msra.mxu0 %v7439
    %8576 = vmatprep.subr.mxu0 %v7444
    %8577 = vmatpush1.msra.mxu0 %v7443
    %8578 = vmatprep.subr.mxu0 %v7448
    %8579 = vmatpush1.msra.mxu0 %v7447
    %8580 = vmatprep.subr.mxu0 %v7452
    %8581 = vmatpush1.msra.mxu0 %v7451
    %8582 = vmatprep.subr.mxu0 %v7456
    %8583 = vmatpush1.msra.mxu0 %v7455
    %8584 = vmatprep.subr.mxu0 %v7460
    %8585 = vmatpush1.msra.mxu0 %v7459
    %8586 = vmatprep.subr.mxu0 %v7464
    %8587 = vmatpush1.msra.mxu0 %v7463
    %8588 = vmatprep.subr.mxu0 %v7468
    %8589 = vmatpush1.msra.mxu0 %v7467
    %8590 = vmatprep.subr.mxu0 %v7472
    %8591 = vmatpush1.msra.mxu0 %v7471
    %8592 = vmatprep.subr.mxu0 %v7476
    %8593 = vmatpush1.msra.mxu0 %v7475
    %8594 = vmatprep.subr.mxu0 %v7480
    %8595 = vmatpush1.msra.mxu0 %v7479
    %8596 = vmatprep.subr.mxu0 %v7484
    %8597 = vmatpush1.msra.mxu0 %v7483
    %8598 = vmatprep.subr.mxu0 %v7488
    %8599 = vmatpush1.msra.mxu0 %v7487
    %8600 = vmatprep.subr.mxu0 %v7492
    %8601 = vmatpush1.msra.mxu0 %v7491
    %8602 = vmatprep.subr.mxu0 %v7496
    %8603 = vmatpush1.msra.mxu0 %v7495
    %8604 = vmatprep.subr.mxu0 %v7500
    %8605 = vmatpush1.msra.mxu0 %v7499
    %8606 = vmatprep.subr.mxu0 %v7504
    %8607 = vmatpush1.msra.mxu0 %v7503
    %8608 = vmatprep.mubr.f32.mxu0 %v6961
    %8609 = vmatmul.mubr.f32.gmra.mrb[0].mxu0 %v6989
    %v8610 = vpop.f32.mrb[0].mxu0
    %v8611 = vadd.f32 %v8522, %v8610
    %v8612 = vpop.f32.mrb[0].mxu0
    %v8613 = vadd.f32 %v8524, %v8612
    %8614 = vmatprep.mubr.f32.mxu0 %v6963
    %8615 = vmatmul.mubr.f32.gmra.mrb[0].mxu0 %v6990
    %v8616 = vpop.f32.mrb[0].mxu0
    %v8617 = vadd.f32 %v8528, %v8616
    %v8618 = vpop.f32.mrb[0].mxu0
    %v8619 = vadd.f32 %v8530, %v8618
    %8620 = vmatprep.mubr.f32.mxu0 %v6965
    %8621 = vmatmul.mubr.f32.gmra.mrb[0].mxu0 %v6991
    %v8622 = vpop.f32.mrb[0].mxu0
    %v8623 = vadd.f32 %v8534, %v8622
    %v8624 = vpop.f32.mrb[0].mxu0
    %v8625 = vadd.f32 %v8536, %v8624
    %8626 = vmatprep.mubr.f32.mxu0 %v6967
    %8627 = vmatmul.mubr.f32.gmra.mrb[0].mxu0 %v6992
    %v8628 = vpop.f32.mrb[0].mxu0
    %v8629 = vadd.f32 %v8540, %v8628
    %v8630 = vpop.f32.mrb[0].mxu0
    %v8631 = vadd.f32 %v8542, %v8630
    %8632 = vdwg.mxu0
    %8633 = vmatprep.subr.mxu0 %v7508
    %8634 = vmatpush1.msra.mxu0 %v7507
    %8635 = vmatprep.subr.mxu0 %v7512
    %8636 = vmatpush1.msra.mxu0 %v7511
    %8637 = vmatprep.subr.mxu0 %v7516
    %8638 = vmatpush1.msra.mxu0 %v7515
    %8639 = vmatprep.subr.mxu0 %v7520
    %8640 = vmatpush1.msra.mxu0 %v7519
    %8641 = vmatprep.subr.mxu0 %v7524
    %8642 = vmatpush1.msra.mxu0 %v7523
    %8643 = vmatprep.subr.mxu0 %v7528
    %8644 = vmatpush1.msra.mxu0 %v7527
    %8645 = vmatprep.subr.mxu0 %v7532
    %8646 = vmatpush1.msra.mxu0 %v7531
    %8647 = vmatprep.subr.mxu0 %v7536
    %8648 = vmatpush1.msra.mxu0 %v7535
    %8649 = vmatprep.subr.mxu0 %v7540
    %8650 = vmatpush1.msra.mxu0 %v7539
    %8651 = vmatprep.subr.mxu0 %v7544
    %8652 = vmatpush1.msra.mxu0 %v7543
    %8653 = vmatprep.subr.mxu0 %v7548
    %8654 = vmatpush1.msra.mxu0 %v7547
    %8655 = vmatprep.subr.mxu0 %v7552
    %8656 = vmatpush1.msra.mxu0 %v7551
    %8657 = vmatprep.subr.mxu0 %v7556
    %8658 = vmatpush1.msra.mxu0 %v7555
    %8659 = vmatprep.subr.mxu0 %v7560
    %8660 = vmatpush1.msra.mxu0 %v7559
    %8661 = vmatprep.subr.mxu0 %v7564
    %8662 = vmatpush1.msra.mxu0 %v7563
    %8663 = vmatprep.subr.mxu0 %v7568
    %8664 = vmatpush1.msra.mxu0 %v7567
    %8665 = vmatprep.subr.mxu0 %v7572
    %8666 = vmatpush1.msra.mxu0 %v7571
    %8667 = vmatprep.subr.mxu0 %v7576
    %8668 = vmatpush1.msra.mxu0 %v7575
    %8669 = vmatprep.subr.mxu0 %v7580
    %8670 = vmatpush1.msra.mxu0 %v7579
    %8671 = vmatprep.subr.mxu0 %v7584
    %8672 = vmatpush1.msra.mxu0 %v7583
    %8673 = vmatprep.subr.mxu0 %v7588
    %8674 = vmatpush1.msra.mxu0 %v7587
    %8675 = vmatprep.subr.mxu0 %v7592
    %8676 = vmatpush1.msra.mxu0 %v7591
    %8677 = vmatprep.subr.mxu0 %v7596
    %8678 = vmatpush1.msra.mxu0 %v7595
    %8679 = vmatprep.subr.mxu0 %v7600
    %8680 = vmatpush1.msra.mxu0 %v7599
    %8681 = vmatprep.subr.mxu0 %v7604
    %8682 = vmatpush1.msra.mxu0 %v7603
    %8683 = vmatprep.subr.mxu0 %v7608
    %8684 = vmatpush1.msra.mxu0 %v7607
    %8685 = vmatprep.subr.mxu0 %v7612
    %8686 = vmatpush1.msra.mxu0 %v7611
    %8687 = vmatprep.subr.mxu0 %v7616
    %8688 = vmatpush1.msra.mxu0 %v7615
    %8689 = vmatprep.subr.mxu0 %v7620
    %8690 = vmatpush1.msra.mxu0 %v7619
    %8691 = vmatprep.subr.mxu0 %v7624
    %8692 = vmatpush1.msra.mxu0 %v7623
    %8693 = vmatprep.subr.mxu0 %v7628
    %8694 = vmatpush1.msra.mxu0 %v7627
    %8695 = vmatprep.subr.mxu0 %v7632
    %8696 = vmatpush1.msra.mxu0 %v7631
    %8697 = vmatprep.mubr.f32.mxu0 %v6807
    %8698 = vmatmul.mubr.f32.gmra.mrb[0].mxu0 %v6962
    %v8699 = vpop.f32.mrb[0].mxu0
    %v8700 = vadd.f32 %v8611, %v8699
    %v8701 = vpop.f32.mrb[0].mxu0
    %v8702 = vadd.f32 %v8613, %v8701
    %8703 = vmatprep.mubr.f32.mxu0 %v6815
    %8704 = vmatmul.mubr.f32.gmra.mrb[0].mxu0 %v6964
    %v8705 = vpop.f32.mrb[0].mxu0
    %v8706 = vadd.f32 %v8617, %v8705
    %v8707 = vpop.f32.mrb[0].mxu0
    %v8708 = vadd.f32 %v8619, %v8707
    %8709 = vmatprep.mubr.f32.mxu0 %v6832
    %8710 = vmatmul.mubr.f32.gmra.mrb[0].mxu0 %v6966
    %v8711 = vpop.f32.mrb[0].mxu0
    %v8712 = vadd.f32 %v8623, %v8711
    %v8713 = vpop.f32.mrb[0].mxu0
    %v8714 = vadd.f32 %v8625, %v8713
    %8715 = vmatprep.mubr.f32.mxu0 %v6840
    %8716 = vmatmul.mubr.f32.gmra.mrb[0].mxu0 %v6968
    %v8717 = vpop.f32.mrb[0].mxu0
    %v8718 = vadd.f32 %v8629, %v8717
    %v8719 = vpop.f32.mrb[0].mxu0
    %v8720 = vadd.f32 %v8631, %v8719
    %8721 = vdwg.mxu0
    %8722 = vmatprep.subr.mxu0 %v7636
    %8723 = vmatpush1.msra.mxu0 %v7635
    %8724 = vmatprep.subr.mxu0 %v7640
    %8725 = vmatpush1.msra.mxu0 %v7639
    %8726 = vmatprep.subr.mxu0 %v7644
    %8727 = vmatpush1.msra.mxu0 %v7643
    %8728 = vmatprep.subr.mxu0 %v7648
    %8729 = vmatpush1.msra.mxu0 %v7647
    %8730 = vmatprep.subr.mxu0 %v7652
    %8731 = vmatpush1.msra.mxu0 %v7651
    %8732 = vmatprep.subr.mxu0 %v7656
    %8733 = vmatpush1.msra.mxu0 %v7655
    %8734 = vmatprep.subr.mxu0 %v7660
    %8735 = vmatpush1.msra.mxu0 %v7659
    %8736 = vmatprep.subr.mxu0 %v7664
    %8737 = vmatpush1.msra.mxu0 %v7663
    %8738 = vmatprep.subr.mxu0 %v7668
    %8739 = vmatpush1.msra.mxu0 %v7667
    %8740 = vmatprep.subr.mxu0 %v7672
    %8741 = vmatpush1.msra.mxu0 %v7671
    %8742 = vmatprep.subr.mxu0 %v7676
    %8743 = vmatpush1.msra.mxu0 %v7675
    %8744 = vmatprep.subr.mxu0 %v7680
    %8745 = vmatpush1.msra.mxu0 %v7679
    %8746 = vmatprep.subr.mxu0 %v7684
    %8747 = vmatpush1.msra.mxu0 %v7683
    %8748 = vmatprep.subr.mxu0 %v7688
    %8749 = vmatpush1.msra.mxu0 %v7687
    %8750 = vmatprep.subr.mxu0 %v7692
    %8751 = vmatpush1.msra.mxu0 %v7691
    %8752 = vmatprep.subr.mxu0 %v7696
    %8753 = vmatpush1.msra.mxu0 %v7695
    %8754 = vmatprep.subr.mxu0 %v7700
    %8755 = vmatpush1.msra.mxu0 %v7699
    %8756 = vmatprep.subr.mxu0 %v7704
    %8757 = vmatpush1.msra.mxu0 %v7703
    %8758 = vmatprep.subr.mxu0 %v7708
    %8759 = vmatpush1.msra.mxu0 %v7707
    %8760 = vmatprep.subr.mxu0 %v7712
    %8761 = vmatpush1.msra.mxu0 %v7711
    %8762 = vmatprep.subr.mxu0 0.0
    %8763 = vmatpush1.msra.mxu0 0.0
    %8764 = vmatprep.subr.mxu0 0.0
    %8765 = vmatpush1.msra.mxu0 0.0
    %8766 = vmatprep.subr.mxu0 0.0
    %8767 = vmatpush1.msra.mxu0 0.0
    %8768 = vmatprep.subr.mxu0 0.0
    %8769 = vmatpush1.msra.mxu0 0.0
    %8770 = vmatprep.subr.mxu0 0.0
    %8771 = vmatpush1.msra.mxu0 0.0
    %8772 = vmatprep.subr.mxu0 0.0
    %8773 = vmatpush1.msra.mxu0 0.0
    %8774 = vmatprep.subr.mxu0 0.0
    %8775 = vmatpush1.msra.mxu0 0.0
    %8776 = vmatprep.subr.mxu0 0.0
    %8777 = vmatpush1.msra.mxu0 0.0
    %8778 = vmatprep.subr.mxu0 0.0
    %8779 = vmatpush1.msra.mxu0 0.0
    %8780 = vmatprep.subr.mxu0 0.0
    %8781 = vmatpush1.msra.mxu0 0.0
    %8782 = vmatprep.subr.mxu0 0.0
    %8783 = vmatpush1.msra.mxu0 0.0
    %8784 = vmatprep.subr.mxu0 0.0
    %8785 = vmatpush1.msra.mxu0 0.0
    %8786 = vmatprep.mubr.f32.mxu0 %v7735
    %8787 = vmatmul.mubr.f32.gmra.mrb[0].mxu0 %v6810
    %v8788 = vpop.f32.mrb[0].mxu0
    %v8789 = vadd.f32 %v8700, %v8788
    %v8790 = vpop.f32.mrb[0].mxu0
    %v8791 = vadd.f32 %v8702, %v8790
    %8792 = vmatprep.mubr.f32.mxu0 %v7737
    %8793 = vmatmul.mubr.f32.gmra.mrb[0].mxu0 %v6817
    %v8794 = vpop.f32.mrb[0].mxu0
    %v8795 = vadd.f32 %v8706, %v8794
    %v8796 = vpop.f32.mrb[0].mxu0
    %v8797 = vadd.f32 %v8708, %v8796
    %8798 = vmatprep.mubr.f32.mxu0 %v7739
    %8799 = vmatmul.mubr.f32.gmra.mrb[0].mxu0 %v6835
    %v8800 = vpop.f32.mrb[0].mxu0
    %v8801 = vadd.f32 %v8712, %v8800
    %v8802 = vpop.f32.mrb[0].mxu0
    %v8803 = vadd.f32 %v8714, %v8802
    %8804 = vmatprep.mubr.f32.mxu0 %v7741
    %8805 = vmatmul.mubr.f32.gmra.mrb[0].mxu0 %v6842
    %v8806 = vpop.f32.mrb[0].mxu0
    %v8807 = vadd.f32 %v8718, %v8806
    %v8808 = vpop.f32.mrb[0].mxu0
    %v8809 = vadd.f32 %v8720, %v8808
    %8810 = vdwg.mxu0
    %v8811 = vmax.f32 %v8255, 0.0
    %v8812 = vmax.f32 %v8257, 0.0
    %v8813 = vmax.f32 %v8789, 0.0
    %v8814 = vmax.f32 %v8791, 0.0
    %v8815 = vmax.f32 %v8261, 0.0
    %v8816 = vmax.f32 %v8263, 0.0
    %v8817 = vmax.f32 %v8795, 0.0
    %v8818 = vmax.f32 %v8797, 0.0
    %v8819 = vmax.f32 %v8267, 0.0
    %v8820 = vmax.f32 %v8269, 0.0
    %v8821 = vmax.f32 %v8801, 0.0
    %v8822 = vmax.f32 %v8803, 0.0
    %v8823 = vmax.f32 %v8273, 0.0
    %v8824 = vmax.f32 %v8275, 0.0
    %v8825 = vmax.f32 %v8807, 0.0
    %v8826 = vmax.f32 %v8809, 0.0
    %8827 = vst [vmem:[#allocation5] sm:$0xff] %v8811
    %8828 = vst [vmem:[#allocation5 + $0x8] sm:$0xff] %v8812
    %8829 = vst [vmem:[#allocation5 + $0x10] sm:$0xff] %v8813
    %8830 = vst.msk [vmem:[#allocation5 + $0x18] sm:$0xff] %vm234, %v8814
    %8831 = vst [vmem:[#allocation5 + $0x20] sm:$0xff] %v8815
    %8832 = vst [vmem:[#allocation5 + $0x28] sm:$0xff] %v8816
    %8833 = vst [vmem:[#allocation5 + $0x30] sm:$0xff] %v8817
    %8834 = vst.msk [vmem:[#allocation5 + $0x38] sm:$0xff] %vm234, %v8818
    %s8835 = scalar_lea.vmem [#allocation5], 64
    %8836 = vst [vmem:[%s8835] sm:$0xff] %v8819
    %8837 = vst [vmem:[%s8835 + $0x8] sm:$0xff] %v8820
    %8838 = vst [vmem:[%s8835 + $0x10] sm:$0xff] %v8821
    %8839 = vst.msk [vmem:[%s8835 + $0x18] sm:$0xff] %vm234, %v8822
    %8840 = vst [vmem:[%s8835 + $0x20] sm:$0xff] %v8823
    %8841 = vst [vmem:[%s8835 + $0x28] sm:$0xff] %v8824
    %8842 = vst [vmem:[%s8835 + $0x30] sm:$0xff] %v8825
    %8843 = vst.msk [vmem:[%s8835 + $0x38] sm:$0xff] %vm234, %v8826
    %v8844 = vld [vmem:[#allocation5] ss:$8 sm:$0xf]
    %s8845 = scalar_lea.vmem [#allocation5], 64
    %v8846 = vld [vmem:[%s8845] ss:$8 sm:$0xf]
    %s8847 = scalar_lea.vmem [#allocation5], 1
    %v8848 = vld [vmem:[%s8847] ss:$8 sm:$0xf]
    %s8849 = scalar_lea.vmem [#allocation5], 65
    %v8850 = vld [vmem:[%s8849] ss:$8 sm:$0xf]
    %v8851 = vmax.f32 %v8844, %v8848
    %v8852 = vmax.f32 %v8846, %v8850
    %8855 = vrot.lane.b32.xlu0 %v8851, 96
    %v8856 = vpop.permute.xlu0 %8855
    %8857 = vrot.lane.b32.xlu0 %v8852, 96
    %v8858 = vpop.permute.xlu0 %8857
    %v8861 = vmax.f32 %v8851, %v8856
    %v8862 = vmax.f32 %v8852, %v8858
    %v8863 = vrot.slane %v8851, 1
    %v8864 = vrot.slane %v8852, 1
    %v8867 = vrot.slane %v8856, 1
    %v8868 = vrot.slane %v8858, 1
    %v8871 = vmax.f32 %v8863, %v8867
    %v8872 = vmax.f32 %v8864, %v8868
    %8873 = vrot.lane.b32.xlu0 %v8851, 64
    %v8874 = vpop.permute.xlu0 %8873
    %8875 = vrot.lane.b32.xlu0 %v8852, 64
    %v8876 = vpop.permute.xlu0 %8875
    %v8877 = vrot.slane %v8874, 1
    %v8878 = vrot.slane %v8876, 1
    %8881 = vrot.lane.b32.xlu0 %v8851, 32
    %v8882 = vpop.permute.xlu0 %8881
    %8883 = vrot.lane.b32.xlu0 %v8852, 32
    %v8884 = vpop.permute.xlu0 %8883
    %v8885 = vrot.slane %v8882, 1
    %v8886 = vrot.slane %v8884, 1
    %v8889 = vmax.f32 %v8877, %v8885
    %v8890 = vmax.f32 %v8878, %v8886
    %v8891 = vrot.slane %v8851, 2
    %v8892 = vrot.slane %v8852, 2
    %v8895 = vrot.slane %v8856, 2
    %v8896 = vrot.slane %v8858, 2
    %v8899 = vmax.f32 %v8891, %v8895
    %v8900 = vmax.f32 %v8892, %v8896
    %v8901 = vrot.slane %v8874, 2
    %v8902 = vrot.slane %v8876, 2
    %v8905 = vrot.slane %v8882, 2
    %v8906 = vrot.slane %v8884, 2
    %v8909 = vmax.f32 %v8901, %v8905
    %v8910 = vmax.f32 %v8902, %v8906
    %v8911 = vrot.slane %v8851, 3
    %v8912 = vrot.slane %v8852, 3
    %v8915 = vrot.slane %v8856, 3
    %v8916 = vrot.slane %v8858, 3
    %v8919 = vmax.f32 %v8911, %v8915
    %v8920 = vmax.f32 %v8912, %v8916
    %s8921 = scalar_lea.vmem [#allocation5], 2
    %v8922 = vld [vmem:[%s8921] ss:$8 sm:$0xf]
    %s8923 = scalar_lea.vmem [#allocation5], 66
    %v8924 = vld [vmem:[%s8923] ss:$8 sm:$0xf]
    %s8925 = scalar_lea.vmem [#allocation5], 3
    %v8926 = vld [vmem:[%s8925] ss:$8 sm:$0xf]
    %s8927 = scalar_lea.vmem [#allocation5], 67
    %v8928 = vld [vmem:[%s8927] ss:$8 sm:$0xf]
    %v8929 = vmax.f32 %v8922, %v8926
    %v8930 = vmax.f32 %v8924, %v8928
    %8933 = vrot.lane.b32.xlu0 %v8929, 96
    %v8934 = vpop.permute.xlu0 %8933
    %8935 = vrot.lane.b32.xlu0 %v8930, 96
    %v8936 = vpop.permute.xlu0 %8935
    %v8939 = vmax.f32 %v8929, %v8934
    %v8940 = vmax.f32 %v8930, %v8936
    %v8941 = vrot.slane %v8929, 1
    %v8942 = vrot.slane %v8930, 1
    %v8945 = vrot.slane %v8934, 1
    %v8946 = vrot.slane %v8936, 1
    %v8949 = vmax.f32 %v8941, %v8945
    %v8950 = vmax.f32 %v8942, %v8946
    %8951 = vrot.lane.b32.xlu0 %v8929, 64
    %v8952 = vpop.permute.xlu0 %8951
    %8953 = vrot.lane.b32.xlu0 %v8930, 64
    %v8954 = vpop.permute.xlu0 %8953
    %v8955 = vrot.slane %v8952, 1
    %v8956 = vrot.slane %v8954, 1
    %8959 = vrot.lane.b32.xlu0 %v8929, 32
    %v8960 = vpop.permute.xlu0 %8959
    %8961 = vrot.lane.b32.xlu0 %v8930, 32
    %v8962 = vpop.permute.xlu0 %8961
    %v8963 = vrot.slane %v8960, 1
    %v8964 = vrot.slane %v8962, 1
    %v8967 = vmax.f32 %v8955, %v8963
    %v8968 = vmax.f32 %v8956, %v8964
    %v8969 = vrot.slane %v8929, 2
    %v8970 = vrot.slane %v8930, 2
    %v8973 = vrot.slane %v8934, 2
    %v8974 = vrot.slane %v8936, 2
    %v8977 = vmax.f32 %v8969, %v8973
    %v8978 = vmax.f32 %v8970, %v8974
    %v8979 = vrot.slane %v8952, 2
    %v8980 = vrot.slane %v8954, 2
    %v8983 = vrot.slane %v8960, 2
    %v8984 = vrot.slane %v8962, 2
    %v8987 = vmax.f32 %v8979, %v8983
    %v8988 = vmax.f32 %v8980, %v8984
    %v8989 = vrot.slane %v8929, 3
    %v8990 = vrot.slane %v8930, 3
    %v8993 = vrot.slane %v8934, 3
    %v8994 = vrot.slane %v8936, 3
    %v8997 = vmax.f32 %v8989, %v8993
    %v8998 = vmax.f32 %v8990, %v8994
    %s8999 = scalar_lea.vmem [#allocation5], 4
    %v9000 = vld [vmem:[%s8999] ss:$8 sm:$0xf]
    %s9001 = scalar_lea.vmem [#allocation5], 68
    %v9002 = vld [vmem:[%s9001] ss:$8 sm:$0xf]
    %s9003 = scalar_lea.vmem [#allocation5], 5
    %v9004 = vld [vmem:[%s9003] ss:$8 sm:$0xf]
    %s9005 = scalar_lea.vmem [#allocation5], 69
    %v9006 = vld [vmem:[%s9005] ss:$8 sm:$0xf]
    %v9007 = vmax.f32 %v9000, %v9004
    %v9008 = vmax.f32 %v9002, %v9006
    %9011 = vrot.lane.b32.xlu0 %v9007, 96
    %v9012 = vpop.permute.xlu0 %9011
    %9013 = vrot.lane.b32.xlu0 %v9008, 96
    %v9014 = vpop.permute.xlu0 %9013
    %v9017 = vmax.f32 %v9007, %v9012
    %v9018 = vmax.f32 %v9008, %v9014
    %v9019 = vrot.slane %v9007, 1
    %v9020 = vrot.slane %v9008, 1
    %v9023 = vrot.slane %v9012, 1
    %v9024 = vrot.slane %v9014, 1
    %v9027 = vmax.f32 %v9019, %v9023
    %v9028 = vmax.f32 %v9020, %v9024
    %9029 = vrot.lane.b32.xlu0 %v9007, 64
    %v9030 = vpop.permute.xlu0 %9029
    %9031 = vrot.lane.b32.xlu0 %v9008, 64
    %v9032 = vpop.permute.xlu0 %9031
    %v9033 = vrot.slane %v9030, 1
    %v9034 = vrot.slane %v9032, 1
    %9037 = vrot.lane.b32.xlu0 %v9007, 32
    %v9038 = vpop.permute.xlu0 %9037
    %9039 = vrot.lane.b32.xlu0 %v9008, 32
    %v9040 = vpop.permute.xlu0 %9039
    %v9041 = vrot.slane %v9038, 1
    %v9042 = vrot.slane %v9040, 1
    %v9045 = vmax.f32 %v9033, %v9041
    %v9046 = vmax.f32 %v9034, %v9042
    %v9047 = vrot.slane %v9007, 2
    %v9048 = vrot.slane %v9008, 2
    %v9051 = vrot.slane %v9012, 2
    %v9052 = vrot.slane %v9014, 2
    %v9055 = vmax.f32 %v9047, %v9051
    %v9056 = vmax.f32 %v9048, %v9052
    %v9057 = vrot.slane %v9030, 2
    %v9058 = vrot.slane %v9032, 2
    %v9061 = vrot.slane %v9038, 2
    %v9062 = vrot.slane %v9040, 2
    %v9065 = vmax.f32 %v9057, %v9061
    %v9066 = vmax.f32 %v9058, %v9062
    %v9067 = vrot.slane %v9007, 3
    %v9068 = vrot.slane %v9008, 3
    %v9071 = vrot.slane %v9012, 3
    %v9072 = vrot.slane %v9014, 3
    %v9075 = vmax.f32 %v9067, %v9071
    %v9076 = vmax.f32 %v9068, %v9072
    %s9077 = scalar_lea.vmem [#allocation5], 6
    %v9078 = vld [vmem:[%s9077] ss:$8 sm:$0xf]
    %s9079 = scalar_lea.vmem [#allocation5], 70
    %v9080 = vld [vmem:[%s9079] ss:$8 sm:$0xf]
    %s9081 = scalar_lea.vmem [#allocation5], 7
    %v9082 = vld [vmem:[%s9081] ss:$8 sm:$0xf]
    %s9083 = scalar_lea.vmem [#allocation5], 71
    %v9084 = vld [vmem:[%s9083] ss:$8 sm:$0xf]
    %v9085 = vmax.f32 %v9078, %v9082
    %v9086 = vmax.f32 %v9080, %v9084
    %9089 = vrot.lane.b32.xlu0 %v9085, 96
    %v9090 = vpop.permute.xlu0 %9089
    %9091 = vrot.lane.b32.xlu0 %v9086, 96
    %v9092 = vpop.permute.xlu0 %9091
    %v9095 = vmax.f32 %v9085, %v9090
    %v9096 = vmax.f32 %v9086, %v9092
    %v9097 = vrot.slane %v9085, 1
    %v9098 = vrot.slane %v9086, 1
    %v9101 = vrot.slane %v9090, 1
    %v9102 = vrot.slane %v9092, 1
    %v9105 = vmax.f32 %v9097, %v9101
    %v9106 = vmax.f32 %v9098, %v9102
    %9107 = vrot.lane.b32.xlu0 %v9085, 64
    %v9108 = vpop.permute.xlu0 %9107
    %9109 = vrot.lane.b32.xlu0 %v9086, 64
    %v9110 = vpop.permute.xlu0 %9109
    %v9111 = vrot.slane %v9108, 1
    %v9112 = vrot.slane %v9110, 1
    %9115 = vrot.lane.b32.xlu0 %v9085, 32
    %v9116 = vpop.permute.xlu0 %9115
    %9117 = vrot.lane.b32.xlu0 %v9086, 32
    %v9118 = vpop.permute.xlu0 %9117
    %v9119 = vrot.slane %v9116, 1
    %v9120 = vrot.slane %v9118, 1
    %v9123 = vmax.f32 %v9111, %v9119
    %v9124 = vmax.f32 %v9112, %v9120
    %v9125 = vrot.slane %v9085, 2
    %v9126 = vrot.slane %v9086, 2
    %v9129 = vrot.slane %v9090, 2
    %v9130 = vrot.slane %v9092, 2
    %v9133 = vmax.f32 %v9125, %v9129
    %v9134 = vmax.f32 %v9126, %v9130
    %v9135 = vrot.slane %v9108, 2
    %v9136 = vrot.slane %v9110, 2
    %v9139 = vrot.slane %v9116, 2
    %v9140 = vrot.slane %v9118, 2
    %v9143 = vmax.f32 %v9135, %v9139
    %v9144 = vmax.f32 %v9136, %v9140
    %v9145 = vrot.slane %v9085, 3
    %v9146 = vrot.slane %v9086, 3
    %v9149 = vrot.slane %v9090, 3
    %v9150 = vrot.slane %v9092, 3
    %v9153 = vmax.f32 %v9145, %v9149
    %v9154 = vmax.f32 %v9146, %v9150
    %s9155 = scalar_lea.vmem [#allocation5], 32
    %v9156 = vld [vmem:[%s9155] ss:$8 sm:$0xf]
    %s9157 = scalar_lea.vmem [#allocation5], 96
    %v9158 = vld [vmem:[%s9157] ss:$8 sm:$0xf]
    %s9159 = scalar_lea.vmem [#allocation5], 33
    %v9160 = vld [vmem:[%s9159] ss:$8 sm:$0xf]
    %s9161 = scalar_lea.vmem [#allocation5], 97
    %v9162 = vld [vmem:[%s9161] ss:$8 sm:$0xf]
    %v9163 = vmax.f32 %v9156, %v9160
    %v9164 = vmax.f32 %v9158, %v9162
    %9167 = vrot.lane.b32.xlu0 %v9163, 96
    %v9168 = vpop.permute.xlu0 %9167
    %9169 = vrot.lane.b32.xlu0 %v9164, 96
    %v9170 = vpop.permute.xlu0 %9169
    %v9173 = vmax.f32 %v9163, %v9168
    %v9174 = vmax.f32 %v9164, %v9170
    %v9175 = vrot.slane %v9163, 1
    %v9176 = vrot.slane %v9164, 1
    %v9179 = vrot.slane %v9168, 1
    %v9180 = vrot.slane %v9170, 1
    %v9183 = vmax.f32 %v9175, %v9179
    %v9184 = vmax.f32 %v9176, %v9180
    %9185 = vrot.lane.b32.xlu0 %v9163, 64
    %v9186 = vpop.permute.xlu0 %9185
    %9187 = vrot.lane.b32.xlu0 %v9164, 64
    %v9188 = vpop.permute.xlu0 %9187
    %v9189 = vrot.slane %v9186, 1
    %v9190 = vrot.slane %v9188, 1
    %9193 = vrot.lane.b32.xlu0 %v9163, 32
    %v9194 = vpop.permute.xlu0 %9193
    %9195 = vrot.lane.b32.xlu0 %v9164, 32
    %v9196 = vpop.permute.xlu0 %9195
    %v9197 = vrot.slane %v9194, 1
    %v9198 = vrot.slane %v9196, 1
    %v9201 = vmax.f32 %v9189, %v9197
    %v9202 = vmax.f32 %v9190, %v9198
    %v9203 = vrot.slane %v9163, 2
    %v9204 = vrot.slane %v9164, 2
    %v9207 = vrot.slane %v9168, 2
    %v9208 = vrot.slane %v9170, 2
    %v9211 = vmax.f32 %v9203, %v9207
    %v9212 = vmax.f32 %v9204, %v9208
    %v9213 = vrot.slane %v9186, 2
    %v9214 = vrot.slane %v9188, 2
    %v9217 = vrot.slane %v9194, 2
    %v9218 = vrot.slane %v9196, 2
    %v9221 = vmax.f32 %v9213, %v9217
    %v9222 = vmax.f32 %v9214, %v9218
    %v9223 = vrot.slane %v9163, 3
    %v9224 = vrot.slane %v9164, 3
    %v9227 = vrot.slane %v9168, 3
    %v9228 = vrot.slane %v9170, 3
    %v9231 = vmax.f32 %v9223, %v9227
    %v9232 = vmax.f32 %v9224, %v9228
    %s9233 = scalar_lea.vmem [#allocation5], 34
    %v9234 = vld [vmem:[%s9233] ss:$8 sm:$0xf]
    %s9235 = scalar_lea.vmem [#allocation5], 98
    %v9236 = vld [vmem:[%s9235] ss:$8 sm:$0xf]
    %s9237 = scalar_lea.vmem [#allocation5], 35
    %v9238 = vld [vmem:[%s9237] ss:$8 sm:$0xf]
    %s9239 = scalar_lea.vmem [#allocation5], 99
    %v9240 = vld [vmem:[%s9239] ss:$8 sm:$0xf]
    %v9241 = vmax.f32 %v9234, %v9238
    %v9242 = vmax.f32 %v9236, %v9240
    %9245 = vrot.lane.b32.xlu0 %v9241, 96
    %v9246 = vpop.permute.xlu0 %9245
    %9247 = vrot.lane.b32.xlu0 %v9242, 96
    %v9248 = vpop.permute.xlu0 %9247
    %v9251 = vmax.f32 %v9241, %v9246
    %v9252 = vmax.f32 %v9242, %v9248
    %v9253 = vrot.slane %v9241, 1
    %v9254 = vrot.slane %v9242, 1
    %v9257 = vrot.slane %v9246, 1
    %v9258 = vrot.slane %v9248, 1
    %v9261 = vmax.f32 %v9253, %v9257
    %v9262 = vmax.f32 %v9254, %v9258
    %9263 = vrot.lane.b32.xlu0 %v9241, 64
    %v9264 = vpop.permute.xlu0 %9263
    %9265 = vrot.lane.b32.xlu0 %v9242, 64
    %v9266 = vpop.permute.xlu0 %9265
    %v9267 = vrot.slane %v9264, 1
    %v9268 = vrot.slane %v9266, 1
    %9271 = vrot.lane.b32.xlu0 %v9241, 32
    %v9272 = vpop.permute.xlu0 %9271
    %9273 = vrot.lane.b32.xlu0 %v9242, 32
    %v9274 = vpop.permute.xlu0 %9273
    %v9275 = vrot.slane %v9272, 1
    %v9276 = vrot.slane %v9274, 1
    %v9279 = vmax.f32 %v9267, %v9275
    %v9280 = vmax.f32 %v9268, %v9276
    %v9281 = vrot.slane %v9241, 2
    %v9282 = vrot.slane %v9242, 2
    %v9285 = vrot.slane %v9246, 2
    %v9286 = vrot.slane %v9248, 2
    %v9289 = vmax.f32 %v9281, %v9285
    %v9290 = vmax.f32 %v9282, %v9286
    %v9291 = vrot.slane %v9264, 2
    %v9292 = vrot.slane %v9266, 2
    %v9295 = vrot.slane %v9272, 2
    %v9296 = vrot.slane %v9274, 2
    %v9299 = vmax.f32 %v9291, %v9295
    %v9300 = vmax.f32 %v9292, %v9296
    %v9301 = vrot.slane %v9241, 3
    %v9302 = vrot.slane %v9242, 3
    %v9305 = vrot.slane %v9246, 3
    %v9306 = vrot.slane %v9248, 3
    %v9309 = vmax.f32 %v9301, %v9305
    %v9310 = vmax.f32 %v9302, %v9306
    %s9311 = scalar_lea.vmem [#allocation5], 36
    %v9312 = vld [vmem:[%s9311] ss:$8 sm:$0xf]
    %s9313 = scalar_lea.vmem [#allocation5], 100
    %v9314 = vld [vmem:[%s9313] ss:$8 sm:$0xf]
    %s9315 = scalar_lea.vmem [#allocation5], 37
    %v9316 = vld [vmem:[%s9315] ss:$8 sm:$0xf]
    %s9317 = scalar_lea.vmem [#allocation5], 101
    %v9318 = vld [vmem:[%s9317] ss:$8 sm:$0xf]
    %v9319 = vmax.f32 %v9312, %v9316
    %v9320 = vmax.f32 %v9314, %v9318
    %9323 = vrot.lane.b32.xlu0 %v9319, 96
    %v9324 = vpop.permute.xlu0 %9323
    %9325 = vrot.lane.b32.xlu0 %v9320, 96
    %v9326 = vpop.permute.xlu0 %9325
    %v9329 = vmax.f32 %v9319, %v9324
    %v9330 = vmax.f32 %v9320, %v9326
    %v9331 = vrot.slane %v9319, 1
    %v9332 = vrot.slane %v9320, 1
    %v9335 = vrot.slane %v9324, 1
    %v9336 = vrot.slane %v9326, 1
    %v9339 = vmax.f32 %v9331, %v9335
    %v9340 = vmax.f32 %v9332, %v9336
    %9341 = vrot.lane.b32.xlu0 %v9319, 64
    %v9342 = vpop.permute.xlu0 %9341
    %9343 = vrot.lane.b32.xlu0 %v9320, 64
    %v9344 = vpop.permute.xlu0 %9343
    %v9345 = vrot.slane %v9342, 1
    %v9346 = vrot.slane %v9344, 1
    %9349 = vrot.lane.b32.xlu0 %v9319, 32
    %v9350 = vpop.permute.xlu0 %9349
    %9351 = vrot.lane.b32.xlu0 %v9320, 32
    %v9352 = vpop.permute.xlu0 %9351
    %v9353 = vrot.slane %v9350, 1
    %v9354 = vrot.slane %v9352, 1
    %v9357 = vmax.f32 %v9345, %v9353
    %v9358 = vmax.f32 %v9346, %v9354
    %v9359 = vrot.slane %v9319, 2
    %v9360 = vrot.slane %v9320, 2
    %v9363 = vrot.slane %v9324, 2
    %v9364 = vrot.slane %v9326, 2
    %v9367 = vmax.f32 %v9359, %v9363
    %v9368 = vmax.f32 %v9360, %v9364
    %v9369 = vrot.slane %v9342, 2
    %v9370 = vrot.slane %v9344, 2
    %v9373 = vrot.slane %v9350, 2
    %v9374 = vrot.slane %v9352, 2
    %v9377 = vmax.f32 %v9369, %v9373
    %v9378 = vmax.f32 %v9370, %v9374
    %v9379 = vrot.slane %v9319, 3
    %v9380 = vrot.slane %v9320, 3
    %v9383 = vrot.slane %v9324, 3
    %v9384 = vrot.slane %v9326, 3
    %v9387 = vmax.f32 %v9379, %v9383
    %v9388 = vmax.f32 %v9380, %v9384
    %v9391 = vcombine.low %v8861, %v8862
    %v9393 = vunpack.c.l.s4 1966171168
    %v9394 = vunpack.c.0.s8 %v9393
    %v9395 = vlaneseq
    %v9396 = vshrl.u32 %v9395, 7
    %v9397 = vsub.s32 %v9394, %v9396
    %v9398 = vrot.slane %v9391, %v9397
    %v9400 = vunpack.c.l.s4 1966171168
    %v9401 = vunpack.c.0.s8 %v9400
    %v9402 = vlaneseq
    %v9403 = vshrl.u32 %v9402, 7
    %v9404 = vsub.s32 %v9401, %v9403
    %v9405 = vrot.slane %v9398, %v9404
    %9407 = vrot.lane.b32.xlu0 %v9405, 96
    %v9408 = vpop.permute.xlu0 %9407
    %v9412 = vcombine.low %v8871, %v8872
    %v9414 = vunpack.c.l.s4 1966171168
    %v9415 = vunpack.c.0.s8 %v9414
    %v9416 = vlaneseq
    %v9417 = vshrl.u32 %v9416, 7
    %v9418 = vsub.s32 %v9415, %v9417
    %v9419 = vrot.slane %v9412, %v9418
    %v9421 = vunpack.c.l.s4 1966171168
    %v9422 = vunpack.c.0.s8 %v9421
    %v9423 = vlaneseq
    %v9424 = vshrl.u32 %v9423, 7
    %v9425 = vsub.s32 %v9422, %v9424
    %v9426 = vrot.slane %v9419, %v9425
    %9427 = vrot.lane.b32.xlu0 %v9426, 64
    %v9428 = vpop.permute.xlu0 %9427
    %v9432 = vcombine.low %v8889, %v8890
    %v9434 = vunpack.c.l.s4 1966171168
    %v9435 = vunpack.c.0.s8 %v9434
    %v9436 = vlaneseq
    %v9437 = vshrl.u32 %v9436, 7
    %v9438 = vsub.s32 %v9435, %v9437
    %v9439 = vrot.slane %v9432, %v9438
    %v9441 = vunpack.c.l.s4 1966171168
    %v9442 = vunpack.c.0.s8 %v9441
    %v9443 = vlaneseq
    %v9444 = vshrl.u32 %v9443, 7
    %v9445 = vsub.s32 %v9442, %v9444
    %v9446 = vrot.slane %v9439, %v9445
    %9447 = vrot.lane.b32.xlu0 %v9446, 96
    %v9448 = vpop.permute.xlu0 %9447
    %v9452 = vcombine.low %v8899, %v8900
    %v9454 = vunpack.c.l.s4 1966171168
    %v9455 = vunpack.c.0.s8 %v9454
    %v9456 = vlaneseq
    %v9457 = vshrl.u32 %v9456, 7
    %v9458 = vsub.s32 %v9455, %v9457
    %v9459 = vrot.slane %v9452, %v9458
    %v9461 = vunpack.c.l.s4 1966171168
    %v9462 = vunpack.c.0.s8 %v9461
    %v9463 = vlaneseq
    %v9464 = vshrl.u32 %v9463, 7
    %v9465 = vsub.s32 %v9462, %v9464
    %v9466 = vrot.slane %v9459, %v9465
    %v9470 = vcombine.low %v8909, %v8910
    %v9472 = vunpack.c.l.s4 1966171168
    %v9473 = vunpack.c.0.s8 %v9472
    %v9474 = vlaneseq
    %v9475 = vshrl.u32 %v9474, 7
    %v9476 = vsub.s32 %v9473, %v9475
    %v9477 = vrot.slane %v9470, %v9476
    %v9479 = vunpack.c.l.s4 1966171168
    %v9480 = vunpack.c.0.s8 %v9479
    %v9481 = vlaneseq
    %v9482 = vshrl.u32 %v9481, 7
    %v9483 = vsub.s32 %v9480, %v9482
    %v9484 = vrot.slane %v9477, %v9483
    %9485 = vrot.lane.b32.xlu0 %v9484, 32
    %v9486 = vpop.permute.xlu0 %9485
    %v9490 = vcombine.low %v8919, %v8920
    %v9492 = vunpack.c.l.s4 1966171168
    %v9493 = vunpack.c.0.s8 %v9492
    %v9494 = vlaneseq
    %v9495 = vshrl.u32 %v9494, 7
    %v9496 = vsub.s32 %v9493, %v9495
    %v9497 = vrot.slane %v9490, %v9496
    %v9499 = vunpack.c.l.s4 1966171168
    %v9500 = vunpack.c.0.s8 %v9499
    %v9501 = vlaneseq
    %v9502 = vshrl.u32 %v9501, 7
    %v9503 = vsub.s32 %v9500, %v9502
    %v9504 = vrot.slane %v9497, %v9503
    %9505 = vrot.lane.b32.xlu0 %v9504, 64
    %v9506 = vpop.permute.xlu0 %9505
    %v9510 = vcombine.low %v8939, %v8940
    %v9512 = vunpack.c.l.s4 1966171168
    %v9513 = vunpack.c.0.s8 %v9512
    %v9514 = vlaneseq
    %v9515 = vshrl.u32 %v9514, 7
    %v9516 = vsub.s32 %v9513, %v9515
    %v9517 = vrot.slane %v9510, %v9516
    %v9519 = vunpack.c.l.s4 1966171168
    %v9520 = vunpack.c.0.s8 %v9519
    %v9521 = vlaneseq
    %v9522 = vshrl.u32 %v9521, 7
    %v9523 = vsub.s32 %v9520, %v9522
    %v9524 = vrot.slane %v9517, %v9523
    %9525 = vrot.lane.b32.xlu0 %v9524, 96
    %v9526 = vpop.permute.xlu0 %9525
    %9528 = vrot.lane.b32.xlu0 %v9524, 64
    %v9529 = vpop.permute.xlu0 %9528
    %v9533 = vcombine.low %v8949, %v8950
    %v9535 = vunpack.c.l.s4 1966171168
    %v9536 = vunpack.c.0.s8 %v9535
    %v9537 = vlaneseq
    %v9538 = vshrl.u32 %v9537, 7
    %v9539 = vsub.s32 %v9536, %v9538
    %v9540 = vrot.slane %v9533, %v9539
    %v9542 = vunpack.c.l.s4 1966171168
    %v9543 = vunpack.c.0.s8 %v9542
    %v9544 = vlaneseq
    %v9545 = vshrl.u32 %v9544, 7
    %v9546 = vsub.s32 %v9543, %v9545
    %v9547 = vrot.slane %v9540, %v9546
    %9548 = vrot.lane.b32.xlu0 %v9547, 32
    %v9549 = vpop.permute.xlu0 %9548
    %v9553 = vcombine.low %v8967, %v8968
    %v9555 = vunpack.c.l.s4 1966171168
    %v9556 = vunpack.c.0.s8 %v9555
    %v9557 = vlaneseq
    %v9558 = vshrl.u32 %v9557, 7
    %v9559 = vsub.s32 %v9556, %v9558
    %v9560 = vrot.slane %v9553, %v9559
    %v9562 = vunpack.c.l.s4 1966171168
    %v9563 = vunpack.c.0.s8 %v9562
    %v9564 = vlaneseq
    %v9565 = vshrl.u32 %v9564, 7
    %v9566 = vsub.s32 %v9563, %v9565
    %v9567 = vrot.slane %v9560, %v9566
    %9568 = vrot.lane.b32.xlu0 %v9567, 64
    %v9569 = vpop.permute.xlu0 %9568
    %v9573 = vcombine.low %v8977, %v8978
    %v9575 = vunpack.c.l.s4 1966171168
    %v9576 = vunpack.c.0.s8 %v9575
    %v9577 = vlaneseq
    %v9578 = vshrl.u32 %v9577, 7
    %v9579 = vsub.s32 %v9576, %v9578
    %v9580 = vrot.slane %v9573, %v9579
    %v9582 = vunpack.c.l.s4 1966171168
    %v9583 = vunpack.c.0.s8 %v9582
    %v9584 = vlaneseq
    %v9585 = vshrl.u32 %v9584, 7
    %v9586 = vsub.s32 %v9583, %v9585
    %v9587 = vrot.slane %v9580, %v9586
    %9588 = vrot.lane.b32.xlu0 %v9587, 96
    %v9589 = vpop.permute.xlu0 %9588
    %v9593 = vcombine.low %v8987, %v8988
    %v9595 = vunpack.c.l.s4 1966171168
    %v9596 = vunpack.c.0.s8 %v9595
    %v9597 = vlaneseq
    %v9598 = vshrl.u32 %v9597, 7
    %v9599 = vsub.s32 %v9596, %v9598
    %v9600 = vrot.slane %v9593, %v9599
    %v9602 = vunpack.c.l.s4 1966171168
    %v9603 = vunpack.c.0.s8 %v9602
    %v9604 = vlaneseq
    %v9605 = vshrl.u32 %v9604, 7
    %v9606 = vsub.s32 %v9603, %v9605
    %v9607 = vrot.slane %v9600, %v9606
    %v9611 = vcombine.low %v8997, %v8998
    %v9613 = vunpack.c.l.s4 1966171168
    %v9614 = vunpack.c.0.s8 %v9613
    %v9615 = vlaneseq
    %v9616 = vshrl.u32 %v9615, 7
    %v9617 = vsub.s32 %v9614, %v9616
    %v9618 = vrot.slane %v9611, %v9617
    %v9620 = vunpack.c.l.s4 1966171168
    %v9621 = vunpack.c.0.s8 %v9620
    %v9622 = vlaneseq
    %v9623 = vshrl.u32 %v9622, 7
    %v9624 = vsub.s32 %v9621, %v9623
    %v9625 = vrot.slane %v9618, %v9624
    %9626 = vrot.lane.b32.xlu0 %v9625, 32
    %v9627 = vpop.permute.xlu0 %9626
    %v9631 = vcombine.low %v9017, %v9018
    %v9633 = vunpack.c.l.s4 1966171168
    %v9634 = vunpack.c.0.s8 %v9633
    %v9635 = vlaneseq
    %v9636 = vshrl.u32 %v9635, 7
    %v9637 = vsub.s32 %v9634, %v9636
    %v9638 = vrot.slane %v9631, %v9637
    %v9640 = vunpack.c.l.s4 1966171168
    %v9641 = vunpack.c.0.s8 %v9640
    %v9642 = vlaneseq
    %v9643 = vshrl.u32 %v9642, 7
    %v9644 = vsub.s32 %v9641, %v9643
    %v9645 = vrot.slane %v9638, %v9644
    %9646 = vrot.lane.b32.xlu0 %v9645, 64
    %v9647 = vpop.permute.xlu0 %9646
    %9649 = vrot.lane.b32.xlu0 %v9645, 32
    %v9650 = vpop.permute.xlu0 %9649
    %v9652 = vsel %vm27, %v9405, %v9408
    %v9653 = vsel %vm234, %v9652, %v9428
    %v9654 = vsel %vm243, %v9653, %v9448
    %v9655 = vsel %vm27, %v9466, %v9486
    %v9656 = vsel %vm234, %v9655, %v9506
    %v9657 = vsel %vm243, %v9656, %v9526
    %v9658 = vsel %vm27, %v9529, %v9549
    %v9659 = vsel %vm234, %v9658, %v9569
    %v9660 = vsel %vm243, %v9659, %v9589
    %v9661 = vsel %vm27, %v9607, %v9627
    %v9662 = vsel %vm234, %v9661, %v9647
    %v9663 = vsel %vm243, %v9662, %v9650
    %v9666 = vcombine.low %v9027, %v9028
    %v9668 = vunpack.c.l.s4 1966171168
    %v9669 = vunpack.c.0.s8 %v9668
    %v9670 = vlaneseq
    %v9671 = vshrl.u32 %v9670, 7
    %v9672 = vsub.s32 %v9669, %v9671
    %v9673 = vrot.slane %v9666, %v9672
    %v9675 = vunpack.c.l.s4 1966171168
    %v9676 = vunpack.c.0.s8 %v9675
    %v9677 = vlaneseq
    %v9678 = vshrl.u32 %v9677, 7
    %v9679 = vsub.s32 %v9676, %v9678
    %v9680 = vrot.slane %v9673, %v9679
    %v9684 = vcombine.low %v9045, %v9046
    %v9686 = vunpack.c.l.s4 1966171168
    %v9687 = vunpack.c.0.s8 %v9686
    %v9688 = vlaneseq
    %v9689 = vshrl.u32 %v9688, 7
    %v9690 = vsub.s32 %v9687, %v9689
    %v9691 = vrot.slane %v9684, %v9690
    %v9693 = vunpack.c.l.s4 1966171168
    %v9694 = vunpack.c.0.s8 %v9693
    %v9695 = vlaneseq
    %v9696 = vshrl.u32 %v9695, 7
    %v9697 = vsub.s32 %v9694, %v9696
    %v9698 = vrot.slane %v9691, %v9697
    %9699 = vrot.lane.b32.xlu0 %v9698, 32
    %v9700 = vpop.permute.xlu0 %9699
    %v9704 = vcombine.low %v9055, %v9056
    %v9706 = vunpack.c.l.s4 1966171168
    %v9707 = vunpack.c.0.s8 %v9706
    %v9708 = vlaneseq
    %v9709 = vshrl.u32 %v9708, 7
    %v9710 = vsub.s32 %v9707, %v9709
    %v9711 = vrot.slane %v9704, %v9710
    %v9713 = vunpack.c.l.s4 1966171168
    %v9714 = vunpack.c.0.s8 %v9713
    %v9715 = vlaneseq
    %v9716 = vshrl.u32 %v9715, 7
    %v9717 = vsub.s32 %v9714, %v9716
    %v9718 = vrot.slane %v9711, %v9717
    %9719 = vrot.lane.b32.xlu0 %v9718, 64
    %v9720 = vpop.permute.xlu0 %9719
    %v9724 = vcombine.low %v9065, %v9066
    %v9726 = vunpack.c.l.s4 1966171168
    %v9727 = vunpack.c.0.s8 %v9726
    %v9728 = vlaneseq
    %v9729 = vshrl.u32 %v9728, 7
    %v9730 = vsub.s32 %v9727, %v9729
    %v9731 = vrot.slane %v9724, %v9730
    %v9733 = vunpack.c.l.s4 1966171168
    %v9734 = vunpack.c.0.s8 %v9733
    %v9735 = vlaneseq
    %v9736 = vshrl.u32 %v9735, 7
    %v9737 = vsub.s32 %v9734, %v9736
    %v9738 = vrot.slane %v9731, %v9737
    %9739 = vrot.lane.b32.xlu0 %v9738, 96
    %v9740 = vpop.permute.xlu0 %9739
    %v9744 = vcombine.low %v9075, %v9076
    %v9746 = vunpack.c.l.s4 1966171168
    %v9747 = vunpack.c.0.s8 %v9746
    %v9748 = vlaneseq
    %v9749 = vshrl.u32 %v9748, 7
    %v9750 = vsub.s32 %v9747, %v9749
    %v9751 = vrot.slane %v9744, %v9750
    %v9753 = vunpack.c.l.s4 1966171168
    %v9754 = vunpack.c.0.s8 %v9753
    %v9755 = vlaneseq
    %v9756 = vshrl.u32 %v9755, 7
    %v9757 = vsub.s32 %v9754, %v9756
    %v9758 = vrot.slane %v9751, %v9757
    %v9762 = vcombine.low %v9095, %v9096
    %v9764 = vunpack.c.l.s4 1966171168
    %v9765 = vunpack.c.0.s8 %v9764
    %v9766 = vlaneseq
    %v9767 = vshrl.u32 %v9766, 7
    %v9768 = vsub.s32 %v9765, %v9767
    %v9769 = vrot.slane %v9762, %v9768
    %v9771 = vunpack.c.l.s4 1966171168
    %v9772 = vunpack.c.0.s8 %v9771
    %v9773 = vlaneseq
    %v9774 = vshrl.u32 %v9773, 7
    %v9775 = vsub.s32 %v9772, %v9774
    %v9776 = vrot.slane %v9769, %v9775
    %9777 = vrot.lane.b32.xlu0 %v9776, 32
    %v9778 = vpop.permute.xlu0 %9777
    %v9783 = vcombine.low %v9105, %v9106
    %v9785 = vunpack.c.l.s4 1966171168
    %v9786 = vunpack.c.0.s8 %v9785
    %v9787 = vlaneseq
    %v9788 = vshrl.u32 %v9787, 7
    %v9789 = vsub.s32 %v9786, %v9788
    %v9790 = vrot.slane %v9783, %v9789
    %v9792 = vunpack.c.l.s4 1966171168
    %v9793 = vunpack.c.0.s8 %v9792
    %v9794 = vlaneseq
    %v9795 = vshrl.u32 %v9794, 7
    %v9796 = vsub.s32 %v9793, %v9795
    %v9797 = vrot.slane %v9790, %v9796
    %9798 = vrot.lane.b32.xlu0 %v9797, 96
    %v9799 = vpop.permute.xlu0 %9798
    %v9803 = vcombine.low %v9123, %v9124
    %v9805 = vunpack.c.l.s4 1966171168
    %v9806 = vunpack.c.0.s8 %v9805
    %v9807 = vlaneseq
    %v9808 = vshrl.u32 %v9807, 7
    %v9809 = vsub.s32 %v9806, %v9808
    %v9810 = vrot.slane %v9803, %v9809
    %v9812 = vunpack.c.l.s4 1966171168
    %v9813 = vunpack.c.0.s8 %v9812
    %v9814 = vlaneseq
    %v9815 = vshrl.u32 %v9814, 7
    %v9816 = vsub.s32 %v9813, %v9815
    %v9817 = vrot.slane %v9810, %v9816
    %v9821 = vcombine.low %v9133, %v9134
    %v9823 = vunpack.c.l.s4 1966171168
    %v9824 = vunpack.c.0.s8 %v9823
    %v9825 = vlaneseq
    %v9826 = vshrl.u32 %v9825, 7
    %v9827 = vsub.s32 %v9824, %v9826
    %v9828 = vrot.slane %v9821, %v9827
    %v9830 = vunpack.c.l.s4 1966171168
    %v9831 = vunpack.c.0.s8 %v9830
    %v9832 = vlaneseq
    %v9833 = vshrl.u32 %v9832, 7
    %v9834 = vsub.s32 %v9831, %v9833
    %v9835 = vrot.slane %v9828, %v9834
    %9836 = vrot.lane.b32.xlu0 %v9835, 32
    %v9837 = vpop.permute.xlu0 %9836
    %v9841 = vcombine.low %v9143, %v9144
    %v9843 = vunpack.c.l.s4 1966171168
    %v9844 = vunpack.c.0.s8 %v9843
    %v9845 = vlaneseq
    %v9846 = vshrl.u32 %v9845, 7
    %v9847 = vsub.s32 %v9844, %v9846
    %v9848 = vrot.slane %v9841, %v9847
    %v9850 = vunpack.c.l.s4 1966171168
    %v9851 = vunpack.c.0.s8 %v9850
    %v9852 = vlaneseq
    %v9853 = vshrl.u32 %v9852, 7
    %v9854 = vsub.s32 %v9851, %v9853
    %v9855 = vrot.slane %v9848, %v9854
    %9856 = vrot.lane.b32.xlu0 %v9855, 64
    %v9857 = vpop.permute.xlu0 %9856
    %v9861 = vcombine.low %v9153, %v9154
    %v9863 = vunpack.c.l.s4 1966171168
    %v9864 = vunpack.c.0.s8 %v9863
    %v9865 = vlaneseq
    %v9866 = vshrl.u32 %v9865, 7
    %v9867 = vsub.s32 %v9864, %v9866
    %v9868 = vrot.slane %v9861, %v9867
    %v9870 = vunpack.c.l.s4 1966171168
    %v9871 = vunpack.c.0.s8 %v9870
    %v9872 = vlaneseq
    %v9873 = vshrl.u32 %v9872, 7
    %v9874 = vsub.s32 %v9871, %v9873
    %v9875 = vrot.slane %v9868, %v9874
    %9876 = vrot.lane.b32.xlu0 %v9875, 96
    %v9877 = vpop.permute.xlu0 %9876
    %v9881 = vcombine.low %v9173, %v9174
    %v9883 = vunpack.c.l.s4 1966171168
    %v9884 = vunpack.c.0.s8 %v9883
    %v9885 = vlaneseq
    %v9886 = vshrl.u32 %v9885, 7
    %v9887 = vsub.s32 %v9884, %v9886
    %v9888 = vrot.slane %v9881, %v9887
    %v9890 = vunpack.c.l.s4 1966171168
    %v9891 = vunpack.c.0.s8 %v9890
    %v9892 = vlaneseq
    %v9893 = vshrl.u32 %v9892, 7
    %v9894 = vsub.s32 %v9891, %v9893
    %v9895 = vrot.slane %v9888, %v9894
    %9897 = vrot.lane.b32.xlu0 %v9895, 96
    %v9898 = vpop.permute.xlu0 %9897
    %v9902 = vcombine.low %v9183, %v9184
    %v9904 = vunpack.c.l.s4 1966171168
    %v9905 = vunpack.c.0.s8 %v9904
    %v9906 = vlaneseq
    %v9907 = vshrl.u32 %v9906, 7
    %v9908 = vsub.s32 %v9905, %v9907
    %v9909 = vrot.slane %v9902, %v9908
    %v9911 = vunpack.c.l.s4 1966171168
    %v9912 = vunpack.c.0.s8 %v9911
    %v9913 = vlaneseq
    %v9914 = vshrl.u32 %v9913, 7
    %v9915 = vsub.s32 %v9912, %v9914
    %v9916 = vrot.slane %v9909, %v9915
    %9917 = vrot.lane.b32.xlu0 %v9916, 64
    %v9918 = vpop.permute.xlu0 %9917
    %v9922 = vcombine.low %v9201, %v9202
    %v9924 = vunpack.c.l.s4 1966171168
    %v9925 = vunpack.c.0.s8 %v9924
    %v9926 = vlaneseq
    %v9927 = vshrl.u32 %v9926, 7
    %v9928 = vsub.s32 %v9925, %v9927
    %v9929 = vrot.slane %v9922, %v9928
    %v9931 = vunpack.c.l.s4 1966171168
    %v9932 = vunpack.c.0.s8 %v9931
    %v9933 = vlaneseq
    %v9934 = vshrl.u32 %v9933, 7
    %v9935 = vsub.s32 %v9932, %v9934
    %v9936 = vrot.slane %v9929, %v9935
    %9937 = vrot.lane.b32.xlu0 %v9936, 96
    %v9938 = vpop.permute.xlu0 %9937
    %v9940 = vsel %vm27, %v9680, %v9700
    %v9941 = vsel %vm234, %v9940, %v9720
    %v9942 = vsel %vm243, %v9941, %v9740
    %v9943 = vsel %vm27, %v9758, %v9778
    %v9944 = vsel %vm234, %v9943, %v9776
    %v9945 = vsel %vm243, %v9944, %v9799
    %v9946 = vsel %vm27, %v9817, %v9837
    %v9947 = vsel %vm234, %v9946, %v9857
    %v9948 = vsel %vm243, %v9947, %v9877
    %v9949 = vsel %vm27, %v9895, %v9898
    %v9950 = vsel %vm234, %v9949, %v9918
    %v9951 = vsel %vm243, %v9950, %v9938
    %v9954 = vcombine.low %v9211, %v9212
    %v9956 = vunpack.c.l.s4 1966171168
    %v9957 = vunpack.c.0.s8 %v9956
    %v9958 = vlaneseq
    %v9959 = vshrl.u32 %v9958, 7
    %v9960 = vsub.s32 %v9957, %v9959
    %v9961 = vrot.slane %v9954, %v9960
    %v9963 = vunpack.c.l.s4 1966171168
    %v9964 = vunpack.c.0.s8 %v9963
    %v9965 = vlaneseq
    %v9966 = vshrl.u32 %v9965, 7
    %v9967 = vsub.s32 %v9964, %v9966
    %v9968 = vrot.slane %v9961, %v9967
    %v9972 = vcombine.low %v9221, %v9222
    %v9974 = vunpack.c.l.s4 1966171168
    %v9975 = vunpack.c.0.s8 %v9974
    %v9976 = vlaneseq
    %v9977 = vshrl.u32 %v9976, 7
    %v9978 = vsub.s32 %v9975, %v9977
    %v9979 = vrot.slane %v9972, %v9978
    %v9981 = vunpack.c.l.s4 1966171168
    %v9982 = vunpack.c.0.s8 %v9981
    %v9983 = vlaneseq
    %v9984 = vshrl.u32 %v9983, 7
    %v9985 = vsub.s32 %v9982, %v9984
    %v9986 = vrot.slane %v9979, %v9985
    %9987 = vrot.lane.b32.xlu0 %v9986, 32
    %v9988 = vpop.permute.xlu0 %9987
    %v9992 = vcombine.low %v9231, %v9232
    %v9994 = vunpack.c.l.s4 1966171168
    %v9995 = vunpack.c.0.s8 %v9994
    %v9996 = vlaneseq
    %v9997 = vshrl.u32 %v9996, 7
    %v9998 = vsub.s32 %v9995, %v9997
    %v9999 = vrot.slane %v9992, %v9998
    %v10001 = vunpack.c.l.s4 1966171168
    %v10002 = vunpack.c.0.s8 %v10001
    %v10003 = vlaneseq
    %v10004 = vshrl.u32 %v10003, 7
    %v10005 = vsub.s32 %v10002, %v10004
    %v10006 = vrot.slane %v9999, %v10005
    %10007 = vrot.lane.b32.xlu0 %v10006, 64
    %v10008 = vpop.permute.xlu0 %10007
    %v10012 = vcombine.low %v9251, %v9252
    %v10014 = vunpack.c.l.s4 1966171168
    %v10015 = vunpack.c.0.s8 %v10014
    %v10016 = vlaneseq
    %v10017 = vshrl.u32 %v10016, 7
    %v10018 = vsub.s32 %v10015, %v10017
    %v10019 = vrot.slane %v10012, %v10018
    %v10021 = vunpack.c.l.s4 1966171168
    %v10022 = vunpack.c.0.s8 %v10021
    %v10023 = vlaneseq
    %v10024 = vshrl.u32 %v10023, 7
    %v10025 = vsub.s32 %v10022, %v10024
    %v10026 = vrot.slane %v10019, %v10025
    %10027 = vrot.lane.b32.xlu0 %v10026, 96
    %v10028 = vpop.permute.xlu0 %10027
    %10030 = vrot.lane.b32.xlu0 %v10026, 64
    %v10031 = vpop.permute.xlu0 %10030
    %v10035 = vcombine.low %v9261, %v9262
    %v10037 = vunpack.c.l.s4 1966171168
    %v10038 = vunpack.c.0.s8 %v10037
    %v10039 = vlaneseq
    %v10040 = vshrl.u32 %v10039, 7
    %v10041 = vsub.s32 %v10038, %v10040
    %v10042 = vrot.slane %v10035, %v10041
    %v10044 = vunpack.c.l.s4 1966171168
    %v10045 = vunpack.c.0.s8 %v10044
    %v10046 = vlaneseq
    %v10047 = vshrl.u32 %v10046, 7
    %v10048 = vsub.s32 %v10045, %v10047
    %v10049 = vrot.slane %v10042, %v10048
    %10050 = vrot.lane.b32.xlu0 %v10049, 32
    %v10051 = vpop.permute.xlu0 %10050
    %v10055 = vcombine.low %v9279, %v9280
    %v10057 = vunpack.c.l.s4 1966171168
    %v10058 = vunpack.c.0.s8 %v10057
    %v10059 = vlaneseq
    %v10060 = vshrl.u32 %v10059, 7
    %v10061 = vsub.s32 %v10058, %v10060
    %v10062 = vrot.slane %v10055, %v10061
    %v10064 = vunpack.c.l.s4 1966171168
    %v10065 = vunpack.c.0.s8 %v10064
    %v10066 = vlaneseq
    %v10067 = vshrl.u32 %v10066, 7
    %v10068 = vsub.s32 %v10065, %v10067
    %v10069 = vrot.slane %v10062, %v10068
    %10070 = vrot.lane.b32.xlu0 %v10069, 64
    %v10071 = vpop.permute.xlu0 %10070
    %v10075 = vcombine.low %v9289, %v9290
    %v10077 = vunpack.c.l.s4 1966171168
    %v10078 = vunpack.c.0.s8 %v10077
    %v10079 = vlaneseq
    %v10080 = vshrl.u32 %v10079, 7
    %v10081 = vsub.s32 %v10078, %v10080
    %v10082 = vrot.slane %v10075, %v10081
    %v10084 = vunpack.c.l.s4 1966171168
    %v10085 = vunpack.c.0.s8 %v10084
    %v10086 = vlaneseq
    %v10087 = vshrl.u32 %v10086, 7
    %v10088 = vsub.s32 %v10085, %v10087
    %v10089 = vrot.slane %v10082, %v10088
    %10090 = vrot.lane.b32.xlu0 %v10089, 96
    %v10091 = vpop.permute.xlu0 %10090
    %v10095 = vcombine.low %v9299, %v9300
    %v10097 = vunpack.c.l.s4 1966171168
    %v10098 = vunpack.c.0.s8 %v10097
    %v10099 = vlaneseq
    %v10100 = vshrl.u32 %v10099, 7
    %v10101 = vsub.s32 %v10098, %v10100
    %v10102 = vrot.slane %v10095, %v10101
    %v10104 = vunpack.c.l.s4 1966171168
    %v10105 = vunpack.c.0.s8 %v10104
    %v10106 = vlaneseq
    %v10107 = vshrl.u32 %v10106, 7
    %v10108 = vsub.s32 %v10105, %v10107
    %v10109 = vrot.slane %v10102, %v10108
    %v10113 = vcombine.low %v9309, %v9310
    %v10115 = vunpack.c.l.s4 1966171168
    %v10116 = vunpack.c.0.s8 %v10115
    %v10117 = vlaneseq
    %v10118 = vshrl.u32 %v10117, 7
    %v10119 = vsub.s32 %v10116, %v10118
    %v10120 = vrot.slane %v10113, %v10119
    %v10122 = vunpack.c.l.s4 1966171168
    %v10123 = vunpack.c.0.s8 %v10122
    %v10124 = vlaneseq
    %v10125 = vshrl.u32 %v10124, 7
    %v10126 = vsub.s32 %v10123, %v10125
    %v10127 = vrot.slane %v10120, %v10126
    %10128 = vrot.lane.b32.xlu0 %v10127, 32
    %v10129 = vpop.permute.xlu0 %10128
    %v10133 = vcombine.low %v9329, %v9330
    %v10135 = vunpack.c.l.s4 1966171168
    %v10136 = vunpack.c.0.s8 %v10135
    %v10137 = vlaneseq
    %v10138 = vshrl.u32 %v10137, 7
    %v10139 = vsub.s32 %v10136, %v10138
    %v10140 = vrot.slane %v10133, %v10139
    %v10142 = vunpack.c.l.s4 1966171168
    %v10143 = vunpack.c.0.s8 %v10142
    %v10144 = vlaneseq
    %v10145 = vshrl.u32 %v10144, 7
    %v10146 = vsub.s32 %v10143, %v10145
    %v10147 = vrot.slane %v10140, %v10146
    %10148 = vrot.lane.b32.xlu0 %v10147, 64
    %v10149 = vpop.permute.xlu0 %10148
    %10151 = vrot.lane.b32.xlu0 %v10147, 32
    %v10152 = vpop.permute.xlu0 %10151
    %v10156 = vcombine.low %v9339, %v9340
    %v10158 = vunpack.c.l.s4 1966171168
    %v10159 = vunpack.c.0.s8 %v10158
    %v10160 = vlaneseq
    %v10161 = vshrl.u32 %v10160, 7
    %v10162 = vsub.s32 %v10159, %v10161
    %v10163 = vrot.slane %v10156, %v10162
    %v10165 = vunpack.c.l.s4 1966171168
    %v10166 = vunpack.c.0.s8 %v10165
    %v10167 = vlaneseq
    %v10168 = vshrl.u32 %v10167, 7
    %v10169 = vsub.s32 %v10166, %v10168
    %v10170 = vrot.slane %v10163, %v10169
    %v10174 = vcombine.low %v9357, %v9358
    %v10176 = vunpack.c.l.s4 1966171168
    %v10177 = vunpack.c.0.s8 %v10176
    %v10178 = vlaneseq
    %v10179 = vshrl.u32 %v10178, 7
    %v10180 = vsub.s32 %v10177, %v10179
    %v10181 = vrot.slane %v10174, %v10180
    %v10183 = vunpack.c.l.s4 1966171168
    %v10184 = vunpack.c.0.s8 %v10183
    %v10185 = vlaneseq
    %v10186 = vshrl.u32 %v10185, 7
    %v10187 = vsub.s32 %v10184, %v10186
    %v10188 = vrot.slane %v10181, %v10187
    %10189 = vrot.lane.b32.xlu0 %v10188, 32
    %v10190 = vpop.permute.xlu0 %10189
    %v10194 = vcombine.low %v9367, %v9368
    %v10196 = vunpack.c.l.s4 1966171168
    %v10197 = vunpack.c.0.s8 %v10196
    %v10198 = vlaneseq
    %v10199 = vshrl.u32 %v10198, 7
    %v10200 = vsub.s32 %v10197, %v10199
    %v10201 = vrot.slane %v10194, %v10200
    %v10203 = vunpack.c.l.s4 1966171168
    %v10204 = vunpack.c.0.s8 %v10203
    %v10205 = vlaneseq
    %v10206 = vshrl.u32 %v10205, 7
    %v10207 = vsub.s32 %v10204, %v10206
    %v10208 = vrot.slane %v10201, %v10207
    %10209 = vrot.lane.b32.xlu0 %v10208, 64
    %v10210 = vpop.permute.xlu0 %10209
    %v10214 = vcombine.low %v9377, %v9378
    %v10216 = vunpack.c.l.s4 1966171168
    %v10217 = vunpack.c.0.s8 %v10216
    %v10218 = vlaneseq
    %v10219 = vshrl.u32 %v10218, 7
    %v10220 = vsub.s32 %v10217, %v10219
    %v10221 = vrot.slane %v10214, %v10220
    %v10223 = vunpack.c.l.s4 1966171168
    %v10224 = vunpack.c.0.s8 %v10223
    %v10225 = vlaneseq
    %v10226 = vshrl.u32 %v10225, 7
    %v10227 = vsub.s32 %v10224, %v10226
    %v10228 = vrot.slane %v10221, %v10227
    %10229 = vrot.lane.b32.xlu0 %v10228, 96
    %v10230 = vpop.permute.xlu0 %10229
    %v10232 = vsel %vm27, %v9968, %v9988
    %v10233 = vsel %vm234, %v10232, %v10008
    %v10234 = vsel %vm243, %v10233, %v10028
    %v10235 = vsel %vm27, %v10031, %v10051
    %v10236 = vsel %vm234, %v10235, %v10071
    %v10237 = vsel %vm243, %v10236, %v10091
    %v10238 = vsel %vm27, %v10109, %v10129
    %v10239 = vsel %vm234, %v10238, %v10149
    %v10240 = vsel %vm243, %v10239, %v10152
    %v10241 = vsel %vm27, %v10170, %v10190
    %v10242 = vsel %vm234, %v10241, %v10210
    %v10243 = vsel %vm243, %v10242, %v10230
    %v10246 = vcombine.low %v9387, %v9388
    %v10248 = vunpack.c.l.s4 1966171168
    %v10249 = vunpack.c.0.s8 %v10248
    %v10250 = vlaneseq
    %v10251 = vshrl.u32 %v10250, 7
    %v10252 = vsub.s32 %v10249, %v10251
    %v10253 = vrot.slane %v10246, %v10252
    %v10255 = vunpack.c.l.s4 1966171168
    %v10256 = vunpack.c.0.s8 %v10255
    %v10257 = vlaneseq
    %v10258 = vshrl.u32 %v10257, 7
    %v10259 = vsub.s32 %v10256, %v10258
    %v10260 = vrot.slane %v10253, %v10259
    %v10261 = vld [vmem:[%s5] sm:$0xff]
    %v10262 = vld [vmem:[%s5 + $0x8] sm:$0xff]
    %v10263 = vld [vmem:[%s5 + $0x10] sm:$0xff]
    %v10264 = vld [vmem:[%s5 + $0x18] sm:$0xff]
    %v10265 = vld [vmem:[%s5 + $0x20] sm:$0xff]
    %v10266 = vld [vmem:[%s5 + $0x28] sm:$0xff]
    %v10267 = vld [vmem:[%s5 + $0x30] sm:$0xff]
    %v10268 = vld [vmem:[%s5 + $0x38] sm:$0xff]
    %v10269 = vld [vmem:[%s5 + $0x40] sm:$0xff]
    %v10270 = vld [vmem:[%s5 + $0x48] sm:$0xff]
    %v10271 = vld [vmem:[%s5 + $0x50] sm:$0xff]
    %v10272 = vld [vmem:[%s5 + $0x58] sm:$0xff]
    %v10273 = vld [vmem:[%s5 + $0x60] sm:$0xff]
    %v10274 = vld [vmem:[%s5 + $0x68] sm:$0xff]
    %v10275 = vld [vmem:[%s5 + $0x70] sm:$0xff]
    %v10276 = vld [vmem:[%s5 + $0x78] sm:$0xff]
    %v10277 = vld [vmem:[%s5 + $0x80] sm:$0xff]
    %v10278 = vld [vmem:[%s5 + $0x88] sm:$0xff]
    %v10279 = vld [vmem:[%s5 + $0x90] sm:$0xff]
    %v10280 = vld [vmem:[%s5 + $0x98] sm:$0xff]
    %v10281 = vld [vmem:[%s5 + $0xa0] sm:$0xff]
    %v10282 = vld [vmem:[%s5 + $0xa8] sm:$0xff]
    %v10283 = vld [vmem:[%s5 + $0xb0] sm:$0xff]
    %v10284 = vld [vmem:[%s5 + $0xb8] sm:$0xff]
    %v10285 = vld [vmem:[%s5 + $0xc0] sm:$0xff]
    %v10286 = vld [vmem:[%s5 + $0xc8] sm:$0xff]
    %v10287 = vld [vmem:[%s5 + $0xd0] sm:$0xff]
    %v10288 = vld [vmem:[%s5 + $0xd8] sm:$0xff]
    %v10289 = vld [vmem:[%s5 + $0xe0] sm:$0xff]
    %v10290 = vld [vmem:[%s5 + $0xe8] sm:$0xff]
    %v10291 = vld [vmem:[%s5 + $0xf0] sm:$0xff]
    %v10292 = vld [vmem:[%s5 + $0xf8] sm:$0xff]
    %v10293 = vld [vmem:[%s5 + $0x100] sm:$0xff]
    %v10294 = vld [vmem:[%s5 + $0x108] sm:$0xff]
    %v10295 = vld [vmem:[%s5 + $0x110] sm:$0xff]
    %v10296 = vld [vmem:[%s5 + $0x118] sm:$0xff]
    %v10297 = vld [vmem:[%s5 + $0x120] sm:$0xff]
    %v10298 = vld [vmem:[%s5 + $0x128] sm:$0xff]
    %v10299 = vld [vmem:[%s5 + $0x130] sm:$0xff]
    %v10300 = vld [vmem:[%s5 + $0x138] sm:$0xff]
    %v10301 = vld [vmem:[%s5 + $0x140] sm:$0xff]
    %v10302 = vld [vmem:[%s5 + $0x148] sm:$0xff]
    %v10303 = vld [vmem:[%s5 + $0x150] sm:$0xff]
    %v10304 = vld [vmem:[%s5 + $0x158] sm:$0xff]
    %v10305 = vld [vmem:[%s5 + $0x160] sm:$0xff]
    %v10306 = vld [vmem:[%s5 + $0x168] sm:$0xff]
    %v10307 = vld [vmem:[%s5 + $0x170] sm:$0xff]
    %v10308 = vld [vmem:[%s5 + $0x178] sm:$0xff]
    %v10309 = vld [vmem:[%s5 + $0x180] sm:$0xff]
    %v10310 = vld [vmem:[%s5 + $0x188] sm:$0xff]
    %v10311 = vld [vmem:[%s5 + $0x190] sm:$0xff]
    %v10312 = vld [vmem:[%s5 + $0x198] sm:$0xff]
    %v10313 = vld [vmem:[%s5 + $0x1a0] sm:$0xff]
    %v10314 = vld [vmem:[%s5 + $0x1a8] sm:$0xff]
    %v10315 = vld [vmem:[%s5 + $0x1b0] sm:$0xff]
    %v10316 = vld [vmem:[%s5 + $0x1b8] sm:$0xff]
    %v10317 = vld [vmem:[%s5 + $0x1c0] sm:$0xff]
    %v10318 = vld [vmem:[%s5 + $0x1c8] sm:$0xff]
    %v10319 = vld [vmem:[%s5 + $0x1d0] sm:$0xff]
    %v10320 = vld [vmem:[%s5 + $0x1d8] sm:$0xff]
    %v10321 = vld [vmem:[%s5 + $0x1e0] sm:$0xff]
    %v10322 = vld [vmem:[%s5 + $0x1e8] sm:$0xff]
    %v10323 = vld [vmem:[%s5 + $0x1f0] sm:$0xff]
    %v10324 = vld [vmem:[%s5 + $0x1f8] sm:$0xff]
    %v10325 = vld [vmem:[%s5 + $0x200] sm:$0xff]
    %v10326 = vld [vmem:[%s5 + $0x208] sm:$0xff]
    %v10327 = vld [vmem:[%s5 + $0x210] sm:$0xff]
    %v10328 = vld [vmem:[%s5 + $0x218] sm:$0xff]
    %v10329 = vld [vmem:[%s5 + $0x220] sm:$0xff]
    %v10330 = vld [vmem:[%s5 + $0x228] sm:$0xff]
    %v10331 = vld [vmem:[%s5 + $0x230] sm:$0xff]
    %v10332 = vld [vmem:[%s5 + $0x238] sm:$0xff]
    %v10333 = vld [vmem:[%s5 + $0x240] sm:$0xff]
    %v10334 = vld [vmem:[%s5 + $0x248] sm:$0xff]
    %v10335 = vld [vmem:[%s5 + $0x250] sm:$0xff]
    %v10336 = vld [vmem:[%s5 + $0x258] sm:$0xff]
    %v10337 = vld [vmem:[%s5 + $0x260] sm:$0xff]
    %v10338 = vld [vmem:[%s5 + $0x268] sm:$0xff]
    %v10339 = vld [vmem:[%s5 + $0x270] sm:$0xff]
    %v10340 = vld [vmem:[%s5 + $0x278] sm:$0xff]
    %v10341 = vld [vmem:[%s5 + $0x280] sm:$0xff]
    %v10342 = vld [vmem:[%s5 + $0x288] sm:$0xff]
    %v10343 = vld [vmem:[%s5 + $0x290] sm:$0xff]
    %v10344 = vld [vmem:[%s5 + $0x298] sm:$0xff]
    %v10345 = vld [vmem:[%s5 + $0x2a0] sm:$0xff]
    %v10346 = vld [vmem:[%s5 + $0x2a8] sm:$0xff]
    %v10347 = vld [vmem:[%s5 + $0x2b0] sm:$0xff]
    %v10348 = vld [vmem:[%s5 + $0x2b8] sm:$0xff]
    %v10349 = vld [vmem:[%s5 + $0x2c0] sm:$0xff]
    %v10350 = vld [vmem:[%s5 + $0x2c8] sm:$0xff]
    %v10351 = vld [vmem:[%s5 + $0x2d0] sm:$0xff]
    %v10352 = vld [vmem:[%s5 + $0x2d8] sm:$0xff]
    %v10353 = vld [vmem:[%s5 + $0x2e0] sm:$0xff]
    %v10354 = vld [vmem:[%s5 + $0x2e8] sm:$0xff]
    %v10355 = vld [vmem:[%s5 + $0x2f0] sm:$0xff]
    %v10356 = vld [vmem:[%s5 + $0x2f8] sm:$0xff]
    %v10357 = vld [vmem:[%s5 + $0x300] sm:$0xff]
    %v10358 = vld [vmem:[%s5 + $0x308] sm:$0xff]
    %v10359 = vld [vmem:[%s5 + $0x310] sm:$0xff]
    %v10360 = vld [vmem:[%s5 + $0x318] sm:$0xff]
    %v10361 = vld [vmem:[%s5 + $0x320] sm:$0xff]
    %v10362 = vld [vmem:[%s5 + $0x328] sm:$0xff]
    %v10363 = vld [vmem:[%s5 + $0x330] sm:$0xff]
    %v10364 = vld [vmem:[%s5 + $0x338] sm:$0xff]
    %v10365 = vld [vmem:[%s5 + $0x340] sm:$0xff]
    %v10366 = vld [vmem:[%s5 + $0x348] sm:$0xff]
    %v10367 = vld [vmem:[%s5 + $0x350] sm:$0xff]
    %v10368 = vld [vmem:[%s5 + $0x358] sm:$0xff]
    %v10369 = vld [vmem:[%s5 + $0x360] sm:$0xff]
    %v10370 = vld [vmem:[%s5 + $0x368] sm:$0xff]
    %v10371 = vld [vmem:[%s5 + $0x370] sm:$0xff]
    %v10372 = vld [vmem:[%s5 + $0x378] sm:$0xff]
    %v10373 = vld [vmem:[%s5 + $0x380] sm:$0xff]
    %v10374 = vld [vmem:[%s5 + $0x388] sm:$0xff]
    %v10375 = vld [vmem:[%s5 + $0x390] sm:$0xff]
    %v10376 = vld [vmem:[%s5 + $0x398] sm:$0xff]
    %v10377 = vld [vmem:[%s5 + $0x3a0] sm:$0xff]
    %v10378 = vld [vmem:[%s5 + $0x3a8] sm:$0xff]
    %v10379 = vld [vmem:[%s5 + $0x3b0] sm:$0xff]
    %v10380 = vld [vmem:[%s5 + $0x3b8] sm:$0xff]
    %v10381 = vld [vmem:[%s5 + $0x3c0] sm:$0xff]
    %v10382 = vld [vmem:[%s5 + $0x3c8] sm:$0xff]
    %v10383 = vld [vmem:[%s5 + $0x3d0] sm:$0xff]
    %v10384 = vld [vmem:[%s5 + $0x3d8] sm:$0xff]
    %v10385 = vld [vmem:[%s5 + $0x3e0] sm:$0xff]
    %v10386 = vld [vmem:[%s5 + $0x3e8] sm:$0xff]
    %v10387 = vld [vmem:[%s5 + $0x3f0] sm:$0xff]
    %v10388 = vld [vmem:[%s5 + $0x3f8] sm:$0xff]
    %v10389 = vld [vmem:[%s5 + $0x400] sm:$0xff]
    %v10390 = vld [vmem:[%s5 + $0x408] sm:$0xff]
    %v10391 = vld [vmem:[%s5 + $0x410] sm:$0xff]
    %v10392 = vld [vmem:[%s5 + $0x418] sm:$0xff]
    %v10393 = vld [vmem:[%s5 + $0x420] sm:$0xff]
    %v10394 = vld [vmem:[%s5 + $0x428] sm:$0xff]
    %v10395 = vld [vmem:[%s5 + $0x430] sm:$0xff]
    %v10396 = vld [vmem:[%s5 + $0x438] sm:$0xff]
    %v10397 = vld [vmem:[%s5 + $0x440] sm:$0xff]
    %v10398 = vld [vmem:[%s5 + $0x448] sm:$0xff]
    %v10399 = vld [vmem:[%s5 + $0x450] sm:$0xff]
    %v10400 = vld [vmem:[%s5 + $0x458] sm:$0xff]
    %v10401 = vld [vmem:[%s5 + $0x460] sm:$0xff]
    %v10402 = vld [vmem:[%s5 + $0x468] sm:$0xff]
    %v10403 = vld [vmem:[%s5 + $0x470] sm:$0xff]
    %v10404 = vld [vmem:[%s5 + $0x478] sm:$0xff]
    %v10405 = vld [vmem:[%s5 + $0x480] sm:$0xff]
    %v10406 = vld [vmem:[%s5 + $0x488] sm:$0xff]
    %v10407 = vld [vmem:[%s5 + $0x490] sm:$0xff]
    %v10408 = vld [vmem:[%s5 + $0x498] sm:$0xff]
    %v10409 = vld [vmem:[%s5 + $0x4a0] sm:$0xff]
    %v10410 = vld [vmem:[%s5 + $0x4a8] sm:$0xff]
    %v10411 = vld [vmem:[%s5 + $0x4b0] sm:$0xff]
    %v10412 = vld [vmem:[%s5 + $0x4b8] sm:$0xff]
    %v10413 = vld [vmem:[%s5 + $0x4c0] sm:$0xff]
    %v10414 = vld [vmem:[%s5 + $0x4c8] sm:$0xff]
    %v10415 = vld [vmem:[%s5 + $0x4d0] sm:$0xff]
    %v10416 = vld [vmem:[%s5 + $0x4d8] sm:$0xff]
    %v10417 = vld [vmem:[%s5 + $0x4e0] sm:$0xff]
    %v10418 = vld [vmem:[%s5 + $0x4e8] sm:$0xff]
    %v10419 = vld [vmem:[%s5 + $0x4f0] sm:$0xff]
    %v10420 = vld [vmem:[%s5 + $0x4f8] sm:$0xff]
    %v10421 = vld [vmem:[%s5 + $0x500] sm:$0xff]
    %v10422 = vld [vmem:[%s5 + $0x508] sm:$0xff]
    %v10423 = vld [vmem:[%s5 + $0x510] sm:$0xff]
    %v10424 = vld [vmem:[%s5 + $0x518] sm:$0xff]
    %v10425 = vld [vmem:[%s5 + $0x520] sm:$0xff]
    %v10426 = vld [vmem:[%s5 + $0x528] sm:$0xff]
    %v10427 = vld [vmem:[%s5 + $0x530] sm:$0xff]
    %v10428 = vld [vmem:[%s5 + $0x538] sm:$0xff]
    %v10429 = vld [vmem:[%s5 + $0x540] sm:$0xff]
    %v10430 = vld [vmem:[%s5 + $0x548] sm:$0xff]
    %v10431 = vld [vmem:[%s5 + $0x550] sm:$0xff]
    %v10432 = vld [vmem:[%s5 + $0x558] sm:$0xff]
    %v10433 = vld [vmem:[%s5 + $0x560] sm:$0xff]
    %v10434 = vld [vmem:[%s5 + $0x568] sm:$0xff]
    %v10435 = vld [vmem:[%s5 + $0x570] sm:$0xff]
    %v10436 = vld [vmem:[%s5 + $0x578] sm:$0xff]
    %v10437 = vld [vmem:[%s5 + $0x580] sm:$0xff]
    %v10438 = vld [vmem:[%s5 + $0x588] sm:$0xff]
    %v10439 = vld [vmem:[%s5 + $0x590] sm:$0xff]
    %v10440 = vld [vmem:[%s5 + $0x598] sm:$0xff]
    %v10441 = vld [vmem:[%s5 + $0x5a0] sm:$0xff]
    %v10442 = vld [vmem:[%s5 + $0x5a8] sm:$0xff]
    %v10443 = vld [vmem:[%s5 + $0x5b0] sm:$0xff]
    %v10444 = vld [vmem:[%s5 + $0x5b8] sm:$0xff]
    %v10445 = vld [vmem:[%s5 + $0x5c0] sm:$0xff]
    %v10446 = vld [vmem:[%s5 + $0x5c8] sm:$0xff]
    %v10447 = vld [vmem:[%s5 + $0x5d0] sm:$0xff]
    %v10448 = vld [vmem:[%s5 + $0x5d8] sm:$0xff]
    %v10449 = vld [vmem:[%s5 + $0x5e0] sm:$0xff]
    %v10450 = vld [vmem:[%s5 + $0x5e8] sm:$0xff]
    %v10451 = vld [vmem:[%s5 + $0x5f0] sm:$0xff]
    %v10452 = vld [vmem:[%s5 + $0x5f8] sm:$0xff]
    %v10453 = vld [vmem:[%s5 + $0x600] sm:$0xff]
    %v10454 = vld [vmem:[%s5 + $0x608] sm:$0xff]
    %v10455 = vld [vmem:[%s5 + $0x610] sm:$0xff]
    %v10456 = vld [vmem:[%s5 + $0x618] sm:$0xff]
    %v10457 = vld [vmem:[%s6] sm:$0x1]
    %v10459 = vlaneseq
    %v10460 = vshrl.u32 %v10459, 7
    %v10461 = vsub.s32 0, %v10460
    %v10462 = vrot.slane %v10457, %v10461
    %v10464 = vsel %vm27, %v10260, 0
    %10466 = vmatprep.subr.mxu0 0.0
    %10467 = vmatpush1.msra.mxu0 %v10261
    %10468 = vmatprep.subr.mxu0 0.0
    %10469 = vmatpush1.msra.mxu0 %v10262
    %10470 = vmatprep.subr.mxu0 0.0
    %10471 = vmatpush1.msra.mxu0 %v10263
    %10472 = vmatprep.subr.mxu0 0.0
    %10473 = vmatpush1.msra.mxu0 %v10264
    %10474 = vmatprep.subr.mxu0 0.0
    %10475 = vmatpush1.msra.mxu0 %v10265
    %10476 = vmatprep.subr.mxu0 0.0
    %10477 = vmatpush1.msra.mxu0 %v10266
    %10478 = vmatprep.subr.mxu0 0.0
    %10479 = vmatpush1.msra.mxu0 %v10267
    %10480 = vmatprep.subr.mxu0 0.0
    %10481 = vmatpush1.msra.mxu0 %v10268
    %10482 = vmatprep.subr.mxu0 0.0
    %10483 = vmatpush1.msra.mxu0 %v10269
    %10484 = vmatprep.subr.mxu0 0.0
    %10485 = vmatpush1.msra.mxu0 %v10270
    %10486 = vmatprep.subr.mxu0 0.0
    %10487 = vmatpush1.msra.mxu0 %v10271
    %10488 = vmatprep.subr.mxu0 0.0
    %10489 = vmatpush1.msra.mxu0 %v10272
    %10490 = vmatprep.subr.mxu0 0.0
    %10491 = vmatpush1.msra.mxu0 %v10273
    %10492 = vmatprep.subr.mxu0 0.0
    %10493 = vmatpush1.msra.mxu0 %v10274
    %10494 = vmatprep.subr.mxu0 0.0
    %10495 = vmatpush1.msra.mxu0 %v10275
    %10496 = vmatprep.subr.mxu0 0.0
    %10497 = vmatpush1.msra.mxu0 %v10276
    %10498 = vmatprep.subr.mxu0 0.0
    %10499 = vmatpush1.msra.mxu0 %v10277
    %10500 = vmatprep.subr.mxu0 0.0
    %10501 = vmatpush1.msra.mxu0 %v10278
    %10502 = vmatprep.subr.mxu0 0.0
    %10503 = vmatpush1.msra.mxu0 %v10279
    %10504 = vmatprep.subr.mxu0 0.0
    %10505 = vmatpush1.msra.mxu0 %v10280
    %10506 = vmatprep.subr.mxu0 0.0
    %10507 = vmatpush1.msra.mxu0 %v10281
    %10508 = vmatprep.subr.mxu0 0.0
    %10509 = vmatpush1.msra.mxu0 %v10282
    %10510 = vmatprep.subr.mxu0 0.0
    %10511 = vmatpush1.msra.mxu0 %v10283
    %10512 = vmatprep.subr.mxu0 0.0
    %10513 = vmatpush1.msra.mxu0 %v10284
    %10514 = vmatprep.subr.mxu0 0.0
    %10515 = vmatpush1.msra.mxu0 %v10285
    %10516 = vmatprep.subr.mxu0 0.0
    %10517 = vmatpush1.msra.mxu0 %v10286
    %10518 = vmatprep.subr.mxu0 0.0
    %10519 = vmatpush1.msra.mxu0 %v10287
    %10520 = vmatprep.subr.mxu0 0.0
    %10521 = vmatpush1.msra.mxu0 %v10288
    %10522 = vmatprep.subr.mxu0 0.0
    %10523 = vmatpush1.msra.mxu0 %v10289
    %10524 = vmatprep.subr.mxu0 0.0
    %10525 = vmatpush1.msra.mxu0 %v10290
    %10526 = vmatprep.subr.mxu0 0.0
    %10527 = vmatpush1.msra.mxu0 %v10291
    %10528 = vmatprep.subr.mxu0 0.0
    %10529 = vmatpush1.msra.mxu0 %v10292
    %10530 = vmatprep.mubr.f32.mxu0 %v9657
    %10531 = vmatmul.mubr.f32.gmra.mrb[0].mxu0 %v9654
    %v10532 = vpop.f32.mrb[0].mxu0
    %v10533 = vadd.f32 %v10462, %v10532
    %v10534 = vpop.f32.mrb[0].mxu0
    %10535 = vdwg.mxu0
    %10536 = vmatprep.subr.mxu0 0.0
    %10537 = vmatpush1.msra.mxu0 %v10293
    %10538 = vmatprep.subr.mxu0 0.0
    %10539 = vmatpush1.msra.mxu0 %v10294
    %10540 = vmatprep.subr.mxu0 0.0
    %10541 = vmatpush1.msra.mxu0 %v10295
    %10542 = vmatprep.subr.mxu0 0.0
    %10543 = vmatpush1.msra.mxu0 %v10296
    %10544 = vmatprep.subr.mxu0 0.0
    %10545 = vmatpush1.msra.mxu0 %v10297
    %10546 = vmatprep.subr.mxu0 0.0
    %10547 = vmatpush1.msra.mxu0 %v10298
    %10548 = vmatprep.subr.mxu0 0.0
    %10549 = vmatpush1.msra.mxu0 %v10299
    %10550 = vmatprep.subr.mxu0 0.0
    %10551 = vmatpush1.msra.mxu0 %v10300
    %10552 = vmatprep.subr.mxu0 0.0
    %10553 = vmatpush1.msra.mxu0 %v10301
    %10554 = vmatprep.subr.mxu0 0.0
    %10555 = vmatpush1.msra.mxu0 %v10302
    %10556 = vmatprep.subr.mxu0 0.0
    %10557 = vmatpush1.msra.mxu0 %v10303
    %10558 = vmatprep.subr.mxu0 0.0
    %10559 = vmatpush1.msra.mxu0 %v10304
    %10560 = vmatprep.subr.mxu0 0.0
    %10561 = vmatpush1.msra.mxu0 %v10305
    %10562 = vmatprep.subr.mxu0 0.0
    %10563 = vmatpush1.msra.mxu0 %v10306
    %10564 = vmatprep.subr.mxu0 0.0
    %10565 = vmatpush1.msra.mxu0 %v10307
    %10566 = vmatprep.subr.mxu0 0.0
    %10567 = vmatpush1.msra.mxu0 %v10308
    %10568 = vmatprep.subr.mxu0 0.0
    %10569 = vmatpush1.msra.mxu0 %v10309
    %10570 = vmatprep.subr.mxu0 0.0
    %10571 = vmatpush1.msra.mxu0 %v10310
    %10572 = vmatprep.subr.mxu0 0.0
    %10573 = vmatpush1.msra.mxu0 %v10311
    %10574 = vmatprep.subr.mxu0 0.0
    %10575 = vmatpush1.msra.mxu0 %v10312
    %10576 = vmatprep.subr.mxu0 0.0
    %10577 = vmatpush1.msra.mxu0 %v10313
    %10578 = vmatprep.subr.mxu0 0.0
    %10579 = vmatpush1.msra.mxu0 %v10314
    %10580 = vmatprep.subr.mxu0 0.0
    %10581 = vmatpush1.msra.mxu0 %v10315
    %10582 = vmatprep.subr.mxu0 0.0
    %10583 = vmatpush1.msra.mxu0 %v10316
    %10584 = vmatprep.subr.mxu0 0.0
    %10585 = vmatpush1.msra.mxu0 %v10317
    %10586 = vmatprep.subr.mxu0 0.0
    %10587 = vmatpush1.msra.mxu0 %v10318
    %10588 = vmatprep.subr.mxu0 0.0
    %10589 = vmatpush1.msra.mxu0 %v10319
    %10590 = vmatprep.subr.mxu0 0.0
    %10591 = vmatpush1.msra.mxu0 %v10320
    %10592 = vmatprep.subr.mxu0 0.0
    %10593 = vmatpush1.msra.mxu0 %v10321
    %10594 = vmatprep.subr.mxu0 0.0
    %10595 = vmatpush1.msra.mxu0 %v10322
    %10596 = vmatprep.subr.mxu0 0.0
    %10597 = vmatpush1.msra.mxu0 %v10323
    %10598 = vmatprep.subr.mxu0 0.0
    %10599 = vmatpush1.msra.mxu0 %v10324
    %10600 = vmatprep.mubr.f32.mxu0 %v9663
    %10601 = vmatmul.mubr.f32.gmra.mrb[0].mxu0 %v9660
    %v10602 = vpop.f32.mrb[0].mxu0
    %v10603 = vadd.f32 %v10533, %v10602
    %v10604 = vpop.f32.mrb[0].mxu0
    %10605 = vdwg.mxu0
    %10606 = vmatprep.subr.mxu0 0.0
    %10607 = vmatpush1.msra.mxu0 %v10325
    %10608 = vmatprep.subr.mxu0 0.0
    %10609 = vmatpush1.msra.mxu0 %v10326
    %10610 = vmatprep.subr.mxu0 0.0
    %10611 = vmatpush1.msra.mxu0 %v10327
    %10612 = vmatprep.subr.mxu0 0.0
    %10613 = vmatpush1.msra.mxu0 %v10328
    %10614 = vmatprep.subr.mxu0 0.0
    %10615 = vmatpush1.msra.mxu0 %v10329
    %10616 = vmatprep.subr.mxu0 0.0
    %10617 = vmatpush1.msra.mxu0 %v10330
    %10618 = vmatprep.subr.mxu0 0.0
    %10619 = vmatpush1.msra.mxu0 %v10331
    %10620 = vmatprep.subr.mxu0 0.0
    %10621 = vmatpush1.msra.mxu0 %v10332
    %10622 = vmatprep.subr.mxu0 0.0
    %10623 = vmatpush1.msra.mxu0 %v10333
    %10624 = vmatprep.subr.mxu0 0.0
    %10625 = vmatpush1.msra.mxu0 %v10334
    %10626 = vmatprep.subr.mxu0 0.0
    %10627 = vmatpush1.msra.mxu0 %v10335
    %10628 = vmatprep.subr.mxu0 0.0
    %10629 = vmatpush1.msra.mxu0 %v10336
    %10630 = vmatprep.subr.mxu0 0.0
    %10631 = vmatpush1.msra.mxu0 %v10337
    %10632 = vmatprep.subr.mxu0 0.0
    %10633 = vmatpush1.msra.mxu0 %v10338
    %10634 = vmatprep.subr.mxu0 0.0
    %10635 = vmatpush1.msra.mxu0 %v10339
    %10636 = vmatprep.subr.mxu0 0.0
    %10637 = vmatpush1.msra.mxu0 %v10340
    %10638 = vmatprep.subr.mxu0 0.0
    %10639 = vmatpush1.msra.mxu0 %v10341
    %10640 = vmatprep.subr.mxu0 0.0
    %10641 = vmatpush1.msra.mxu0 %v10342
    %10642 = vmatprep.subr.mxu0 0.0
    %10643 = vmatpush1.msra.mxu0 %v10343
    %10644 = vmatprep.subr.mxu0 0.0
    %10645 = vmatpush1.msra.mxu0 %v10344
    %10646 = vmatprep.subr.mxu0 0.0
    %10647 = vmatpush1.msra.mxu0 %v10345
    %10648 = vmatprep.subr.mxu0 0.0
    %10649 = vmatpush1.msra.mxu0 %v10346
    %10650 = vmatprep.subr.mxu0 0.0
    %10651 = vmatpush1.msra.mxu0 %v10347
    %10652 = vmatprep.subr.mxu0 0.0
    %10653 = vmatpush1.msra.mxu0 %v10348
    %10654 = vmatprep.subr.mxu0 0.0
    %10655 = vmatpush1.msra.mxu0 %v10349
    %10656 = vmatprep.subr.mxu0 0.0
    %10657 = vmatpush1.msra.mxu0 %v10350
    %10658 = vmatprep.subr.mxu0 0.0
    %10659 = vmatpush1.msra.mxu0 %v10351
    %10660 = vmatprep.subr.mxu0 0.0
    %10661 = vmatpush1.msra.mxu0 %v10352
    %10662 = vmatprep.subr.mxu0 0.0
    %10663 = vmatpush1.msra.mxu0 %v10353
    %10664 = vmatprep.subr.mxu0 0.0
    %10665 = vmatpush1.msra.mxu0 %v10354
    %10666 = vmatprep.subr.mxu0 0.0
    %10667 = vmatpush1.msra.mxu0 %v10355
    %10668 = vmatprep.subr.mxu0 0.0
    %10669 = vmatpush1.msra.mxu0 %v10356
    %10670 = vmatprep.mubr.f32.mxu0 %v9945
    %10671 = vmatmul.mubr.f32.gmra.mrb[0].mxu0 %v9942
    %v10672 = vpop.f32.mrb[0].mxu0
    %v10673 = vadd.f32 %v10603, %v10672
    %v10674 = vpop.f32.mrb[0].mxu0
    %10675 = vdwg.mxu0
    %10676 = vmatprep.subr.mxu0 0.0
    %10677 = vmatpush1.msra.mxu0 %v10357
    %10678 = vmatprep.subr.mxu0 0.0
    %10679 = vmatpush1.msra.mxu0 %v10358
    %10680 = vmatprep.subr.mxu0 0.0
    %10681 = vmatpush1.msra.mxu0 %v10359
    %10682 = vmatprep.subr.mxu0 0.0
    %10683 = vmatpush1.msra.mxu0 %v10360
    %10684 = vmatprep.subr.mxu0 0.0
    %10685 = vmatpush1.msra.mxu0 %v10361
    %10686 = vmatprep.subr.mxu0 0.0
    %10687 = vmatpush1.msra.mxu0 %v10362
    %10688 = vmatprep.subr.mxu0 0.0
    %10689 = vmatpush1.msra.mxu0 %v10363
    %10690 = vmatprep.subr.mxu0 0.0
    %10691 = vmatpush1.msra.mxu0 %v10364
    %10692 = vmatprep.subr.mxu0 0.0
    %10693 = vmatpush1.msra.mxu0 %v10365
    %10694 = vmatprep.subr.mxu0 0.0
    %10695 = vmatpush1.msra.mxu0 %v10366
    %10696 = vmatprep.subr.mxu0 0.0
    %10697 = vmatpush1.msra.mxu0 %v10367
    %10698 = vmatprep.subr.mxu0 0.0
    %10699 = vmatpush1.msra.mxu0 %v10368
    %10700 = vmatprep.subr.mxu0 0.0
    %10701 = vmatpush1.msra.mxu0 %v10369
    %10702 = vmatprep.subr.mxu0 0.0
    %10703 = vmatpush1.msra.mxu0 %v10370
    %10704 = vmatprep.subr.mxu0 0.0
    %10705 = vmatpush1.msra.mxu0 %v10371
    %10706 = vmatprep.subr.mxu0 0.0
    %10707 = vmatpush1.msra.mxu0 %v10372
    %10708 = vmatprep.subr.mxu0 0.0
    %10709 = vmatpush1.msra.mxu0 %v10373
    %10710 = vmatprep.subr.mxu0 0.0
    %10711 = vmatpush1.msra.mxu0 %v10374
    %10712 = vmatprep.subr.mxu0 0.0
    %10713 = vmatpush1.msra.mxu0 %v10375
    %10714 = vmatprep.subr.mxu0 0.0
    %10715 = vmatpush1.msra.mxu0 %v10376
    %10716 = vmatprep.subr.mxu0 0.0
    %10717 = vmatpush1.msra.mxu0 %v10377
    %10718 = vmatprep.subr.mxu0 0.0
    %10719 = vmatpush1.msra.mxu0 %v10378
    %10720 = vmatprep.subr.mxu0 0.0
    %10721 = vmatpush1.msra.mxu0 %v10379
    %10722 = vmatprep.subr.mxu0 0.0
    %10723 = vmatpush1.msra.mxu0 %v10380
    %10724 = vmatprep.subr.mxu0 0.0
    %10725 = vmatpush1.msra.mxu0 %v10381
    %10726 = vmatprep.subr.mxu0 0.0
    %10727 = vmatpush1.msra.mxu0 %v10382
    %10728 = vmatprep.subr.mxu0 0.0
    %10729 = vmatpush1.msra.mxu0 %v10383
    %10730 = vmatprep.subr.mxu0 0.0
    %10731 = vmatpush1.msra.mxu0 %v10384
    %10732 = vmatprep.subr.mxu0 0.0
    %10733 = vmatpush1.msra.mxu0 %v10385
    %10734 = vmatprep.subr.mxu0 0.0
    %10735 = vmatpush1.msra.mxu0 %v10386
    %10736 = vmatprep.subr.mxu0 0.0
    %10737 = vmatpush1.msra.mxu0 %v10387
    %10738 = vmatprep.subr.mxu0 0.0
    %10739 = vmatpush1.msra.mxu0 %v10388
    %10740 = vmatprep.mubr.f32.mxu0 %v9951
    %10741 = vmatmul.mubr.f32.gmra.mrb[0].mxu0 %v9948
    %v10742 = vpop.f32.mrb[0].mxu0
    %v10743 = vadd.f32 %v10673, %v10742
    %v10744 = vpop.f32.mrb[0].mxu0
    %10745 = vdwg.mxu0
    %10746 = vmatprep.subr.mxu0 0.0
    %10747 = vmatpush1.msra.mxu0 %v10389
    %10748 = vmatprep.subr.mxu0 0.0
    %10749 = vmatpush1.msra.mxu0 %v10390
    %10750 = vmatprep.subr.mxu0 0.0
    %10751 = vmatpush1.msra.mxu0 %v10391
    %10752 = vmatprep.subr.mxu0 0.0
    %10753 = vmatpush1.msra.mxu0 %v10392
    %10754 = vmatprep.subr.mxu0 0.0
    %10755 = vmatpush1.msra.mxu0 %v10393
    %10756 = vmatprep.subr.mxu0 0.0
    %10757 = vmatpush1.msra.mxu0 %v10394
    %10758 = vmatprep.subr.mxu0 0.0
    %10759 = vmatpush1.msra.mxu0 %v10395
    %10760 = vmatprep.subr.mxu0 0.0
    %10761 = vmatpush1.msra.mxu0 %v10396
    %10762 = vmatprep.subr.mxu0 0.0
    %10763 = vmatpush1.msra.mxu0 %v10397
    %10764 = vmatprep.subr.mxu0 0.0
    %10765 = vmatpush1.msra.mxu0 %v10398
    %10766 = vmatprep.subr.mxu0 0.0
    %10767 = vmatpush1.msra.mxu0 %v10399
    %10768 = vmatprep.subr.mxu0 0.0
    %10769 = vmatpush1.msra.mxu0 %v10400
    %10770 = vmatprep.subr.mxu0 0.0
    %10771 = vmatpush1.msra.mxu0 %v10401
    %10772 = vmatprep.subr.mxu0 0.0
    %10773 = vmatpush1.msra.mxu0 %v10402
    %10774 = vmatprep.subr.mxu0 0.0
    %10775 = vmatpush1.msra.mxu0 %v10403
    %10776 = vmatprep.subr.mxu0 0.0
    %10777 = vmatpush1.msra.mxu0 %v10404
    %10778 = vmatprep.subr.mxu0 0.0
    %10779 = vmatpush1.msra.mxu0 %v10405
    %10780 = vmatprep.subr.mxu0 0.0
    %10781 = vmatpush1.msra.mxu0 %v10406
    %10782 = vmatprep.subr.mxu0 0.0
    %10783 = vmatpush1.msra.mxu0 %v10407
    %10784 = vmatprep.subr.mxu0 0.0
    %10785 = vmatpush1.msra.mxu0 %v10408
    %10786 = vmatprep.subr.mxu0 0.0
    %10787 = vmatpush1.msra.mxu0 %v10409
    %10788 = vmatprep.subr.mxu0 0.0
    %10789 = vmatpush1.msra.mxu0 %v10410
    %10790 = vmatprep.subr.mxu0 0.0
    %10791 = vmatpush1.msra.mxu0 %v10411
    %10792 = vmatprep.subr.mxu0 0.0
    %10793 = vmatpush1.msra.mxu0 %v10412
    %10794 = vmatprep.subr.mxu0 0.0
    %10795 = vmatpush1.msra.mxu0 %v10413
    %10796 = vmatprep.subr.mxu0 0.0
    %10797 = vmatpush1.msra.mxu0 %v10414
    %10798 = vmatprep.subr.mxu0 0.0
    %10799 = vmatpush1.msra.mxu0 %v10415
    %10800 = vmatprep.subr.mxu0 0.0
    %10801 = vmatpush1.msra.mxu0 %v10416
    %10802 = vmatprep.subr.mxu0 0.0
    %10803 = vmatpush1.msra.mxu0 %v10417
    %10804 = vmatprep.subr.mxu0 0.0
    %10805 = vmatpush1.msra.mxu0 %v10418
    %10806 = vmatprep.subr.mxu0 0.0
    %10807 = vmatpush1.msra.mxu0 %v10419
    %10808 = vmatprep.subr.mxu0 0.0
    %10809 = vmatpush1.msra.mxu0 %v10420
    %10810 = vmatprep.mubr.f32.mxu0 %v10237
    %10811 = vmatmul.mubr.f32.gmra.mrb[0].mxu0 %v10234
    %v10812 = vpop.f32.mrb[0].mxu0
    %v10813 = vadd.f32 %v10743, %v10812
    %v10814 = vpop.f32.mrb[0].mxu0
    %10815 = vdwg.mxu0
    %10816 = vmatprep.subr.mxu0 0.0
    %10817 = vmatpush1.msra.mxu0 %v10421
    %10818 = vmatprep.subr.mxu0 0.0
    %10819 = vmatpush1.msra.mxu0 %v10422
    %10820 = vmatprep.subr.mxu0 0.0
    %10821 = vmatpush1.msra.mxu0 %v10423
    %10822 = vmatprep.subr.mxu0 0.0
    %10823 = vmatpush1.msra.mxu0 %v10424
    %10824 = vmatprep.subr.mxu0 0.0
    %10825 = vmatpush1.msra.mxu0 %v10425
    %10826 = vmatprep.subr.mxu0 0.0
    %10827 = vmatpush1.msra.mxu0 %v10426
    %10828 = vmatprep.subr.mxu0 0.0
    %10829 = vmatpush1.msra.mxu0 %v10427
    %10830 = vmatprep.subr.mxu0 0.0
    %10831 = vmatpush1.msra.mxu0 %v10428
    %10832 = vmatprep.subr.mxu0 0.0
    %10833 = vmatpush1.msra.mxu0 %v10429
    %10834 = vmatprep.subr.mxu0 0.0
    %10835 = vmatpush1.msra.mxu0 %v10430
    %10836 = vmatprep.subr.mxu0 0.0
    %10837 = vmatpush1.msra.mxu0 %v10431
    %10838 = vmatprep.subr.mxu0 0.0
    %10839 = vmatpush1.msra.mxu0 %v10432
    %10840 = vmatprep.subr.mxu0 0.0
    %10841 = vmatpush1.msra.mxu0 %v10433
    %10842 = vmatprep.subr.mxu0 0.0
    %10843 = vmatpush1.msra.mxu0 %v10434
    %10844 = vmatprep.subr.mxu0 0.0
    %10845 = vmatpush1.msra.mxu0 %v10435
    %10846 = vmatprep.subr.mxu0 0.0
    %10847 = vmatpush1.msra.mxu0 %v10436
    %10848 = vmatprep.subr.mxu0 0.0
    %10849 = vmatpush1.msra.mxu0 %v10437
    %10850 = vmatprep.subr.mxu0 0.0
    %10851 = vmatpush1.msra.mxu0 %v10438
    %10852 = vmatprep.subr.mxu0 0.0
    %10853 = vmatpush1.msra.mxu0 %v10439
    %10854 = vmatprep.subr.mxu0 0.0
    %10855 = vmatpush1.msra.mxu0 %v10440
    %10856 = vmatprep.subr.mxu0 0.0
    %10857 = vmatpush1.msra.mxu0 %v10441
    %10858 = vmatprep.subr.mxu0 0.0
    %10859 = vmatpush1.msra.mxu0 %v10442
    %10860 = vmatprep.subr.mxu0 0.0
    %10861 = vmatpush1.msra.mxu0 %v10443
    %10862 = vmatprep.subr.mxu0 0.0
    %10863 = vmatpush1.msra.mxu0 %v10444
    %10864 = vmatprep.subr.mxu0 0.0
    %10865 = vmatpush1.msra.mxu0 %v10445
    %10866 = vmatprep.subr.mxu0 0.0
    %10867 = vmatpush1.msra.mxu0 %v10446
    %10868 = vmatprep.subr.mxu0 0.0
    %10869 = vmatpush1.msra.mxu0 %v10447
    %10870 = vmatprep.subr.mxu0 0.0
    %10871 = vmatpush1.msra.mxu0 %v10448
    %10872 = vmatprep.subr.mxu0 0.0
    %10873 = vmatpush1.msra.mxu0 %v10449
    %10874 = vmatprep.subr.mxu0 0.0
    %10875 = vmatpush1.msra.mxu0 %v10450
    %10876 = vmatprep.subr.mxu0 0.0
    %10877 = vmatpush1.msra.mxu0 %v10451
    %10878 = vmatprep.subr.mxu0 0.0
    %10879 = vmatpush1.msra.mxu0 %v10452
    %10880 = vmatprep.mubr.f32.mxu0 %v10243
    %10881 = vmatmul.mubr.f32.gmra.mrb[0].mxu0 %v10240
    %v10882 = vpop.f32.mrb[0].mxu0
    %v10883 = vadd.f32 %v10813, %v10882
    %v10884 = vpop.f32.mrb[0].mxu0
    %10885 = vdwg.mxu0
    %10886 = vmatprep.subr.mxu0 0.0
    %10887 = vmatpush1.msra.mxu0 %v10453
    %10888 = vmatprep.subr.mxu0 0.0
    %10889 = vmatpush1.msra.mxu0 %v10454
    %10890 = vmatprep.subr.mxu0 0.0
    %10891 = vmatpush1.msra.mxu0 %v10455
    %10892 = vmatprep.subr.mxu0 0.0
    %10893 = vmatpush1.msra.mxu0 %v10456
    %10894 = vmatprep.subr.mxu0 0.0
    %10895 = vmatpush1.msra.mxu0 0.0
    %10896 = vmatprep.subr.mxu0 0.0
    %10897 = vmatpush1.msra.mxu0 0.0
    %10898 = vmatprep.subr.mxu0 0.0
    %10899 = vmatpush1.msra.mxu0 0.0
    %10900 = vmatprep.subr.mxu0 0.0
    %10901 = vmatpush1.msra.mxu0 0.0
    %10902 = vmatprep.subr.mxu0 0.0
    %10903 = vmatpush1.msra.mxu0 0.0
    %10904 = vmatprep.subr.mxu0 0.0
    %10905 = vmatpush1.msra.mxu0 0.0
    %10906 = vmatprep.subr.mxu0 0.0
    %10907 = vmatpush1.msra.mxu0 0.0
    %10908 = vmatprep.subr.mxu0 0.0
    %10909 = vmatpush1.msra.mxu0 0.0
    %10910 = vmatprep.subr.mxu0 0.0
    %10911 = vmatpush1.msra.mxu0 0.0
    %10912 = vmatprep.subr.mxu0 0.0
    %10913 = vmatpush1.msra.mxu0 0.0
    %10914 = vmatprep.subr.mxu0 0.0
    %10915 = vmatpush1.msra.mxu0 0.0
    %10916 = vmatprep.subr.mxu0 0.0
    %10917 = vmatpush1.msra.mxu0 0.0
    %10918 = vmatprep.subr.mxu0 0.0
    %10919 = vmatpush1.msra.mxu0 0.0
    %10920 = vmatprep.subr.mxu0 0.0
    %10921 = vmatpush1.msra.mxu0 0.0
    %10922 = vmatprep.subr.mxu0 0.0
    %10923 = vmatpush1.msra.mxu0 0.0
    %10924 = vmatprep.subr.mxu0 0.0
    %10925 = vmatpush1.msra.mxu0 0.0
    %10926 = vmatprep.subr.mxu0 0.0
    %10927 = vmatpush1.msra.mxu0 0.0
    %10928 = vmatprep.subr.mxu0 0.0
    %10929 = vmatpush1.msra.mxu0 0.0
    %10930 = vmatprep.subr.mxu0 0.0
    %10931 = vmatpush1.msra.mxu0 0.0
    %10932 = vmatprep.subr.mxu0 0.0
    %10933 = vmatpush1.msra.mxu0 0.0
    %10934 = vmatprep.subr.mxu0 0.0
    %10935 = vmatpush1.msra.mxu0 0.0
    %10936 = vmatprep.subr.mxu0 0.0
    %10937 = vmatpush1.msra.mxu0 0.0
    %10938 = vmatprep.subr.mxu0 0.0
    %10939 = vmatpush1.msra.mxu0 0.0
    %10940 = vmatprep.subr.mxu0 0.0
    %10941 = vmatpush1.msra.mxu0 0.0
    %10942 = vmatprep.subr.mxu0 0.0
    %10943 = vmatpush1.msra.mxu0 0.0
    %10944 = vmatprep.subr.mxu0 0.0
    %10945 = vmatpush1.msra.mxu0 0.0
    %10946 = vmatprep.subr.mxu0 0.0
    %10947 = vmatpush1.msra.mxu0 0.0
    %10948 = vmatprep.subr.mxu0 0.0
    %10949 = vmatpush1.msra.mxu0 0.0
    %10950 = vmatprep.mubr.f32.mxu0 0.0
    %10951 = vmatmul.mubr.f32.gmra.mrb[0].mxu0 %v10464
    %v10952 = vpop.f32.mrb[0].mxu0
    %v10953 = vadd.f32 %v10883, %v10952
    %v10954 = vpop.f32.mrb[0].mxu0
    %10955 = vdwg.mxu0
    %vm10956 = vcmask 74752
    %10957 = vst.msk [vmem:[#allocation6] sm:$0x3] %vm10956, %v10953
    // Predicated region
    $region30: #{convnet_forward.1} parent=1 // pred_check
      _
    $region31: #{convnet_forward.1} parent=1 // pred_check_branch
      %10959 = sbr.rel (0) target = $region33
    $region32: #{convnet_forward.1} parent=1 // pred_region
      %s10961 = ssub.s32 32, 32
      %10962 = vsyncadd [#allocation7], %s10961
      %s10964 = sshll.u32 [#allocation6], 4
      %s10965 = int_to_ptr.vmem [resolvable:$true] %s10964
      %10967 = dma.vmem_to_hbm [thread:$0]  %s10965, 32, %s7, [#allocation7]
    $region33: #{convnet_forward.1} parent=1 // pred_fallthru
      _
    // Predicated region
    $region34: #{convnet_forward.1} parent=1 // pred_check
      _
    $region35: #{convnet_forward.1} parent=1 // pred_check_branch
      %10969 = sbr.rel (0) target = $region37
    $region36: #{convnet_forward.1} parent=1 // pred_region
      %10970 = dma.done [#allocation7], 32
    $region37: #{convnet_forward.1} parent=1 // pred_fallthru
      _
    %10971 = vsyncpa [#allocation7], 1

</llo_original>
